<compile_context>
chip_gen: v7x
topology: tpu7x:2x2x1
jax: 0.10.0
libtpu: 0.0.40
codegen_flags: <defaults>
</compile_context>

<pallas_src>
import functools

import jax
import jax.numpy as jnp
from jax.experimental import pallas as pl
from jax.experimental.pallas import tpu as pltpu

FEAT = 768      # 6 * 128, lane-aligned
OUT_PAD = 128   # lane-dense padding of the 1-wide output layer
MAX_TM = 512    # max batch-tile rows (fits VMEM on all generations)


def _round_up(n, m):
    return ((n + m - 1) // m) * m


def _choose_tm(batch):
    """Pick a balanced batch tile.

    Guarantees:
      * tm is a multiple of 8 (sublane constraint),
      * the grid has >= 2 steps whenever batch > 8 (so the "parallel" batch
        axis can be sharded across both v7x TensorCores),
      * padding waste is bounded by < tm per call (no B=520 -> 1024 blowups).
    """
    b8 = _round_up(max(batch, 1), 8)
    if b8 <= 8:
        return 8
    n_tiles = max(2, pl.cdiv(b8, MAX_TM))
    return _round_up(pl.cdiv(b8, n_tiles), 8)


def _vmem_limit_bytes(tm, weight_bytes):
    """Usage-derived VMEM budget (not 80% of the chip)."""
    w = 4 * FEAT * FEAT * weight_bytes + FEAT * OUT_PAD * weight_bytes  # weights
    b = 4 * FEAT * 4 + OUT_PAD * 4                                      # biases (f32)
    x_io = 2 * tm * FEAT * 4        # double-buffered f32 input tiles
    o_io = 2 * tm * OUT_PAD * 4     # double-buffered f32 output tiles
    act = 2 * tm * FEAT * 4         # live intermediate activations (headroom)
    total = w + b + x_io + o_io + act
    # ~50% margin + 4MB slack, capped well under v7x's 64 MiB/TC.
    return min(int(total * 1.5) + (4 << 20), 56 << 20)


def _mlp_kernel(x_ref,
                w1_ref, b1_ref,
                w2_ref, b2_ref,
                w3_ref, b3_ref,
                w4_ref, b4_ref,
                w5_ref, b5_ref,
                o_ref):
    """Fused 5-layer MLP on one batch tile. All weights resident in VMEM."""
    h = x_ref[...]  # (tm, 768) f32
    for w_ref, b_ref in ((w1_ref, b1_ref), (w2_ref, b2_ref),
                         (w3_ref, b3_ref), (w4_ref, b4_ref)):
        w = w_ref[...]
        # MXU: LHS cast to the weight dtype (bf16 by default), f32 accumulate.
        h = jnp.dot(h.astype(w.dtype), w, preferred_element_type=jnp.float32)
        h = jnp.maximum(h + b_ref[...], 0.0)  # bias + ReLU; Dropout == identity (eval)
    w5 = w5_ref[...]  # (768, 128), only column 0 is non-zero
    o_ref[...] = jnp.dot(h.astype(w5.dtype), w5,
                         preferred_element_type=jnp.float32) + b5_ref[...]


@functools.partial(jax.jit, static_argnames=("tm", "weight_dtype"))
def _forward(x, params, *, tm, weight_dtype):
    B, F = x.shape
    assert F == FEAT
    wdt = jnp.dtype(weight_dtype)

    # Pad batch so it is divisible by the tile size (waste < tm rows).
    B_pad = _round_up(B, tm)
    if B_pad != B:
        x = jnp.pad(x, ((0, B_pad - B), (0, 0)))

    ws = [params[f"w{i}"].astype(wdt) for i in range(1, 5)]
    bs = [params[f"b{i}"].astype(jnp.float32) for i in range(1, 5)]
    # Lane-dense final layer: (768,1) -> (768,128), zeros in cols 1..127.
    w5 = jnp.pad(params["w5"].astype(wdt), ((0, 0), (0, OUT_PAD - 1)))
    # Output bias folded in-kernel; pad (1,1) -> (1,128).
    b5 = jnp.pad(params["b5"].astype(jnp.float32), ((0, 0), (0, OUT_PAD - 1)))

    # Weights/biases never change across the grid -> single-buffer them.
    w_spec = pl.BlockSpec((FEAT, FEAT), lambda i: (0, 0),
                          pipeline_mode=pl.Buffered(1))
    b_spec = pl.BlockSpec((1, FEAT), lambda i: (0, 0),
                          pipeline_mode=pl.Buffered(1))
    w5_spec = pl.BlockSpec((FEAT, OUT_PAD), lambda i: (0, 0),
                           pipeline_mode=pl.Buffered(1))
    b5_spec = pl.BlockSpec((1, OUT_PAD), lambda i: (0, 0),
                           pipeline_mode=pl.Buffered(1))
    x_spec = pl.BlockSpec((tm, FEAT), lambda i: (i, 0))
    out_spec = pl.BlockSpec((tm, OUT_PAD), lambda i: (i, 0))

    in_specs = [
        x_spec,
        w_spec, b_spec,   # layer1
        w_spec, b_spec,   # layer2
        w_spec, b_spec,   # layer3
        w_spec, b_spec,   # layer4
        w5_spec, b5_spec, # output layer (lane-padded)
    ]

    y = pl.pallas_call(
        _mlp_kernel,
        out_shape=jax.ShapeDtypeStruct((B_pad, OUT_PAD), jnp.float32),
        grid_spec=pltpu.PrefetchScalarGridSpec(
            num_scalar_prefetch=0,
            grid=(B_pad // tm,),
            in_specs=in_specs,
            out_specs=out_spec,
        ),
        compiler_params=pltpu.CompilerParams(
            dimension_semantics=("parallel",),   # megacore-shard batch tiles
            vmem_limit_bytes=_vmem_limit_bytes(tm, wdt.itemsize),
        ),
    )(x, ws[0], bs[0], ws[1], bs[1], ws[2], bs[2], ws[3], bs[3], w5, b5)

    # b5 already added in-kernel; epilogue is a pure slice.
    return y[:B, 0:1]


def chessmait_mlp6_forward(x, params, *, tm=None, weight_dtype="bfloat16"):
    """x: (B, 768) float32.  params: dict of w1..w5, b1..b5.  Returns (B, 1).

    Default compute path is bf16 weights / bf16 MXU operands with f32
    accumulation (matches reference_forward(..., "bfloat16")); pass
    weight_dtype="float32" for exact-f32 numerics.
    """
    B = x.shape[0]
    if tm is None:
        tm = _choose_tm(B)
    return _forward(x, params, tm=tm, weight_dtype=weight_dtype)


def init_params(key):
    """Deterministic init mimicking nn.Linear's U(-1/sqrt(in), 1/sqrt(in)).

    Weights stored as (in_features, out_features) -- transpose of nn.Linear --
    so the kernel computes h @ W + b directly on the MXU.
    """
    params = {}
    dims = [(FEAT, FEAT)] * 4 + [(FEAT, 1)]
    for idx, (fan_in, fan_out) in enumerate(dims, start=1):
        key, kw, kb = jax.random.split(key, 3)
        bound = 1.0 / jnp.sqrt(float(fan_in))
        params[f"w{idx}"] = jax.random.uniform(
            kw, (fan_in, fan_out), jnp.float32, minval=-bound, maxval=bound)
        params[f"b{idx}"] = jax.random.uniform(
            kb, (1, fan_out), jnp.float32, minval=-bound, maxval=bound)
    return params


def reference_forward(x, params, weight_dtype="float32"):
    """Plain-JAX reference (same dtype semantics as the kernel)."""
    wdt = jnp.dtype(weight_dtype)
    h = x
    for idx in range(1, 5):
        w = params[f"w{idx}"].astype(wdt)
        h = jnp.dot(h.astype(wdt), w, preferred_element_type=jnp.float32)
        h = jnp.maximum(h + params[f"b{idx}"], 0.0)
    w5 = params["w5"].astype(wdt)
    out = jnp.dot(h.astype(wdt), w5, preferred_element_type=jnp.float32)
    return out + params["b5"]


if __name__ == "__main__":
    key = jax.random.PRNGKey(0)
    key, kx = jax.random.split(key)

    B = 16  # small test batch (any B works; wrapper pads to the tile size)
    x = jax.random.normal(kx, (B, FEAT), dtype=jnp.float32)
    params = init_params(key)

    # Tiling sanity: default heuristic must give a >=2-step grid for B=16
    # (so the "parallel" axis can use both v7x TensorCores).
    tm_default = _choose_tm(B)
    assert _round_up(B, tm_default) // tm_default >= 2

    # --- default bf16 path (MXU bf16 operands, f32 accumulation) ---
    out_bf16 = jax.block_until_ready(chessmait_mlp6_forward(x, params))
    ref_bf16 = reference_forward(x, params, weight_dtype="bfloat16")
    assert out_bf16.shape == (B, 1)
    assert jnp.allclose(out_bf16, ref_bf16, atol=1e-2, rtol=1e-2)

    # --- exact-f32 path, tight tolerance ---
    out_f32 = jax.block_until_ready(
        chessmait_mlp6_forward(x, params, weight_dtype="float32"))
    ref_f32 = reference_forward(x, params, weight_dtype="float32")
    assert out_f32.shape == (B, 1)
    assert jnp.allclose(out_f32, ref_f32, atol=1e-4, rtol=1e-4)

    # bf16 vs pure-f32 baseline should agree at ~1e-2 level (documented drift).
    assert jnp.allclose(out_bf16, ref_f32, atol=5e-2, rtol=5e-2)

    # --- ragged batch (exercises wrapper-side padding + balanced tiling) ---
    x_odd = x[:10]
    out_odd = jax.block_until_ready(chessmait_mlp6_forward(x_odd, params))
    assert out_odd.shape == (10, 1)
    assert jnp.allclose(out_odd, ref_bf16[:10], atol=1e-2, rtol=1e-2)

    print("KERNEL_OK")
</pallas_src>

<mosaic_0001>
module attributes {stable_mosaic.version = 11 : i64} {
  func.func @_mlp_kernel(%arg0: i32, %arg1: memref<8x768xf32, #tpu.memory_space<vmem>>, %arg2: memref<768x768xbf16, #tpu.memory_space<vmem>>, %arg3: memref<1x768xf32, #tpu.memory_space<vmem>>, %arg4: memref<768x768xbf16, #tpu.memory_space<vmem>>, %arg5: memref<1x768xf32, #tpu.memory_space<vmem>>, %arg6: memref<768x768xbf16, #tpu.memory_space<vmem>>, %arg7: memref<1x768xf32, #tpu.memory_space<vmem>>, %arg8: memref<768x768xbf16, #tpu.memory_space<vmem>>, %arg9: memref<1x768xf32, #tpu.memory_space<vmem>>, %arg10: memref<768x128xbf16, #tpu.memory_space<vmem>>, %arg11: memref<1x128xf32, #tpu.memory_space<vmem>>, %arg12: memref<8x128xf32, #tpu.memory_space<vmem>>) attributes {dimension_semantics = [#tpu.dimension_semantics<parallel>], iteration_bounds = array<i64: 2>, scalar_prefetch = 0 : i64, scratch_operands = 0 : i64, tpu.core_type = #tpu.core_type<tc>, window_params = [{transform_indices = @transform_0, window_bounds = array<i64: 8, 768>}, {pipeline_mode = #tpu.pipeline_mode<synchronous>, transform_indices = @transform_1, window_bounds = array<i64: 768, 768>}, {pipeline_mode = #tpu.pipeline_mode<synchronous>, transform_indices = @transform_2, window_bounds = array<i64: 1, 768>}, {pipeline_mode = #tpu.pipeline_mode<synchronous>, transform_indices = @transform_3, window_bounds = array<i64: 768, 768>}, {pipeline_mode = #tpu.pipeline_mode<synchronous>, transform_indices = @transform_4, window_bounds = array<i64: 1, 768>}, {pipeline_mode = #tpu.pipeline_mode<synchronous>, transform_indices = @transform_5, window_bounds = array<i64: 768, 768>}, {pipeline_mode = #tpu.pipeline_mode<synchronous>, transform_indices = @transform_6, window_bounds = array<i64: 1, 768>}, {pipeline_mode = #tpu.pipeline_mode<synchronous>, transform_indices = @transform_7, window_bounds = array<i64: 768, 768>}, {pipeline_mode = #tpu.pipeline_mode<synchronous>, transform_indices = @transform_8, window_bounds = array<i64: 1, 768>}, {pipeline_mode = #tpu.pipeline_mode<synchronous>, transform_indices = @transform_9, window_bounds = array<i64: 768, 128>}, {pipeline_mode = #tpu.pipeline_mode<synchronous>, transform_indices = @transform_10, window_bounds = array<i64: 1, 128>}, {transform_indices = @transform_11, window_bounds = array<i64: 8, 128>}]} {
    %c0 = arith.constant 0 : index
    %c0_0 = arith.constant 0 : index
    %0 = vector.load %arg1[%c0, %c0_0] : memref<8x768xf32, #tpu.memory_space<vmem>>, vector<8x768xf32>
    %c0_1 = arith.constant 0 : index
    %c0_2 = arith.constant 0 : index
    %1 = vector.load %arg2[%c0_1, %c0_2] : memref<768x768xbf16, #tpu.memory_space<vmem>>, vector<768x768xbf16>
    %2 = arith.truncf %0 : vector<8x768xf32> to vector<8x768xbf16>
    %cst = arith.constant dense<0.000000e+00> : vector<8x768xf32>
    %3 = tpu.matmul %2, %1, %cst {dimension_numbers = #tpu.dot_dimension_numbers<[1], [0], [0], [1], [0, 0, 1, 1], [], []>} : vector<8x768xbf16>, vector<768x768xbf16>, vector<8x768xf32> -> vector<8x768xf32>
    %c0_3 = arith.constant 0 : index
    %c0_4 = arith.constant 0 : index
    %4 = vector.load %arg3[%c0_3, %c0_4] : memref<1x768xf32, #tpu.memory_space<vmem>>, vector<1x768xf32>
    %5 = vector.broadcast %4 : vector<1x768xf32> to vector<8x768xf32>
    %6 = arith.addf %3, %5 : vector<8x768xf32>
    %cst_5 = arith.constant 0.000000e+00 : f32
    %7 = vector.broadcast %cst_5 : f32 to vector<8x768xf32>
    %8 = arith.maximumf %6, %7 : vector<8x768xf32>
    %c0_6 = arith.constant 0 : index
    %c0_7 = arith.constant 0 : index
    %9 = vector.load %arg4[%c0_6, %c0_7] : memref<768x768xbf16, #tpu.memory_space<vmem>>, vector<768x768xbf16>
    %10 = arith.truncf %8 : vector<8x768xf32> to vector<8x768xbf16>
    %cst_8 = arith.constant dense<0.000000e+00> : vector<8x768xf32>
    %11 = tpu.matmul %10, %9, %cst_8 {dimension_numbers = #tpu.dot_dimension_numbers<[1], [0], [0], [1], [0, 0, 1, 1], [], []>} : vector<8x768xbf16>, vector<768x768xbf16>, vector<8x768xf32> -> vector<8x768xf32>
    %c0_9 = arith.constant 0 : index
    %c0_10 = arith.constant 0 : index
    %12 = vector.load %arg5[%c0_9, %c0_10] : memref<1x768xf32, #tpu.memory_space<vmem>>, vector<1x768xf32>
    %13 = vector.broadcast %12 : vector<1x768xf32> to vector<8x768xf32>
    %14 = arith.addf %11, %13 : vector<8x768xf32>
    %cst_11 = arith.constant 0.000000e+00 : f32
    %15 = vector.broadcast %cst_11 : f32 to vector<8x768xf32>
    %16 = arith.maximumf %14, %15 : vector<8x768xf32>
    %c0_12 = arith.constant 0 : index
    %c0_13 = arith.constant 0 : index
    %17 = vector.load %arg6[%c0_12, %c0_13] : memref<768x768xbf16, #tpu.memory_space<vmem>>, vector<768x768xbf16>
    %18 = arith.truncf %16 : vector<8x768xf32> to vector<8x768xbf16>
    %cst_14 = arith.constant dense<0.000000e+00> : vector<8x768xf32>
    %19 = tpu.matmul %18, %17, %cst_14 {dimension_numbers = #tpu.dot_dimension_numbers<[1], [0], [0], [1], [0, 0, 1, 1], [], []>} : vector<8x768xbf16>, vector<768x768xbf16>, vector<8x768xf32> -> vector<8x768xf32>
    %c0_15 = arith.constant 0 : index
    %c0_16 = arith.constant 0 : index
    %20 = vector.load %arg7[%c0_15, %c0_16] : memref<1x768xf32, #tpu.memory_space<vmem>>, vector<1x768xf32>
    %21 = vector.broadcast %20 : vector<1x768xf32> to vector<8x768xf32>
    %22 = arith.addf %19, %21 : vector<8x768xf32>
    %cst_17 = arith.constant 0.000000e+00 : f32
    %23 = vector.broadcast %cst_17 : f32 to vector<8x768xf32>
    %24 = arith.maximumf %22, %23 : vector<8x768xf32>
    %c0_18 = arith.constant 0 : index
    %c0_19 = arith.constant 0 : index
    %25 = vector.load %arg8[%c0_18, %c0_19] : memref<768x768xbf16, #tpu.memory_space<vmem>>, vector<768x768xbf16>
    %26 = arith.truncf %24 : vector<8x768xf32> to vector<8x768xbf16>
    %cst_20 = arith.constant dense<0.000000e+00> : vector<8x768xf32>
    %27 = tpu.matmul %26, %25, %cst_20 {dimension_numbers = #tpu.dot_dimension_numbers<[1], [0], [0], [1], [0, 0, 1, 1], [], []>} : vector<8x768xbf16>, vector<768x768xbf16>, vector<8x768xf32> -> vector<8x768xf32>
    %c0_21 = arith.constant 0 : index
    %c0_22 = arith.constant 0 : index
    %28 = vector.load %arg9[%c0_21, %c0_22] : memref<1x768xf32, #tpu.memory_space<vmem>>, vector<1x768xf32>
    %29 = vector.broadcast %28 : vector<1x768xf32> to vector<8x768xf32>
    %30 = arith.addf %27, %29 : vector<8x768xf32>
    %cst_23 = arith.constant 0.000000e+00 : f32
    %31 = vector.broadcast %cst_23 : f32 to vector<8x768xf32>
    %32 = arith.maximumf %30, %31 : vector<8x768xf32>
    %c0_24 = arith.constant 0 : index
    %c0_25 = arith.constant 0 : index
    %33 = vector.load %arg10[%c0_24, %c0_25] : memref<768x128xbf16, #tpu.memory_space<vmem>>, vector<768x128xbf16>
    %34 = arith.truncf %32 : vector<8x768xf32> to vector<8x768xbf16>
    %cst_26 = arith.constant dense<0.000000e+00> : vector<8x128xf32>
    %35 = tpu.matmul %34, %33, %cst_26 {dimension_numbers = #tpu.dot_dimension_numbers<[1], [0], [0], [1], [0, 0, 1, 1], [], []>} : vector<8x768xbf16>, vector<768x128xbf16>, vector<8x128xf32> -> vector<8x128xf32>
    %c0_27 = arith.constant 0 : index
    %c0_28 = arith.constant 0 : index
    %36 = vector.load %arg11[%c0_27, %c0_28] : memref<1x128xf32, #tpu.memory_space<vmem>>, vector<1x128xf32>
    %37 = vector.broadcast %36 : vector<1x128xf32> to vector<8x128xf32>
    %38 = arith.addf %35, %37 : vector<8x128xf32>
    %c0_29 = arith.constant 0 : index
    %c0_30 = arith.constant 0 : index
    %39 = vector.load %arg12[%c0_29, %c0_30] : memref<8x128xf32, #tpu.memory_space<vmem>>, vector<8x128xf32>
    tpu.vector_store %arg12[%c0_29, %c0_30], %38 {strides = array<i32>} : memref<8x128xf32, #tpu.memory_space<vmem>>, vector<8x128xf32>,
    return
  }
  func.func @transform_0(%arg0: i32) -> (i32, i32) {
    %c0_i32 = arith.constant 0 : i32
    %c0_i32_0 = arith.constant 0 : i32
    return %arg0, %c0_i32 : i32, i32
  }
  func.func @transform_1(%arg0: i32) -> (i32, i32) {
    %c0_i32 = arith.constant 0 : i32
    %c0_i32_0 = arith.constant 0 : i32
    %c0_i32_1 = arith.constant 0 : i32
    return %c0_i32, %c0_i32_0 : i32, i32
  }
  func.func @transform_2(%arg0: i32) -> (i32, i32) {
    %c0_i32 = arith.constant 0 : i32
    %c0_i32_0 = arith.constant 0 : i32
    %c0_i32_1 = arith.constant 0 : i32
    return %c0_i32, %c0_i32_0 : i32, i32
  }
  func.func @transform_3(%arg0: i32) -> (i32, i32) {
    %c0_i32 = arith.constant 0 : i32
    %c0_i32_0 = arith.constant 0 : i32
    %c0_i32_1 = arith.constant 0 : i32
    return %c0_i32, %c0_i32_0 : i32, i32
  }
  func.func @transform_4(%arg0: i32) -> (i32, i32) {
    %c0_i32 = arith.constant 0 : i32
    %c0_i32_0 = arith.constant 0 : i32
    %c0_i32_1 = arith.constant 0 : i32
    return %c0_i32, %c0_i32_0 : i32, i32
  }
  func.func @transform_5(%arg0: i32) -> (i32, i32) {
    %c0_i32 = arith.constant 0 : i32
    %c0_i32_0 = arith.constant 0 : i32
    %c0_i32_1 = arith.constant 0 : i32
    return %c0_i32, %c0_i32_0 : i32, i32
  }
  func.func @transform_6(%arg0: i32) -> (i32, i32) {
    %c0_i32 = arith.constant 0 : i32
    %c0_i32_0 = arith.constant 0 : i32
    %c0_i32_1 = arith.constant 0 : i32
    return %c0_i32, %c0_i32_0 : i32, i32
  }
  func.func @transform_7(%arg0: i32) -> (i32, i32) {
    %c0_i32 = arith.constant 0 : i32
    %c0_i32_0 = arith.constant 0 : i32
    %c0_i32_1 = arith.constant 0 : i32
    return %c0_i32, %c0_i32_0 : i32, i32
  }
  func.func @transform_8(%arg0: i32) -> (i32, i32) {
    %c0_i32 = arith.constant 0 : i32
    %c0_i32_0 = arith.constant 0 : i32
    %c0_i32_1 = arith.constant 0 : i32
    return %c0_i32, %c0_i32_0 : i32, i32
  }
  func.func @transform_9(%arg0: i32) -> (i32, i32) {
    %c0_i32 = arith.constant 0 : i32
    %c0_i32_0 = arith.constant 0 : i32
    %c0_i32_1 = arith.constant 0 : i32
    return %c0_i32, %c0_i32_0 : i32, i32
  }
  func.func @transform_10(%arg0: i32) -> (i32, i32) {
    %c0_i32 = arith.constant 0 : i32
    %c0_i32_0 = arith.constant 0 : i32
    %c0_i32_1 = arith.constant 0 : i32
    return %c0_i32, %c0_i32_0 : i32, i32
  }
  func.func @transform_11(%arg0: i32) -> (i32, i32) {
    %c0_i32 = arith.constant 0 : i32
    %c0_i32_0 = arith.constant 0 : i32
    return %arg0, %c0_i32 : i32, i32
  }
}

</mosaic_0001>

<llo_original>
// kernel: _forward.1
$region0: #{_forward.1}
  #allocation0 [shape = 'u32[]', space=smem, size = 0x4, offset = 0x4, fixed_abs, tag = 'smem constant byte address 0x4 - core index']
  #allocation1 [shape = 'u32[144,128]{1,0:T(1,128)}', space=vmem, size = 0x12000, scoped, tag = 'internal scratch']
  %s0 = inlined_call_operand.vmem [shape: f32[16,768], index: 0, kind: input, shape index: {}]
  %s1 = inlined_call_operand.vmem [shape: bf16[768,768], index: 1, kind: input, shape index: {}]
  %s2 = inlined_call_operand.vmem [shape: f32[1,768], index: 2, kind: input, shape index: {}]
  %s3 = inlined_call_operand.vmem [shape: bf16[768,768], index: 3, kind: input, shape index: {}]
  %s4 = inlined_call_operand.vmem [shape: f32[1,768], index: 4, kind: input, shape index: {}]
  %s5 = inlined_call_operand.vmem [shape: bf16[768,768], index: 5, kind: input, shape index: {}]
  %s6 = inlined_call_operand.vmem [shape: f32[1,768], index: 6, kind: input, shape index: {}]
  %s7 = inlined_call_operand.vmem [shape: bf16[768,768], index: 7, kind: input, shape index: {}]
  %s8 = inlined_call_operand.vmem [shape: f32[1,768], index: 8, kind: input, shape index: {}]
  %s9 = inlined_call_operand.vmem [shape: bf16[768,128], index: 9, kind: input, shape index: {}]
  %s10 = inlined_call_operand.vmem [shape: f32[1,128], index: 10, kind: input, shape index: {}]
  %s11 = inlined_call_operand.vmem [shape: f32[16,128], index: 11, kind: output, shape index: {}]
  %s12 = sld [smem:[#allocation0]]
  $region77: #{_forward.1} parent=0
    _
  %s14 = ssub.s32 1, %s12
  %s15 = scalar_select 0, %s14, %s12
  loop: start=0, step=1, limit=4
  $region2: #{_forward.1} parent=0 // loop_pre_header
    _
  $region3: #{_forward.1} parent=0 // loop_header
    %s17 = sphi 0, %s21
    %p18 = scmp.ge.s32.totalorder %s17, 4
    %s27 = sphi 0, %s29
    %s30 = sphi 0, %s27
    %s31 = sphi 0, %s30
    %s47 = sphi 0, %s31
    %s51 = sphi 0, %s51
    %s53 = sphi 0, %s51
    %s54 = sphi 0, %s53
    %s68 = sphi 0, %s54
    %s72 = sphi 0, %s72
    %s74 = sphi 0, %s72
    %s75 = sphi 0, %s74
    %s89 = sphi 0, %s75
    %s93 = sphi 0, %s93
    %s95 = sphi 0, %s93
    %s96 = sphi 0, %s95
    %s110 = sphi 0, %s96
    %s114 = sphi 0, %s114
    %s116 = sphi 0, %s114
    %s117 = sphi 0, %s116
    %s131 = sphi 0, %s117
    %s135 = sphi 0, %s135
    %s137 = sphi 0, %s135
    %s138 = sphi 0, %s137
    %s152 = sphi 0, %s138
    %s156 = sphi 0, %s156
    %s158 = sphi 0, %s156
    %s159 = sphi 0, %s158
    %s173 = sphi 0, %s159
    %s177 = sphi 0, %s177
    %s179 = sphi 0, %s177
    %s180 = sphi 0, %s179
    %s194 = sphi 0, %s180
    %s198 = sphi 0, %s198
    %s200 = sphi 0, %s198
    %s201 = sphi 0, %s200
    %s215 = sphi 0, %s201
    %s219 = sphi 0, %s219
    %s221 = sphi 0, %s219
    %s222 = sphi 0, %s221
    %s236 = sphi 0, %s222
    %s240 = sphi 0, %s240
    %s242 = sphi 0, %s240
    %s243 = sphi 0, %s242
    %s257 = sphi 0, %s243
    %s263 = sphi 0, %s265
    %s266 = sphi 0, %s263
    %s267 = sphi 0, %s266
    %s283 = sphi 0, %s267
  $region4: #{_forward.1} parent=0 // loop_header_branch
    %20 = sbr.rel (%p18) target = $region8
  $region5: #{_forward.1} parent=0 // loop_body
    %s22 = ssub.s32 %s17, 1
    %s23 = ssub.s32 %s17, 2
    %s24 = sadd.s32 %s17, 1
    %s25 = ssub.s32 %s17, %s24
    %p26 = scmp.eq.s32.totalorder %s25, 0
    %s28 = sadd.s32 %s27, 1
    %s29 = scalar_select %p26, %s27, %s28
    %p32 = pneg %p26
    %p33 = scmp.eq.s32.totalorder %s17, 1
    %p34 = por %p32, %p33
    %p35 = scmp.ne.s32.totalorder %s27, %s30
    %p36 = scmp.eq.s32.totalorder %s17, 0
    %p37 = por %p35, %p36
    %p38 = scmp.ne.s32.totalorder %s27, %s30
    %p39 = scmp.eq.s32.totalorder %s22, 1
    %p40 = por %p38, %p39
    %p41 = scmp.ne.s32.totalorder %s30, %s31
    %p42 = scmp.eq.s32.totalorder %s22, 0
    %p43 = por %p41, %p42
    %p44 = scmp.ne.s32.totalorder %s30, %s31
    %p45 = scmp.eq.s32.totalorder %s23, 1
    %p46 = por %p44, %p45
    %p48 = scmp.ne.s32.totalorder %s31, %s47
    %p49 = scmp.eq.s32.totalorder %s23, 0
    %p50 = por %p48, %p49
    %s52 = sadd.s32 %s51, 1
    %p55 = scmp.eq.s32.totalorder %s17, 1
    %p56 = scmp.ne.s32.totalorder %s51, %s53
    %p57 = scmp.eq.s32.totalorder %s17, 0
    %p58 = por %p56, %p57
    %p59 = scmp.ne.s32.totalorder %s51, %s53
    %p60 = scmp.eq.s32.totalorder %s22, 1
    %p61 = por %p59, %p60
    %p62 = scmp.ne.s32.totalorder %s53, %s54
    %p63 = scmp.eq.s32.totalorder %s22, 0
    %p64 = por %p62, %p63
    %p65 = scmp.ne.s32.totalorder %s53, %s54
    %p66 = scmp.eq.s32.totalorder %s23, 1
    %p67 = por %p65, %p66
    %p69 = scmp.ne.s32.totalorder %s54, %s68
    %p70 = scmp.eq.s32.totalorder %s23, 0
    %p71 = por %p69, %p70
    %s73 = sadd.s32 %s72, 1
    %p76 = scmp.eq.s32.totalorder %s17, 1
    %p77 = scmp.ne.s32.totalorder %s72, %s74
    %p78 = scmp.eq.s32.totalorder %s17, 0
    %p79 = por %p77, %p78
    %p80 = scmp.ne.s32.totalorder %s72, %s74
    %p81 = scmp.eq.s32.totalorder %s22, 1
    %p82 = por %p80, %p81
    %p83 = scmp.ne.s32.totalorder %s74, %s75
    %p84 = scmp.eq.s32.totalorder %s22, 0
    %p85 = por %p83, %p84
    %p86 = scmp.ne.s32.totalorder %s74, %s75
    %p87 = scmp.eq.s32.totalorder %s23, 1
    %p88 = por %p86, %p87
    %p90 = scmp.ne.s32.totalorder %s75, %s89
    %p91 = scmp.eq.s32.totalorder %s23, 0
    %p92 = por %p90, %p91
    %s94 = sadd.s32 %s93, 1
    %p97 = scmp.eq.s32.totalorder %s17, 1
    %p98 = scmp.ne.s32.totalorder %s93, %s95
    %p99 = scmp.eq.s32.totalorder %s17, 0
    %p100 = por %p98, %p99
    %p101 = scmp.ne.s32.totalorder %s93, %s95
    %p102 = scmp.eq.s32.totalorder %s22, 1
    %p103 = por %p101, %p102
    %p104 = scmp.ne.s32.totalorder %s95, %s96
    %p105 = scmp.eq.s32.totalorder %s22, 0
    %p106 = por %p104, %p105
    %p107 = scmp.ne.s32.totalorder %s95, %s96
    %p108 = scmp.eq.s32.totalorder %s23, 1
    %p109 = por %p107, %p108
    %p111 = scmp.ne.s32.totalorder %s96, %s110
    %p112 = scmp.eq.s32.totalorder %s23, 0
    %p113 = por %p111, %p112
    %s115 = sadd.s32 %s114, 1
    %p118 = scmp.eq.s32.totalorder %s17, 1
    %p119 = scmp.ne.s32.totalorder %s114, %s116
    %p120 = scmp.eq.s32.totalorder %s17, 0
    %p121 = por %p119, %p120
    %p122 = scmp.ne.s32.totalorder %s114, %s116
    %p123 = scmp.eq.s32.totalorder %s22, 1
    %p124 = por %p122, %p123
    %p125 = scmp.ne.s32.totalorder %s116, %s117
    %p126 = scmp.eq.s32.totalorder %s22, 0
    %p127 = por %p125, %p126
    %p128 = scmp.ne.s32.totalorder %s116, %s117
    %p129 = scmp.eq.s32.totalorder %s23, 1
    %p130 = por %p128, %p129
    %p132 = scmp.ne.s32.totalorder %s117, %s131
    %p133 = scmp.eq.s32.totalorder %s23, 0
    %p134 = por %p132, %p133
    %s136 = sadd.s32 %s135, 1
    %p139 = scmp.eq.s32.totalorder %s17, 1
    %p140 = scmp.ne.s32.totalorder %s135, %s137
    %p141 = scmp.eq.s32.totalorder %s17, 0
    %p142 = por %p140, %p141
    %p143 = scmp.ne.s32.totalorder %s135, %s137
    %p144 = scmp.eq.s32.totalorder %s22, 1
    %p145 = por %p143, %p144
    %p146 = scmp.ne.s32.totalorder %s137, %s138
    %p147 = scmp.eq.s32.totalorder %s22, 0
    %p148 = por %p146, %p147
    %p149 = scmp.ne.s32.totalorder %s137, %s138
    %p150 = scmp.eq.s32.totalorder %s23, 1
    %p151 = por %p149, %p150
    %p153 = scmp.ne.s32.totalorder %s138, %s152
    %p154 = scmp.eq.s32.totalorder %s23, 0
    %p155 = por %p153, %p154
    %s157 = sadd.s32 %s156, 1
    %p160 = scmp.eq.s32.totalorder %s17, 1
    %p161 = scmp.ne.s32.totalorder %s156, %s158
    %p162 = scmp.eq.s32.totalorder %s17, 0
    %p163 = por %p161, %p162
    %p164 = scmp.ne.s32.totalorder %s156, %s158
    %p165 = scmp.eq.s32.totalorder %s22, 1
    %p166 = por %p164, %p165
    %p167 = scmp.ne.s32.totalorder %s158, %s159
    %p168 = scmp.eq.s32.totalorder %s22, 0
    %p169 = por %p167, %p168
    %p170 = scmp.ne.s32.totalorder %s158, %s159
    %p171 = scmp.eq.s32.totalorder %s23, 1
    %p172 = por %p170, %p171
    %p174 = scmp.ne.s32.totalorder %s159, %s173
    %p175 = scmp.eq.s32.totalorder %s23, 0
    %p176 = por %p174, %p175
    %s178 = sadd.s32 %s177, 1
    %p181 = scmp.eq.s32.totalorder %s17, 1
    %p182 = scmp.ne.s32.totalorder %s177, %s179
    %p183 = scmp.eq.s32.totalorder %s17, 0
    %p184 = por %p182, %p183
    %p185 = scmp.ne.s32.totalorder %s177, %s179
    %p186 = scmp.eq.s32.totalorder %s22, 1
    %p187 = por %p185, %p186
    %p188 = scmp.ne.s32.totalorder %s179, %s180
    %p189 = scmp.eq.s32.totalorder %s22, 0
    %p190 = por %p188, %p189
    %p191 = scmp.ne.s32.totalorder %s179, %s180
    %p192 = scmp.eq.s32.totalorder %s23, 1
    %p193 = por %p191, %p192
    %p195 = scmp.ne.s32.totalorder %s180, %s194
    %p196 = scmp.eq.s32.totalorder %s23, 0
    %p197 = por %p195, %p196
    %s199 = sadd.s32 %s198, 1
    %p202 = scmp.eq.s32.totalorder %s17, 1
    %p203 = scmp.ne.s32.totalorder %s198, %s200
    %p204 = scmp.eq.s32.totalorder %s17, 0
    %p205 = por %p203, %p204
    %p206 = scmp.ne.s32.totalorder %s198, %s200
    %p207 = scmp.eq.s32.totalorder %s22, 1
    %p208 = por %p206, %p207
    %p209 = scmp.ne.s32.totalorder %s200, %s201
    %p210 = scmp.eq.s32.totalorder %s22, 0
    %p211 = por %p209, %p210
    %p212 = scmp.ne.s32.totalorder %s200, %s201
    %p213 = scmp.eq.s32.totalorder %s23, 1
    %p214 = por %p212, %p213
    %p216 = scmp.ne.s32.totalorder %s201, %s215
    %p217 = scmp.eq.s32.totalorder %s23, 0
    %p218 = por %p216, %p217
    %s220 = sadd.s32 %s219, 1
    %p223 = scmp.eq.s32.totalorder %s17, 1
    %p224 = scmp.ne.s32.totalorder %s219, %s221
    %p225 = scmp.eq.s32.totalorder %s17, 0
    %p226 = por %p224, %p225
    %p227 = scmp.ne.s32.totalorder %s219, %s221
    %p228 = scmp.eq.s32.totalorder %s22, 1
    %p229 = por %p227, %p228
    %p230 = scmp.ne.s32.totalorder %s221, %s222
    %p231 = scmp.eq.s32.totalorder %s22, 0
    %p232 = por %p230, %p231
    %p233 = scmp.ne.s32.totalorder %s221, %s222
    %p234 = scmp.eq.s32.totalorder %s23, 1
    %p235 = por %p233, %p234
    %p237 = scmp.ne.s32.totalorder %s222, %s236
    %p238 = scmp.eq.s32.totalorder %s23, 0
    %p239 = por %p237, %p238
    %s241 = sadd.s32 %s240, 1
    %p244 = scmp.eq.s32.totalorder %s17, 1
    %p245 = scmp.ne.s32.totalorder %s240, %s242
    %p246 = scmp.eq.s32.totalorder %s17, 0
    %p247 = por %p245, %p246
    %p248 = scmp.ne.s32.totalorder %s240, %s242
    %p249 = scmp.eq.s32.totalorder %s22, 1
    %p250 = por %p248, %p249
    %p251 = scmp.ne.s32.totalorder %s242, %s243
    %p252 = scmp.eq.s32.totalorder %s22, 0
    %p253 = por %p251, %p252
    %p254 = scmp.ne.s32.totalorder %s242, %s243
    %p255 = scmp.eq.s32.totalorder %s23, 1
    %p256 = por %p254, %p255
    %p258 = scmp.ne.s32.totalorder %s243, %s257
    %p259 = scmp.eq.s32.totalorder %s23, 0
    %p260 = por %p258, %p259
    %s261 = ssub.s32 %s17, %s24
    %p262 = scmp.eq.s32.totalorder %s261, 0
    %s264 = sadd.s32 %s263, 1
    %s265 = scalar_select %p262, %s263, %s264
    %p268 = pneg %p262
    %p269 = scmp.eq.s32.totalorder %s17, 1
    %p270 = por %p268, %p269
    %p271 = scmp.ne.s32.totalorder %s263, %s266
    %p272 = scmp.eq.s32.totalorder %s17, 0
    %p273 = por %p271, %p272
    %p274 = scmp.ne.s32.totalorder %s263, %s266
    %p275 = scmp.eq.s32.totalorder %s22, 1
    %p276 = por %p274, %p275
    %p277 = scmp.ne.s32.totalorder %s266, %s267
    %p278 = scmp.eq.s32.totalorder %s22, 0
    %p279 = por %p277, %p278
    %p280 = scmp.ne.s32.totalorder %s266, %s267
    %p281 = scmp.eq.s32.totalorder %s23, 1
    %p282 = por %p280, %p281
    %p284 = scmp.ne.s32.totalorder %s267, %s283
    %p285 = scmp.eq.s32.totalorder %s23, 0
    %p286 = por %p284, %p285
    %p287 = scmp.le.s32.totalorder 1, %s17
    %p288 = scmp.lt.s32.totalorder %s17, 3
    %p289 = pnand %p287, %p288
    %p290 = pneg %p289
    // Predicated region
    $region9: #{_forward.1} parent=5 // pred_check
      _
    $region10: #{_forward.1} parent=5 // pred_check_branch
      %292 = sbr.rel (%p289) target = $region12
    $region11: #{_forward.1} parent=5 // pred_region
      %s293 = ssub.s32 %s17, 1
      // Predicated region
      $region13: #{_forward.1} parent=11 // pred_check
        %p294 = pneg %p64
      $region14: #{_forward.1} parent=11 // pred_check_branch
        %296 = sbr.rel (%p294) target = $region16
      $region15: #{_forward.1} parent=11 // pred_region
        _
      $region16: #{_forward.1} parent=11 // pred_fallthru
        _
      // Predicated region
      $region17: #{_forward.1} parent=11 // pred_check
        %p297 = pneg %p85
      $region18: #{_forward.1} parent=11 // pred_check_branch
        %299 = sbr.rel (%p297) target = $region20
      $region19: #{_forward.1} parent=11 // pred_region
        _
      $region20: #{_forward.1} parent=11 // pred_fallthru
        _
      // Predicated region
      $region21: #{_forward.1} parent=11 // pred_check
        %p300 = pneg %p106
      $region22: #{_forward.1} parent=11 // pred_check_branch
        %302 = sbr.rel (%p300) target = $region24
      $region23: #{_forward.1} parent=11 // pred_region
        _
      $region24: #{_forward.1} parent=11 // pred_fallthru
        _
      // Predicated region
      $region25: #{_forward.1} parent=11 // pred_check
        %p303 = pneg %p127
      $region26: #{_forward.1} parent=11 // pred_check_branch
        %305 = sbr.rel (%p303) target = $region28
      $region27: #{_forward.1} parent=11 // pred_region
        _
      $region28: #{_forward.1} parent=11 // pred_fallthru
        _
      // Predicated region
      $region29: #{_forward.1} parent=11 // pred_check
        %p306 = pneg %p148
      $region30: #{_forward.1} parent=11 // pred_check_branch
        %308 = sbr.rel (%p306) target = $region32
      $region31: #{_forward.1} parent=11 // pred_region
        _
      $region32: #{_forward.1} parent=11 // pred_fallthru
        _
      // Predicated region
      $region33: #{_forward.1} parent=11 // pred_check
        %p309 = pneg %p169
      $region34: #{_forward.1} parent=11 // pred_check_branch
        %311 = sbr.rel (%p309) target = $region36
      $region35: #{_forward.1} parent=11 // pred_region
        _
      $region36: #{_forward.1} parent=11 // pred_fallthru
        _
      // Predicated region
      $region37: #{_forward.1} parent=11 // pred_check
        %p312 = pneg %p190
      $region38: #{_forward.1} parent=11 // pred_check_branch
        %314 = sbr.rel (%p312) target = $region40
      $region39: #{_forward.1} parent=11 // pred_region
        _
      $region40: #{_forward.1} parent=11 // pred_fallthru
        _
      // Predicated region
      $region41: #{_forward.1} parent=11 // pred_check
        %p315 = pneg %p211
      $region42: #{_forward.1} parent=11 // pred_check_branch
        %317 = sbr.rel (%p315) target = $region44
      $region43: #{_forward.1} parent=11 // pred_region
        _
      $region44: #{_forward.1} parent=11 // pred_fallthru
        _
      // Predicated region
      $region45: #{_forward.1} parent=11 // pred_check
        %p318 = pneg %p232
      $region46: #{_forward.1} parent=11 // pred_check_branch
        %320 = sbr.rel (%p318) target = $region48
      $region47: #{_forward.1} parent=11 // pred_region
        _
      $region48: #{_forward.1} parent=11 // pred_fallthru
        _
      // Predicated region
      $region49: #{_forward.1} parent=11 // pred_check
        %p321 = pneg %p253
      $region50: #{_forward.1} parent=11 // pred_check_branch
        %323 = sbr.rel (%p321) target = $region52
      $region51: #{_forward.1} parent=11 // pred_region
        _
      $region52: #{_forward.1} parent=11 // pred_fallthru
        _
    $region12: #{_forward.1} parent=5 // pred_fallthru
      _
    %p324 = scmp.lt.s32.totalorder %s17, 2
    // Predicated region
    $region53: #{_forward.1} parent=5 // pred_check
      %p325 = pneg %p324
    $region54: #{_forward.1} parent=5 // pred_check_branch
      %327 = sbr.rel (%p325) target = $region56
    $region55: #{_forward.1} parent=5 // pred_region
      // Predicated region
      $region57: #{_forward.1} parent=55 // pred_check
        %p328 = pneg %p37
      $region58: #{_forward.1} parent=55 // pred_check_branch
        %330 = sbr.rel (%p328) target = $region60
      $region59: #{_forward.1} parent=55 // pred_region
        %p331 = scmp.lt.s32.totalorder %s17, 1
        %s332 = scalar_select %p331, %s17, 1
        %s333 = smul.addr %s332, 6
        %s334 = smul.addr %s333, 8
        %s335 = scalar_lea.vmem %s0, %s334
      $region60: #{_forward.1} parent=55 // pred_fallthru
        _
    $region56: #{_forward.1} parent=5 // pred_fallthru
      _
    %p336 = scmp.le.s32.totalorder 1, %s17
    %p337 = scmp.lt.s32.totalorder %s17, 3
    %p338 = pnand %p336, %p337
    %p339 = pneg %p338
    // Predicated region
    $region61: #{_forward.1} parent=5 // pred_check
      _
    $region62: #{_forward.1} parent=5 // pred_check_branch
      %341 = sbr.rel (%p338) target = $region64
    $region63: #{_forward.1} parent=5 // pred_region
      %s342 = ssub.s32 %s17, 1
      %p343 = scmp.lt.s32.totalorder %s22, 1
      %s344 = scalar_select %p343, %s22, 1
      %s345 = smul.addr %s344, 6
      %s346 = smul.addr %s345, 8
      %s347 = scalar_lea.vmem %s0, %s346
      %p348 = pneg %p43
      %p349 = pneg %p40
      %p350 = pneg %p64
      %p351 = pneg %p61
      %p352 = pneg %p85
      %p353 = pneg %p82
      %p354 = pneg %p106
      %p355 = pneg %p103
      %p356 = pneg %p127
      %p357 = pneg %p124
      %p358 = pneg %p148
      %p359 = pneg %p145
      %p360 = pneg %p169
      %p361 = pneg %p166
      %p362 = pneg %p190
      %p363 = pneg %p187
      %p364 = pneg %p211
      %p365 = pneg %p208
      %p366 = pneg %p232
      %p367 = pneg %p229
      %p368 = pneg %p253
      %p369 = pneg %p250
      %p370 = pneg %p279
      %p371 = pneg %p276
      %p372 = scmp.lt.s32.totalorder %s22, 1
      %s373 = scalar_select %p372, %s22, 1
      %s374 = smul.addr %s373, 8
      %s375 = scalar_lea.vmem %s11, %s374
      %p376 = scmp.lt.s32.totalorder %s22, 1
      %s377 = scalar_select %p376, %s22, 1
      %s378 = smul.addr %s377, 6
      %s379 = smul.addr %s378, 8
      %s380 = scalar_lea.vmem %s0, %s379
      %p381 = scmp.lt.s32.totalorder %s22, 1
      %s382 = scalar_select %p381, %s22, 1
      %s383 = smul.addr %s382, 8
      %s384 = scalar_lea.vmem %s11, %s383
      %v386 = vld [vmem:[%s380] sm:$0xff]
      %v387 = vld [vmem:[%s380 + $0x8] sm:$0xff]
      %v388 = vld [vmem:[%s380 + $0x10] sm:$0xff]
      %v389 = vld [vmem:[%s380 + $0x18] sm:$0xff]
      %v390 = vld [vmem:[%s380 + $0x20] sm:$0xff]
      %v391 = vld [vmem:[%s380 + $0x28] sm:$0xff]
      %v392 = vld [vmem:[%s1] sm:$0xff]
      %v393 = vld [vmem:[%s1 + $0x8] sm:$0xff]
      %v394 = vld [vmem:[%s1 + $0x10] sm:$0xff]
      %v395 = vld [vmem:[%s1 + $0x18] sm:$0xff]
      %v396 = vld [vmem:[%s1 + $0x20] sm:$0xff]
      %v397 = vld [vmem:[%s1 + $0x28] sm:$0xff]
      %v398 = vld [vmem:[%s1 + $0x30] sm:$0xff]
      %v399 = vld [vmem:[%s1 + $0x38] sm:$0xff]
      %v400 = vld [vmem:[%s1 + $0x40] sm:$0xff]
      %v401 = vld [vmem:[%s1 + $0x48] sm:$0xff]
      %v402 = vld [vmem:[%s1 + $0x50] sm:$0xff]
      %v403 = vld [vmem:[%s1 + $0x58] sm:$0xff]
      %v404 = vld [vmem:[%s1 + $0x60] sm:$0xff]
      %v405 = vld [vmem:[%s1 + $0x68] sm:$0xff]
      %v406 = vld [vmem:[%s1 + $0x70] sm:$0xff]
      %v407 = vld [vmem:[%s1 + $0x78] sm:$0xff]
      %v408 = vld [vmem:[%s1 + $0x80] sm:$0xff]
      %v409 = vld [vmem:[%s1 + $0x88] sm:$0xff]
      %v410 = vld [vmem:[%s1 + $0x90] sm:$0xff]
      %v411 = vld [vmem:[%s1 + $0x98] sm:$0xff]
      %v412 = vld [vmem:[%s1 + $0xa0] sm:$0xff]
      %v413 = vld [vmem:[%s1 + $0xa8] sm:$0xff]
      %v414 = vld [vmem:[%s1 + $0xb0] sm:$0xff]
      %v415 = vld [vmem:[%s1 + $0xb8] sm:$0xff]
      %v416 = vld [vmem:[%s1 + $0xc0] sm:$0xff]
      %v417 = vld [vmem:[%s1 + $0xc8] sm:$0xff]
      %v418 = vld [vmem:[%s1 + $0xd0] sm:$0xff]
      %v419 = vld [vmem:[%s1 + $0xd8] sm:$0xff]
      %v420 = vld [vmem:[%s1 + $0xe0] sm:$0xff]
      %v421 = vld [vmem:[%s1 + $0xe8] sm:$0xff]
      %v422 = vld [vmem:[%s1 + $0xf0] sm:$0xff]
      %v423 = vld [vmem:[%s1 + $0xf8] sm:$0xff]
      %v424 = vld [vmem:[%s1 + $0x100] sm:$0xff]
      %v425 = vld [vmem:[%s1 + $0x108] sm:$0xff]
      %v426 = vld [vmem:[%s1 + $0x110] sm:$0xff]
      %v427 = vld [vmem:[%s1 + $0x118] sm:$0xff]
      %v428 = vld [vmem:[%s1 + $0x120] sm:$0xff]
      %v429 = vld [vmem:[%s1 + $0x128] sm:$0xff]
      %v430 = vld [vmem:[%s1 + $0x130] sm:$0xff]
      %v431 = vld [vmem:[%s1 + $0x138] sm:$0xff]
      %v432 = vld [vmem:[%s1 + $0x140] sm:$0xff]
      %v433 = vld [vmem:[%s1 + $0x148] sm:$0xff]
      %v434 = vld [vmem:[%s1 + $0x150] sm:$0xff]
      %v435 = vld [vmem:[%s1 + $0x158] sm:$0xff]
      %v436 = vld [vmem:[%s1 + $0x160] sm:$0xff]
      %v437 = vld [vmem:[%s1 + $0x168] sm:$0xff]
      %v438 = vld [vmem:[%s1 + $0x170] sm:$0xff]
      %v439 = vld [vmem:[%s1 + $0x178] sm:$0xff]
      %v440 = vld [vmem:[%s1 + $0x180] sm:$0xff]
      %v441 = vld [vmem:[%s1 + $0x188] sm:$0xff]
      %v442 = vld [vmem:[%s1 + $0x190] sm:$0xff]
      %v443 = vld [vmem:[%s1 + $0x198] sm:$0xff]
      %v444 = vld [vmem:[%s1 + $0x1a0] sm:$0xff]
      %v445 = vld [vmem:[%s1 + $0x1a8] sm:$0xff]
      %v446 = vld [vmem:[%s1 + $0x1b0] sm:$0xff]
      %v447 = vld [vmem:[%s1 + $0x1b8] sm:$0xff]
      %v448 = vld [vmem:[%s1 + $0x1c0] sm:$0xff]
      %v449 = vld [vmem:[%s1 + $0x1c8] sm:$0xff]
      %v450 = vld [vmem:[%s1 + $0x1d0] sm:$0xff]
      %v451 = vld [vmem:[%s1 + $0x1d8] sm:$0xff]
      %v452 = vld [vmem:[%s1 + $0x1e0] sm:$0xff]
      %v453 = vld [vmem:[%s1 + $0x1e8] sm:$0xff]
      %v454 = vld [vmem:[%s1 + $0x1f0] sm:$0xff]
      %v455 = vld [vmem:[%s1 + $0x1f8] sm:$0xff]
      %v456 = vld [vmem:[%s1 + $0x200] sm:$0xff]
      %v457 = vld [vmem:[%s1 + $0x208] sm:$0xff]
      %v458 = vld [vmem:[%s1 + $0x210] sm:$0xff]
      %v459 = vld [vmem:[%s1 + $0x218] sm:$0xff]
      %v460 = vld [vmem:[%s1 + $0x220] sm:$0xff]
      %v461 = vld [vmem:[%s1 + $0x228] sm:$0xff]
      %v462 = vld [vmem:[%s1 + $0x230] sm:$0xff]
      %v463 = vld [vmem:[%s1 + $0x238] sm:$0xff]
      %v464 = vld [vmem:[%s1 + $0x240] sm:$0xff]
      %v465 = vld [vmem:[%s1 + $0x248] sm:$0xff]
      %v466 = vld [vmem:[%s1 + $0x250] sm:$0xff]
      %v467 = vld [vmem:[%s1 + $0x258] sm:$0xff]
      %v468 = vld [vmem:[%s1 + $0x260] sm:$0xff]
      %v469 = vld [vmem:[%s1 + $0x268] sm:$0xff]
      %v470 = vld [vmem:[%s1 + $0x270] sm:$0xff]
      %v471 = vld [vmem:[%s1 + $0x278] sm:$0xff]
      %v472 = vld [vmem:[%s1 + $0x280] sm:$0xff]
      %v473 = vld [vmem:[%s1 + $0x288] sm:$0xff]
      %v474 = vld [vmem:[%s1 + $0x290] sm:$0xff]
      %v475 = vld [vmem:[%s1 + $0x298] sm:$0xff]
      %v476 = vld [vmem:[%s1 + $0x2a0] sm:$0xff]
      %v477 = vld [vmem:[%s1 + $0x2a8] sm:$0xff]
      %v478 = vld [vmem:[%s1 + $0x2b0] sm:$0xff]
      %v479 = vld [vmem:[%s1 + $0x2b8] sm:$0xff]
      %v480 = vld [vmem:[%s1 + $0x2c0] sm:$0xff]
      %v481 = vld [vmem:[%s1 + $0x2c8] sm:$0xff]
      %v482 = vld [vmem:[%s1 + $0x2d0] sm:$0xff]
      %v483 = vld [vmem:[%s1 + $0x2d8] sm:$0xff]
      %v484 = vld [vmem:[%s1 + $0x2e0] sm:$0xff]
      %v485 = vld [vmem:[%s1 + $0x2e8] sm:$0xff]
      %v486 = vld [vmem:[%s1 + $0x2f0] sm:$0xff]
      %v487 = vld [vmem:[%s1 + $0x2f8] sm:$0xff]
      %v488 = vld [vmem:[%s1 + $0x300] sm:$0xff]
      %v489 = vld [vmem:[%s1 + $0x308] sm:$0xff]
      %v490 = vld [vmem:[%s1 + $0x310] sm:$0xff]
      %v491 = vld [vmem:[%s1 + $0x318] sm:$0xff]
      %v492 = vld [vmem:[%s1 + $0x320] sm:$0xff]
      %v493 = vld [vmem:[%s1 + $0x328] sm:$0xff]
      %v494 = vld [vmem:[%s1 + $0x330] sm:$0xff]
      %v495 = vld [vmem:[%s1 + $0x338] sm:$0xff]
      %v496 = vld [vmem:[%s1 + $0x340] sm:$0xff]
      %v497 = vld [vmem:[%s1 + $0x348] sm:$0xff]
      %v498 = vld [vmem:[%s1 + $0x350] sm:$0xff]
      %v499 = vld [vmem:[%s1 + $0x358] sm:$0xff]
      %v500 = vld [vmem:[%s1 + $0x360] sm:$0xff]
      %v501 = vld [vmem:[%s1 + $0x368] sm:$0xff]
      %v502 = vld [vmem:[%s1 + $0x370] sm:$0xff]
      %v503 = vld [vmem:[%s1 + $0x378] sm:$0xff]
      %v504 = vld [vmem:[%s1 + $0x380] sm:$0xff]
      %v505 = vld [vmem:[%s1 + $0x388] sm:$0xff]
      %v506 = vld [vmem:[%s1 + $0x390] sm:$0xff]
      %v507 = vld [vmem:[%s1 + $0x398] sm:$0xff]
      %v508 = vld [vmem:[%s1 + $0x3a0] sm:$0xff]
      %v509 = vld [vmem:[%s1 + $0x3a8] sm:$0xff]
      %v510 = vld [vmem:[%s1 + $0x3b0] sm:$0xff]
      %v511 = vld [vmem:[%s1 + $0x3b8] sm:$0xff]
      %v512 = vld [vmem:[%s1 + $0x3c0] sm:$0xff]
      %v513 = vld [vmem:[%s1 + $0x3c8] sm:$0xff]
      %v514 = vld [vmem:[%s1 + $0x3d0] sm:$0xff]
      %v515 = vld [vmem:[%s1 + $0x3d8] sm:$0xff]
      %v516 = vld [vmem:[%s1 + $0x3e0] sm:$0xff]
      %v517 = vld [vmem:[%s1 + $0x3e8] sm:$0xff]
      %v518 = vld [vmem:[%s1 + $0x3f0] sm:$0xff]
      %v519 = vld [vmem:[%s1 + $0x3f8] sm:$0xff]
      %v520 = vld [vmem:[%s1 + $0x400] sm:$0xff]
      %v521 = vld [vmem:[%s1 + $0x408] sm:$0xff]
      %v522 = vld [vmem:[%s1 + $0x410] sm:$0xff]
      %v523 = vld [vmem:[%s1 + $0x418] sm:$0xff]
      %v524 = vld [vmem:[%s1 + $0x420] sm:$0xff]
      %v525 = vld [vmem:[%s1 + $0x428] sm:$0xff]
      %v526 = vld [vmem:[%s1 + $0x430] sm:$0xff]
      %v527 = vld [vmem:[%s1 + $0x438] sm:$0xff]
      %v528 = vld [vmem:[%s1 + $0x440] sm:$0xff]
      %v529 = vld [vmem:[%s1 + $0x448] sm:$0xff]
      %v530 = vld [vmem:[%s1 + $0x450] sm:$0xff]
      %v531 = vld [vmem:[%s1 + $0x458] sm:$0xff]
      %v532 = vld [vmem:[%s1 + $0x460] sm:$0xff]
      %v533 = vld [vmem:[%s1 + $0x468] sm:$0xff]
      %v534 = vld [vmem:[%s1 + $0x470] sm:$0xff]
      %v535 = vld [vmem:[%s1 + $0x478] sm:$0xff]
      %v536 = vld [vmem:[%s1 + $0x480] sm:$0xff]
      %v537 = vld [vmem:[%s1 + $0x488] sm:$0xff]
      %v538 = vld [vmem:[%s1 + $0x490] sm:$0xff]
      %v539 = vld [vmem:[%s1 + $0x498] sm:$0xff]
      %v540 = vld [vmem:[%s1 + $0x4a0] sm:$0xff]
      %v541 = vld [vmem:[%s1 + $0x4a8] sm:$0xff]
      %v542 = vld [vmem:[%s1 + $0x4b0] sm:$0xff]
      %v543 = vld [vmem:[%s1 + $0x4b8] sm:$0xff]
      %v544 = vld [vmem:[%s1 + $0x4c0] sm:$0xff]
      %v545 = vld [vmem:[%s1 + $0x4c8] sm:$0xff]
      %v546 = vld [vmem:[%s1 + $0x4d0] sm:$0xff]
      %v547 = vld [vmem:[%s1 + $0x4d8] sm:$0xff]
      %v548 = vld [vmem:[%s1 + $0x4e0] sm:$0xff]
      %v549 = vld [vmem:[%s1 + $0x4e8] sm:$0xff]
      %v550 = vld [vmem:[%s1 + $0x4f0] sm:$0xff]
      %v551 = vld [vmem:[%s1 + $0x4f8] sm:$0xff]
      %v552 = vld [vmem:[%s1 + $0x500] sm:$0xff]
      %v553 = vld [vmem:[%s1 + $0x508] sm:$0xff]
      %v554 = vld [vmem:[%s1 + $0x510] sm:$0xff]
      %v555 = vld [vmem:[%s1 + $0x518] sm:$0xff]
      %v556 = vld [vmem:[%s1 + $0x520] sm:$0xff]
      %v557 = vld [vmem:[%s1 + $0x528] sm:$0xff]
      %v558 = vld [vmem:[%s1 + $0x530] sm:$0xff]
      %v559 = vld [vmem:[%s1 + $0x538] sm:$0xff]
      %v560 = vld [vmem:[%s1 + $0x540] sm:$0xff]
      %v561 = vld [vmem:[%s1 + $0x548] sm:$0xff]
      %v562 = vld [vmem:[%s1 + $0x550] sm:$0xff]
      %v563 = vld [vmem:[%s1 + $0x558] sm:$0xff]
      %v564 = vld [vmem:[%s1 + $0x560] sm:$0xff]
      %v565 = vld [vmem:[%s1 + $0x568] sm:$0xff]
      %v566 = vld [vmem:[%s1 + $0x570] sm:$0xff]
      %v567 = vld [vmem:[%s1 + $0x578] sm:$0xff]
      %v568 = vld [vmem:[%s1 + $0x580] sm:$0xff]
      %v569 = vld [vmem:[%s1 + $0x588] sm:$0xff]
      %v570 = vld [vmem:[%s1 + $0x590] sm:$0xff]
      %v571 = vld [vmem:[%s1 + $0x598] sm:$0xff]
      %v572 = vld [vmem:[%s1 + $0x5a0] sm:$0xff]
      %v573 = vld [vmem:[%s1 + $0x5a8] sm:$0xff]
      %v574 = vld [vmem:[%s1 + $0x5b0] sm:$0xff]
      %v575 = vld [vmem:[%s1 + $0x5b8] sm:$0xff]
      %v576 = vld [vmem:[%s1 + $0x5c0] sm:$0xff]
      %v577 = vld [vmem:[%s1 + $0x5c8] sm:$0xff]
      %v578 = vld [vmem:[%s1 + $0x5d0] sm:$0xff]
      %v579 = vld [vmem:[%s1 + $0x5d8] sm:$0xff]
      %v580 = vld [vmem:[%s1 + $0x5e0] sm:$0xff]
      %v581 = vld [vmem:[%s1 + $0x5e8] sm:$0xff]
      %v582 = vld [vmem:[%s1 + $0x5f0] sm:$0xff]
      %v583 = vld [vmem:[%s1 + $0x5f8] sm:$0xff]
      %v584 = vld [vmem:[%s1 + $0x600] sm:$0xff]
      %v585 = vld [vmem:[%s1 + $0x608] sm:$0xff]
      %v586 = vld [vmem:[%s1 + $0x610] sm:$0xff]
      %v587 = vld [vmem:[%s1 + $0x618] sm:$0xff]
      %v588 = vld [vmem:[%s1 + $0x620] sm:$0xff]
      %v589 = vld [vmem:[%s1 + $0x628] sm:$0xff]
      %v590 = vld [vmem:[%s1 + $0x630] sm:$0xff]
      %v591 = vld [vmem:[%s1 + $0x638] sm:$0xff]
      %v592 = vld [vmem:[%s1 + $0x640] sm:$0xff]
      %v593 = vld [vmem:[%s1 + $0x648] sm:$0xff]
      %v594 = vld [vmem:[%s1 + $0x650] sm:$0xff]
      %v595 = vld [vmem:[%s1 + $0x658] sm:$0xff]
      %v596 = vld [vmem:[%s1 + $0x660] sm:$0xff]
      %v597 = vld [vmem:[%s1 + $0x668] sm:$0xff]
      %v598 = vld [vmem:[%s1 + $0x670] sm:$0xff]
      %v599 = vld [vmem:[%s1 + $0x678] sm:$0xff]
      %v600 = vld [vmem:[%s1 + $0x680] sm:$0xff]
      %v601 = vld [vmem:[%s1 + $0x688] sm:$0xff]
      %v602 = vld [vmem:[%s1 + $0x690] sm:$0xff]
      %v603 = vld [vmem:[%s1 + $0x698] sm:$0xff]
      %v604 = vld [vmem:[%s1 + $0x6a0] sm:$0xff]
      %v605 = vld [vmem:[%s1 + $0x6a8] sm:$0xff]
      %v606 = vld [vmem:[%s1 + $0x6b0] sm:$0xff]
      %v607 = vld [vmem:[%s1 + $0x6b8] sm:$0xff]
      %v608 = vld [vmem:[%s1 + $0x6c0] sm:$0xff]
      %v609 = vld [vmem:[%s1 + $0x6c8] sm:$0xff]
      %v610 = vld [vmem:[%s1 + $0x6d0] sm:$0xff]
      %v611 = vld [vmem:[%s1 + $0x6d8] sm:$0xff]
      %v612 = vld [vmem:[%s1 + $0x6e0] sm:$0xff]
      %v613 = vld [vmem:[%s1 + $0x6e8] sm:$0xff]
      %v614 = vld [vmem:[%s1 + $0x6f0] sm:$0xff]
      %v615 = vld [vmem:[%s1 + $0x6f8] sm:$0xff]
      %v616 = vld [vmem:[%s1 + $0x700] sm:$0xff]
      %v617 = vld [vmem:[%s1 + $0x708] sm:$0xff]
      %v618 = vld [vmem:[%s1 + $0x710] sm:$0xff]
      %v619 = vld [vmem:[%s1 + $0x718] sm:$0xff]
      %v620 = vld [vmem:[%s1 + $0x720] sm:$0xff]
      %v621 = vld [vmem:[%s1 + $0x728] sm:$0xff]
      %v622 = vld [vmem:[%s1 + $0x730] sm:$0xff]
      %v623 = vld [vmem:[%s1 + $0x738] sm:$0xff]
      %v624 = vld [vmem:[%s1 + $0x740] sm:$0xff]
      %v625 = vld [vmem:[%s1 + $0x748] sm:$0xff]
      %v626 = vld [vmem:[%s1 + $0x750] sm:$0xff]
      %v627 = vld [vmem:[%s1 + $0x758] sm:$0xff]
      %v628 = vld [vmem:[%s1 + $0x760] sm:$0xff]
      %v629 = vld [vmem:[%s1 + $0x768] sm:$0xff]
      %v630 = vld [vmem:[%s1 + $0x770] sm:$0xff]
      %v631 = vld [vmem:[%s1 + $0x778] sm:$0xff]
      %v632 = vld [vmem:[%s1 + $0x780] sm:$0xff]
      %v633 = vld [vmem:[%s1 + $0x788] sm:$0xff]
      %v634 = vld [vmem:[%s1 + $0x790] sm:$0xff]
      %v635 = vld [vmem:[%s1 + $0x798] sm:$0xff]
      %v636 = vld [vmem:[%s1 + $0x7a0] sm:$0xff]
      %v637 = vld [vmem:[%s1 + $0x7a8] sm:$0xff]
      %v638 = vld [vmem:[%s1 + $0x7b0] sm:$0xff]
      %v639 = vld [vmem:[%s1 + $0x7b8] sm:$0xff]
      %v640 = vld [vmem:[%s1 + $0x7c0] sm:$0xff]
      %v641 = vld [vmem:[%s1 + $0x7c8] sm:$0xff]
      %v642 = vld [vmem:[%s1 + $0x7d0] sm:$0xff]
      %v643 = vld [vmem:[%s1 + $0x7d8] sm:$0xff]
      %v644 = vld [vmem:[%s1 + $0x7e0] sm:$0xff]
      %v645 = vld [vmem:[%s1 + $0x7e8] sm:$0xff]
      %v646 = vld [vmem:[%s1 + $0x7f0] sm:$0xff]
      %v647 = vld [vmem:[%s1 + $0x7f8] sm:$0xff]
      %v648 = vld [vmem:[%s1 + $0x800] sm:$0xff]
      %v649 = vld [vmem:[%s1 + $0x808] sm:$0xff]
      %v650 = vld [vmem:[%s1 + $0x810] sm:$0xff]
      %v651 = vld [vmem:[%s1 + $0x818] sm:$0xff]
      %v652 = vld [vmem:[%s1 + $0x820] sm:$0xff]
      %v653 = vld [vmem:[%s1 + $0x828] sm:$0xff]
      %v654 = vld [vmem:[%s1 + $0x830] sm:$0xff]
      %v655 = vld [vmem:[%s1 + $0x838] sm:$0xff]
      %v656 = vld [vmem:[%s1 + $0x840] sm:$0xff]
      %v657 = vld [vmem:[%s1 + $0x848] sm:$0xff]
      %v658 = vld [vmem:[%s1 + $0x850] sm:$0xff]
      %v659 = vld [vmem:[%s1 + $0x858] sm:$0xff]
      %v660 = vld [vmem:[%s1 + $0x860] sm:$0xff]
      %v661 = vld [vmem:[%s1 + $0x868] sm:$0xff]
      %v662 = vld [vmem:[%s1 + $0x870] sm:$0xff]
      %v663 = vld [vmem:[%s1 + $0x878] sm:$0xff]
      %v664 = vld [vmem:[%s1 + $0x880] sm:$0xff]
      %v665 = vld [vmem:[%s1 + $0x888] sm:$0xff]
      %v666 = vld [vmem:[%s1 + $0x890] sm:$0xff]
      %v667 = vld [vmem:[%s1 + $0x898] sm:$0xff]
      %v668 = vld [vmem:[%s1 + $0x8a0] sm:$0xff]
      %v669 = vld [vmem:[%s1 + $0x8a8] sm:$0xff]
      %v670 = vld [vmem:[%s1 + $0x8b0] sm:$0xff]
      %v671 = vld [vmem:[%s1 + $0x8b8] sm:$0xff]
      %v672 = vld [vmem:[%s1 + $0x8c0] sm:$0xff]
      %v673 = vld [vmem:[%s1 + $0x8c8] sm:$0xff]
      %v674 = vld [vmem:[%s1 + $0x8d0] sm:$0xff]
      %v675 = vld [vmem:[%s1 + $0x8d8] sm:$0xff]
      %v676 = vld [vmem:[%s1 + $0x8e0] sm:$0xff]
      %v677 = vld [vmem:[%s1 + $0x8e8] sm:$0xff]
      %v678 = vld [vmem:[%s1 + $0x8f0] sm:$0xff]
      %v679 = vld [vmem:[%s1 + $0x8f8] sm:$0xff]
      %v680 = vpack.c.bf16 %v386, %v386
      %v681 = vpack.c.bf16 %v387, %v387
      %v682 = vpack.c.bf16 %v388, %v388
      %v683 = vpack.c.bf16 %v389, %v389
      %v684 = vpack.c.bf16 %v390, %v390
      %v685 = vpack.c.bf16 %v391, %v391
      %v686 = vld [vmem:[%s2] sm:$0x3f]
      %v688 = vlaneseq
      %v689 = vshrl.u32 %v688, 7
      %v690 = vsub.s32 0, %v689
      %v691 = vrot.slane %v686, %v690
      %v692 = vlaneseq
      %v693 = vshrl.u32 %v692, 7
      %v694 = vsub.s32 1, %v693
      %v695 = vrot.slane %v686, %v694
      %v696 = vlaneseq
      %v697 = vshrl.u32 %v696, 7
      %v698 = vsub.s32 2, %v697
      %v699 = vrot.slane %v686, %v698
      %v700 = vlaneseq
      %v701 = vshrl.u32 %v700, 7
      %v702 = vsub.s32 3, %v701
      %v703 = vrot.slane %v686, %v702
      %v704 = vlaneseq
      %v705 = vshrl.u32 %v704, 7
      %v706 = vsub.s32 4, %v705
      %v707 = vrot.slane %v686, %v706
      %v708 = vlaneseq
      %v709 = vshrl.u32 %v708, 7
      %v710 = vsub.s32 5, %v709
      %v711 = vrot.slane %v686, %v710
      %v1006 = vunpack.c.l.b16 %v392
      %v1007 = vunpack.c.h.b16 %v392
      %v1008 = vunpack.c.l.b16 %v393
      %v1009 = vunpack.c.h.b16 %v393
      %v1010 = vunpack.c.l.b16 %v394
      %v1011 = vunpack.c.h.b16 %v394
      %v1012 = vunpack.c.l.b16 %v395
      %v1013 = vunpack.c.h.b16 %v395
      %v1014 = vunpack.c.l.b16 %v396
      %v1015 = vunpack.c.h.b16 %v396
      %v1016 = vunpack.c.l.b16 %v397
      %v1017 = vunpack.c.h.b16 %v397
      %v1018 = vunpack.c.l.b16 %v398
      %v1019 = vunpack.c.h.b16 %v398
      %v1020 = vunpack.c.l.b16 %v399
      %v1021 = vunpack.c.h.b16 %v399
      %v1022 = vunpack.c.l.b16 %v400
      %v1023 = vunpack.c.h.b16 %v400
      %v1024 = vunpack.c.l.b16 %v401
      %v1025 = vunpack.c.h.b16 %v401
      %v1026 = vunpack.c.l.b16 %v402
      %v1027 = vunpack.c.h.b16 %v402
      %v1028 = vunpack.c.l.b16 %v403
      %v1029 = vunpack.c.h.b16 %v403
      %v1030 = vunpack.c.l.b16 %v404
      %v1031 = vunpack.c.h.b16 %v404
      %v1032 = vunpack.c.l.b16 %v405
      %v1033 = vunpack.c.h.b16 %v405
      %v1034 = vunpack.c.l.b16 %v406
      %v1035 = vunpack.c.h.b16 %v406
      %v1036 = vunpack.c.l.b16 %v407
      %v1037 = vunpack.c.h.b16 %v407
      %v1038 = vunpack.c.l.b16 %v408
      %v1039 = vunpack.c.h.b16 %v408
      %v1040 = vunpack.c.l.b16 %v409
      %v1041 = vunpack.c.h.b16 %v409
      %v1042 = vunpack.c.l.b16 %v410
      %v1043 = vunpack.c.h.b16 %v410
      %v1044 = vunpack.c.l.b16 %v411
      %v1045 = vunpack.c.h.b16 %v411
      %v1046 = vunpack.c.l.b16 %v412
      %v1047 = vunpack.c.h.b16 %v412
      %v1048 = vunpack.c.l.b16 %v413
      %v1049 = vunpack.c.h.b16 %v413
      %v1050 = vunpack.c.l.b16 %v414
      %v1051 = vunpack.c.h.b16 %v414
      %v1052 = vunpack.c.l.b16 %v415
      %v1053 = vunpack.c.h.b16 %v415
      %v1054 = vunpack.c.l.b16 %v416
      %v1055 = vunpack.c.h.b16 %v416
      %v1056 = vunpack.c.l.b16 %v417
      %v1057 = vunpack.c.h.b16 %v417
      %v1058 = vunpack.c.l.b16 %v418
      %v1059 = vunpack.c.h.b16 %v418
      %v1060 = vunpack.c.l.b16 %v419
      %v1061 = vunpack.c.h.b16 %v419
      %v1062 = vunpack.c.l.b16 %v420
      %v1063 = vunpack.c.h.b16 %v420
      %v1064 = vunpack.c.l.b16 %v421
      %v1065 = vunpack.c.h.b16 %v421
      %v1066 = vunpack.c.l.b16 %v422
      %v1067 = vunpack.c.h.b16 %v422
      %v1068 = vunpack.c.l.b16 %v423
      %v1069 = vunpack.c.h.b16 %v423
      %v1070 = vunpack.c.l.b16 %v424
      %v1071 = vunpack.c.h.b16 %v424
      %v1072 = vunpack.c.l.b16 %v425
      %v1073 = vunpack.c.h.b16 %v425
      %v1074 = vunpack.c.l.b16 %v426
      %v1075 = vunpack.c.h.b16 %v426
      %v1076 = vunpack.c.l.b16 %v427
      %v1077 = vunpack.c.h.b16 %v427
      %v1078 = vunpack.c.l.b16 %v428
      %v1079 = vunpack.c.h.b16 %v428
      %v1080 = vunpack.c.l.b16 %v429
      %v1081 = vunpack.c.h.b16 %v429
      %v1082 = vunpack.c.l.b16 %v430
      %v1083 = vunpack.c.h.b16 %v430
      %v1084 = vunpack.c.l.b16 %v431
      %v1085 = vunpack.c.h.b16 %v431
      %v1086 = vunpack.c.l.b16 %v432
      %v1087 = vunpack.c.h.b16 %v432
      %v1088 = vunpack.c.l.b16 %v433
      %v1089 = vunpack.c.h.b16 %v433
      %v1090 = vunpack.c.l.b16 %v434
      %v1091 = vunpack.c.h.b16 %v434
      %v1092 = vunpack.c.l.b16 %v435
      %v1093 = vunpack.c.h.b16 %v435
      %v1094 = vunpack.c.l.b16 %v436
      %v1095 = vunpack.c.h.b16 %v436
      %v1096 = vunpack.c.l.b16 %v437
      %v1097 = vunpack.c.h.b16 %v437
      %v1098 = vunpack.c.l.b16 %v438
      %v1099 = vunpack.c.h.b16 %v438
      %v1100 = vunpack.c.l.b16 %v439
      %v1101 = vunpack.c.h.b16 %v439
      %v1102 = vunpack.c.l.b16 %v440
      %v1103 = vunpack.c.h.b16 %v440
      %v1104 = vunpack.c.l.b16 %v441
      %v1105 = vunpack.c.h.b16 %v441
      %v1106 = vunpack.c.l.b16 %v442
      %v1107 = vunpack.c.h.b16 %v442
      %v1108 = vunpack.c.l.b16 %v443
      %v1109 = vunpack.c.h.b16 %v443
      %v1110 = vunpack.c.l.b16 %v444
      %v1111 = vunpack.c.h.b16 %v444
      %v1112 = vunpack.c.l.b16 %v445
      %v1113 = vunpack.c.h.b16 %v445
      %v1114 = vunpack.c.l.b16 %v446
      %v1115 = vunpack.c.h.b16 %v446
      %v1116 = vunpack.c.l.b16 %v447
      %v1117 = vunpack.c.h.b16 %v447
      %v1118 = vunpack.c.l.b16 %v448
      %v1119 = vunpack.c.h.b16 %v448
      %v1120 = vunpack.c.l.b16 %v449
      %v1121 = vunpack.c.h.b16 %v449
      %v1122 = vunpack.c.l.b16 %v450
      %v1123 = vunpack.c.h.b16 %v450
      %v1124 = vunpack.c.l.b16 %v451
      %v1125 = vunpack.c.h.b16 %v451
      %v1126 = vunpack.c.l.b16 %v452
      %v1127 = vunpack.c.h.b16 %v452
      %v1128 = vunpack.c.l.b16 %v453
      %v1129 = vunpack.c.h.b16 %v453
      %v1130 = vunpack.c.l.b16 %v454
      %v1131 = vunpack.c.h.b16 %v454
      %v1132 = vunpack.c.l.b16 %v455
      %v1133 = vunpack.c.h.b16 %v455
      %v1134 = vunpack.c.l.b16 %v456
      %v1135 = vunpack.c.h.b16 %v456
      %v1136 = vunpack.c.l.b16 %v457
      %v1137 = vunpack.c.h.b16 %v457
      %v1138 = vunpack.c.l.b16 %v458
      %v1139 = vunpack.c.h.b16 %v458
      %v1140 = vunpack.c.l.b16 %v459
      %v1141 = vunpack.c.h.b16 %v459
      %v1142 = vunpack.c.l.b16 %v460
      %v1143 = vunpack.c.h.b16 %v460
      %v1144 = vunpack.c.l.b16 %v461
      %v1145 = vunpack.c.h.b16 %v461
      %v1146 = vunpack.c.l.b16 %v462
      %v1147 = vunpack.c.h.b16 %v462
      %v1148 = vunpack.c.l.b16 %v463
      %v1149 = vunpack.c.h.b16 %v463
      %v1150 = vunpack.c.l.b16 %v464
      %v1151 = vunpack.c.h.b16 %v464
      %v1152 = vunpack.c.l.b16 %v465
      %v1153 = vunpack.c.h.b16 %v465
      %v1154 = vunpack.c.l.b16 %v466
      %v1155 = vunpack.c.h.b16 %v466
      %v1156 = vunpack.c.l.b16 %v467
      %v1157 = vunpack.c.h.b16 %v467
      %v1158 = vunpack.c.l.b16 %v468
      %v1159 = vunpack.c.h.b16 %v468
      %v1160 = vunpack.c.l.b16 %v469
      %v1161 = vunpack.c.h.b16 %v469
      %v1162 = vunpack.c.l.b16 %v470
      %v1163 = vunpack.c.h.b16 %v470
      %v1164 = vunpack.c.l.b16 %v471
      %v1165 = vunpack.c.h.b16 %v471
      %v1166 = vunpack.c.l.b16 %v472
      %v1167 = vunpack.c.h.b16 %v472
      %v1168 = vunpack.c.l.b16 %v473
      %v1169 = vunpack.c.h.b16 %v473
      %v1170 = vunpack.c.l.b16 %v474
      %v1171 = vunpack.c.h.b16 %v474
      %v1172 = vunpack.c.l.b16 %v475
      %v1173 = vunpack.c.h.b16 %v475
      %v1174 = vunpack.c.l.b16 %v476
      %v1175 = vunpack.c.h.b16 %v476
      %v1176 = vunpack.c.l.b16 %v477
      %v1177 = vunpack.c.h.b16 %v477
      %v1178 = vunpack.c.l.b16 %v478
      %v1179 = vunpack.c.h.b16 %v478
      %v1180 = vunpack.c.l.b16 %v479
      %v1181 = vunpack.c.h.b16 %v479
      %v1182 = vunpack.c.l.b16 %v480
      %v1183 = vunpack.c.h.b16 %v480
      %v1184 = vunpack.c.l.b16 %v481
      %v1185 = vunpack.c.h.b16 %v481
      %v1186 = vunpack.c.l.b16 %v482
      %v1187 = vunpack.c.h.b16 %v482
      %v1188 = vunpack.c.l.b16 %v483
      %v1189 = vunpack.c.h.b16 %v483
      %v1190 = vunpack.c.l.b16 %v484
      %v1191 = vunpack.c.h.b16 %v484
      %v1192 = vunpack.c.l.b16 %v485
      %v1193 = vunpack.c.h.b16 %v485
      %v1194 = vunpack.c.l.b16 %v486
      %v1195 = vunpack.c.h.b16 %v486
      %v1196 = vunpack.c.l.b16 %v487
      %v1197 = vunpack.c.h.b16 %v487
      %v1198 = vunpack.c.l.b16 %v488
      %v1199 = vunpack.c.h.b16 %v488
      %v1200 = vunpack.c.l.b16 %v489
      %v1201 = vunpack.c.h.b16 %v489
      %v1202 = vunpack.c.l.b16 %v490
      %v1203 = vunpack.c.h.b16 %v490
      %v1204 = vunpack.c.l.b16 %v491
      %v1205 = vunpack.c.h.b16 %v491
      %v1206 = vunpack.c.l.b16 %v492
      %v1207 = vunpack.c.h.b16 %v492
      %v1208 = vunpack.c.l.b16 %v493
      %v1209 = vunpack.c.h.b16 %v493
      %v1210 = vunpack.c.l.b16 %v494
      %v1211 = vunpack.c.h.b16 %v494
      %v1212 = vunpack.c.l.b16 %v495
      %v1213 = vunpack.c.h.b16 %v495
      %v1214 = vunpack.c.l.b16 %v496
      %v1215 = vunpack.c.h.b16 %v496
      %v1216 = vunpack.c.l.b16 %v497
      %v1217 = vunpack.c.h.b16 %v497
      %v1218 = vunpack.c.l.b16 %v498
      %v1219 = vunpack.c.h.b16 %v498
      %v1220 = vunpack.c.l.b16 %v499
      %v1221 = vunpack.c.h.b16 %v499
      %v1222 = vunpack.c.l.b16 %v500
      %v1223 = vunpack.c.h.b16 %v500
      %v1224 = vunpack.c.l.b16 %v501
      %v1225 = vunpack.c.h.b16 %v501
      %v1226 = vunpack.c.l.b16 %v502
      %v1227 = vunpack.c.h.b16 %v502
      %v1228 = vunpack.c.l.b16 %v503
      %v1229 = vunpack.c.h.b16 %v503
      %v1230 = vunpack.c.l.b16 %v504
      %v1231 = vunpack.c.h.b16 %v504
      %v1232 = vunpack.c.l.b16 %v505
      %v1233 = vunpack.c.h.b16 %v505
      %v1234 = vunpack.c.l.b16 %v506
      %v1235 = vunpack.c.h.b16 %v506
      %v1236 = vunpack.c.l.b16 %v507
      %v1237 = vunpack.c.h.b16 %v507
      %v1238 = vunpack.c.l.b16 %v508
      %v1239 = vunpack.c.h.b16 %v508
      %v1240 = vunpack.c.l.b16 %v509
      %v1241 = vunpack.c.h.b16 %v509
      %v1242 = vunpack.c.l.b16 %v510
      %v1243 = vunpack.c.h.b16 %v510
      %v1244 = vunpack.c.l.b16 %v511
      %v1245 = vunpack.c.h.b16 %v511
      %v1246 = vunpack.c.l.b16 %v512
      %v1247 = vunpack.c.h.b16 %v512
      %v1248 = vunpack.c.l.b16 %v513
      %v1249 = vunpack.c.h.b16 %v513
      %v1250 = vunpack.c.l.b16 %v514
      %v1251 = vunpack.c.h.b16 %v514
      %v1252 = vunpack.c.l.b16 %v515
      %v1253 = vunpack.c.h.b16 %v515
      %v1254 = vunpack.c.l.b16 %v516
      %v1255 = vunpack.c.h.b16 %v516
      %v1256 = vunpack.c.l.b16 %v517
      %v1257 = vunpack.c.h.b16 %v517
      %v1258 = vunpack.c.l.b16 %v518
      %v1259 = vunpack.c.h.b16 %v518
      %v1260 = vunpack.c.l.b16 %v519
      %v1261 = vunpack.c.h.b16 %v519
      %v1262 = vunpack.c.l.b16 %v520
      %v1263 = vunpack.c.h.b16 %v520
      %v1264 = vunpack.c.l.b16 %v521
      %v1265 = vunpack.c.h.b16 %v521
      %v1266 = vunpack.c.l.b16 %v522
      %v1267 = vunpack.c.h.b16 %v522
      %v1268 = vunpack.c.l.b16 %v523
      %v1269 = vunpack.c.h.b16 %v523
      %v1270 = vunpack.c.l.b16 %v524
      %v1271 = vunpack.c.h.b16 %v524
      %v1272 = vunpack.c.l.b16 %v525
      %v1273 = vunpack.c.h.b16 %v525
      %v1274 = vunpack.c.l.b16 %v526
      %v1275 = vunpack.c.h.b16 %v526
      %v1276 = vunpack.c.l.b16 %v527
      %v1277 = vunpack.c.h.b16 %v527
      %v1278 = vunpack.c.l.b16 %v528
      %v1279 = vunpack.c.h.b16 %v528
      %v1280 = vunpack.c.l.b16 %v529
      %v1281 = vunpack.c.h.b16 %v529
      %v1282 = vunpack.c.l.b16 %v530
      %v1283 = vunpack.c.h.b16 %v530
      %v1284 = vunpack.c.l.b16 %v531
      %v1285 = vunpack.c.h.b16 %v531
      %v1286 = vunpack.c.l.b16 %v532
      %v1287 = vunpack.c.h.b16 %v532
      %v1288 = vunpack.c.l.b16 %v533
      %v1289 = vunpack.c.h.b16 %v533
      %v1290 = vunpack.c.l.b16 %v534
      %v1291 = vunpack.c.h.b16 %v534
      %v1292 = vunpack.c.l.b16 %v535
      %v1293 = vunpack.c.h.b16 %v535
      %v1294 = vunpack.c.l.b16 %v536
      %v1295 = vunpack.c.h.b16 %v536
      %v1296 = vunpack.c.l.b16 %v537
      %v1297 = vunpack.c.h.b16 %v537
      %v1298 = vunpack.c.l.b16 %v538
      %v1299 = vunpack.c.h.b16 %v538
      %v1300 = vunpack.c.l.b16 %v539
      %v1301 = vunpack.c.h.b16 %v539
      %v1302 = vunpack.c.l.b16 %v540
      %v1303 = vunpack.c.h.b16 %v540
      %v1304 = vunpack.c.l.b16 %v541
      %v1305 = vunpack.c.h.b16 %v541
      %v1306 = vunpack.c.l.b16 %v542
      %v1307 = vunpack.c.h.b16 %v542
      %v1308 = vunpack.c.l.b16 %v543
      %v1309 = vunpack.c.h.b16 %v543
      %v1310 = vunpack.c.l.b16 %v544
      %v1311 = vunpack.c.h.b16 %v544
      %v1312 = vunpack.c.l.b16 %v545
      %v1313 = vunpack.c.h.b16 %v545
      %v1314 = vunpack.c.l.b16 %v546
      %v1315 = vunpack.c.h.b16 %v546
      %v1316 = vunpack.c.l.b16 %v547
      %v1317 = vunpack.c.h.b16 %v547
      %v1318 = vunpack.c.l.b16 %v548
      %v1319 = vunpack.c.h.b16 %v548
      %v1320 = vunpack.c.l.b16 %v549
      %v1321 = vunpack.c.h.b16 %v549
      %v1322 = vunpack.c.l.b16 %v550
      %v1323 = vunpack.c.h.b16 %v550
      %v1324 = vunpack.c.l.b16 %v551
      %v1325 = vunpack.c.h.b16 %v551
      %v1326 = vunpack.c.l.b16 %v552
      %v1327 = vunpack.c.h.b16 %v552
      %v1328 = vunpack.c.l.b16 %v553
      %v1329 = vunpack.c.h.b16 %v553
      %v1330 = vunpack.c.l.b16 %v554
      %v1331 = vunpack.c.h.b16 %v554
      %v1332 = vunpack.c.l.b16 %v555
      %v1333 = vunpack.c.h.b16 %v555
      %v1334 = vunpack.c.l.b16 %v556
      %v1335 = vunpack.c.h.b16 %v556
      %v1336 = vunpack.c.l.b16 %v557
      %v1337 = vunpack.c.h.b16 %v557
      %v1338 = vunpack.c.l.b16 %v558
      %v1339 = vunpack.c.h.b16 %v558
      %v1340 = vunpack.c.l.b16 %v559
      %v1341 = vunpack.c.h.b16 %v559
      %v1342 = vunpack.c.l.b16 %v560
      %v1343 = vunpack.c.h.b16 %v560
      %v1344 = vunpack.c.l.b16 %v561
      %v1345 = vunpack.c.h.b16 %v561
      %v1346 = vunpack.c.l.b16 %v562
      %v1347 = vunpack.c.h.b16 %v562
      %v1348 = vunpack.c.l.b16 %v563
      %v1349 = vunpack.c.h.b16 %v563
      %v1350 = vunpack.c.l.b16 %v564
      %v1351 = vunpack.c.h.b16 %v564
      %v1352 = vunpack.c.l.b16 %v565
      %v1353 = vunpack.c.h.b16 %v565
      %v1354 = vunpack.c.l.b16 %v566
      %v1355 = vunpack.c.h.b16 %v566
      %v1356 = vunpack.c.l.b16 %v567
      %v1357 = vunpack.c.h.b16 %v567
      %v1358 = vunpack.c.l.b16 %v568
      %v1359 = vunpack.c.h.b16 %v568
      %v1360 = vunpack.c.l.b16 %v569
      %v1361 = vunpack.c.h.b16 %v569
      %v1362 = vunpack.c.l.b16 %v570
      %v1363 = vunpack.c.h.b16 %v570
      %v1364 = vunpack.c.l.b16 %v571
      %v1365 = vunpack.c.h.b16 %v571
      %v1366 = vunpack.c.l.b16 %v572
      %v1367 = vunpack.c.h.b16 %v572
      %v1368 = vunpack.c.l.b16 %v573
      %v1369 = vunpack.c.h.b16 %v573
      %v1370 = vunpack.c.l.b16 %v574
      %v1371 = vunpack.c.h.b16 %v574
      %v1372 = vunpack.c.l.b16 %v575
      %v1373 = vunpack.c.h.b16 %v575
      %v1374 = vunpack.c.l.b16 %v576
      %v1375 = vunpack.c.h.b16 %v576
      %v1376 = vunpack.c.l.b16 %v577
      %v1377 = vunpack.c.h.b16 %v577
      %v1378 = vunpack.c.l.b16 %v578
      %v1379 = vunpack.c.h.b16 %v578
      %v1380 = vunpack.c.l.b16 %v579
      %v1381 = vunpack.c.h.b16 %v579
      %v1382 = vunpack.c.l.b16 %v580
      %v1383 = vunpack.c.h.b16 %v580
      %v1384 = vunpack.c.l.b16 %v581
      %v1385 = vunpack.c.h.b16 %v581
      %v1386 = vunpack.c.l.b16 %v582
      %v1387 = vunpack.c.h.b16 %v582
      %v1388 = vunpack.c.l.b16 %v583
      %v1389 = vunpack.c.h.b16 %v583
      %v1390 = vunpack.c.l.b16 %v584
      %v1391 = vunpack.c.h.b16 %v584
      %v1392 = vunpack.c.l.b16 %v585
      %v1393 = vunpack.c.h.b16 %v585
      %v1394 = vunpack.c.l.b16 %v586
      %v1395 = vunpack.c.h.b16 %v586
      %v1396 = vunpack.c.l.b16 %v587
      %v1397 = vunpack.c.h.b16 %v587
      %v1398 = vunpack.c.l.b16 %v588
      %v1399 = vunpack.c.h.b16 %v588
      %v1400 = vunpack.c.l.b16 %v589
      %v1401 = vunpack.c.h.b16 %v589
      %v1402 = vunpack.c.l.b16 %v590
      %v1403 = vunpack.c.h.b16 %v590
      %v1404 = vunpack.c.l.b16 %v591
      %v1405 = vunpack.c.h.b16 %v591
      %v1406 = vunpack.c.l.b16 %v592
      %v1407 = vunpack.c.h.b16 %v592
      %v1408 = vunpack.c.l.b16 %v593
      %v1409 = vunpack.c.h.b16 %v593
      %v1410 = vunpack.c.l.b16 %v594
      %v1411 = vunpack.c.h.b16 %v594
      %v1412 = vunpack.c.l.b16 %v595
      %v1413 = vunpack.c.h.b16 %v595
      %v1414 = vunpack.c.l.b16 %v596
      %v1415 = vunpack.c.h.b16 %v596
      %v1416 = vunpack.c.l.b16 %v597
      %v1417 = vunpack.c.h.b16 %v597
      %v1418 = vunpack.c.l.b16 %v598
      %v1419 = vunpack.c.h.b16 %v598
      %v1420 = vunpack.c.l.b16 %v599
      %v1421 = vunpack.c.h.b16 %v599
      %v1422 = vunpack.c.l.b16 %v600
      %v1423 = vunpack.c.h.b16 %v600
      %v1424 = vunpack.c.l.b16 %v601
      %v1425 = vunpack.c.h.b16 %v601
      %v1426 = vunpack.c.l.b16 %v602
      %v1427 = vunpack.c.h.b16 %v602
      %v1428 = vunpack.c.l.b16 %v603
      %v1429 = vunpack.c.h.b16 %v603
      %v1430 = vunpack.c.l.b16 %v604
      %v1431 = vunpack.c.h.b16 %v604
      %v1432 = vunpack.c.l.b16 %v605
      %v1433 = vunpack.c.h.b16 %v605
      %v1434 = vunpack.c.l.b16 %v606
      %v1435 = vunpack.c.h.b16 %v606
      %v1436 = vunpack.c.l.b16 %v607
      %v1437 = vunpack.c.h.b16 %v607
      %v1438 = vunpack.c.l.b16 %v608
      %v1439 = vunpack.c.h.b16 %v608
      %v1440 = vunpack.c.l.b16 %v609
      %v1441 = vunpack.c.h.b16 %v609
      %v1442 = vunpack.c.l.b16 %v610
      %v1443 = vunpack.c.h.b16 %v610
      %v1444 = vunpack.c.l.b16 %v611
      %v1445 = vunpack.c.h.b16 %v611
      %v1446 = vunpack.c.l.b16 %v612
      %v1447 = vunpack.c.h.b16 %v612
      %v1448 = vunpack.c.l.b16 %v613
      %v1449 = vunpack.c.h.b16 %v613
      %v1450 = vunpack.c.l.b16 %v614
      %v1451 = vunpack.c.h.b16 %v614
      %v1452 = vunpack.c.l.b16 %v615
      %v1453 = vunpack.c.h.b16 %v615
      %v1454 = vunpack.c.l.b16 %v616
      %v1455 = vunpack.c.h.b16 %v616
      %v1456 = vunpack.c.l.b16 %v617
      %v1457 = vunpack.c.h.b16 %v617
      %v1458 = vunpack.c.l.b16 %v618
      %v1459 = vunpack.c.h.b16 %v618
      %v1460 = vunpack.c.l.b16 %v619
      %v1461 = vunpack.c.h.b16 %v619
      %v1462 = vunpack.c.l.b16 %v620
      %v1463 = vunpack.c.h.b16 %v620
      %v1464 = vunpack.c.l.b16 %v621
      %v1465 = vunpack.c.h.b16 %v621
      %v1466 = vunpack.c.l.b16 %v622
      %v1467 = vunpack.c.h.b16 %v622
      %v1468 = vunpack.c.l.b16 %v623
      %v1469 = vunpack.c.h.b16 %v623
      %v1470 = vunpack.c.l.b16 %v624
      %v1471 = vunpack.c.h.b16 %v624
      %v1472 = vunpack.c.l.b16 %v625
      %v1473 = vunpack.c.h.b16 %v625
      %v1474 = vunpack.c.l.b16 %v626
      %v1475 = vunpack.c.h.b16 %v626
      %v1476 = vunpack.c.l.b16 %v627
      %v1477 = vunpack.c.h.b16 %v627
      %v1478 = vunpack.c.l.b16 %v628
      %v1479 = vunpack.c.h.b16 %v628
      %v1480 = vunpack.c.l.b16 %v629
      %v1481 = vunpack.c.h.b16 %v629
      %v1482 = vunpack.c.l.b16 %v630
      %v1483 = vunpack.c.h.b16 %v630
      %v1484 = vunpack.c.l.b16 %v631
      %v1485 = vunpack.c.h.b16 %v631
      %v1486 = vunpack.c.l.b16 %v632
      %v1487 = vunpack.c.h.b16 %v632
      %v1488 = vunpack.c.l.b16 %v633
      %v1489 = vunpack.c.h.b16 %v633
      %v1490 = vunpack.c.l.b16 %v634
      %v1491 = vunpack.c.h.b16 %v634
      %v1492 = vunpack.c.l.b16 %v635
      %v1493 = vunpack.c.h.b16 %v635
      %v1494 = vunpack.c.l.b16 %v636
      %v1495 = vunpack.c.h.b16 %v636
      %v1496 = vunpack.c.l.b16 %v637
      %v1497 = vunpack.c.h.b16 %v637
      %v1498 = vunpack.c.l.b16 %v638
      %v1499 = vunpack.c.h.b16 %v638
      %v1500 = vunpack.c.l.b16 %v639
      %v1501 = vunpack.c.h.b16 %v639
      %v1502 = vunpack.c.l.b16 %v640
      %v1503 = vunpack.c.h.b16 %v640
      %v1504 = vunpack.c.l.b16 %v641
      %v1505 = vunpack.c.h.b16 %v641
      %v1506 = vunpack.c.l.b16 %v642
      %v1507 = vunpack.c.h.b16 %v642
      %v1508 = vunpack.c.l.b16 %v643
      %v1509 = vunpack.c.h.b16 %v643
      %v1510 = vunpack.c.l.b16 %v644
      %v1511 = vunpack.c.h.b16 %v644
      %v1512 = vunpack.c.l.b16 %v645
      %v1513 = vunpack.c.h.b16 %v645
      %v1514 = vunpack.c.l.b16 %v646
      %v1515 = vunpack.c.h.b16 %v646
      %v1516 = vunpack.c.l.b16 %v647
      %v1517 = vunpack.c.h.b16 %v647
      %v1518 = vunpack.c.l.b16 %v648
      %v1519 = vunpack.c.h.b16 %v648
      %v1520 = vunpack.c.l.b16 %v649
      %v1521 = vunpack.c.h.b16 %v649
      %v1522 = vunpack.c.l.b16 %v650
      %v1523 = vunpack.c.h.b16 %v650
      %v1524 = vunpack.c.l.b16 %v651
      %v1525 = vunpack.c.h.b16 %v651
      %v1526 = vunpack.c.l.b16 %v652
      %v1527 = vunpack.c.h.b16 %v652
      %v1528 = vunpack.c.l.b16 %v653
      %v1529 = vunpack.c.h.b16 %v653
      %v1530 = vunpack.c.l.b16 %v654
      %v1531 = vunpack.c.h.b16 %v654
      %v1532 = vunpack.c.l.b16 %v655
      %v1533 = vunpack.c.h.b16 %v655
      %v1534 = vunpack.c.l.b16 %v656
      %v1535 = vunpack.c.h.b16 %v656
      %v1536 = vunpack.c.l.b16 %v657
      %v1537 = vunpack.c.h.b16 %v657
      %v1538 = vunpack.c.l.b16 %v658
      %v1539 = vunpack.c.h.b16 %v658
      %v1540 = vunpack.c.l.b16 %v659
      %v1541 = vunpack.c.h.b16 %v659
      %v1542 = vunpack.c.l.b16 %v660
      %v1543 = vunpack.c.h.b16 %v660
      %v1544 = vunpack.c.l.b16 %v661
      %v1545 = vunpack.c.h.b16 %v661
      %v1546 = vunpack.c.l.b16 %v662
      %v1547 = vunpack.c.h.b16 %v662
      %v1548 = vunpack.c.l.b16 %v663
      %v1549 = vunpack.c.h.b16 %v663
      %v1550 = vunpack.c.l.b16 %v664
      %v1551 = vunpack.c.h.b16 %v664
      %v1552 = vunpack.c.l.b16 %v665
      %v1553 = vunpack.c.h.b16 %v665
      %v1554 = vunpack.c.l.b16 %v666
      %v1555 = vunpack.c.h.b16 %v666
      %v1556 = vunpack.c.l.b16 %v667
      %v1557 = vunpack.c.h.b16 %v667
      %v1558 = vunpack.c.l.b16 %v668
      %v1559 = vunpack.c.h.b16 %v668
      %v1560 = vunpack.c.l.b16 %v669
      %v1561 = vunpack.c.h.b16 %v669
      %v1562 = vunpack.c.l.b16 %v670
      %v1563 = vunpack.c.h.b16 %v670
      %v1564 = vunpack.c.l.b16 %v671
      %v1565 = vunpack.c.h.b16 %v671
      %v1566 = vunpack.c.l.b16 %v672
      %v1567 = vunpack.c.h.b16 %v672
      %v1568 = vunpack.c.l.b16 %v673
      %v1569 = vunpack.c.h.b16 %v673
      %v1570 = vunpack.c.l.b16 %v674
      %v1571 = vunpack.c.h.b16 %v674
      %v1572 = vunpack.c.l.b16 %v675
      %v1573 = vunpack.c.h.b16 %v675
      %v1574 = vunpack.c.l.b16 %v676
      %v1575 = vunpack.c.h.b16 %v676
      %v1576 = vunpack.c.l.b16 %v677
      %v1577 = vunpack.c.h.b16 %v677
      %v1578 = vunpack.c.l.b16 %v678
      %v1579 = vunpack.c.h.b16 %v678
      %v1580 = vunpack.c.l.b16 %v679
      %v1581 = vunpack.c.h.b16 %v679
      %v1582 = vpack.c.b16 %v1012, %v1006
      %v1583 = vpack.c.b16 %v1013, %v1007
      %v1584 = vpack.c.b16 %v1014, %v1008
      %v1585 = vpack.c.b16 %v1015, %v1009
      %v1586 = vpack.c.b16 %v1016, %v1010
      %v1587 = vpack.c.b16 %v1017, %v1011
      %v1588 = vpack.c.b16 %v1024, %v1018
      %v1589 = vpack.c.b16 %v1025, %v1019
      %v1590 = vpack.c.b16 %v1026, %v1020
      %v1591 = vpack.c.b16 %v1027, %v1021
      %v1592 = vpack.c.b16 %v1028, %v1022
      %v1593 = vpack.c.b16 %v1029, %v1023
      %v1594 = vpack.c.b16 %v1036, %v1030
      %v1595 = vpack.c.b16 %v1037, %v1031
      %v1596 = vpack.c.b16 %v1038, %v1032
      %v1597 = vpack.c.b16 %v1039, %v1033
      %v1598 = vpack.c.b16 %v1040, %v1034
      %v1599 = vpack.c.b16 %v1041, %v1035
      %v1600 = vpack.c.b16 %v1048, %v1042
      %v1601 = vpack.c.b16 %v1049, %v1043
      %v1602 = vpack.c.b16 %v1050, %v1044
      %v1603 = vpack.c.b16 %v1051, %v1045
      %v1604 = vpack.c.b16 %v1052, %v1046
      %v1605 = vpack.c.b16 %v1053, %v1047
      %v1606 = vpack.c.b16 %v1060, %v1054
      %v1607 = vpack.c.b16 %v1061, %v1055
      %v1608 = vpack.c.b16 %v1062, %v1056
      %v1609 = vpack.c.b16 %v1063, %v1057
      %v1610 = vpack.c.b16 %v1064, %v1058
      %v1611 = vpack.c.b16 %v1065, %v1059
      %v1612 = vpack.c.b16 %v1072, %v1066
      %v1613 = vpack.c.b16 %v1073, %v1067
      %v1614 = vpack.c.b16 %v1074, %v1068
      %v1615 = vpack.c.b16 %v1075, %v1069
      %v1616 = vpack.c.b16 %v1076, %v1070
      %v1617 = vpack.c.b16 %v1077, %v1071
      %v1618 = vpack.c.b16 %v1084, %v1078
      %v1619 = vpack.c.b16 %v1085, %v1079
      %v1620 = vpack.c.b16 %v1086, %v1080
      %v1621 = vpack.c.b16 %v1087, %v1081
      %v1622 = vpack.c.b16 %v1088, %v1082
      %v1623 = vpack.c.b16 %v1089, %v1083
      %v1624 = vpack.c.b16 %v1096, %v1090
      %v1625 = vpack.c.b16 %v1097, %v1091
      %v1626 = vpack.c.b16 %v1098, %v1092
      %v1627 = vpack.c.b16 %v1099, %v1093
      %v1628 = vpack.c.b16 %v1100, %v1094
      %v1629 = vpack.c.b16 %v1101, %v1095
      %v1630 = vpack.c.b16 %v1108, %v1102
      %v1631 = vpack.c.b16 %v1109, %v1103
      %v1632 = vpack.c.b16 %v1110, %v1104
      %v1633 = vpack.c.b16 %v1111, %v1105
      %v1634 = vpack.c.b16 %v1112, %v1106
      %v1635 = vpack.c.b16 %v1113, %v1107
      %v1636 = vpack.c.b16 %v1120, %v1114
      %v1637 = vpack.c.b16 %v1121, %v1115
      %v1638 = vpack.c.b16 %v1122, %v1116
      %v1639 = vpack.c.b16 %v1123, %v1117
      %v1640 = vpack.c.b16 %v1124, %v1118
      %v1641 = vpack.c.b16 %v1125, %v1119
      %v1642 = vpack.c.b16 %v1132, %v1126
      %v1643 = vpack.c.b16 %v1133, %v1127
      %v1644 = vpack.c.b16 %v1134, %v1128
      %v1645 = vpack.c.b16 %v1135, %v1129
      %v1646 = vpack.c.b16 %v1136, %v1130
      %v1647 = vpack.c.b16 %v1137, %v1131
      %v1648 = vpack.c.b16 %v1144, %v1138
      %v1649 = vpack.c.b16 %v1145, %v1139
      %v1650 = vpack.c.b16 %v1146, %v1140
      %v1651 = vpack.c.b16 %v1147, %v1141
      %v1652 = vpack.c.b16 %v1148, %v1142
      %v1653 = vpack.c.b16 %v1149, %v1143
      %v1654 = vpack.c.b16 %v1156, %v1150
      %v1655 = vpack.c.b16 %v1157, %v1151
      %v1656 = vpack.c.b16 %v1158, %v1152
      %v1657 = vpack.c.b16 %v1159, %v1153
      %v1658 = vpack.c.b16 %v1160, %v1154
      %v1659 = vpack.c.b16 %v1161, %v1155
      %v1660 = vpack.c.b16 %v1168, %v1162
      %v1661 = vpack.c.b16 %v1169, %v1163
      %v1662 = vpack.c.b16 %v1170, %v1164
      %v1663 = vpack.c.b16 %v1171, %v1165
      %v1664 = vpack.c.b16 %v1172, %v1166
      %v1665 = vpack.c.b16 %v1173, %v1167
      %v1666 = vpack.c.b16 %v1180, %v1174
      %v1667 = vpack.c.b16 %v1181, %v1175
      %v1668 = vpack.c.b16 %v1182, %v1176
      %v1669 = vpack.c.b16 %v1183, %v1177
      %v1670 = vpack.c.b16 %v1184, %v1178
      %v1671 = vpack.c.b16 %v1185, %v1179
      %v1672 = vpack.c.b16 %v1192, %v1186
      %v1673 = vpack.c.b16 %v1193, %v1187
      %v1674 = vpack.c.b16 %v1194, %v1188
      %v1675 = vpack.c.b16 %v1195, %v1189
      %v1676 = vpack.c.b16 %v1196, %v1190
      %v1677 = vpack.c.b16 %v1197, %v1191
      %v1678 = vpack.c.b16 %v1204, %v1198
      %v1679 = vpack.c.b16 %v1205, %v1199
      %v1680 = vpack.c.b16 %v1206, %v1200
      %v1681 = vpack.c.b16 %v1207, %v1201
      %v1682 = vpack.c.b16 %v1208, %v1202
      %v1683 = vpack.c.b16 %v1209, %v1203
      %v1684 = vpack.c.b16 %v1216, %v1210
      %v1685 = vpack.c.b16 %v1217, %v1211
      %v1686 = vpack.c.b16 %v1218, %v1212
      %v1687 = vpack.c.b16 %v1219, %v1213
      %v1688 = vpack.c.b16 %v1220, %v1214
      %v1689 = vpack.c.b16 %v1221, %v1215
      %v1690 = vpack.c.b16 %v1228, %v1222
      %v1691 = vpack.c.b16 %v1229, %v1223
      %v1692 = vpack.c.b16 %v1230, %v1224
      %v1693 = vpack.c.b16 %v1231, %v1225
      %v1694 = vpack.c.b16 %v1232, %v1226
      %v1695 = vpack.c.b16 %v1233, %v1227
      %v1696 = vpack.c.b16 %v1240, %v1234
      %v1697 = vpack.c.b16 %v1241, %v1235
      %v1698 = vpack.c.b16 %v1242, %v1236
      %v1699 = vpack.c.b16 %v1243, %v1237
      %v1700 = vpack.c.b16 %v1244, %v1238
      %v1701 = vpack.c.b16 %v1245, %v1239
      %v1702 = vpack.c.b16 %v1252, %v1246
      %v1703 = vpack.c.b16 %v1253, %v1247
      %v1704 = vpack.c.b16 %v1254, %v1248
      %v1705 = vpack.c.b16 %v1255, %v1249
      %v1706 = vpack.c.b16 %v1256, %v1250
      %v1707 = vpack.c.b16 %v1257, %v1251
      %v1708 = vpack.c.b16 %v1264, %v1258
      %v1709 = vpack.c.b16 %v1265, %v1259
      %v1710 = vpack.c.b16 %v1266, %v1260
      %v1711 = vpack.c.b16 %v1267, %v1261
      %v1712 = vpack.c.b16 %v1268, %v1262
      %v1713 = vpack.c.b16 %v1269, %v1263
      %v1714 = vpack.c.b16 %v1276, %v1270
      %v1715 = vpack.c.b16 %v1277, %v1271
      %v1716 = vpack.c.b16 %v1278, %v1272
      %v1717 = vpack.c.b16 %v1279, %v1273
      %v1718 = vpack.c.b16 %v1280, %v1274
      %v1719 = vpack.c.b16 %v1281, %v1275
      %v1720 = vpack.c.b16 %v1288, %v1282
      %v1721 = vpack.c.b16 %v1289, %v1283
      %v1722 = vpack.c.b16 %v1290, %v1284
      %v1723 = vpack.c.b16 %v1291, %v1285
      %v1724 = vpack.c.b16 %v1292, %v1286
      %v1725 = vpack.c.b16 %v1293, %v1287
      %v1726 = vpack.c.b16 %v1300, %v1294
      %v1727 = vpack.c.b16 %v1301, %v1295
      %v1728 = vpack.c.b16 %v1302, %v1296
      %v1729 = vpack.c.b16 %v1303, %v1297
      %v1730 = vpack.c.b16 %v1304, %v1298
      %v1731 = vpack.c.b16 %v1305, %v1299
      %v1732 = vpack.c.b16 %v1312, %v1306
      %v1733 = vpack.c.b16 %v1313, %v1307
      %v1734 = vpack.c.b16 %v1314, %v1308
      %v1735 = vpack.c.b16 %v1315, %v1309
      %v1736 = vpack.c.b16 %v1316, %v1310
      %v1737 = vpack.c.b16 %v1317, %v1311
      %v1738 = vpack.c.b16 %v1324, %v1318
      %v1739 = vpack.c.b16 %v1325, %v1319
      %v1740 = vpack.c.b16 %v1326, %v1320
      %v1741 = vpack.c.b16 %v1327, %v1321
      %v1742 = vpack.c.b16 %v1328, %v1322
      %v1743 = vpack.c.b16 %v1329, %v1323
      %v1744 = vpack.c.b16 %v1336, %v1330
      %v1745 = vpack.c.b16 %v1337, %v1331
      %v1746 = vpack.c.b16 %v1338, %v1332
      %v1747 = vpack.c.b16 %v1339, %v1333
      %v1748 = vpack.c.b16 %v1340, %v1334
      %v1749 = vpack.c.b16 %v1341, %v1335
      %v1750 = vpack.c.b16 %v1348, %v1342
      %v1751 = vpack.c.b16 %v1349, %v1343
      %v1752 = vpack.c.b16 %v1350, %v1344
      %v1753 = vpack.c.b16 %v1351, %v1345
      %v1754 = vpack.c.b16 %v1352, %v1346
      %v1755 = vpack.c.b16 %v1353, %v1347
      %v1756 = vpack.c.b16 %v1360, %v1354
      %v1757 = vpack.c.b16 %v1361, %v1355
      %v1758 = vpack.c.b16 %v1362, %v1356
      %v1759 = vpack.c.b16 %v1363, %v1357
      %v1760 = vpack.c.b16 %v1364, %v1358
      %v1761 = vpack.c.b16 %v1365, %v1359
      %v1762 = vpack.c.b16 %v1372, %v1366
      %v1763 = vpack.c.b16 %v1373, %v1367
      %v1764 = vpack.c.b16 %v1374, %v1368
      %v1765 = vpack.c.b16 %v1375, %v1369
      %v1766 = vpack.c.b16 %v1376, %v1370
      %v1767 = vpack.c.b16 %v1377, %v1371
      %v1768 = vpack.c.b16 %v1384, %v1378
      %v1769 = vpack.c.b16 %v1385, %v1379
      %v1770 = vpack.c.b16 %v1386, %v1380
      %v1771 = vpack.c.b16 %v1387, %v1381
      %v1772 = vpack.c.b16 %v1388, %v1382
      %v1773 = vpack.c.b16 %v1389, %v1383
      %v1774 = vpack.c.b16 %v1396, %v1390
      %v1775 = vpack.c.b16 %v1397, %v1391
      %v1776 = vpack.c.b16 %v1398, %v1392
      %v1777 = vpack.c.b16 %v1399, %v1393
      %v1778 = vpack.c.b16 %v1400, %v1394
      %v1779 = vpack.c.b16 %v1401, %v1395
      %v1780 = vpack.c.b16 %v1408, %v1402
      %v1781 = vpack.c.b16 %v1409, %v1403
      %v1782 = vpack.c.b16 %v1410, %v1404
      %v1783 = vpack.c.b16 %v1411, %v1405
      %v1784 = vpack.c.b16 %v1412, %v1406
      %v1785 = vpack.c.b16 %v1413, %v1407
      %v1786 = vpack.c.b16 %v1420, %v1414
      %v1787 = vpack.c.b16 %v1421, %v1415
      %v1788 = vpack.c.b16 %v1422, %v1416
      %v1789 = vpack.c.b16 %v1423, %v1417
      %v1790 = vpack.c.b16 %v1424, %v1418
      %v1791 = vpack.c.b16 %v1425, %v1419
      %v1792 = vpack.c.b16 %v1432, %v1426
      %v1793 = vpack.c.b16 %v1433, %v1427
      %v1794 = vpack.c.b16 %v1434, %v1428
      %v1795 = vpack.c.b16 %v1435, %v1429
      %v1796 = vpack.c.b16 %v1436, %v1430
      %v1797 = vpack.c.b16 %v1437, %v1431
      %v1798 = vpack.c.b16 %v1444, %v1438
      %v1799 = vpack.c.b16 %v1445, %v1439
      %v1800 = vpack.c.b16 %v1446, %v1440
      %v1801 = vpack.c.b16 %v1447, %v1441
      %v1802 = vpack.c.b16 %v1448, %v1442
      %v1803 = vpack.c.b16 %v1449, %v1443
      %v1804 = vpack.c.b16 %v1456, %v1450
      %v1805 = vpack.c.b16 %v1457, %v1451
      %v1806 = vpack.c.b16 %v1458, %v1452
      %v1807 = vpack.c.b16 %v1459, %v1453
      %v1808 = vpack.c.b16 %v1460, %v1454
      %v1809 = vpack.c.b16 %v1461, %v1455
      %v1810 = vpack.c.b16 %v1468, %v1462
      %v1811 = vpack.c.b16 %v1469, %v1463
      %v1812 = vpack.c.b16 %v1470, %v1464
      %v1813 = vpack.c.b16 %v1471, %v1465
      %v1814 = vpack.c.b16 %v1472, %v1466
      %v1815 = vpack.c.b16 %v1473, %v1467
      %v1816 = vpack.c.b16 %v1480, %v1474
      %v1817 = vpack.c.b16 %v1481, %v1475
      %v1818 = vpack.c.b16 %v1482, %v1476
      %v1819 = vpack.c.b16 %v1483, %v1477
      %v1820 = vpack.c.b16 %v1484, %v1478
      %v1821 = vpack.c.b16 %v1485, %v1479
      %v1822 = vpack.c.b16 %v1492, %v1486
      %v1823 = vpack.c.b16 %v1493, %v1487
      %v1824 = vpack.c.b16 %v1494, %v1488
      %v1825 = vpack.c.b16 %v1495, %v1489
      %v1826 = vpack.c.b16 %v1496, %v1490
      %v1827 = vpack.c.b16 %v1497, %v1491
      %v1828 = vpack.c.b16 %v1504, %v1498
      %v1829 = vpack.c.b16 %v1505, %v1499
      %v1830 = vpack.c.b16 %v1506, %v1500
      %v1831 = vpack.c.b16 %v1507, %v1501
      %v1832 = vpack.c.b16 %v1508, %v1502
      %v1833 = vpack.c.b16 %v1509, %v1503
      %v1834 = vpack.c.b16 %v1516, %v1510
      %v1835 = vpack.c.b16 %v1517, %v1511
      %v1836 = vpack.c.b16 %v1518, %v1512
      %v1837 = vpack.c.b16 %v1519, %v1513
      %v1838 = vpack.c.b16 %v1520, %v1514
      %v1839 = vpack.c.b16 %v1521, %v1515
      %v1840 = vpack.c.b16 %v1528, %v1522
      %v1841 = vpack.c.b16 %v1529, %v1523
      %v1842 = vpack.c.b16 %v1530, %v1524
      %v1843 = vpack.c.b16 %v1531, %v1525
      %v1844 = vpack.c.b16 %v1532, %v1526
      %v1845 = vpack.c.b16 %v1533, %v1527
      %v1846 = vpack.c.b16 %v1540, %v1534
      %v1847 = vpack.c.b16 %v1541, %v1535
      %v1848 = vpack.c.b16 %v1542, %v1536
      %v1849 = vpack.c.b16 %v1543, %v1537
      %v1850 = vpack.c.b16 %v1544, %v1538
      %v1851 = vpack.c.b16 %v1545, %v1539
      %v1852 = vpack.c.b16 %v1552, %v1546
      %v1853 = vpack.c.b16 %v1553, %v1547
      %v1854 = vpack.c.b16 %v1554, %v1548
      %v1855 = vpack.c.b16 %v1555, %v1549
      %v1856 = vpack.c.b16 %v1556, %v1550
      %v1857 = vpack.c.b16 %v1557, %v1551
      %v1858 = vpack.c.b16 %v1564, %v1558
      %v1859 = vpack.c.b16 %v1565, %v1559
      %v1860 = vpack.c.b16 %v1566, %v1560
      %v1861 = vpack.c.b16 %v1567, %v1561
      %v1862 = vpack.c.b16 %v1568, %v1562
      %v1863 = vpack.c.b16 %v1569, %v1563
      %v1864 = vpack.c.b16 %v1576, %v1570
      %v1865 = vpack.c.b16 %v1577, %v1571
      %v1866 = vpack.c.b16 %v1578, %v1572
      %v1867 = vpack.c.b16 %v1579, %v1573
      %v1868 = vpack.c.b16 %v1580, %v1574
      %v1869 = vpack.c.b16 %v1581, %v1575
      %2158 = vmatprep.subr.bf16.mxu0 %v1583
      %2159 = vmatpush1.bf16.msra.mxu0 %v1582
      %2160 = vmatprep.subr.bf16.mxu0 %v1589
      %2161 = vmatpush1.bf16.msra.mxu0 %v1588
      %2162 = vmatprep.subr.bf16.mxu0 %v1595
      %2163 = vmatpush1.bf16.msra.mxu0 %v1594
      %2164 = vmatprep.subr.bf16.mxu0 %v1601
      %2165 = vmatpush1.bf16.msra.mxu0 %v1600
      %2166 = vmatprep.subr.bf16.mxu0 %v1607
      %2167 = vmatpush1.bf16.msra.mxu0 %v1606
      %2168 = vmatprep.subr.bf16.mxu0 %v1613
      %2169 = vmatpush1.bf16.msra.mxu0 %v1612
      %2170 = vmatprep.subr.bf16.mxu0 %v1619
      %2171 = vmatpush1.bf16.msra.mxu0 %v1618
      %2172 = vmatprep.subr.bf16.mxu0 %v1625
      %2173 = vmatpush1.bf16.msra.mxu0 %v1624
      %2174 = vmatprep.subr.bf16.mxu0 %v1631
      %2175 = vmatpush1.bf16.msra.mxu0 %v1630
      %2176 = vmatprep.subr.bf16.mxu0 %v1637
      %2177 = vmatpush1.bf16.msra.mxu0 %v1636
      %2178 = vmatprep.subr.bf16.mxu0 %v1643
      %2179 = vmatpush1.bf16.msra.mxu0 %v1642
      %2180 = vmatprep.subr.bf16.mxu0 %v1649
      %2181 = vmatpush1.bf16.msra.mxu0 %v1648
      %2182 = vmatprep.subr.bf16.mxu0 %v1655
      %2183 = vmatpush1.bf16.msra.mxu0 %v1654
      %2184 = vmatprep.subr.bf16.mxu0 %v1661
      %2185 = vmatpush1.bf16.msra.mxu0 %v1660
      %2186 = vmatprep.subr.bf16.mxu0 %v1667
      %2187 = vmatpush1.bf16.msra.mxu0 %v1666
      %2188 = vmatprep.subr.bf16.mxu0 %v1673
      %2189 = vmatpush1.bf16.msra.mxu0 %v1672
      %2190 = vmatprep.mubr.bf16.mxu0 %v681
      %2191 = vmatmul.mubr.bf16.gmra.mrb[0].mxu0 %v680
      %v2192 = vpop.f32.mrb[0].mxu0
      %v2193 = vadd.f32 %v691, %v2192
      %v2194 = vpop.f32.mrb[0].mxu0
      %v2195 = vadd.f32 %v695, %v2194
      %v2196 = vpop.f32.mrb[0].mxu0
      %v2197 = vpop.f32.mrb[0].mxu0
      %2198 = vdwg.mxu0
      %2199 = vmatprep.subr.bf16.mxu0 %v1679
      %2200 = vmatpush1.bf16.msra.mxu0 %v1678
      %2201 = vmatprep.subr.bf16.mxu0 %v1685
      %2202 = vmatpush1.bf16.msra.mxu0 %v1684
      %2203 = vmatprep.subr.bf16.mxu0 %v1691
      %2204 = vmatpush1.bf16.msra.mxu0 %v1690
      %2205 = vmatprep.subr.bf16.mxu0 %v1697
      %2206 = vmatpush1.bf16.msra.mxu0 %v1696
      %2207 = vmatprep.subr.bf16.mxu0 %v1703
      %2208 = vmatpush1.bf16.msra.mxu0 %v1702
      %2209 = vmatprep.subr.bf16.mxu0 %v1709
      %2210 = vmatpush1.bf16.msra.mxu0 %v1708
      %2211 = vmatprep.subr.bf16.mxu0 %v1715
      %2212 = vmatpush1.bf16.msra.mxu0 %v1714
      %2213 = vmatprep.subr.bf16.mxu0 %v1721
      %2214 = vmatpush1.bf16.msra.mxu0 %v1720
      %2215 = vmatprep.subr.bf16.mxu0 %v1727
      %2216 = vmatpush1.bf16.msra.mxu0 %v1726
      %2217 = vmatprep.subr.bf16.mxu0 %v1733
      %2218 = vmatpush1.bf16.msra.mxu0 %v1732
      %2219 = vmatprep.subr.bf16.mxu0 %v1739
      %2220 = vmatpush1.bf16.msra.mxu0 %v1738
      %2221 = vmatprep.subr.bf16.mxu0 %v1745
      %2222 = vmatpush1.bf16.msra.mxu0 %v1744
      %2223 = vmatprep.subr.bf16.mxu0 %v1751
      %2224 = vmatpush1.bf16.msra.mxu0 %v1750
      %2225 = vmatprep.subr.bf16.mxu0 %v1757
      %2226 = vmatpush1.bf16.msra.mxu0 %v1756
      %2227 = vmatprep.subr.bf16.mxu0 %v1763
      %2228 = vmatpush1.bf16.msra.mxu0 %v1762
      %2229 = vmatprep.subr.bf16.mxu0 %v1769
      %2230 = vmatpush1.bf16.msra.mxu0 %v1768
      %2231 = vmatprep.mubr.bf16.mxu0 %v683
      %2232 = vmatmul.mubr.bf16.gmra.mrb[0].mxu0 %v682
      %v2233 = vpop.f32.mrb[0].mxu0
      %v2234 = vadd.f32 %v2193, %v2233
      %v2235 = vpop.f32.mrb[0].mxu0
      %v2236 = vadd.f32 %v2195, %v2235
      %v2237 = vpop.f32.mrb[0].mxu0
      %v2238 = vpop.f32.mrb[0].mxu0
      %2239 = vdwg.mxu0
      %2240 = vmatprep.subr.bf16.mxu0 %v1775
      %2241 = vmatpush1.bf16.msra.mxu0 %v1774
      %2242 = vmatprep.subr.bf16.mxu0 %v1781
      %2243 = vmatpush1.bf16.msra.mxu0 %v1780
      %2244 = vmatprep.subr.bf16.mxu0 %v1787
      %2245 = vmatpush1.bf16.msra.mxu0 %v1786
      %2246 = vmatprep.subr.bf16.mxu0 %v1793
      %2247 = vmatpush1.bf16.msra.mxu0 %v1792
      %2248 = vmatprep.subr.bf16.mxu0 %v1799
      %2249 = vmatpush1.bf16.msra.mxu0 %v1798
      %2250 = vmatprep.subr.bf16.mxu0 %v1805
      %2251 = vmatpush1.bf16.msra.mxu0 %v1804
      %2252 = vmatprep.subr.bf16.mxu0 %v1811
      %2253 = vmatpush1.bf16.msra.mxu0 %v1810
      %2254 = vmatprep.subr.bf16.mxu0 %v1817
      %2255 = vmatpush1.bf16.msra.mxu0 %v1816
      %2256 = vmatprep.subr.bf16.mxu0 %v1823
      %2257 = vmatpush1.bf16.msra.mxu0 %v1822
      %2258 = vmatprep.subr.bf16.mxu0 %v1829
      %2259 = vmatpush1.bf16.msra.mxu0 %v1828
      %2260 = vmatprep.subr.bf16.mxu0 %v1835
      %2261 = vmatpush1.bf16.msra.mxu0 %v1834
      %2262 = vmatprep.subr.bf16.mxu0 %v1841
      %2263 = vmatpush1.bf16.msra.mxu0 %v1840
      %2264 = vmatprep.subr.bf16.mxu0 %v1847
      %2265 = vmatpush1.bf16.msra.mxu0 %v1846
      %2266 = vmatprep.subr.bf16.mxu0 %v1853
      %2267 = vmatpush1.bf16.msra.mxu0 %v1852
      %2268 = vmatprep.subr.bf16.mxu0 %v1859
      %2269 = vmatpush1.bf16.msra.mxu0 %v1858
      %2270 = vmatprep.subr.bf16.mxu0 %v1865
      %2271 = vmatpush1.bf16.msra.mxu0 %v1864
      %2272 = vmatprep.mubr.bf16.mxu0 %v685
      %2273 = vmatmul.mubr.bf16.gmra.mrb[0].mxu0 %v684
      %v2274 = vpop.f32.mrb[0].mxu0
      %v2275 = vadd.f32 %v2234, %v2274
      %v2276 = vpop.f32.mrb[0].mxu0
      %v2277 = vadd.f32 %v2236, %v2276
      %v2278 = vpop.f32.mrb[0].mxu0
      %v2279 = vpop.f32.mrb[0].mxu0
      %2280 = vdwg.mxu0
      %2281 = vmatprep.subr.bf16.mxu0 %v1585
      %2282 = vmatpush1.bf16.msra.mxu0 %v1584
      %2283 = vmatprep.subr.bf16.mxu0 %v1591
      %2284 = vmatpush1.bf16.msra.mxu0 %v1590
      %2285 = vmatprep.subr.bf16.mxu0 %v1597
      %2286 = vmatpush1.bf16.msra.mxu0 %v1596
      %2287 = vmatprep.subr.bf16.mxu0 %v1603
      %2288 = vmatpush1.bf16.msra.mxu0 %v1602
      %2289 = vmatprep.subr.bf16.mxu0 %v1609
      %2290 = vmatpush1.bf16.msra.mxu0 %v1608
      %2291 = vmatprep.subr.bf16.mxu0 %v1615
      %2292 = vmatpush1.bf16.msra.mxu0 %v1614
      %2293 = vmatprep.subr.bf16.mxu0 %v1621
      %2294 = vmatpush1.bf16.msra.mxu0 %v1620
      %2295 = vmatprep.subr.bf16.mxu0 %v1627
      %2296 = vmatpush1.bf16.msra.mxu0 %v1626
      %2297 = vmatprep.subr.bf16.mxu0 %v1633
      %2298 = vmatpush1.bf16.msra.mxu0 %v1632
      %2299 = vmatprep.subr.bf16.mxu0 %v1639
      %2300 = vmatpush1.bf16.msra.mxu0 %v1638
      %2301 = vmatprep.subr.bf16.mxu0 %v1645
      %2302 = vmatpush1.bf16.msra.mxu0 %v1644
      %2303 = vmatprep.subr.bf16.mxu0 %v1651
      %2304 = vmatpush1.bf16.msra.mxu0 %v1650
      %2305 = vmatprep.subr.bf16.mxu0 %v1657
      %2306 = vmatpush1.bf16.msra.mxu0 %v1656
      %2307 = vmatprep.subr.bf16.mxu0 %v1663
      %2308 = vmatpush1.bf16.msra.mxu0 %v1662
      %2309 = vmatprep.subr.bf16.mxu0 %v1669
      %2310 = vmatpush1.bf16.msra.mxu0 %v1668
      %2311 = vmatprep.subr.bf16.mxu0 %v1675
      %2312 = vmatpush1.bf16.msra.mxu0 %v1674
      %2313 = vmatprep.mubr.bf16.mxu0 %v681
      %2314 = vmatmul.mubr.bf16.gmra.mrb[0].mxu0 %v680
      %v2315 = vpop.f32.mrb[0].mxu0
      %v2316 = vadd.f32 %v699, %v2315
      %v2317 = vpop.f32.mrb[0].mxu0
      %v2318 = vadd.f32 %v703, %v2317
      %v2319 = vpop.f32.mrb[0].mxu0
      %v2320 = vpop.f32.mrb[0].mxu0
      %2321 = vdwg.mxu0
      %2322 = vmatprep.subr.bf16.mxu0 %v1681
      %2323 = vmatpush1.bf16.msra.mxu0 %v1680
      %2324 = vmatprep.subr.bf16.mxu0 %v1687
      %2325 = vmatpush1.bf16.msra.mxu0 %v1686
      %2326 = vmatprep.subr.bf16.mxu0 %v1693
      %2327 = vmatpush1.bf16.msra.mxu0 %v1692
      %2328 = vmatprep.subr.bf16.mxu0 %v1699
      %2329 = vmatpush1.bf16.msra.mxu0 %v1698
      %2330 = vmatprep.subr.bf16.mxu0 %v1705
      %2331 = vmatpush1.bf16.msra.mxu0 %v1704
      %2332 = vmatprep.subr.bf16.mxu0 %v1711
      %2333 = vmatpush1.bf16.msra.mxu0 %v1710
      %2334 = vmatprep.subr.bf16.mxu0 %v1717
      %2335 = vmatpush1.bf16.msra.mxu0 %v1716
      %2336 = vmatprep.subr.bf16.mxu0 %v1723
      %2337 = vmatpush1.bf16.msra.mxu0 %v1722
      %2338 = vmatprep.subr.bf16.mxu0 %v1729
      %2339 = vmatpush1.bf16.msra.mxu0 %v1728
      %2340 = vmatprep.subr.bf16.mxu0 %v1735
      %2341 = vmatpush1.bf16.msra.mxu0 %v1734
      %2342 = vmatprep.subr.bf16.mxu0 %v1741
      %2343 = vmatpush1.bf16.msra.mxu0 %v1740
      %2344 = vmatprep.subr.bf16.mxu0 %v1747
      %2345 = vmatpush1.bf16.msra.mxu0 %v1746
      %2346 = vmatprep.subr.bf16.mxu0 %v1753
      %2347 = vmatpush1.bf16.msra.mxu0 %v1752
      %2348 = vmatprep.subr.bf16.mxu0 %v1759
      %2349 = vmatpush1.bf16.msra.mxu0 %v1758
      %2350 = vmatprep.subr.bf16.mxu0 %v1765
      %2351 = vmatpush1.bf16.msra.mxu0 %v1764
      %2352 = vmatprep.subr.bf16.mxu0 %v1771
      %2353 = vmatpush1.bf16.msra.mxu0 %v1770
      %2354 = vmatprep.mubr.bf16.mxu0 %v683
      %2355 = vmatmul.mubr.bf16.gmra.mrb[0].mxu0 %v682
      %v2356 = vpop.f32.mrb[0].mxu0
      %v2357 = vadd.f32 %v2316, %v2356
      %v2358 = vpop.f32.mrb[0].mxu0
      %v2359 = vadd.f32 %v2318, %v2358
      %v2360 = vpop.f32.mrb[0].mxu0
      %v2361 = vpop.f32.mrb[0].mxu0
      %2362 = vdwg.mxu0
      %2363 = vmatprep.subr.bf16.mxu0 %v1777
      %2364 = vmatpush1.bf16.msra.mxu0 %v1776
      %2365 = vmatprep.subr.bf16.mxu0 %v1783
      %2366 = vmatpush1.bf16.msra.mxu0 %v1782
      %2367 = vmatprep.subr.bf16.mxu0 %v1789
      %2368 = vmatpush1.bf16.msra.mxu0 %v1788
      %2369 = vmatprep.subr.bf16.mxu0 %v1795
      %2370 = vmatpush1.bf16.msra.mxu0 %v1794
      %2371 = vmatprep.subr.bf16.mxu0 %v1801
      %2372 = vmatpush1.bf16.msra.mxu0 %v1800
      %2373 = vmatprep.subr.bf16.mxu0 %v1807
      %2374 = vmatpush1.bf16.msra.mxu0 %v1806
      %2375 = vmatprep.subr.bf16.mxu0 %v1813
      %2376 = vmatpush1.bf16.msra.mxu0 %v1812
      %2377 = vmatprep.subr.bf16.mxu0 %v1819
      %2378 = vmatpush1.bf16.msra.mxu0 %v1818
      %2379 = vmatprep.subr.bf16.mxu0 %v1825
      %2380 = vmatpush1.bf16.msra.mxu0 %v1824
      %2381 = vmatprep.subr.bf16.mxu0 %v1831
      %2382 = vmatpush1.bf16.msra.mxu0 %v1830
      %2383 = vmatprep.subr.bf16.mxu0 %v1837
      %2384 = vmatpush1.bf16.msra.mxu0 %v1836
      %2385 = vmatprep.subr.bf16.mxu0 %v1843
      %2386 = vmatpush1.bf16.msra.mxu0 %v1842
      %2387 = vmatprep.subr.bf16.mxu0 %v1849
      %2388 = vmatpush1.bf16.msra.mxu0 %v1848
      %2389 = vmatprep.subr.bf16.mxu0 %v1855
      %2390 = vmatpush1.bf16.msra.mxu0 %v1854
      %2391 = vmatprep.subr.bf16.mxu0 %v1861
      %2392 = vmatpush1.bf16.msra.mxu0 %v1860
      %2393 = vmatprep.subr.bf16.mxu0 %v1867
      %2394 = vmatpush1.bf16.msra.mxu0 %v1866
      %2395 = vmatprep.mubr.bf16.mxu0 %v685
      %2396 = vmatmul.mubr.bf16.gmra.mrb[0].mxu0 %v684
      %v2397 = vpop.f32.mrb[0].mxu0
      %v2398 = vadd.f32 %v2357, %v2397
      %v2399 = vpop.f32.mrb[0].mxu0
      %v2400 = vadd.f32 %v2359, %v2399
      %v2401 = vpop.f32.mrb[0].mxu0
      %v2402 = vpop.f32.mrb[0].mxu0
      %2403 = vdwg.mxu0
      %2404 = vmatprep.subr.bf16.mxu0 %v1587
      %2405 = vmatpush1.bf16.msra.mxu0 %v1586
      %2406 = vmatprep.subr.bf16.mxu0 %v1593
      %2407 = vmatpush1.bf16.msra.mxu0 %v1592
      %2408 = vmatprep.subr.bf16.mxu0 %v1599
      %2409 = vmatpush1.bf16.msra.mxu0 %v1598
      %2410 = vmatprep.subr.bf16.mxu0 %v1605
      %2411 = vmatpush1.bf16.msra.mxu0 %v1604
      %2412 = vmatprep.subr.bf16.mxu0 %v1611
      %2413 = vmatpush1.bf16.msra.mxu0 %v1610
      %2414 = vmatprep.subr.bf16.mxu0 %v1617
      %2415 = vmatpush1.bf16.msra.mxu0 %v1616
      %2416 = vmatprep.subr.bf16.mxu0 %v1623
      %2417 = vmatpush1.bf16.msra.mxu0 %v1622
      %2418 = vmatprep.subr.bf16.mxu0 %v1629
      %2419 = vmatpush1.bf16.msra.mxu0 %v1628
      %2420 = vmatprep.subr.bf16.mxu0 %v1635
      %2421 = vmatpush1.bf16.msra.mxu0 %v1634
      %2422 = vmatprep.subr.bf16.mxu0 %v1641
      %2423 = vmatpush1.bf16.msra.mxu0 %v1640
      %2424 = vmatprep.subr.bf16.mxu0 %v1647
      %2425 = vmatpush1.bf16.msra.mxu0 %v1646
      %2426 = vmatprep.subr.bf16.mxu0 %v1653
      %2427 = vmatpush1.bf16.msra.mxu0 %v1652
      %2428 = vmatprep.subr.bf16.mxu0 %v1659
      %2429 = vmatpush1.bf16.msra.mxu0 %v1658
      %2430 = vmatprep.subr.bf16.mxu0 %v1665
      %2431 = vmatpush1.bf16.msra.mxu0 %v1664
      %2432 = vmatprep.subr.bf16.mxu0 %v1671
      %2433 = vmatpush1.bf16.msra.mxu0 %v1670
      %2434 = vmatprep.subr.bf16.mxu0 %v1677
      %2435 = vmatpush1.bf16.msra.mxu0 %v1676
      %2436 = vmatprep.mubr.bf16.mxu0 %v681
      %2437 = vmatmul.mubr.bf16.gmra.mrb[0].mxu0 %v680
      %v2438 = vpop.f32.mrb[0].mxu0
      %v2439 = vadd.f32 %v707, %v2438
      %v2440 = vpop.f32.mrb[0].mxu0
      %v2441 = vadd.f32 %v711, %v2440
      %v2442 = vpop.f32.mrb[0].mxu0
      %v2443 = vpop.f32.mrb[0].mxu0
      %2444 = vdwg.mxu0
      %2445 = vmatprep.subr.bf16.mxu0 %v1683
      %2446 = vmatpush1.bf16.msra.mxu0 %v1682
      %2447 = vmatprep.subr.bf16.mxu0 %v1689
      %2448 = vmatpush1.bf16.msra.mxu0 %v1688
      %2449 = vmatprep.subr.bf16.mxu0 %v1695
      %2450 = vmatpush1.bf16.msra.mxu0 %v1694
      %2451 = vmatprep.subr.bf16.mxu0 %v1701
      %2452 = vmatpush1.bf16.msra.mxu0 %v1700
      %2453 = vmatprep.subr.bf16.mxu0 %v1707
      %2454 = vmatpush1.bf16.msra.mxu0 %v1706
      %2455 = vmatprep.subr.bf16.mxu0 %v1713
      %2456 = vmatpush1.bf16.msra.mxu0 %v1712
      %2457 = vmatprep.subr.bf16.mxu0 %v1719
      %2458 = vmatpush1.bf16.msra.mxu0 %v1718
      %2459 = vmatprep.subr.bf16.mxu0 %v1725
      %2460 = vmatpush1.bf16.msra.mxu0 %v1724
      %2461 = vmatprep.subr.bf16.mxu0 %v1731
      %2462 = vmatpush1.bf16.msra.mxu0 %v1730
      %2463 = vmatprep.subr.bf16.mxu0 %v1737
      %2464 = vmatpush1.bf16.msra.mxu0 %v1736
      %2465 = vmatprep.subr.bf16.mxu0 %v1743
      %2466 = vmatpush1.bf16.msra.mxu0 %v1742
      %2467 = vmatprep.subr.bf16.mxu0 %v1749
      %2468 = vmatpush1.bf16.msra.mxu0 %v1748
      %2469 = vmatprep.subr.bf16.mxu0 %v1755
      %2470 = vmatpush1.bf16.msra.mxu0 %v1754
      %2471 = vmatprep.subr.bf16.mxu0 %v1761
      %2472 = vmatpush1.bf16.msra.mxu0 %v1760
      %2473 = vmatprep.subr.bf16.mxu0 %v1767
      %2474 = vmatpush1.bf16.msra.mxu0 %v1766
      %2475 = vmatprep.subr.bf16.mxu0 %v1773
      %2476 = vmatpush1.bf16.msra.mxu0 %v1772
      %2477 = vmatprep.mubr.bf16.mxu0 %v683
      %2478 = vmatmul.mubr.bf16.gmra.mrb[0].mxu0 %v682
      %v2479 = vpop.f32.mrb[0].mxu0
      %v2480 = vadd.f32 %v2439, %v2479
      %v2481 = vpop.f32.mrb[0].mxu0
      %v2482 = vadd.f32 %v2441, %v2481
      %v2483 = vpop.f32.mrb[0].mxu0
      %v2484 = vpop.f32.mrb[0].mxu0
      %2485 = vdwg.mxu0
      %2486 = vmatprep.subr.bf16.mxu0 %v1779
      %2487 = vmatpush1.bf16.msra.mxu0 %v1778
      %2488 = vmatprep.subr.bf16.mxu0 %v1785
      %2489 = vmatpush1.bf16.msra.mxu0 %v1784
      %2490 = vmatprep.subr.bf16.mxu0 %v1791
      %2491 = vmatpush1.bf16.msra.mxu0 %v1790
      %2492 = vmatprep.subr.bf16.mxu0 %v1797
      %2493 = vmatpush1.bf16.msra.mxu0 %v1796
      %2494 = vmatprep.subr.bf16.mxu0 %v1803
      %2495 = vmatpush1.bf16.msra.mxu0 %v1802
      %2496 = vmatprep.subr.bf16.mxu0 %v1809
      %2497 = vmatpush1.bf16.msra.mxu0 %v1808
      %2498 = vmatprep.subr.bf16.mxu0 %v1815
      %2499 = vmatpush1.bf16.msra.mxu0 %v1814
      %2500 = vmatprep.subr.bf16.mxu0 %v1821
      %2501 = vmatpush1.bf16.msra.mxu0 %v1820
      %2502 = vmatprep.subr.bf16.mxu0 %v1827
      %2503 = vmatpush1.bf16.msra.mxu0 %v1826
      %2504 = vmatprep.subr.bf16.mxu0 %v1833
      %2505 = vmatpush1.bf16.msra.mxu0 %v1832
      %2506 = vmatprep.subr.bf16.mxu0 %v1839
      %2507 = vmatpush1.bf16.msra.mxu0 %v1838
      %2508 = vmatprep.subr.bf16.mxu0 %v1845
      %2509 = vmatpush1.bf16.msra.mxu0 %v1844
      %2510 = vmatprep.subr.bf16.mxu0 %v1851
      %2511 = vmatpush1.bf16.msra.mxu0 %v1850
      %2512 = vmatprep.subr.bf16.mxu0 %v1857
      %2513 = vmatpush1.bf16.msra.mxu0 %v1856
      %2514 = vmatprep.subr.bf16.mxu0 %v1863
      %2515 = vmatpush1.bf16.msra.mxu0 %v1862
      %2516 = vmatprep.subr.bf16.mxu0 %v1869
      %2517 = vmatpush1.bf16.msra.mxu0 %v1868
      %2518 = vmatprep.mubr.bf16.mxu0 %v685
      %2519 = vmatmul.mubr.bf16.gmra.mrb[0].mxu0 %v684
      %v2520 = vpop.f32.mrb[0].mxu0
      %v2521 = vadd.f32 %v2480, %v2520
      %v2522 = vpop.f32.mrb[0].mxu0
      %v2523 = vadd.f32 %v2482, %v2522
      %v2524 = vpop.f32.mrb[0].mxu0
      %v2525 = vpop.f32.mrb[0].mxu0
      %2526 = vdwg.mxu0
      %v2527 = vmax.f32 %v2275, 0.0
      %v2528 = vmax.f32 %v2277, 0.0
      %v2529 = vmax.f32 %v2398, 0.0
      %v2530 = vmax.f32 %v2400, 0.0
      %v2531 = vmax.f32 %v2521, 0.0
      %v2532 = vmax.f32 %v2523, 0.0
      %v2533 = vld [vmem:[%s3] sm:$0xff]
      %v2534 = vld [vmem:[%s3 + $0x8] sm:$0xff]
      %v2535 = vld [vmem:[%s3 + $0x10] sm:$0xff]
      %v2536 = vld [vmem:[%s3 + $0x18] sm:$0xff]
      %v2537 = vld [vmem:[%s3 + $0x20] sm:$0xff]
      %v2538 = vld [vmem:[%s3 + $0x28] sm:$0xff]
      %v2539 = vld [vmem:[%s3 + $0x30] sm:$0xff]
      %v2540 = vld [vmem:[%s3 + $0x38] sm:$0xff]
      %v2541 = vld [vmem:[%s3 + $0x40] sm:$0xff]
      %v2542 = vld [vmem:[%s3 + $0x48] sm:$0xff]
      %v2543 = vld [vmem:[%s3 + $0x50] sm:$0xff]
      %v2544 = vld [vmem:[%s3 + $0x58] sm:$0xff]
      %v2545 = vld [vmem:[%s3 + $0x60] sm:$0xff]
      %v2546 = vld [vmem:[%s3 + $0x68] sm:$0xff]
      %v2547 = vld [vmem:[%s3 + $0x70] sm:$0xff]
      %v2548 = vld [vmem:[%s3 + $0x78] sm:$0xff]
      %v2549 = vld [vmem:[%s3 + $0x80] sm:$0xff]
      %v2550 = vld [vmem:[%s3 + $0x88] sm:$0xff]
      %v2551 = vld [vmem:[%s3 + $0x90] sm:$0xff]
      %v2552 = vld [vmem:[%s3 + $0x98] sm:$0xff]
      %v2553 = vld [vmem:[%s3 + $0xa0] sm:$0xff]
      %v2554 = vld [vmem:[%s3 + $0xa8] sm:$0xff]
      %v2555 = vld [vmem:[%s3 + $0xb0] sm:$0xff]
      %v2556 = vld [vmem:[%s3 + $0xb8] sm:$0xff]
      %v2557 = vld [vmem:[%s3 + $0xc0] sm:$0xff]
      %v2558 = vld [vmem:[%s3 + $0xc8] sm:$0xff]
      %v2559 = vld [vmem:[%s3 + $0xd0] sm:$0xff]
      %v2560 = vld [vmem:[%s3 + $0xd8] sm:$0xff]
      %v2561 = vld [vmem:[%s3 + $0xe0] sm:$0xff]
      %v2562 = vld [vmem:[%s3 + $0xe8] sm:$0xff]
      %v2563 = vld [vmem:[%s3 + $0xf0] sm:$0xff]
      %v2564 = vld [vmem:[%s3 + $0xf8] sm:$0xff]
      %v2565 = vld [vmem:[%s3 + $0x100] sm:$0xff]
      %v2566 = vld [vmem:[%s3 + $0x108] sm:$0xff]
      %v2567 = vld [vmem:[%s3 + $0x110] sm:$0xff]
      %v2568 = vld [vmem:[%s3 + $0x118] sm:$0xff]
      %v2569 = vld [vmem:[%s3 + $0x120] sm:$0xff]
      %v2570 = vld [vmem:[%s3 + $0x128] sm:$0xff]
      %v2571 = vld [vmem:[%s3 + $0x130] sm:$0xff]
      %v2572 = vld [vmem:[%s3 + $0x138] sm:$0xff]
      %v2573 = vld [vmem:[%s3 + $0x140] sm:$0xff]
      %v2574 = vld [vmem:[%s3 + $0x148] sm:$0xff]
      %v2575 = vld [vmem:[%s3 + $0x150] sm:$0xff]
      %v2576 = vld [vmem:[%s3 + $0x158] sm:$0xff]
      %v2577 = vld [vmem:[%s3 + $0x160] sm:$0xff]
      %v2578 = vld [vmem:[%s3 + $0x168] sm:$0xff]
      %v2579 = vld [vmem:[%s3 + $0x170] sm:$0xff]
      %v2580 = vld [vmem:[%s3 + $0x178] sm:$0xff]
      %v2581 = vld [vmem:[%s3 + $0x180] sm:$0xff]
      %v2582 = vld [vmem:[%s3 + $0x188] sm:$0xff]
      %v2583 = vld [vmem:[%s3 + $0x190] sm:$0xff]
      %v2584 = vld [vmem:[%s3 + $0x198] sm:$0xff]
      %v2585 = vld [vmem:[%s3 + $0x1a0] sm:$0xff]
      %v2586 = vld [vmem:[%s3 + $0x1a8] sm:$0xff]
      %v2587 = vld [vmem:[%s3 + $0x1b0] sm:$0xff]
      %v2588 = vld [vmem:[%s3 + $0x1b8] sm:$0xff]
      %v2589 = vld [vmem:[%s3 + $0x1c0] sm:$0xff]
      %v2590 = vld [vmem:[%s3 + $0x1c8] sm:$0xff]
      %v2591 = vld [vmem:[%s3 + $0x1d0] sm:$0xff]
      %v2592 = vld [vmem:[%s3 + $0x1d8] sm:$0xff]
      %v2593 = vld [vmem:[%s3 + $0x1e0] sm:$0xff]
      %v2594 = vld [vmem:[%s3 + $0x1e8] sm:$0xff]
      %v2595 = vld [vmem:[%s3 + $0x1f0] sm:$0xff]
      %v2596 = vld [vmem:[%s3 + $0x1f8] sm:$0xff]
      %v2597 = vld [vmem:[%s3 + $0x200] sm:$0xff]
      %v2598 = vld [vmem:[%s3 + $0x208] sm:$0xff]
      %v2599 = vld [vmem:[%s3 + $0x210] sm:$0xff]
      %v2600 = vld [vmem:[%s3 + $0x218] sm:$0xff]
      %v2601 = vld [vmem:[%s3 + $0x220] sm:$0xff]
      %v2602 = vld [vmem:[%s3 + $0x228] sm:$0xff]
      %v2603 = vld [vmem:[%s3 + $0x230] sm:$0xff]
      %v2604 = vld [vmem:[%s3 + $0x238] sm:$0xff]
      %v2605 = vld [vmem:[%s3 + $0x240] sm:$0xff]
      %v2606 = vld [vmem:[%s3 + $0x248] sm:$0xff]
      %v2607 = vld [vmem:[%s3 + $0x250] sm:$0xff]
      %v2608 = vld [vmem:[%s3 + $0x258] sm:$0xff]
      %v2609 = vld [vmem:[%s3 + $0x260] sm:$0xff]
      %v2610 = vld [vmem:[%s3 + $0x268] sm:$0xff]
      %v2611 = vld [vmem:[%s3 + $0x270] sm:$0xff]
      %v2612 = vld [vmem:[%s3 + $0x278] sm:$0xff]
      %v2613 = vld [vmem:[%s3 + $0x280] sm:$0xff]
      %v2614 = vld [vmem:[%s3 + $0x288] sm:$0xff]
      %v2615 = vld [vmem:[%s3 + $0x290] sm:$0xff]
      %v2616 = vld [vmem:[%s3 + $0x298] sm:$0xff]
      %v2617 = vld [vmem:[%s3 + $0x2a0] sm:$0xff]
      %v2618 = vld [vmem:[%s3 + $0x2a8] sm:$0xff]
      %v2619 = vld [vmem:[%s3 + $0x2b0] sm:$0xff]
      %v2620 = vld [vmem:[%s3 + $0x2b8] sm:$0xff]
      %v2621 = vld [vmem:[%s3 + $0x2c0] sm:$0xff]
      %v2622 = vld [vmem:[%s3 + $0x2c8] sm:$0xff]
      %v2623 = vld [vmem:[%s3 + $0x2d0] sm:$0xff]
      %v2624 = vld [vmem:[%s3 + $0x2d8] sm:$0xff]
      %v2625 = vld [vmem:[%s3 + $0x2e0] sm:$0xff]
      %v2626 = vld [vmem:[%s3 + $0x2e8] sm:$0xff]
      %v2627 = vld [vmem:[%s3 + $0x2f0] sm:$0xff]
      %v2628 = vld [vmem:[%s3 + $0x2f8] sm:$0xff]
      %v2629 = vld [vmem:[%s3 + $0x300] sm:$0xff]
      %v2630 = vld [vmem:[%s3 + $0x308] sm:$0xff]
      %v2631 = vld [vmem:[%s3 + $0x310] sm:$0xff]
      %v2632 = vld [vmem:[%s3 + $0x318] sm:$0xff]
      %v2633 = vld [vmem:[%s3 + $0x320] sm:$0xff]
      %v2634 = vld [vmem:[%s3 + $0x328] sm:$0xff]
      %v2635 = vld [vmem:[%s3 + $0x330] sm:$0xff]
      %v2636 = vld [vmem:[%s3 + $0x338] sm:$0xff]
      %v2637 = vld [vmem:[%s3 + $0x340] sm:$0xff]
      %v2638 = vld [vmem:[%s3 + $0x348] sm:$0xff]
      %v2639 = vld [vmem:[%s3 + $0x350] sm:$0xff]
      %v2640 = vld [vmem:[%s3 + $0x358] sm:$0xff]
      %v2641 = vld [vmem:[%s3 + $0x360] sm:$0xff]
      %v2642 = vld [vmem:[%s3 + $0x368] sm:$0xff]
      %v2643 = vld [vmem:[%s3 + $0x370] sm:$0xff]
      %v2644 = vld [vmem:[%s3 + $0x378] sm:$0xff]
      %v2645 = vld [vmem:[%s3 + $0x380] sm:$0xff]
      %v2646 = vld [vmem:[%s3 + $0x388] sm:$0xff]
      %v2647 = vld [vmem:[%s3 + $0x390] sm:$0xff]
      %v2648 = vld [vmem:[%s3 + $0x398] sm:$0xff]
      %v2649 = vld [vmem:[%s3 + $0x3a0] sm:$0xff]
      %v2650 = vld [vmem:[%s3 + $0x3a8] sm:$0xff]
      %v2651 = vld [vmem:[%s3 + $0x3b0] sm:$0xff]
      %v2652 = vld [vmem:[%s3 + $0x3b8] sm:$0xff]
      %v2653 = vld [vmem:[%s3 + $0x3c0] sm:$0xff]
      %v2654 = vld [vmem:[%s3 + $0x3c8] sm:$0xff]
      %v2655 = vld [vmem:[%s3 + $0x3d0] sm:$0xff]
      %v2656 = vld [vmem:[%s3 + $0x3d8] sm:$0xff]
      %v2657 = vld [vmem:[%s3 + $0x3e0] sm:$0xff]
      %v2658 = vld [vmem:[%s3 + $0x3e8] sm:$0xff]
      %v2659 = vld [vmem:[%s3 + $0x3f0] sm:$0xff]
      %v2660 = vld [vmem:[%s3 + $0x3f8] sm:$0xff]
      %v2661 = vld [vmem:[%s3 + $0x400] sm:$0xff]
      %v2662 = vld [vmem:[%s3 + $0x408] sm:$0xff]
      %v2663 = vld [vmem:[%s3 + $0x410] sm:$0xff]
      %v2664 = vld [vmem:[%s3 + $0x418] sm:$0xff]
      %v2665 = vld [vmem:[%s3 + $0x420] sm:$0xff]
      %v2666 = vld [vmem:[%s3 + $0x428] sm:$0xff]
      %v2667 = vld [vmem:[%s3 + $0x430] sm:$0xff]
      %v2668 = vld [vmem:[%s3 + $0x438] sm:$0xff]
      %v2669 = vld [vmem:[%s3 + $0x440] sm:$0xff]
      %v2670 = vld [vmem:[%s3 + $0x448] sm:$0xff]
      %v2671 = vld [vmem:[%s3 + $0x450] sm:$0xff]
      %v2672 = vld [vmem:[%s3 + $0x458] sm:$0xff]
      %v2673 = vld [vmem:[%s3 + $0x460] sm:$0xff]
      %v2674 = vld [vmem:[%s3 + $0x468] sm:$0xff]
      %v2675 = vld [vmem:[%s3 + $0x470] sm:$0xff]
      %v2676 = vld [vmem:[%s3 + $0x478] sm:$0xff]
      %v2677 = vld [vmem:[%s3 + $0x480] sm:$0xff]
      %v2678 = vld [vmem:[%s3 + $0x488] sm:$0xff]
      %v2679 = vld [vmem:[%s3 + $0x490] sm:$0xff]
      %v2680 = vld [vmem:[%s3 + $0x498] sm:$0xff]
      %v2681 = vld [vmem:[%s3 + $0x4a0] sm:$0xff]
      %v2682 = vld [vmem:[%s3 + $0x4a8] sm:$0xff]
      %v2683 = vld [vmem:[%s3 + $0x4b0] sm:$0xff]
      %v2684 = vld [vmem:[%s3 + $0x4b8] sm:$0xff]
      %v2685 = vld [vmem:[%s3 + $0x4c0] sm:$0xff]
      %v2686 = vld [vmem:[%s3 + $0x4c8] sm:$0xff]
      %v2687 = vld [vmem:[%s3 + $0x4d0] sm:$0xff]
      %v2688 = vld [vmem:[%s3 + $0x4d8] sm:$0xff]
      %v2689 = vld [vmem:[%s3 + $0x4e0] sm:$0xff]
      %v2690 = vld [vmem:[%s3 + $0x4e8] sm:$0xff]
      %v2691 = vld [vmem:[%s3 + $0x4f0] sm:$0xff]
      %v2692 = vld [vmem:[%s3 + $0x4f8] sm:$0xff]
      %v2693 = vld [vmem:[%s3 + $0x500] sm:$0xff]
      %v2694 = vld [vmem:[%s3 + $0x508] sm:$0xff]
      %v2695 = vld [vmem:[%s3 + $0x510] sm:$0xff]
      %v2696 = vld [vmem:[%s3 + $0x518] sm:$0xff]
      %v2697 = vld [vmem:[%s3 + $0x520] sm:$0xff]
      %v2698 = vld [vmem:[%s3 + $0x528] sm:$0xff]
      %v2699 = vld [vmem:[%s3 + $0x530] sm:$0xff]
      %v2700 = vld [vmem:[%s3 + $0x538] sm:$0xff]
      %v2701 = vld [vmem:[%s3 + $0x540] sm:$0xff]
      %v2702 = vld [vmem:[%s3 + $0x548] sm:$0xff]
      %v2703 = vld [vmem:[%s3 + $0x550] sm:$0xff]
      %v2704 = vld [vmem:[%s3 + $0x558] sm:$0xff]
      %v2705 = vld [vmem:[%s3 + $0x560] sm:$0xff]
      %v2706 = vld [vmem:[%s3 + $0x568] sm:$0xff]
      %v2707 = vld [vmem:[%s3 + $0x570] sm:$0xff]
      %v2708 = vld [vmem:[%s3 + $0x578] sm:$0xff]
      %v2709 = vld [vmem:[%s3 + $0x580] sm:$0xff]
      %v2710 = vld [vmem:[%s3 + $0x588] sm:$0xff]
      %v2711 = vld [vmem:[%s3 + $0x590] sm:$0xff]
      %v2712 = vld [vmem:[%s3 + $0x598] sm:$0xff]
      %v2713 = vld [vmem:[%s3 + $0x5a0] sm:$0xff]
      %v2714 = vld [vmem:[%s3 + $0x5a8] sm:$0xff]
      %v2715 = vld [vmem:[%s3 + $0x5b0] sm:$0xff]
      %v2716 = vld [vmem:[%s3 + $0x5b8] sm:$0xff]
      %v2717 = vld [vmem:[%s3 + $0x5c0] sm:$0xff]
      %v2718 = vld [vmem:[%s3 + $0x5c8] sm:$0xff]
      %v2719 = vld [vmem:[%s3 + $0x5d0] sm:$0xff]
      %v2720 = vld [vmem:[%s3 + $0x5d8] sm:$0xff]
      %v2721 = vld [vmem:[%s3 + $0x5e0] sm:$0xff]
      %v2722 = vld [vmem:[%s3 + $0x5e8] sm:$0xff]
      %v2723 = vld [vmem:[%s3 + $0x5f0] sm:$0xff]
      %v2724 = vld [vmem:[%s3 + $0x5f8] sm:$0xff]
      %v2725 = vld [vmem:[%s3 + $0x600] sm:$0xff]
      %v2726 = vld [vmem:[%s3 + $0x608] sm:$0xff]
      %v2727 = vld [vmem:[%s3 + $0x610] sm:$0xff]
      %v2728 = vld [vmem:[%s3 + $0x618] sm:$0xff]
      %v2729 = vld [vmem:[%s3 + $0x620] sm:$0xff]
      %v2730 = vld [vmem:[%s3 + $0x628] sm:$0xff]
      %v2731 = vld [vmem:[%s3 + $0x630] sm:$0xff]
      %v2732 = vld [vmem:[%s3 + $0x638] sm:$0xff]
      %v2733 = vld [vmem:[%s3 + $0x640] sm:$0xff]
      %v2734 = vld [vmem:[%s3 + $0x648] sm:$0xff]
      %v2735 = vld [vmem:[%s3 + $0x650] sm:$0xff]
      %v2736 = vld [vmem:[%s3 + $0x658] sm:$0xff]
      %v2737 = vld [vmem:[%s3 + $0x660] sm:$0xff]
      %v2738 = vld [vmem:[%s3 + $0x668] sm:$0xff]
      %v2739 = vld [vmem:[%s3 + $0x670] sm:$0xff]
      %v2740 = vld [vmem:[%s3 + $0x678] sm:$0xff]
      %v2741 = vld [vmem:[%s3 + $0x680] sm:$0xff]
      %v2742 = vld [vmem:[%s3 + $0x688] sm:$0xff]
      %v2743 = vld [vmem:[%s3 + $0x690] sm:$0xff]
      %v2744 = vld [vmem:[%s3 + $0x698] sm:$0xff]
      %v2745 = vld [vmem:[%s3 + $0x6a0] sm:$0xff]
      %v2746 = vld [vmem:[%s3 + $0x6a8] sm:$0xff]
      %v2747 = vld [vmem:[%s3 + $0x6b0] sm:$0xff]
      %v2748 = vld [vmem:[%s3 + $0x6b8] sm:$0xff]
      %v2749 = vld [vmem:[%s3 + $0x6c0] sm:$0xff]
      %v2750 = vld [vmem:[%s3 + $0x6c8] sm:$0xff]
      %v2751 = vld [vmem:[%s3 + $0x6d0] sm:$0xff]
      %v2752 = vld [vmem:[%s3 + $0x6d8] sm:$0xff]
      %v2753 = vld [vmem:[%s3 + $0x6e0] sm:$0xff]
      %v2754 = vld [vmem:[%s3 + $0x6e8] sm:$0xff]
      %v2755 = vld [vmem:[%s3 + $0x6f0] sm:$0xff]
      %v2756 = vld [vmem:[%s3 + $0x6f8] sm:$0xff]
      %v2757 = vld [vmem:[%s3 + $0x700] sm:$0xff]
      %v2758 = vld [vmem:[%s3 + $0x708] sm:$0xff]
      %v2759 = vld [vmem:[%s3 + $0x710] sm:$0xff]
      %v2760 = vld [vmem:[%s3 + $0x718] sm:$0xff]
      %v2761 = vld [vmem:[%s3 + $0x720] sm:$0xff]
      %v2762 = vld [vmem:[%s3 + $0x728] sm:$0xff]
      %v2763 = vld [vmem:[%s3 + $0x730] sm:$0xff]
      %v2764 = vld [vmem:[%s3 + $0x738] sm:$0xff]
      %v2765 = vld [vmem:[%s3 + $0x740] sm:$0xff]
      %v2766 = vld [vmem:[%s3 + $0x748] sm:$0xff]
      %v2767 = vld [vmem:[%s3 + $0x750] sm:$0xff]
      %v2768 = vld [vmem:[%s3 + $0x758] sm:$0xff]
      %v2769 = vld [vmem:[%s3 + $0x760] sm:$0xff]
      %v2770 = vld [vmem:[%s3 + $0x768] sm:$0xff]
      %v2771 = vld [vmem:[%s3 + $0x770] sm:$0xff]
      %v2772 = vld [vmem:[%s3 + $0x778] sm:$0xff]
      %v2773 = vld [vmem:[%s3 + $0x780] sm:$0xff]
      %v2774 = vld [vmem:[%s3 + $0x788] sm:$0xff]
      %v2775 = vld [vmem:[%s3 + $0x790] sm:$0xff]
      %v2776 = vld [vmem:[%s3 + $0x798] sm:$0xff]
      %v2777 = vld [vmem:[%s3 + $0x7a0] sm:$0xff]
      %v2778 = vld [vmem:[%s3 + $0x7a8] sm:$0xff]
      %v2779 = vld [vmem:[%s3 + $0x7b0] sm:$0xff]
      %v2780 = vld [vmem:[%s3 + $0x7b8] sm:$0xff]
      %v2781 = vld [vmem:[%s3 + $0x7c0] sm:$0xff]
      %v2782 = vld [vmem:[%s3 + $0x7c8] sm:$0xff]
      %v2783 = vld [vmem:[%s3 + $0x7d0] sm:$0xff]
      %v2784 = vld [vmem:[%s3 + $0x7d8] sm:$0xff]
      %v2785 = vld [vmem:[%s3 + $0x7e0] sm:$0xff]
      %v2786 = vld [vmem:[%s3 + $0x7e8] sm:$0xff]
      %v2787 = vld [vmem:[%s3 + $0x7f0] sm:$0xff]
      %v2788 = vld [vmem:[%s3 + $0x7f8] sm:$0xff]
      %v2789 = vld [vmem:[%s3 + $0x800] sm:$0xff]
      %v2790 = vld [vmem:[%s3 + $0x808] sm:$0xff]
      %v2791 = vld [vmem:[%s3 + $0x810] sm:$0xff]
      %v2792 = vld [vmem:[%s3 + $0x818] sm:$0xff]
      %v2793 = vld [vmem:[%s3 + $0x820] sm:$0xff]
      %v2794 = vld [vmem:[%s3 + $0x828] sm:$0xff]
      %v2795 = vld [vmem:[%s3 + $0x830] sm:$0xff]
      %v2796 = vld [vmem:[%s3 + $0x838] sm:$0xff]
      %v2797 = vld [vmem:[%s3 + $0x840] sm:$0xff]
      %v2798 = vld [vmem:[%s3 + $0x848] sm:$0xff]
      %v2799 = vld [vmem:[%s3 + $0x850] sm:$0xff]
      %v2800 = vld [vmem:[%s3 + $0x858] sm:$0xff]
      %v2801 = vld [vmem:[%s3 + $0x860] sm:$0xff]
      %v2802 = vld [vmem:[%s3 + $0x868] sm:$0xff]
      %v2803 = vld [vmem:[%s3 + $0x870] sm:$0xff]
      %v2804 = vld [vmem:[%s3 + $0x878] sm:$0xff]
      %v2805 = vld [vmem:[%s3 + $0x880] sm:$0xff]
      %v2806 = vld [vmem:[%s3 + $0x888] sm:$0xff]
      %v2807 = vld [vmem:[%s3 + $0x890] sm:$0xff]
      %v2808 = vld [vmem:[%s3 + $0x898] sm:$0xff]
      %v2809 = vld [vmem:[%s3 + $0x8a0] sm:$0xff]
      %v2810 = vld [vmem:[%s3 + $0x8a8] sm:$0xff]
      %v2811 = vld [vmem:[%s3 + $0x8b0] sm:$0xff]
      %v2812 = vld [vmem:[%s3 + $0x8b8] sm:$0xff]
      %v2813 = vld [vmem:[%s3 + $0x8c0] sm:$0xff]
      %v2814 = vld [vmem:[%s3 + $0x8c8] sm:$0xff]
      %v2815 = vld [vmem:[%s3 + $0x8d0] sm:$0xff]
      %v2816 = vld [vmem:[%s3 + $0x8d8] sm:$0xff]
      %v2817 = vld [vmem:[%s3 + $0x8e0] sm:$0xff]
      %v2818 = vld [vmem:[%s3 + $0x8e8] sm:$0xff]
      %v2819 = vld [vmem:[%s3 + $0x8f0] sm:$0xff]
      %v2820 = vld [vmem:[%s3 + $0x8f8] sm:$0xff]
      %v2821 = vpack.c.bf16 %v2527, %v2527
      %v2822 = vpack.c.bf16 %v2528, %v2528
      %v2823 = vpack.c.bf16 %v2529, %v2529
      %v2824 = vpack.c.bf16 %v2530, %v2530
      %v2825 = vpack.c.bf16 %v2531, %v2531
      %v2826 = vpack.c.bf16 %v2532, %v2532
      %v2827 = vld [vmem:[%s4] sm:$0x3f]
      %v2829 = vlaneseq
      %v2830 = vshrl.u32 %v2829, 7
      %v2831 = vsub.s32 0, %v2830
      %v2832 = vrot.slane %v2827, %v2831
      %v2833 = vlaneseq
      %v2834 = vshrl.u32 %v2833, 7
      %v2835 = vsub.s32 1, %v2834
      %v2836 = vrot.slane %v2827, %v2835
      %v2837 = vlaneseq
      %v2838 = vshrl.u32 %v2837, 7
      %v2839 = vsub.s32 2, %v2838
      %v2840 = vrot.slane %v2827, %v2839
      %v2841 = vlaneseq
      %v2842 = vshrl.u32 %v2841, 7
      %v2843 = vsub.s32 3, %v2842
      %v2844 = vrot.slane %v2827, %v2843
      %v2845 = vlaneseq
      %v2846 = vshrl.u32 %v2845, 7
      %v2847 = vsub.s32 4, %v2846
      %v2848 = vrot.slane %v2827, %v2847
      %v2849 = vlaneseq
      %v2850 = vshrl.u32 %v2849, 7
      %v2851 = vsub.s32 5, %v2850
      %v2852 = vrot.slane %v2827, %v2851
      %v3147 = vunpack.c.l.b16 %v2533
      %v3148 = vunpack.c.h.b16 %v2533
      %v3149 = vunpack.c.l.b16 %v2534
      %v3150 = vunpack.c.h.b16 %v2534
      %v3151 = vunpack.c.l.b16 %v2535
      %v3152 = vunpack.c.h.b16 %v2535
      %v3153 = vunpack.c.l.b16 %v2536
      %v3154 = vunpack.c.h.b16 %v2536
      %v3155 = vunpack.c.l.b16 %v2537
      %v3156 = vunpack.c.h.b16 %v2537
      %v3157 = vunpack.c.l.b16 %v2538
      %v3158 = vunpack.c.h.b16 %v2538
      %v3159 = vunpack.c.l.b16 %v2539
      %v3160 = vunpack.c.h.b16 %v2539
      %v3161 = vunpack.c.l.b16 %v2540
      %v3162 = vunpack.c.h.b16 %v2540
      %v3163 = vunpack.c.l.b16 %v2541
      %v3164 = vunpack.c.h.b16 %v2541
      %v3165 = vunpack.c.l.b16 %v2542
      %v3166 = vunpack.c.h.b16 %v2542
      %v3167 = vunpack.c.l.b16 %v2543
      %v3168 = vunpack.c.h.b16 %v2543
      %v3169 = vunpack.c.l.b16 %v2544
      %v3170 = vunpack.c.h.b16 %v2544
      %v3171 = vunpack.c.l.b16 %v2545
      %v3172 = vunpack.c.h.b16 %v2545
      %v3173 = vunpack.c.l.b16 %v2546
      %v3174 = vunpack.c.h.b16 %v2546
      %v3175 = vunpack.c.l.b16 %v2547
      %v3176 = vunpack.c.h.b16 %v2547
      %v3177 = vunpack.c.l.b16 %v2548
      %v3178 = vunpack.c.h.b16 %v2548
      %v3179 = vunpack.c.l.b16 %v2549
      %v3180 = vunpack.c.h.b16 %v2549
      %v3181 = vunpack.c.l.b16 %v2550
      %v3182 = vunpack.c.h.b16 %v2550
      %v3183 = vunpack.c.l.b16 %v2551
      %v3184 = vunpack.c.h.b16 %v2551
      %v3185 = vunpack.c.l.b16 %v2552
      %v3186 = vunpack.c.h.b16 %v2552
      %v3187 = vunpack.c.l.b16 %v2553
      %v3188 = vunpack.c.h.b16 %v2553
      %v3189 = vunpack.c.l.b16 %v2554
      %v3190 = vunpack.c.h.b16 %v2554
      %v3191 = vunpack.c.l.b16 %v2555
      %v3192 = vunpack.c.h.b16 %v2555
      %v3193 = vunpack.c.l.b16 %v2556
      %v3194 = vunpack.c.h.b16 %v2556
      %v3195 = vunpack.c.l.b16 %v2557
      %v3196 = vunpack.c.h.b16 %v2557
      %v3197 = vunpack.c.l.b16 %v2558
      %v3198 = vunpack.c.h.b16 %v2558
      %v3199 = vunpack.c.l.b16 %v2559
      %v3200 = vunpack.c.h.b16 %v2559
      %v3201 = vunpack.c.l.b16 %v2560
      %v3202 = vunpack.c.h.b16 %v2560
      %v3203 = vunpack.c.l.b16 %v2561
      %v3204 = vunpack.c.h.b16 %v2561
      %v3205 = vunpack.c.l.b16 %v2562
      %v3206 = vunpack.c.h.b16 %v2562
      %v3207 = vunpack.c.l.b16 %v2563
      %v3208 = vunpack.c.h.b16 %v2563
      %v3209 = vunpack.c.l.b16 %v2564
      %v3210 = vunpack.c.h.b16 %v2564
      %v3211 = vunpack.c.l.b16 %v2565
      %v3212 = vunpack.c.h.b16 %v2565
      %v3213 = vunpack.c.l.b16 %v2566
      %v3214 = vunpack.c.h.b16 %v2566
      %v3215 = vunpack.c.l.b16 %v2567
      %v3216 = vunpack.c.h.b16 %v2567
      %v3217 = vunpack.c.l.b16 %v2568
      %v3218 = vunpack.c.h.b16 %v2568
      %v3219 = vunpack.c.l.b16 %v2569
      %v3220 = vunpack.c.h.b16 %v2569
      %v3221 = vunpack.c.l.b16 %v2570
      %v3222 = vunpack.c.h.b16 %v2570
      %v3223 = vunpack.c.l.b16 %v2571
      %v3224 = vunpack.c.h.b16 %v2571
      %v3225 = vunpack.c.l.b16 %v2572
      %v3226 = vunpack.c.h.b16 %v2572
      %v3227 = vunpack.c.l.b16 %v2573
      %v3228 = vunpack.c.h.b16 %v2573
      %v3229 = vunpack.c.l.b16 %v2574
      %v3230 = vunpack.c.h.b16 %v2574
      %v3231 = vunpack.c.l.b16 %v2575
      %v3232 = vunpack.c.h.b16 %v2575
      %v3233 = vunpack.c.l.b16 %v2576
      %v3234 = vunpack.c.h.b16 %v2576
      %v3235 = vunpack.c.l.b16 %v2577
      %v3236 = vunpack.c.h.b16 %v2577
      %v3237 = vunpack.c.l.b16 %v2578
      %v3238 = vunpack.c.h.b16 %v2578
      %v3239 = vunpack.c.l.b16 %v2579
      %v3240 = vunpack.c.h.b16 %v2579
      %v3241 = vunpack.c.l.b16 %v2580
      %v3242 = vunpack.c.h.b16 %v2580
      %v3243 = vunpack.c.l.b16 %v2581
      %v3244 = vunpack.c.h.b16 %v2581
      %v3245 = vunpack.c.l.b16 %v2582
      %v3246 = vunpack.c.h.b16 %v2582
      %v3247 = vunpack.c.l.b16 %v2583
      %v3248 = vunpack.c.h.b16 %v2583
      %v3249 = vunpack.c.l.b16 %v2584
      %v3250 = vunpack.c.h.b16 %v2584
      %v3251 = vunpack.c.l.b16 %v2585
      %v3252 = vunpack.c.h.b16 %v2585
      %v3253 = vunpack.c.l.b16 %v2586
      %v3254 = vunpack.c.h.b16 %v2586
      %v3255 = vunpack.c.l.b16 %v2587
      %v3256 = vunpack.c.h.b16 %v2587
      %v3257 = vunpack.c.l.b16 %v2588
      %v3258 = vunpack.c.h.b16 %v2588
      %v3259 = vunpack.c.l.b16 %v2589
      %v3260 = vunpack.c.h.b16 %v2589
      %v3261 = vunpack.c.l.b16 %v2590
      %v3262 = vunpack.c.h.b16 %v2590
      %v3263 = vunpack.c.l.b16 %v2591
      %v3264 = vunpack.c.h.b16 %v2591
      %v3265 = vunpack.c.l.b16 %v2592
      %v3266 = vunpack.c.h.b16 %v2592
      %v3267 = vunpack.c.l.b16 %v2593
      %v3268 = vunpack.c.h.b16 %v2593
      %v3269 = vunpack.c.l.b16 %v2594
      %v3270 = vunpack.c.h.b16 %v2594
      %v3271 = vunpack.c.l.b16 %v2595
      %v3272 = vunpack.c.h.b16 %v2595
      %v3273 = vunpack.c.l.b16 %v2596
      %v3274 = vunpack.c.h.b16 %v2596
      %v3275 = vunpack.c.l.b16 %v2597
      %v3276 = vunpack.c.h.b16 %v2597
      %v3277 = vunpack.c.l.b16 %v2598
      %v3278 = vunpack.c.h.b16 %v2598
      %v3279 = vunpack.c.l.b16 %v2599
      %v3280 = vunpack.c.h.b16 %v2599
      %v3281 = vunpack.c.l.b16 %v2600
      %v3282 = vunpack.c.h.b16 %v2600
      %v3283 = vunpack.c.l.b16 %v2601
      %v3284 = vunpack.c.h.b16 %v2601
      %v3285 = vunpack.c.l.b16 %v2602
      %v3286 = vunpack.c.h.b16 %v2602
      %v3287 = vunpack.c.l.b16 %v2603
      %v3288 = vunpack.c.h.b16 %v2603
      %v3289 = vunpack.c.l.b16 %v2604
      %v3290 = vunpack.c.h.b16 %v2604
      %v3291 = vunpack.c.l.b16 %v2605
      %v3292 = vunpack.c.h.b16 %v2605
      %v3293 = vunpack.c.l.b16 %v2606
      %v3294 = vunpack.c.h.b16 %v2606
      %v3295 = vunpack.c.l.b16 %v2607
      %v3296 = vunpack.c.h.b16 %v2607
      %v3297 = vunpack.c.l.b16 %v2608
      %v3298 = vunpack.c.h.b16 %v2608
      %v3299 = vunpack.c.l.b16 %v2609
      %v3300 = vunpack.c.h.b16 %v2609
      %v3301 = vunpack.c.l.b16 %v2610
      %v3302 = vunpack.c.h.b16 %v2610
      %v3303 = vunpack.c.l.b16 %v2611
      %v3304 = vunpack.c.h.b16 %v2611
      %v3305 = vunpack.c.l.b16 %v2612
      %v3306 = vunpack.c.h.b16 %v2612
      %v3307 = vunpack.c.l.b16 %v2613
      %v3308 = vunpack.c.h.b16 %v2613
      %v3309 = vunpack.c.l.b16 %v2614
      %v3310 = vunpack.c.h.b16 %v2614
      %v3311 = vunpack.c.l.b16 %v2615
      %v3312 = vunpack.c.h.b16 %v2615
      %v3313 = vunpack.c.l.b16 %v2616
      %v3314 = vunpack.c.h.b16 %v2616
      %v3315 = vunpack.c.l.b16 %v2617
      %v3316 = vunpack.c.h.b16 %v2617
      %v3317 = vunpack.c.l.b16 %v2618
      %v3318 = vunpack.c.h.b16 %v2618
      %v3319 = vunpack.c.l.b16 %v2619
      %v3320 = vunpack.c.h.b16 %v2619
      %v3321 = vunpack.c.l.b16 %v2620
      %v3322 = vunpack.c.h.b16 %v2620
      %v3323 = vunpack.c.l.b16 %v2621
      %v3324 = vunpack.c.h.b16 %v2621
      %v3325 = vunpack.c.l.b16 %v2622
      %v3326 = vunpack.c.h.b16 %v2622
      %v3327 = vunpack.c.l.b16 %v2623
      %v3328 = vunpack.c.h.b16 %v2623
      %v3329 = vunpack.c.l.b16 %v2624
      %v3330 = vunpack.c.h.b16 %v2624
      %v3331 = vunpack.c.l.b16 %v2625
      %v3332 = vunpack.c.h.b16 %v2625
      %v3333 = vunpack.c.l.b16 %v2626
      %v3334 = vunpack.c.h.b16 %v2626
      %v3335 = vunpack.c.l.b16 %v2627
      %v3336 = vunpack.c.h.b16 %v2627
      %v3337 = vunpack.c.l.b16 %v2628
      %v3338 = vunpack.c.h.b16 %v2628
      %v3339 = vunpack.c.l.b16 %v2629
      %v3340 = vunpack.c.h.b16 %v2629
      %v3341 = vunpack.c.l.b16 %v2630
      %v3342 = vunpack.c.h.b16 %v2630
      %v3343 = vunpack.c.l.b16 %v2631
      %v3344 = vunpack.c.h.b16 %v2631
      %v3345 = vunpack.c.l.b16 %v2632
      %v3346 = vunpack.c.h.b16 %v2632
      %v3347 = vunpack.c.l.b16 %v2633
      %v3348 = vunpack.c.h.b16 %v2633
      %v3349 = vunpack.c.l.b16 %v2634
      %v3350 = vunpack.c.h.b16 %v2634
      %v3351 = vunpack.c.l.b16 %v2635
      %v3352 = vunpack.c.h.b16 %v2635
      %v3353 = vunpack.c.l.b16 %v2636
      %v3354 = vunpack.c.h.b16 %v2636
      %v3355 = vunpack.c.l.b16 %v2637
      %v3356 = vunpack.c.h.b16 %v2637
      %v3357 = vunpack.c.l.b16 %v2638
      %v3358 = vunpack.c.h.b16 %v2638
      %v3359 = vunpack.c.l.b16 %v2639
      %v3360 = vunpack.c.h.b16 %v2639
      %v3361 = vunpack.c.l.b16 %v2640
      %v3362 = vunpack.c.h.b16 %v2640
      %v3363 = vunpack.c.l.b16 %v2641
      %v3364 = vunpack.c.h.b16 %v2641
      %v3365 = vunpack.c.l.b16 %v2642
      %v3366 = vunpack.c.h.b16 %v2642
      %v3367 = vunpack.c.l.b16 %v2643
      %v3368 = vunpack.c.h.b16 %v2643
      %v3369 = vunpack.c.l.b16 %v2644
      %v3370 = vunpack.c.h.b16 %v2644
      %v3371 = vunpack.c.l.b16 %v2645
      %v3372 = vunpack.c.h.b16 %v2645
      %v3373 = vunpack.c.l.b16 %v2646
      %v3374 = vunpack.c.h.b16 %v2646
      %v3375 = vunpack.c.l.b16 %v2647
      %v3376 = vunpack.c.h.b16 %v2647
      %v3377 = vunpack.c.l.b16 %v2648
      %v3378 = vunpack.c.h.b16 %v2648
      %v3379 = vunpack.c.l.b16 %v2649
      %v3380 = vunpack.c.h.b16 %v2649
      %v3381 = vunpack.c.l.b16 %v2650
      %v3382 = vunpack.c.h.b16 %v2650
      %v3383 = vunpack.c.l.b16 %v2651
      %v3384 = vunpack.c.h.b16 %v2651
      %v3385 = vunpack.c.l.b16 %v2652
      %v3386 = vunpack.c.h.b16 %v2652
      %v3387 = vunpack.c.l.b16 %v2653
      %v3388 = vunpack.c.h.b16 %v2653
      %v3389 = vunpack.c.l.b16 %v2654
      %v3390 = vunpack.c.h.b16 %v2654
      %v3391 = vunpack.c.l.b16 %v2655
      %v3392 = vunpack.c.h.b16 %v2655
      %v3393 = vunpack.c.l.b16 %v2656
      %v3394 = vunpack.c.h.b16 %v2656
      %v3395 = vunpack.c.l.b16 %v2657
      %v3396 = vunpack.c.h.b16 %v2657
      %v3397 = vunpack.c.l.b16 %v2658
      %v3398 = vunpack.c.h.b16 %v2658
      %v3399 = vunpack.c.l.b16 %v2659
      %v3400 = vunpack.c.h.b16 %v2659
      %v3401 = vunpack.c.l.b16 %v2660
      %v3402 = vunpack.c.h.b16 %v2660
      %v3403 = vunpack.c.l.b16 %v2661
      %v3404 = vunpack.c.h.b16 %v2661
      %v3405 = vunpack.c.l.b16 %v2662
      %v3406 = vunpack.c.h.b16 %v2662
      %v3407 = vunpack.c.l.b16 %v2663
      %v3408 = vunpack.c.h.b16 %v2663
      %v3409 = vunpack.c.l.b16 %v2664
      %v3410 = vunpack.c.h.b16 %v2664
      %v3411 = vunpack.c.l.b16 %v2665
      %v3412 = vunpack.c.h.b16 %v2665
      %v3413 = vunpack.c.l.b16 %v2666
      %v3414 = vunpack.c.h.b16 %v2666
      %v3415 = vunpack.c.l.b16 %v2667
      %v3416 = vunpack.c.h.b16 %v2667
      %v3417 = vunpack.c.l.b16 %v2668
      %v3418 = vunpack.c.h.b16 %v2668
      %v3419 = vunpack.c.l.b16 %v2669
      %v3420 = vunpack.c.h.b16 %v2669
      %v3421 = vunpack.c.l.b16 %v2670
      %v3422 = vunpack.c.h.b16 %v2670
      %v3423 = vunpack.c.l.b16 %v2671
      %v3424 = vunpack.c.h.b16 %v2671
      %v3425 = vunpack.c.l.b16 %v2672
      %v3426 = vunpack.c.h.b16 %v2672
      %v3427 = vunpack.c.l.b16 %v2673
      %v3428 = vunpack.c.h.b16 %v2673
      %v3429 = vunpack.c.l.b16 %v2674
      %v3430 = vunpack.c.h.b16 %v2674
      %v3431 = vunpack.c.l.b16 %v2675
      %v3432 = vunpack.c.h.b16 %v2675
      %v3433 = vunpack.c.l.b16 %v2676
      %v3434 = vunpack.c.h.b16 %v2676
      %v3435 = vunpack.c.l.b16 %v2677
      %v3436 = vunpack.c.h.b16 %v2677
      %v3437 = vunpack.c.l.b16 %v2678
      %v3438 = vunpack.c.h.b16 %v2678
      %v3439 = vunpack.c.l.b16 %v2679
      %v3440 = vunpack.c.h.b16 %v2679
      %v3441 = vunpack.c.l.b16 %v2680
      %v3442 = vunpack.c.h.b16 %v2680
      %v3443 = vunpack.c.l.b16 %v2681
      %v3444 = vunpack.c.h.b16 %v2681
      %v3445 = vunpack.c.l.b16 %v2682
      %v3446 = vunpack.c.h.b16 %v2682
      %v3447 = vunpack.c.l.b16 %v2683
      %v3448 = vunpack.c.h.b16 %v2683
      %v3449 = vunpack.c.l.b16 %v2684
      %v3450 = vunpack.c.h.b16 %v2684
      %v3451 = vunpack.c.l.b16 %v2685
      %v3452 = vunpack.c.h.b16 %v2685
      %v3453 = vunpack.c.l.b16 %v2686
      %v3454 = vunpack.c.h.b16 %v2686
      %v3455 = vunpack.c.l.b16 %v2687
      %v3456 = vunpack.c.h.b16 %v2687
      %v3457 = vunpack.c.l.b16 %v2688
      %v3458 = vunpack.c.h.b16 %v2688
      %v3459 = vunpack.c.l.b16 %v2689
      %v3460 = vunpack.c.h.b16 %v2689
      %v3461 = vunpack.c.l.b16 %v2690
      %v3462 = vunpack.c.h.b16 %v2690
      %v3463 = vunpack.c.l.b16 %v2691
      %v3464 = vunpack.c.h.b16 %v2691
      %v3465 = vunpack.c.l.b16 %v2692
      %v3466 = vunpack.c.h.b16 %v2692
      %v3467 = vunpack.c.l.b16 %v2693
      %v3468 = vunpack.c.h.b16 %v2693
      %v3469 = vunpack.c.l.b16 %v2694
      %v3470 = vunpack.c.h.b16 %v2694
      %v3471 = vunpack.c.l.b16 %v2695
      %v3472 = vunpack.c.h.b16 %v2695
      %v3473 = vunpack.c.l.b16 %v2696
      %v3474 = vunpack.c.h.b16 %v2696
      %v3475 = vunpack.c.l.b16 %v2697
      %v3476 = vunpack.c.h.b16 %v2697
      %v3477 = vunpack.c.l.b16 %v2698
      %v3478 = vunpack.c.h.b16 %v2698
      %v3479 = vunpack.c.l.b16 %v2699
      %v3480 = vunpack.c.h.b16 %v2699
      %v3481 = vunpack.c.l.b16 %v2700
      %v3482 = vunpack.c.h.b16 %v2700
      %v3483 = vunpack.c.l.b16 %v2701
      %v3484 = vunpack.c.h.b16 %v2701
      %v3485 = vunpack.c.l.b16 %v2702
      %v3486 = vunpack.c.h.b16 %v2702
      %v3487 = vunpack.c.l.b16 %v2703
      %v3488 = vunpack.c.h.b16 %v2703
      %v3489 = vunpack.c.l.b16 %v2704
      %v3490 = vunpack.c.h.b16 %v2704
      %v3491 = vunpack.c.l.b16 %v2705
      %v3492 = vunpack.c.h.b16 %v2705
      %v3493 = vunpack.c.l.b16 %v2706
      %v3494 = vunpack.c.h.b16 %v2706
      %v3495 = vunpack.c.l.b16 %v2707
      %v3496 = vunpack.c.h.b16 %v2707
      %v3497 = vunpack.c.l.b16 %v2708
      %v3498 = vunpack.c.h.b16 %v2708
      %v3499 = vunpack.c.l.b16 %v2709
      %v3500 = vunpack.c.h.b16 %v2709
      %v3501 = vunpack.c.l.b16 %v2710
      %v3502 = vunpack.c.h.b16 %v2710
      %v3503 = vunpack.c.l.b16 %v2711
      %v3504 = vunpack.c.h.b16 %v2711
      %v3505 = vunpack.c.l.b16 %v2712
      %v3506 = vunpack.c.h.b16 %v2712
      %v3507 = vunpack.c.l.b16 %v2713
      %v3508 = vunpack.c.h.b16 %v2713
      %v3509 = vunpack.c.l.b16 %v2714
      %v3510 = vunpack.c.h.b16 %v2714
      %v3511 = vunpack.c.l.b16 %v2715
      %v3512 = vunpack.c.h.b16 %v2715
      %v3513 = vunpack.c.l.b16 %v2716
      %v3514 = vunpack.c.h.b16 %v2716
      %v3515 = vunpack.c.l.b16 %v2717
      %v3516 = vunpack.c.h.b16 %v2717
      %v3517 = vunpack.c.l.b16 %v2718
      %v3518 = vunpack.c.h.b16 %v2718
      %v3519 = vunpack.c.l.b16 %v2719
      %v3520 = vunpack.c.h.b16 %v2719
      %v3521 = vunpack.c.l.b16 %v2720
      %v3522 = vunpack.c.h.b16 %v2720
      %v3523 = vunpack.c.l.b16 %v2721
      %v3524 = vunpack.c.h.b16 %v2721
      %v3525 = vunpack.c.l.b16 %v2722
      %v3526 = vunpack.c.h.b16 %v2722
      %v3527 = vunpack.c.l.b16 %v2723
      %v3528 = vunpack.c.h.b16 %v2723
      %v3529 = vunpack.c.l.b16 %v2724
      %v3530 = vunpack.c.h.b16 %v2724
      %v3531 = vunpack.c.l.b16 %v2725
      %v3532 = vunpack.c.h.b16 %v2725
      %v3533 = vunpack.c.l.b16 %v2726
      %v3534 = vunpack.c.h.b16 %v2726
      %v3535 = vunpack.c.l.b16 %v2727
      %v3536 = vunpack.c.h.b16 %v2727
      %v3537 = vunpack.c.l.b16 %v2728
      %v3538 = vunpack.c.h.b16 %v2728
      %v3539 = vunpack.c.l.b16 %v2729
      %v3540 = vunpack.c.h.b16 %v2729
      %v3541 = vunpack.c.l.b16 %v2730
      %v3542 = vunpack.c.h.b16 %v2730
      %v3543 = vunpack.c.l.b16 %v2731
      %v3544 = vunpack.c.h.b16 %v2731
      %v3545 = vunpack.c.l.b16 %v2732
      %v3546 = vunpack.c.h.b16 %v2732
      %v3547 = vunpack.c.l.b16 %v2733
      %v3548 = vunpack.c.h.b16 %v2733
      %v3549 = vunpack.c.l.b16 %v2734
      %v3550 = vunpack.c.h.b16 %v2734
      %v3551 = vunpack.c.l.b16 %v2735
      %v3552 = vunpack.c.h.b16 %v2735
      %v3553 = vunpack.c.l.b16 %v2736
      %v3554 = vunpack.c.h.b16 %v2736
      %v3555 = vunpack.c.l.b16 %v2737
      %v3556 = vunpack.c.h.b16 %v2737
      %v3557 = vunpack.c.l.b16 %v2738
      %v3558 = vunpack.c.h.b16 %v2738
      %v3559 = vunpack.c.l.b16 %v2739
      %v3560 = vunpack.c.h.b16 %v2739
      %v3561 = vunpack.c.l.b16 %v2740
      %v3562 = vunpack.c.h.b16 %v2740
      %v3563 = vunpack.c.l.b16 %v2741
      %v3564 = vunpack.c.h.b16 %v2741
      %v3565 = vunpack.c.l.b16 %v2742
      %v3566 = vunpack.c.h.b16 %v2742
      %v3567 = vunpack.c.l.b16 %v2743
      %v3568 = vunpack.c.h.b16 %v2743
      %v3569 = vunpack.c.l.b16 %v2744
      %v3570 = vunpack.c.h.b16 %v2744
      %v3571 = vunpack.c.l.b16 %v2745
      %v3572 = vunpack.c.h.b16 %v2745
      %v3573 = vunpack.c.l.b16 %v2746
      %v3574 = vunpack.c.h.b16 %v2746
      %v3575 = vunpack.c.l.b16 %v2747
      %v3576 = vunpack.c.h.b16 %v2747
      %v3577 = vunpack.c.l.b16 %v2748
      %v3578 = vunpack.c.h.b16 %v2748
      %v3579 = vunpack.c.l.b16 %v2749
      %v3580 = vunpack.c.h.b16 %v2749
      %v3581 = vunpack.c.l.b16 %v2750
      %v3582 = vunpack.c.h.b16 %v2750
      %v3583 = vunpack.c.l.b16 %v2751
      %v3584 = vunpack.c.h.b16 %v2751
      %v3585 = vunpack.c.l.b16 %v2752
      %v3586 = vunpack.c.h.b16 %v2752
      %v3587 = vunpack.c.l.b16 %v2753
      %v3588 = vunpack.c.h.b16 %v2753
      %v3589 = vunpack.c.l.b16 %v2754
      %v3590 = vunpack.c.h.b16 %v2754
      %v3591 = vunpack.c.l.b16 %v2755
      %v3592 = vunpack.c.h.b16 %v2755
      %v3593 = vunpack.c.l.b16 %v2756
      %v3594 = vunpack.c.h.b16 %v2756
      %v3595 = vunpack.c.l.b16 %v2757
      %v3596 = vunpack.c.h.b16 %v2757
      %v3597 = vunpack.c.l.b16 %v2758
      %v3598 = vunpack.c.h.b16 %v2758
      %v3599 = vunpack.c.l.b16 %v2759
      %v3600 = vunpack.c.h.b16 %v2759
      %v3601 = vunpack.c.l.b16 %v2760
      %v3602 = vunpack.c.h.b16 %v2760
      %v3603 = vunpack.c.l.b16 %v2761
      %v3604 = vunpack.c.h.b16 %v2761
      %v3605 = vunpack.c.l.b16 %v2762
      %v3606 = vunpack.c.h.b16 %v2762
      %v3607 = vunpack.c.l.b16 %v2763
      %v3608 = vunpack.c.h.b16 %v2763
      %v3609 = vunpack.c.l.b16 %v2764
      %v3610 = vunpack.c.h.b16 %v2764
      %v3611 = vunpack.c.l.b16 %v2765
      %v3612 = vunpack.c.h.b16 %v2765
      %v3613 = vunpack.c.l.b16 %v2766
      %v3614 = vunpack.c.h.b16 %v2766
      %v3615 = vunpack.c.l.b16 %v2767
      %v3616 = vunpack.c.h.b16 %v2767
      %v3617 = vunpack.c.l.b16 %v2768
      %v3618 = vunpack.c.h.b16 %v2768
      %v3619 = vunpack.c.l.b16 %v2769
      %v3620 = vunpack.c.h.b16 %v2769
      %v3621 = vunpack.c.l.b16 %v2770
      %v3622 = vunpack.c.h.b16 %v2770
      %v3623 = vunpack.c.l.b16 %v2771
      %v3624 = vunpack.c.h.b16 %v2771
      %v3625 = vunpack.c.l.b16 %v2772
      %v3626 = vunpack.c.h.b16 %v2772
      %v3627 = vunpack.c.l.b16 %v2773
      %v3628 = vunpack.c.h.b16 %v2773
      %v3629 = vunpack.c.l.b16 %v2774
      %v3630 = vunpack.c.h.b16 %v2774
      %v3631 = vunpack.c.l.b16 %v2775
      %v3632 = vunpack.c.h.b16 %v2775
      %v3633 = vunpack.c.l.b16 %v2776
      %v3634 = vunpack.c.h.b16 %v2776
      %v3635 = vunpack.c.l.b16 %v2777
      %v3636 = vunpack.c.h.b16 %v2777
      %v3637 = vunpack.c.l.b16 %v2778
      %v3638 = vunpack.c.h.b16 %v2778
      %v3639 = vunpack.c.l.b16 %v2779
      %v3640 = vunpack.c.h.b16 %v2779
      %v3641 = vunpack.c.l.b16 %v2780
      %v3642 = vunpack.c.h.b16 %v2780
      %v3643 = vunpack.c.l.b16 %v2781
      %v3644 = vunpack.c.h.b16 %v2781
      %v3645 = vunpack.c.l.b16 %v2782
      %v3646 = vunpack.c.h.b16 %v2782
      %v3647 = vunpack.c.l.b16 %v2783
      %v3648 = vunpack.c.h.b16 %v2783
      %v3649 = vunpack.c.l.b16 %v2784
      %v3650 = vunpack.c.h.b16 %v2784
      %v3651 = vunpack.c.l.b16 %v2785
      %v3652 = vunpack.c.h.b16 %v2785
      %v3653 = vunpack.c.l.b16 %v2786
      %v3654 = vunpack.c.h.b16 %v2786
      %v3655 = vunpack.c.l.b16 %v2787
      %v3656 = vunpack.c.h.b16 %v2787
      %v3657 = vunpack.c.l.b16 %v2788
      %v3658 = vunpack.c.h.b16 %v2788
      %v3659 = vunpack.c.l.b16 %v2789
      %v3660 = vunpack.c.h.b16 %v2789
      %v3661 = vunpack.c.l.b16 %v2790
      %v3662 = vunpack.c.h.b16 %v2790
      %v3663 = vunpack.c.l.b16 %v2791
      %v3664 = vunpack.c.h.b16 %v2791
      %v3665 = vunpack.c.l.b16 %v2792
      %v3666 = vunpack.c.h.b16 %v2792
      %v3667 = vunpack.c.l.b16 %v2793
      %v3668 = vunpack.c.h.b16 %v2793
      %v3669 = vunpack.c.l.b16 %v2794
      %v3670 = vunpack.c.h.b16 %v2794
      %v3671 = vunpack.c.l.b16 %v2795
      %v3672 = vunpack.c.h.b16 %v2795
      %v3673 = vunpack.c.l.b16 %v2796
      %v3674 = vunpack.c.h.b16 %v2796
      %v3675 = vunpack.c.l.b16 %v2797
      %v3676 = vunpack.c.h.b16 %v2797
      %v3677 = vunpack.c.l.b16 %v2798
      %v3678 = vunpack.c.h.b16 %v2798
      %v3679 = vunpack.c.l.b16 %v2799
      %v3680 = vunpack.c.h.b16 %v2799
      %v3681 = vunpack.c.l.b16 %v2800
      %v3682 = vunpack.c.h.b16 %v2800
      %v3683 = vunpack.c.l.b16 %v2801
      %v3684 = vunpack.c.h.b16 %v2801
      %v3685 = vunpack.c.l.b16 %v2802
      %v3686 = vunpack.c.h.b16 %v2802
      %v3687 = vunpack.c.l.b16 %v2803
      %v3688 = vunpack.c.h.b16 %v2803
      %v3689 = vunpack.c.l.b16 %v2804
      %v3690 = vunpack.c.h.b16 %v2804
      %v3691 = vunpack.c.l.b16 %v2805
      %v3692 = vunpack.c.h.b16 %v2805
      %v3693 = vunpack.c.l.b16 %v2806
      %v3694 = vunpack.c.h.b16 %v2806
      %v3695 = vunpack.c.l.b16 %v2807
      %v3696 = vunpack.c.h.b16 %v2807
      %v3697 = vunpack.c.l.b16 %v2808
      %v3698 = vunpack.c.h.b16 %v2808
      %v3699 = vunpack.c.l.b16 %v2809
      %v3700 = vunpack.c.h.b16 %v2809
      %v3701 = vunpack.c.l.b16 %v2810
      %v3702 = vunpack.c.h.b16 %v2810
      %v3703 = vunpack.c.l.b16 %v2811
      %v3704 = vunpack.c.h.b16 %v2811
      %v3705 = vunpack.c.l.b16 %v2812
      %v3706 = vunpack.c.h.b16 %v2812
      %v3707 = vunpack.c.l.b16 %v2813
      %v3708 = vunpack.c.h.b16 %v2813
      %v3709 = vunpack.c.l.b16 %v2814
      %v3710 = vunpack.c.h.b16 %v2814
      %v3711 = vunpack.c.l.b16 %v2815
      %v3712 = vunpack.c.h.b16 %v2815
      %v3713 = vunpack.c.l.b16 %v2816
      %v3714 = vunpack.c.h.b16 %v2816
      %v3715 = vunpack.c.l.b16 %v2817
      %v3716 = vunpack.c.h.b16 %v2817
      %v3717 = vunpack.c.l.b16 %v2818
      %v3718 = vunpack.c.h.b16 %v2818
      %v3719 = vunpack.c.l.b16 %v2819
      %v3720 = vunpack.c.h.b16 %v2819
      %v3721 = vunpack.c.l.b16 %v2820
      %v3722 = vunpack.c.h.b16 %v2820
      %v3723 = vpack.c.b16 %v3153, %v3147
      %v3724 = vpack.c.b16 %v3154, %v3148
      %v3725 = vpack.c.b16 %v3155, %v3149
      %v3726 = vpack.c.b16 %v3156, %v3150
      %v3727 = vpack.c.b16 %v3157, %v3151
      %v3728 = vpack.c.b16 %v3158, %v3152
      %v3729 = vpack.c.b16 %v3165, %v3159
      %v3730 = vpack.c.b16 %v3166, %v3160
      %v3731 = vpack.c.b16 %v3167, %v3161
      %v3732 = vpack.c.b16 %v3168, %v3162
      %v3733 = vpack.c.b16 %v3169, %v3163
      %v3734 = vpack.c.b16 %v3170, %v3164
      %v3735 = vpack.c.b16 %v3177, %v3171
      %v3736 = vpack.c.b16 %v3178, %v3172
      %v3737 = vpack.c.b16 %v3179, %v3173
      %v3738 = vpack.c.b16 %v3180, %v3174
      %v3739 = vpack.c.b16 %v3181, %v3175
      %v3740 = vpack.c.b16 %v3182, %v3176
      %v3741 = vpack.c.b16 %v3189, %v3183
      %v3742 = vpack.c.b16 %v3190, %v3184
      %v3743 = vpack.c.b16 %v3191, %v3185
      %v3744 = vpack.c.b16 %v3192, %v3186
      %v3745 = vpack.c.b16 %v3193, %v3187
      %v3746 = vpack.c.b16 %v3194, %v3188
      %v3747 = vpack.c.b16 %v3201, %v3195
      %v3748 = vpack.c.b16 %v3202, %v3196
      %v3749 = vpack.c.b16 %v3203, %v3197
      %v3750 = vpack.c.b16 %v3204, %v3198
      %v3751 = vpack.c.b16 %v3205, %v3199
      %v3752 = vpack.c.b16 %v3206, %v3200
      %v3753 = vpack.c.b16 %v3213, %v3207
      %v3754 = vpack.c.b16 %v3214, %v3208
      %v3755 = vpack.c.b16 %v3215, %v3209
      %v3756 = vpack.c.b16 %v3216, %v3210
      %v3757 = vpack.c.b16 %v3217, %v3211
      %v3758 = vpack.c.b16 %v3218, %v3212
      %v3759 = vpack.c.b16 %v3225, %v3219
      %v3760 = vpack.c.b16 %v3226, %v3220
      %v3761 = vpack.c.b16 %v3227, %v3221
      %v3762 = vpack.c.b16 %v3228, %v3222
      %v3763 = vpack.c.b16 %v3229, %v3223
      %v3764 = vpack.c.b16 %v3230, %v3224
      %v3765 = vpack.c.b16 %v3237, %v3231
      %v3766 = vpack.c.b16 %v3238, %v3232
      %v3767 = vpack.c.b16 %v3239, %v3233
      %v3768 = vpack.c.b16 %v3240, %v3234
      %v3769 = vpack.c.b16 %v3241, %v3235
      %v3770 = vpack.c.b16 %v3242, %v3236
      %v3771 = vpack.c.b16 %v3249, %v3243
      %v3772 = vpack.c.b16 %v3250, %v3244
      %v3773 = vpack.c.b16 %v3251, %v3245
      %v3774 = vpack.c.b16 %v3252, %v3246
      %v3775 = vpack.c.b16 %v3253, %v3247
      %v3776 = vpack.c.b16 %v3254, %v3248
      %v3777 = vpack.c.b16 %v3261, %v3255
      %v3778 = vpack.c.b16 %v3262, %v3256
      %v3779 = vpack.c.b16 %v3263, %v3257
      %v3780 = vpack.c.b16 %v3264, %v3258
      %v3781 = vpack.c.b16 %v3265, %v3259
      %v3782 = vpack.c.b16 %v3266, %v3260
      %v3783 = vpack.c.b16 %v3273, %v3267
      %v3784 = vpack.c.b16 %v3274, %v3268
      %v3785 = vpack.c.b16 %v3275, %v3269
      %v3786 = vpack.c.b16 %v3276, %v3270
      %v3787 = vpack.c.b16 %v3277, %v3271
      %v3788 = vpack.c.b16 %v3278, %v3272
      %v3789 = vpack.c.b16 %v3285, %v3279
      %v3790 = vpack.c.b16 %v3286, %v3280
      %v3791 = vpack.c.b16 %v3287, %v3281
      %v3792 = vpack.c.b16 %v3288, %v3282
      %v3793 = vpack.c.b16 %v3289, %v3283
      %v3794 = vpack.c.b16 %v3290, %v3284
      %v3795 = vpack.c.b16 %v3297, %v3291
      %v3796 = vpack.c.b16 %v3298, %v3292
      %v3797 = vpack.c.b16 %v3299, %v3293
      %v3798 = vpack.c.b16 %v3300, %v3294
      %v3799 = vpack.c.b16 %v3301, %v3295
      %v3800 = vpack.c.b16 %v3302, %v3296
      %v3801 = vpack.c.b16 %v3309, %v3303
      %v3802 = vpack.c.b16 %v3310, %v3304
      %v3803 = vpack.c.b16 %v3311, %v3305
      %v3804 = vpack.c.b16 %v3312, %v3306
      %v3805 = vpack.c.b16 %v3313, %v3307
      %v3806 = vpack.c.b16 %v3314, %v3308
      %v3807 = vpack.c.b16 %v3321, %v3315
      %v3808 = vpack.c.b16 %v3322, %v3316
      %v3809 = vpack.c.b16 %v3323, %v3317
      %v3810 = vpack.c.b16 %v3324, %v3318
      %v3811 = vpack.c.b16 %v3325, %v3319
      %v3812 = vpack.c.b16 %v3326, %v3320
      %v3813 = vpack.c.b16 %v3333, %v3327
      %v3814 = vpack.c.b16 %v3334, %v3328
      %v3815 = vpack.c.b16 %v3335, %v3329
      %v3816 = vpack.c.b16 %v3336, %v3330
      %v3817 = vpack.c.b16 %v3337, %v3331
      %v3818 = vpack.c.b16 %v3338, %v3332
      %v3819 = vpack.c.b16 %v3345, %v3339
      %v3820 = vpack.c.b16 %v3346, %v3340
      %v3821 = vpack.c.b16 %v3347, %v3341
      %v3822 = vpack.c.b16 %v3348, %v3342
      %v3823 = vpack.c.b16 %v3349, %v3343
      %v3824 = vpack.c.b16 %v3350, %v3344
      %v3825 = vpack.c.b16 %v3357, %v3351
      %v3826 = vpack.c.b16 %v3358, %v3352
      %v3827 = vpack.c.b16 %v3359, %v3353
      %v3828 = vpack.c.b16 %v3360, %v3354
      %v3829 = vpack.c.b16 %v3361, %v3355
      %v3830 = vpack.c.b16 %v3362, %v3356
      %v3831 = vpack.c.b16 %v3369, %v3363
      %v3832 = vpack.c.b16 %v3370, %v3364
      %v3833 = vpack.c.b16 %v3371, %v3365
      %v3834 = vpack.c.b16 %v3372, %v3366
      %v3835 = vpack.c.b16 %v3373, %v3367
      %v3836 = vpack.c.b16 %v3374, %v3368
      %v3837 = vpack.c.b16 %v3381, %v3375
      %v3838 = vpack.c.b16 %v3382, %v3376
      %v3839 = vpack.c.b16 %v3383, %v3377
      %v3840 = vpack.c.b16 %v3384, %v3378
      %v3841 = vpack.c.b16 %v3385, %v3379
      %v3842 = vpack.c.b16 %v3386, %v3380
      %v3843 = vpack.c.b16 %v3393, %v3387
      %v3844 = vpack.c.b16 %v3394, %v3388
      %v3845 = vpack.c.b16 %v3395, %v3389
      %v3846 = vpack.c.b16 %v3396, %v3390
      %v3847 = vpack.c.b16 %v3397, %v3391
      %v3848 = vpack.c.b16 %v3398, %v3392
      %v3849 = vpack.c.b16 %v3405, %v3399
      %v3850 = vpack.c.b16 %v3406, %v3400
      %v3851 = vpack.c.b16 %v3407, %v3401
      %v3852 = vpack.c.b16 %v3408, %v3402
      %v3853 = vpack.c.b16 %v3409, %v3403
      %v3854 = vpack.c.b16 %v3410, %v3404
      %v3855 = vpack.c.b16 %v3417, %v3411
      %v3856 = vpack.c.b16 %v3418, %v3412
      %v3857 = vpack.c.b16 %v3419, %v3413
      %v3858 = vpack.c.b16 %v3420, %v3414
      %v3859 = vpack.c.b16 %v3421, %v3415
      %v3860 = vpack.c.b16 %v3422, %v3416
      %v3861 = vpack.c.b16 %v3429, %v3423
      %v3862 = vpack.c.b16 %v3430, %v3424
      %v3863 = vpack.c.b16 %v3431, %v3425
      %v3864 = vpack.c.b16 %v3432, %v3426
      %v3865 = vpack.c.b16 %v3433, %v3427
      %v3866 = vpack.c.b16 %v3434, %v3428
      %v3867 = vpack.c.b16 %v3441, %v3435
      %v3868 = vpack.c.b16 %v3442, %v3436
      %v3869 = vpack.c.b16 %v3443, %v3437
      %v3870 = vpack.c.b16 %v3444, %v3438
      %v3871 = vpack.c.b16 %v3445, %v3439
      %v3872 = vpack.c.b16 %v3446, %v3440
      %v3873 = vpack.c.b16 %v3453, %v3447
      %v3874 = vpack.c.b16 %v3454, %v3448
      %v3875 = vpack.c.b16 %v3455, %v3449
      %v3876 = vpack.c.b16 %v3456, %v3450
      %v3877 = vpack.c.b16 %v3457, %v3451
      %v3878 = vpack.c.b16 %v3458, %v3452
      %v3879 = vpack.c.b16 %v3465, %v3459
      %v3880 = vpack.c.b16 %v3466, %v3460
      %v3881 = vpack.c.b16 %v3467, %v3461
      %v3882 = vpack.c.b16 %v3468, %v3462
      %v3883 = vpack.c.b16 %v3469, %v3463
      %v3884 = vpack.c.b16 %v3470, %v3464
      %v3885 = vpack.c.b16 %v3477, %v3471
      %v3886 = vpack.c.b16 %v3478, %v3472
      %v3887 = vpack.c.b16 %v3479, %v3473
      %v3888 = vpack.c.b16 %v3480, %v3474
      %v3889 = vpack.c.b16 %v3481, %v3475
      %v3890 = vpack.c.b16 %v3482, %v3476
      %v3891 = vpack.c.b16 %v3489, %v3483
      %v3892 = vpack.c.b16 %v3490, %v3484
      %v3893 = vpack.c.b16 %v3491, %v3485
      %v3894 = vpack.c.b16 %v3492, %v3486
      %v3895 = vpack.c.b16 %v3493, %v3487
      %v3896 = vpack.c.b16 %v3494, %v3488
      %v3897 = vpack.c.b16 %v3501, %v3495
      %v3898 = vpack.c.b16 %v3502, %v3496
      %v3899 = vpack.c.b16 %v3503, %v3497
      %v3900 = vpack.c.b16 %v3504, %v3498
      %v3901 = vpack.c.b16 %v3505, %v3499
      %v3902 = vpack.c.b16 %v3506, %v3500
      %v3903 = vpack.c.b16 %v3513, %v3507
      %v3904 = vpack.c.b16 %v3514, %v3508
      %v3905 = vpack.c.b16 %v3515, %v3509
      %v3906 = vpack.c.b16 %v3516, %v3510
      %v3907 = vpack.c.b16 %v3517, %v3511
      %v3908 = vpack.c.b16 %v3518, %v3512
      %v3909 = vpack.c.b16 %v3525, %v3519
      %v3910 = vpack.c.b16 %v3526, %v3520
      %v3911 = vpack.c.b16 %v3527, %v3521
      %v3912 = vpack.c.b16 %v3528, %v3522
      %v3913 = vpack.c.b16 %v3529, %v3523
      %v3914 = vpack.c.b16 %v3530, %v3524
      %v3915 = vpack.c.b16 %v3537, %v3531
      %v3916 = vpack.c.b16 %v3538, %v3532
      %v3917 = vpack.c.b16 %v3539, %v3533
      %v3918 = vpack.c.b16 %v3540, %v3534
      %v3919 = vpack.c.b16 %v3541, %v3535
      %v3920 = vpack.c.b16 %v3542, %v3536
      %v3921 = vpack.c.b16 %v3549, %v3543
      %v3922 = vpack.c.b16 %v3550, %v3544
      %v3923 = vpack.c.b16 %v3551, %v3545
      %v3924 = vpack.c.b16 %v3552, %v3546
      %v3925 = vpack.c.b16 %v3553, %v3547
      %v3926 = vpack.c.b16 %v3554, %v3548
      %v3927 = vpack.c.b16 %v3561, %v3555
      %v3928 = vpack.c.b16 %v3562, %v3556
      %v3929 = vpack.c.b16 %v3563, %v3557
      %v3930 = vpack.c.b16 %v3564, %v3558
      %v3931 = vpack.c.b16 %v3565, %v3559
      %v3932 = vpack.c.b16 %v3566, %v3560
      %v3933 = vpack.c.b16 %v3573, %v3567
      %v3934 = vpack.c.b16 %v3574, %v3568
      %v3935 = vpack.c.b16 %v3575, %v3569
      %v3936 = vpack.c.b16 %v3576, %v3570
      %v3937 = vpack.c.b16 %v3577, %v3571
      %v3938 = vpack.c.b16 %v3578, %v3572
      %v3939 = vpack.c.b16 %v3585, %v3579
      %v3940 = vpack.c.b16 %v3586, %v3580
      %v3941 = vpack.c.b16 %v3587, %v3581
      %v3942 = vpack.c.b16 %v3588, %v3582
      %v3943 = vpack.c.b16 %v3589, %v3583
      %v3944 = vpack.c.b16 %v3590, %v3584
      %v3945 = vpack.c.b16 %v3597, %v3591
      %v3946 = vpack.c.b16 %v3598, %v3592
      %v3947 = vpack.c.b16 %v3599, %v3593
      %v3948 = vpack.c.b16 %v3600, %v3594
      %v3949 = vpack.c.b16 %v3601, %v3595
      %v3950 = vpack.c.b16 %v3602, %v3596
      %v3951 = vpack.c.b16 %v3609, %v3603
      %v3952 = vpack.c.b16 %v3610, %v3604
      %v3953 = vpack.c.b16 %v3611, %v3605
      %v3954 = vpack.c.b16 %v3612, %v3606
      %v3955 = vpack.c.b16 %v3613, %v3607
      %v3956 = vpack.c.b16 %v3614, %v3608
      %v3957 = vpack.c.b16 %v3621, %v3615
      %v3958 = vpack.c.b16 %v3622, %v3616
      %v3959 = vpack.c.b16 %v3623, %v3617
      %v3960 = vpack.c.b16 %v3624, %v3618
      %v3961 = vpack.c.b16 %v3625, %v3619
      %v3962 = vpack.c.b16 %v3626, %v3620
      %v3963 = vpack.c.b16 %v3633, %v3627
      %v3964 = vpack.c.b16 %v3634, %v3628
      %v3965 = vpack.c.b16 %v3635, %v3629
      %v3966 = vpack.c.b16 %v3636, %v3630
      %v3967 = vpack.c.b16 %v3637, %v3631
      %v3968 = vpack.c.b16 %v3638, %v3632
      %v3969 = vpack.c.b16 %v3645, %v3639
      %v3970 = vpack.c.b16 %v3646, %v3640
      %v3971 = vpack.c.b16 %v3647, %v3641
      %v3972 = vpack.c.b16 %v3648, %v3642
      %v3973 = vpack.c.b16 %v3649, %v3643
      %v3974 = vpack.c.b16 %v3650, %v3644
      %v3975 = vpack.c.b16 %v3657, %v3651
      %v3976 = vpack.c.b16 %v3658, %v3652
      %v3977 = vpack.c.b16 %v3659, %v3653
      %v3978 = vpack.c.b16 %v3660, %v3654
      %v3979 = vpack.c.b16 %v3661, %v3655
      %v3980 = vpack.c.b16 %v3662, %v3656
      %v3981 = vpack.c.b16 %v3669, %v3663
      %v3982 = vpack.c.b16 %v3670, %v3664
      %v3983 = vpack.c.b16 %v3671, %v3665
      %v3984 = vpack.c.b16 %v3672, %v3666
      %v3985 = vpack.c.b16 %v3673, %v3667
      %v3986 = vpack.c.b16 %v3674, %v3668
      %v3987 = vpack.c.b16 %v3681, %v3675
      %v3988 = vpack.c.b16 %v3682, %v3676
      %v3989 = vpack.c.b16 %v3683, %v3677
      %v3990 = vpack.c.b16 %v3684, %v3678
      %v3991 = vpack.c.b16 %v3685, %v3679
      %v3992 = vpack.c.b16 %v3686, %v3680
      %v3993 = vpack.c.b16 %v3693, %v3687
      %v3994 = vpack.c.b16 %v3694, %v3688
      %v3995 = vpack.c.b16 %v3695, %v3689
      %v3996 = vpack.c.b16 %v3696, %v3690
      %v3997 = vpack.c.b16 %v3697, %v3691
      %v3998 = vpack.c.b16 %v3698, %v3692
      %v3999 = vpack.c.b16 %v3705, %v3699
      %v4000 = vpack.c.b16 %v3706, %v3700
      %v4001 = vpack.c.b16 %v3707, %v3701
      %v4002 = vpack.c.b16 %v3708, %v3702
      %v4003 = vpack.c.b16 %v3709, %v3703
      %v4004 = vpack.c.b16 %v3710, %v3704
      %v4005 = vpack.c.b16 %v3717, %v3711
      %v4006 = vpack.c.b16 %v3718, %v3712
      %v4007 = vpack.c.b16 %v3719, %v3713
      %v4008 = vpack.c.b16 %v3720, %v3714
      %v4009 = vpack.c.b16 %v3721, %v3715
      %v4010 = vpack.c.b16 %v3722, %v3716
      %4299 = vmatprep.subr.bf16.mxu0 %v3724
      %4300 = vmatpush1.bf16.msra.mxu0 %v3723
      %4301 = vmatprep.subr.bf16.mxu0 %v3730
      %4302 = vmatpush1.bf16.msra.mxu0 %v3729
      %4303 = vmatprep.subr.bf16.mxu0 %v3736
      %4304 = vmatpush1.bf16.msra.mxu0 %v3735
      %4305 = vmatprep.subr.bf16.mxu0 %v3742
      %4306 = vmatpush1.bf16.msra.mxu0 %v3741
      %4307 = vmatprep.subr.bf16.mxu0 %v3748
      %4308 = vmatpush1.bf16.msra.mxu0 %v3747
      %4309 = vmatprep.subr.bf16.mxu0 %v3754
      %4310 = vmatpush1.bf16.msra.mxu0 %v3753
      %4311 = vmatprep.subr.bf16.mxu0 %v3760
      %4312 = vmatpush1.bf16.msra.mxu0 %v3759
      %4313 = vmatprep.subr.bf16.mxu0 %v3766
      %4314 = vmatpush1.bf16.msra.mxu0 %v3765
      %4315 = vmatprep.subr.bf16.mxu0 %v3772
      %4316 = vmatpush1.bf16.msra.mxu0 %v3771
      %4317 = vmatprep.subr.bf16.mxu0 %v3778
      %4318 = vmatpush1.bf16.msra.mxu0 %v3777
      %4319 = vmatprep.subr.bf16.mxu0 %v3784
      %4320 = vmatpush1.bf16.msra.mxu0 %v3783
      %4321 = vmatprep.subr.bf16.mxu0 %v3790
      %4322 = vmatpush1.bf16.msra.mxu0 %v3789
      %4323 = vmatprep.subr.bf16.mxu0 %v3796
      %4324 = vmatpush1.bf16.msra.mxu0 %v3795
      %4325 = vmatprep.subr.bf16.mxu0 %v3802
      %4326 = vmatpush1.bf16.msra.mxu0 %v3801
      %4327 = vmatprep.subr.bf16.mxu0 %v3808
      %4328 = vmatpush1.bf16.msra.mxu0 %v3807
      %4329 = vmatprep.subr.bf16.mxu0 %v3814
      %4330 = vmatpush1.bf16.msra.mxu0 %v3813
      %4331 = vmatprep.mubr.bf16.mxu0 %v2822
      %4332 = vmatmul.mubr.bf16.gmra.mrb[0].mxu0 %v2821
      %v4333 = vpop.f32.mrb[0].mxu0
      %v4334 = vadd.f32 %v2832, %v4333
      %v4335 = vpop.f32.mrb[0].mxu0
      %v4336 = vadd.f32 %v2836, %v4335
      %v4337 = vpop.f32.mrb[0].mxu0
      %v4338 = vpop.f32.mrb[0].mxu0
      %4339 = vdwg.mxu0
      %4340 = vmatprep.subr.bf16.mxu0 %v3820
      %4341 = vmatpush1.bf16.msra.mxu0 %v3819
      %4342 = vmatprep.subr.bf16.mxu0 %v3826
      %4343 = vmatpush1.bf16.msra.mxu0 %v3825
      %4344 = vmatprep.subr.bf16.mxu0 %v3832
      %4345 = vmatpush1.bf16.msra.mxu0 %v3831
      %4346 = vmatprep.subr.bf16.mxu0 %v3838
      %4347 = vmatpush1.bf16.msra.mxu0 %v3837
      %4348 = vmatprep.subr.bf16.mxu0 %v3844
      %4349 = vmatpush1.bf16.msra.mxu0 %v3843
      %4350 = vmatprep.subr.bf16.mxu0 %v3850
      %4351 = vmatpush1.bf16.msra.mxu0 %v3849
      %4352 = vmatprep.subr.bf16.mxu0 %v3856
      %4353 = vmatpush1.bf16.msra.mxu0 %v3855
      %4354 = vmatprep.subr.bf16.mxu0 %v3862
      %4355 = vmatpush1.bf16.msra.mxu0 %v3861
      %4356 = vmatprep.subr.bf16.mxu0 %v3868
      %4357 = vmatpush1.bf16.msra.mxu0 %v3867
      %4358 = vmatprep.subr.bf16.mxu0 %v3874
      %4359 = vmatpush1.bf16.msra.mxu0 %v3873
      %4360 = vmatprep.subr.bf16.mxu0 %v3880
      %4361 = vmatpush1.bf16.msra.mxu0 %v3879
      %4362 = vmatprep.subr.bf16.mxu0 %v3886
      %4363 = vmatpush1.bf16.msra.mxu0 %v3885
      %4364 = vmatprep.subr.bf16.mxu0 %v3892
      %4365 = vmatpush1.bf16.msra.mxu0 %v3891
      %4366 = vmatprep.subr.bf16.mxu0 %v3898
      %4367 = vmatpush1.bf16.msra.mxu0 %v3897
      %4368 = vmatprep.subr.bf16.mxu0 %v3904
      %4369 = vmatpush1.bf16.msra.mxu0 %v3903
      %4370 = vmatprep.subr.bf16.mxu0 %v3910
      %4371 = vmatpush1.bf16.msra.mxu0 %v3909
      %4372 = vmatprep.mubr.bf16.mxu0 %v2824
      %4373 = vmatmul.mubr.bf16.gmra.mrb[0].mxu0 %v2823
      %v4374 = vpop.f32.mrb[0].mxu0
      %v4375 = vadd.f32 %v4334, %v4374
      %v4376 = vpop.f32.mrb[0].mxu0
      %v4377 = vadd.f32 %v4336, %v4376
      %v4378 = vpop.f32.mrb[0].mxu0
      %v4379 = vpop.f32.mrb[0].mxu0
      %4380 = vdwg.mxu0
      %4381 = vmatprep.subr.bf16.mxu0 %v3916
      %4382 = vmatpush1.bf16.msra.mxu0 %v3915
      %4383 = vmatprep.subr.bf16.mxu0 %v3922
      %4384 = vmatpush1.bf16.msra.mxu0 %v3921
      %4385 = vmatprep.subr.bf16.mxu0 %v3928
      %4386 = vmatpush1.bf16.msra.mxu0 %v3927
      %4387 = vmatprep.subr.bf16.mxu0 %v3934
      %4388 = vmatpush1.bf16.msra.mxu0 %v3933
      %4389 = vmatprep.subr.bf16.mxu0 %v3940
      %4390 = vmatpush1.bf16.msra.mxu0 %v3939
      %4391 = vmatprep.subr.bf16.mxu0 %v3946
      %4392 = vmatpush1.bf16.msra.mxu0 %v3945
      %4393 = vmatprep.subr.bf16.mxu0 %v3952
      %4394 = vmatpush1.bf16.msra.mxu0 %v3951
      %4395 = vmatprep.subr.bf16.mxu0 %v3958
      %4396 = vmatpush1.bf16.msra.mxu0 %v3957
      %4397 = vmatprep.subr.bf16.mxu0 %v3964
      %4398 = vmatpush1.bf16.msra.mxu0 %v3963
      %4399 = vmatprep.subr.bf16.mxu0 %v3970
      %4400 = vmatpush1.bf16.msra.mxu0 %v3969
      %4401 = vmatprep.subr.bf16.mxu0 %v3976
      %4402 = vmatpush1.bf16.msra.mxu0 %v3975
      %4403 = vmatprep.subr.bf16.mxu0 %v3982
      %4404 = vmatpush1.bf16.msra.mxu0 %v3981
      %4405 = vmatprep.subr.bf16.mxu0 %v3988
      %4406 = vmatpush1.bf16.msra.mxu0 %v3987
      %4407 = vmatprep.subr.bf16.mxu0 %v3994
      %4408 = vmatpush1.bf16.msra.mxu0 %v3993
      %4409 = vmatprep.subr.bf16.mxu0 %v4000
      %4410 = vmatpush1.bf16.msra.mxu0 %v3999
      %4411 = vmatprep.subr.bf16.mxu0 %v4006
      %4412 = vmatpush1.bf16.msra.mxu0 %v4005
      %4413 = vmatprep.mubr.bf16.mxu0 %v2826
      %4414 = vmatmul.mubr.bf16.gmra.mrb[0].mxu0 %v2825
      %v4415 = vpop.f32.mrb[0].mxu0
      %v4416 = vadd.f32 %v4375, %v4415
      %v4417 = vpop.f32.mrb[0].mxu0
      %v4418 = vadd.f32 %v4377, %v4417
      %v4419 = vpop.f32.mrb[0].mxu0
      %v4420 = vpop.f32.mrb[0].mxu0
      %4421 = vdwg.mxu0
      %4422 = vmatprep.subr.bf16.mxu0 %v3726
      %4423 = vmatpush1.bf16.msra.mxu0 %v3725
      %4424 = vmatprep.subr.bf16.mxu0 %v3732
      %4425 = vmatpush1.bf16.msra.mxu0 %v3731
      %4426 = vmatprep.subr.bf16.mxu0 %v3738
      %4427 = vmatpush1.bf16.msra.mxu0 %v3737
      %4428 = vmatprep.subr.bf16.mxu0 %v3744
      %4429 = vmatpush1.bf16.msra.mxu0 %v3743
      %4430 = vmatprep.subr.bf16.mxu0 %v3750
      %4431 = vmatpush1.bf16.msra.mxu0 %v3749
      %4432 = vmatprep.subr.bf16.mxu0 %v3756
      %4433 = vmatpush1.bf16.msra.mxu0 %v3755
      %4434 = vmatprep.subr.bf16.mxu0 %v3762
      %4435 = vmatpush1.bf16.msra.mxu0 %v3761
      %4436 = vmatprep.subr.bf16.mxu0 %v3768
      %4437 = vmatpush1.bf16.msra.mxu0 %v3767
      %4438 = vmatprep.subr.bf16.mxu0 %v3774
      %4439 = vmatpush1.bf16.msra.mxu0 %v3773
      %4440 = vmatprep.subr.bf16.mxu0 %v3780
      %4441 = vmatpush1.bf16.msra.mxu0 %v3779
      %4442 = vmatprep.subr.bf16.mxu0 %v3786
      %4443 = vmatpush1.bf16.msra.mxu0 %v3785
      %4444 = vmatprep.subr.bf16.mxu0 %v3792
      %4445 = vmatpush1.bf16.msra.mxu0 %v3791
      %4446 = vmatprep.subr.bf16.mxu0 %v3798
      %4447 = vmatpush1.bf16.msra.mxu0 %v3797
      %4448 = vmatprep.subr.bf16.mxu0 %v3804
      %4449 = vmatpush1.bf16.msra.mxu0 %v3803
      %4450 = vmatprep.subr.bf16.mxu0 %v3810
      %4451 = vmatpush1.bf16.msra.mxu0 %v3809
      %4452 = vmatprep.subr.bf16.mxu0 %v3816
      %4453 = vmatpush1.bf16.msra.mxu0 %v3815
      %4454 = vmatprep.mubr.bf16.mxu0 %v2822
      %4455 = vmatmul.mubr.bf16.gmra.mrb[0].mxu0 %v2821
      %v4456 = vpop.f32.mrb[0].mxu0
      %v4457 = vadd.f32 %v2840, %v4456
      %v4458 = vpop.f32.mrb[0].mxu0
      %v4459 = vadd.f32 %v2844, %v4458
      %v4460 = vpop.f32.mrb[0].mxu0
      %v4461 = vpop.f32.mrb[0].mxu0
      %4462 = vdwg.mxu0
      %4463 = vmatprep.subr.bf16.mxu0 %v3822
      %4464 = vmatpush1.bf16.msra.mxu0 %v3821
      %4465 = vmatprep.subr.bf16.mxu0 %v3828
      %4466 = vmatpush1.bf16.msra.mxu0 %v3827
      %4467 = vmatprep.subr.bf16.mxu0 %v3834
      %4468 = vmatpush1.bf16.msra.mxu0 %v3833
      %4469 = vmatprep.subr.bf16.mxu0 %v3840
      %4470 = vmatpush1.bf16.msra.mxu0 %v3839
      %4471 = vmatprep.subr.bf16.mxu0 %v3846
      %4472 = vmatpush1.bf16.msra.mxu0 %v3845
      %4473 = vmatprep.subr.bf16.mxu0 %v3852
      %4474 = vmatpush1.bf16.msra.mxu0 %v3851
      %4475 = vmatprep.subr.bf16.mxu0 %v3858
      %4476 = vmatpush1.bf16.msra.mxu0 %v3857
      %4477 = vmatprep.subr.bf16.mxu0 %v3864
      %4478 = vmatpush1.bf16.msra.mxu0 %v3863
      %4479 = vmatprep.subr.bf16.mxu0 %v3870
      %4480 = vmatpush1.bf16.msra.mxu0 %v3869
      %4481 = vmatprep.subr.bf16.mxu0 %v3876
      %4482 = vmatpush1.bf16.msra.mxu0 %v3875
      %4483 = vmatprep.subr.bf16.mxu0 %v3882
      %4484 = vmatpush1.bf16.msra.mxu0 %v3881
      %4485 = vmatprep.subr.bf16.mxu0 %v3888
      %4486 = vmatpush1.bf16.msra.mxu0 %v3887
      %4487 = vmatprep.subr.bf16.mxu0 %v3894
      %4488 = vmatpush1.bf16.msra.mxu0 %v3893
      %4489 = vmatprep.subr.bf16.mxu0 %v3900
      %4490 = vmatpush1.bf16.msra.mxu0 %v3899
      %4491 = vmatprep.subr.bf16.mxu0 %v3906
      %4492 = vmatpush1.bf16.msra.mxu0 %v3905
      %4493 = vmatprep.subr.bf16.mxu0 %v3912
      %4494 = vmatpush1.bf16.msra.mxu0 %v3911
      %4495 = vmatprep.mubr.bf16.mxu0 %v2824
      %4496 = vmatmul.mubr.bf16.gmra.mrb[0].mxu0 %v2823
      %v4497 = vpop.f32.mrb[0].mxu0
      %v4498 = vadd.f32 %v4457, %v4497
      %v4499 = vpop.f32.mrb[0].mxu0
      %v4500 = vadd.f32 %v4459, %v4499
      %v4501 = vpop.f32.mrb[0].mxu0
      %v4502 = vpop.f32.mrb[0].mxu0
      %4503 = vdwg.mxu0
      %4504 = vmatprep.subr.bf16.mxu0 %v3918
      %4505 = vmatpush1.bf16.msra.mxu0 %v3917
      %4506 = vmatprep.subr.bf16.mxu0 %v3924
      %4507 = vmatpush1.bf16.msra.mxu0 %v3923
      %4508 = vmatprep.subr.bf16.mxu0 %v3930
      %4509 = vmatpush1.bf16.msra.mxu0 %v3929
      %4510 = vmatprep.subr.bf16.mxu0 %v3936
      %4511 = vmatpush1.bf16.msra.mxu0 %v3935
      %4512 = vmatprep.subr.bf16.mxu0 %v3942
      %4513 = vmatpush1.bf16.msra.mxu0 %v3941
      %4514 = vmatprep.subr.bf16.mxu0 %v3948
      %4515 = vmatpush1.bf16.msra.mxu0 %v3947
      %4516 = vmatprep.subr.bf16.mxu0 %v3954
      %4517 = vmatpush1.bf16.msra.mxu0 %v3953
      %4518 = vmatprep.subr.bf16.mxu0 %v3960
      %4519 = vmatpush1.bf16.msra.mxu0 %v3959
      %4520 = vmatprep.subr.bf16.mxu0 %v3966
      %4521 = vmatpush1.bf16.msra.mxu0 %v3965
      %4522 = vmatprep.subr.bf16.mxu0 %v3972
      %4523 = vmatpush1.bf16.msra.mxu0 %v3971
      %4524 = vmatprep.subr.bf16.mxu0 %v3978
      %4525 = vmatpush1.bf16.msra.mxu0 %v3977
      %4526 = vmatprep.subr.bf16.mxu0 %v3984
      %4527 = vmatpush1.bf16.msra.mxu0 %v3983
      %4528 = vmatprep.subr.bf16.mxu0 %v3990
      %4529 = vmatpush1.bf16.msra.mxu0 %v3989
      %4530 = vmatprep.subr.bf16.mxu0 %v3996
      %4531 = vmatpush1.bf16.msra.mxu0 %v3995
      %4532 = vmatprep.subr.bf16.mxu0 %v4002
      %4533 = vmatpush1.bf16.msra.mxu0 %v4001
      %4534 = vmatprep.subr.bf16.mxu0 %v4008
      %4535 = vmatpush1.bf16.msra.mxu0 %v4007
      %4536 = vmatprep.mubr.bf16.mxu0 %v2826
      %4537 = vmatmul.mubr.bf16.gmra.mrb[0].mxu0 %v2825
      %v4538 = vpop.f32.mrb[0].mxu0
      %v4539 = vadd.f32 %v4498, %v4538
      %v4540 = vpop.f32.mrb[0].mxu0
      %v4541 = vadd.f32 %v4500, %v4540
      %v4542 = vpop.f32.mrb[0].mxu0
      %v4543 = vpop.f32.mrb[0].mxu0
      %4544 = vdwg.mxu0
      %4545 = vmatprep.subr.bf16.mxu0 %v3728
      %4546 = vmatpush1.bf16.msra.mxu0 %v3727
      %4547 = vmatprep.subr.bf16.mxu0 %v3734
      %4548 = vmatpush1.bf16.msra.mxu0 %v3733
      %4549 = vmatprep.subr.bf16.mxu0 %v3740
      %4550 = vmatpush1.bf16.msra.mxu0 %v3739
      %4551 = vmatprep.subr.bf16.mxu0 %v3746
      %4552 = vmatpush1.bf16.msra.mxu0 %v3745
      %4553 = vmatprep.subr.bf16.mxu0 %v3752
      %4554 = vmatpush1.bf16.msra.mxu0 %v3751
      %4555 = vmatprep.subr.bf16.mxu0 %v3758
      %4556 = vmatpush1.bf16.msra.mxu0 %v3757
      %4557 = vmatprep.subr.bf16.mxu0 %v3764
      %4558 = vmatpush1.bf16.msra.mxu0 %v3763
      %4559 = vmatprep.subr.bf16.mxu0 %v3770
      %4560 = vmatpush1.bf16.msra.mxu0 %v3769
      %4561 = vmatprep.subr.bf16.mxu0 %v3776
      %4562 = vmatpush1.bf16.msra.mxu0 %v3775
      %4563 = vmatprep.subr.bf16.mxu0 %v3782
      %4564 = vmatpush1.bf16.msra.mxu0 %v3781
      %4565 = vmatprep.subr.bf16.mxu0 %v3788
      %4566 = vmatpush1.bf16.msra.mxu0 %v3787
      %4567 = vmatprep.subr.bf16.mxu0 %v3794
      %4568 = vmatpush1.bf16.msra.mxu0 %v3793
      %4569 = vmatprep.subr.bf16.mxu0 %v3800
      %4570 = vmatpush1.bf16.msra.mxu0 %v3799
      %4571 = vmatprep.subr.bf16.mxu0 %v3806
      %4572 = vmatpush1.bf16.msra.mxu0 %v3805
      %4573 = vmatprep.subr.bf16.mxu0 %v3812
      %4574 = vmatpush1.bf16.msra.mxu0 %v3811
      %4575 = vmatprep.subr.bf16.mxu0 %v3818
      %4576 = vmatpush1.bf16.msra.mxu0 %v3817
      %4577 = vmatprep.mubr.bf16.mxu0 %v2822
      %4578 = vmatmul.mubr.bf16.gmra.mrb[0].mxu0 %v2821
      %v4579 = vpop.f32.mrb[0].mxu0
      %v4580 = vadd.f32 %v2848, %v4579
      %v4581 = vpop.f32.mrb[0].mxu0
      %v4582 = vadd.f32 %v2852, %v4581
      %v4583 = vpop.f32.mrb[0].mxu0
      %v4584 = vpop.f32.mrb[0].mxu0
      %4585 = vdwg.mxu0
      %4586 = vmatprep.subr.bf16.mxu0 %v3824
      %4587 = vmatpush1.bf16.msra.mxu0 %v3823
      %4588 = vmatprep.subr.bf16.mxu0 %v3830
      %4589 = vmatpush1.bf16.msra.mxu0 %v3829
      %4590 = vmatprep.subr.bf16.mxu0 %v3836
      %4591 = vmatpush1.bf16.msra.mxu0 %v3835
      %4592 = vmatprep.subr.bf16.mxu0 %v3842
      %4593 = vmatpush1.bf16.msra.mxu0 %v3841
      %4594 = vmatprep.subr.bf16.mxu0 %v3848
      %4595 = vmatpush1.bf16.msra.mxu0 %v3847
      %4596 = vmatprep.subr.bf16.mxu0 %v3854
      %4597 = vmatpush1.bf16.msra.mxu0 %v3853
      %4598 = vmatprep.subr.bf16.mxu0 %v3860
      %4599 = vmatpush1.bf16.msra.mxu0 %v3859
      %4600 = vmatprep.subr.bf16.mxu0 %v3866
      %4601 = vmatpush1.bf16.msra.mxu0 %v3865
      %4602 = vmatprep.subr.bf16.mxu0 %v3872
      %4603 = vmatpush1.bf16.msra.mxu0 %v3871
      %4604 = vmatprep.subr.bf16.mxu0 %v3878
      %4605 = vmatpush1.bf16.msra.mxu0 %v3877
      %4606 = vmatprep.subr.bf16.mxu0 %v3884
      %4607 = vmatpush1.bf16.msra.mxu0 %v3883
      %4608 = vmatprep.subr.bf16.mxu0 %v3890
      %4609 = vmatpush1.bf16.msra.mxu0 %v3889
      %4610 = vmatprep.subr.bf16.mxu0 %v3896
      %4611 = vmatpush1.bf16.msra.mxu0 %v3895
      %4612 = vmatprep.subr.bf16.mxu0 %v3902
      %4613 = vmatpush1.bf16.msra.mxu0 %v3901
      %4614 = vmatprep.subr.bf16.mxu0 %v3908
      %4615 = vmatpush1.bf16.msra.mxu0 %v3907
      %4616 = vmatprep.subr.bf16.mxu0 %v3914
      %4617 = vmatpush1.bf16.msra.mxu0 %v3913
      %4618 = vmatprep.mubr.bf16.mxu0 %v2824
      %4619 = vmatmul.mubr.bf16.gmra.mrb[0].mxu0 %v2823
      %v4620 = vpop.f32.mrb[0].mxu0
      %v4621 = vadd.f32 %v4580, %v4620
      %v4622 = vpop.f32.mrb[0].mxu0
      %v4623 = vadd.f32 %v4582, %v4622
      %v4624 = vpop.f32.mrb[0].mxu0
      %v4625 = vpop.f32.mrb[0].mxu0
      %4626 = vdwg.mxu0
      %4627 = vmatprep.subr.bf16.mxu0 %v3920
      %4628 = vmatpush1.bf16.msra.mxu0 %v3919
      %4629 = vmatprep.subr.bf16.mxu0 %v3926
      %4630 = vmatpush1.bf16.msra.mxu0 %v3925
      %4631 = vmatprep.subr.bf16.mxu0 %v3932
      %4632 = vmatpush1.bf16.msra.mxu0 %v3931
      %4633 = vmatprep.subr.bf16.mxu0 %v3938
      %4634 = vmatpush1.bf16.msra.mxu0 %v3937
      %4635 = vmatprep.subr.bf16.mxu0 %v3944
      %4636 = vmatpush1.bf16.msra.mxu0 %v3943
      %4637 = vmatprep.subr.bf16.mxu0 %v3950
      %4638 = vmatpush1.bf16.msra.mxu0 %v3949
      %4639 = vmatprep.subr.bf16.mxu0 %v3956
      %4640 = vmatpush1.bf16.msra.mxu0 %v3955
      %4641 = vmatprep.subr.bf16.mxu0 %v3962
      %4642 = vmatpush1.bf16.msra.mxu0 %v3961
      %4643 = vmatprep.subr.bf16.mxu0 %v3968
      %4644 = vmatpush1.bf16.msra.mxu0 %v3967
      %4645 = vmatprep.subr.bf16.mxu0 %v3974
      %4646 = vmatpush1.bf16.msra.mxu0 %v3973
      %4647 = vmatprep.subr.bf16.mxu0 %v3980
      %4648 = vmatpush1.bf16.msra.mxu0 %v3979
      %4649 = vmatprep.subr.bf16.mxu0 %v3986
      %4650 = vmatpush1.bf16.msra.mxu0 %v3985
      %4651 = vmatprep.subr.bf16.mxu0 %v3992
      %4652 = vmatpush1.bf16.msra.mxu0 %v3991
      %4653 = vmatprep.subr.bf16.mxu0 %v3998
      %4654 = vmatpush1.bf16.msra.mxu0 %v3997
      %4655 = vmatprep.subr.bf16.mxu0 %v4004
      %4656 = vmatpush1.bf16.msra.mxu0 %v4003
      %4657 = vmatprep.subr.bf16.mxu0 %v4010
      %4658 = vmatpush1.bf16.msra.mxu0 %v4009
      %4659 = vmatprep.mubr.bf16.mxu0 %v2826
      %4660 = vmatmul.mubr.bf16.gmra.mrb[0].mxu0 %v2825
      %v4661 = vpop.f32.mrb[0].mxu0
      %v4662 = vadd.f32 %v4621, %v4661
      %v4663 = vpop.f32.mrb[0].mxu0
      %v4664 = vadd.f32 %v4623, %v4663
      %v4665 = vpop.f32.mrb[0].mxu0
      %v4666 = vpop.f32.mrb[0].mxu0
      %4667 = vdwg.mxu0
      %v4668 = vmax.f32 %v4416, 0.0
      %v4669 = vmax.f32 %v4418, 0.0
      %v4670 = vmax.f32 %v4539, 0.0
      %v4671 = vmax.f32 %v4541, 0.0
      %v4672 = vmax.f32 %v4662, 0.0
      %v4673 = vmax.f32 %v4664, 0.0
      %v4674 = vld [vmem:[%s5] sm:$0xff]
      %v4675 = vld [vmem:[%s5 + $0x8] sm:$0xff]
      %v4676 = vld [vmem:[%s5 + $0x10] sm:$0xff]
      %v4677 = vld [vmem:[%s5 + $0x18] sm:$0xff]
      %v4678 = vld [vmem:[%s5 + $0x20] sm:$0xff]
      %v4679 = vld [vmem:[%s5 + $0x28] sm:$0xff]
      %v4680 = vld [vmem:[%s5 + $0x30] sm:$0xff]
      %v4681 = vld [vmem:[%s5 + $0x38] sm:$0xff]
      %v4682 = vld [vmem:[%s5 + $0x40] sm:$0xff]
      %v4683 = vld [vmem:[%s5 + $0x48] sm:$0xff]
      %v4684 = vld [vmem:[%s5 + $0x50] sm:$0xff]
      %v4685 = vld [vmem:[%s5 + $0x58] sm:$0xff]
      %v4686 = vld [vmem:[%s5 + $0x60] sm:$0xff]
      %v4687 = vld [vmem:[%s5 + $0x68] sm:$0xff]
      %v4688 = vld [vmem:[%s5 + $0x70] sm:$0xff]
      %v4689 = vld [vmem:[%s5 + $0x78] sm:$0xff]
      %v4690 = vld [vmem:[%s5 + $0x80] sm:$0xff]
      %v4691 = vld [vmem:[%s5 + $0x88] sm:$0xff]
      %v4692 = vld [vmem:[%s5 + $0x90] sm:$0xff]
      %v4693 = vld [vmem:[%s5 + $0x98] sm:$0xff]
      %v4694 = vld [vmem:[%s5 + $0xa0] sm:$0xff]
      %v4695 = vld [vmem:[%s5 + $0xa8] sm:$0xff]
      %v4696 = vld [vmem:[%s5 + $0xb0] sm:$0xff]
      %v4697 = vld [vmem:[%s5 + $0xb8] sm:$0xff]
      %v4698 = vld [vmem:[%s5 + $0xc0] sm:$0xff]
      %v4699 = vld [vmem:[%s5 + $0xc8] sm:$0xff]
      %v4700 = vld [vmem:[%s5 + $0xd0] sm:$0xff]
      %v4701 = vld [vmem:[%s5 + $0xd8] sm:$0xff]
      %v4702 = vld [vmem:[%s5 + $0xe0] sm:$0xff]
      %v4703 = vld [vmem:[%s5 + $0xe8] sm:$0xff]
      %v4704 = vld [vmem:[%s5 + $0xf0] sm:$0xff]
      %v4705 = vld [vmem:[%s5 + $0xf8] sm:$0xff]
      %v4706 = vld [vmem:[%s5 + $0x100] sm:$0xff]
      %v4707 = vld [vmem:[%s5 + $0x108] sm:$0xff]
      %v4708 = vld [vmem:[%s5 + $0x110] sm:$0xff]
      %v4709 = vld [vmem:[%s5 + $0x118] sm:$0xff]
      %v4710 = vld [vmem:[%s5 + $0x120] sm:$0xff]
      %v4711 = vld [vmem:[%s5 + $0x128] sm:$0xff]
      %v4712 = vld [vmem:[%s5 + $0x130] sm:$0xff]
      %v4713 = vld [vmem:[%s5 + $0x138] sm:$0xff]
      %v4714 = vld [vmem:[%s5 + $0x140] sm:$0xff]
      %v4715 = vld [vmem:[%s5 + $0x148] sm:$0xff]
      %v4716 = vld [vmem:[%s5 + $0x150] sm:$0xff]
      %v4717 = vld [vmem:[%s5 + $0x158] sm:$0xff]
      %v4718 = vld [vmem:[%s5 + $0x160] sm:$0xff]
      %v4719 = vld [vmem:[%s5 + $0x168] sm:$0xff]
      %v4720 = vld [vmem:[%s5 + $0x170] sm:$0xff]
      %v4721 = vld [vmem:[%s5 + $0x178] sm:$0xff]
      %v4722 = vld [vmem:[%s5 + $0x180] sm:$0xff]
      %v4723 = vld [vmem:[%s5 + $0x188] sm:$0xff]
      %v4724 = vld [vmem:[%s5 + $0x190] sm:$0xff]
      %v4725 = vld [vmem:[%s5 + $0x198] sm:$0xff]
      %v4726 = vld [vmem:[%s5 + $0x1a0] sm:$0xff]
      %v4727 = vld [vmem:[%s5 + $0x1a8] sm:$0xff]
      %v4728 = vld [vmem:[%s5 + $0x1b0] sm:$0xff]
      %v4729 = vld [vmem:[%s5 + $0x1b8] sm:$0xff]
      %v4730 = vld [vmem:[%s5 + $0x1c0] sm:$0xff]
      %v4731 = vld [vmem:[%s5 + $0x1c8] sm:$0xff]
      %v4732 = vld [vmem:[%s5 + $0x1d0] sm:$0xff]
      %v4733 = vld [vmem:[%s5 + $0x1d8] sm:$0xff]
      %v4734 = vld [vmem:[%s5 + $0x1e0] sm:$0xff]
      %v4735 = vld [vmem:[%s5 + $0x1e8] sm:$0xff]
      %v4736 = vld [vmem:[%s5 + $0x1f0] sm:$0xff]
      %v4737 = vld [vmem:[%s5 + $0x1f8] sm:$0xff]
      %v4738 = vld [vmem:[%s5 + $0x200] sm:$0xff]
      %v4739 = vld [vmem:[%s5 + $0x208] sm:$0xff]
      %v4740 = vld [vmem:[%s5 + $0x210] sm:$0xff]
      %v4741 = vld [vmem:[%s5 + $0x218] sm:$0xff]
      %v4742 = vld [vmem:[%s5 + $0x220] sm:$0xff]
      %v4743 = vld [vmem:[%s5 + $0x228] sm:$0xff]
      %v4744 = vld [vmem:[%s5 + $0x230] sm:$0xff]
      %v4745 = vld [vmem:[%s5 + $0x238] sm:$0xff]
      %v4746 = vld [vmem:[%s5 + $0x240] sm:$0xff]
      %v4747 = vld [vmem:[%s5 + $0x248] sm:$0xff]
      %v4748 = vld [vmem:[%s5 + $0x250] sm:$0xff]
      %v4749 = vld [vmem:[%s5 + $0x258] sm:$0xff]
      %v4750 = vld [vmem:[%s5 + $0x260] sm:$0xff]
      %v4751 = vld [vmem:[%s5 + $0x268] sm:$0xff]
      %v4752 = vld [vmem:[%s5 + $0x270] sm:$0xff]
      %v4753 = vld [vmem:[%s5 + $0x278] sm:$0xff]
      %v4754 = vld [vmem:[%s5 + $0x280] sm:$0xff]
      %v4755 = vld [vmem:[%s5 + $0x288] sm:$0xff]
      %v4756 = vld [vmem:[%s5 + $0x290] sm:$0xff]
      %v4757 = vld [vmem:[%s5 + $0x298] sm:$0xff]
      %v4758 = vld [vmem:[%s5 + $0x2a0] sm:$0xff]
      %v4759 = vld [vmem:[%s5 + $0x2a8] sm:$0xff]
      %v4760 = vld [vmem:[%s5 + $0x2b0] sm:$0xff]
      %v4761 = vld [vmem:[%s5 + $0x2b8] sm:$0xff]
      %v4762 = vld [vmem:[%s5 + $0x2c0] sm:$0xff]
      %v4763 = vld [vmem:[%s5 + $0x2c8] sm:$0xff]
      %v4764 = vld [vmem:[%s5 + $0x2d0] sm:$0xff]
      %v4765 = vld [vmem:[%s5 + $0x2d8] sm:$0xff]
      %v4766 = vld [vmem:[%s5 + $0x2e0] sm:$0xff]
      %v4767 = vld [vmem:[%s5 + $0x2e8] sm:$0xff]
      %v4768 = vld [vmem:[%s5 + $0x2f0] sm:$0xff]
      %v4769 = vld [vmem:[%s5 + $0x2f8] sm:$0xff]
      %v4770 = vld [vmem:[%s5 + $0x300] sm:$0xff]
      %v4771 = vld [vmem:[%s5 + $0x308] sm:$0xff]
      %v4772 = vld [vmem:[%s5 + $0x310] sm:$0xff]
      %v4773 = vld [vmem:[%s5 + $0x318] sm:$0xff]
      %v4774 = vld [vmem:[%s5 + $0x320] sm:$0xff]
      %v4775 = vld [vmem:[%s5 + $0x328] sm:$0xff]
      %v4776 = vld [vmem:[%s5 + $0x330] sm:$0xff]
      %v4777 = vld [vmem:[%s5 + $0x338] sm:$0xff]
      %v4778 = vld [vmem:[%s5 + $0x340] sm:$0xff]
      %v4779 = vld [vmem:[%s5 + $0x348] sm:$0xff]
      %v4780 = vld [vmem:[%s5 + $0x350] sm:$0xff]
      %v4781 = vld [vmem:[%s5 + $0x358] sm:$0xff]
      %v4782 = vld [vmem:[%s5 + $0x360] sm:$0xff]
      %v4783 = vld [vmem:[%s5 + $0x368] sm:$0xff]
      %v4784 = vld [vmem:[%s5 + $0x370] sm:$0xff]
      %v4785 = vld [vmem:[%s5 + $0x378] sm:$0xff]
      %v4786 = vld [vmem:[%s5 + $0x380] sm:$0xff]
      %v4787 = vld [vmem:[%s5 + $0x388] sm:$0xff]
      %v4788 = vld [vmem:[%s5 + $0x390] sm:$0xff]
      %v4789 = vld [vmem:[%s5 + $0x398] sm:$0xff]
      %v4790 = vld [vmem:[%s5 + $0x3a0] sm:$0xff]
      %v4791 = vld [vmem:[%s5 + $0x3a8] sm:$0xff]
      %v4792 = vld [vmem:[%s5 + $0x3b0] sm:$0xff]
      %v4793 = vld [vmem:[%s5 + $0x3b8] sm:$0xff]
      %v4794 = vld [vmem:[%s5 + $0x3c0] sm:$0xff]
      %v4795 = vld [vmem:[%s5 + $0x3c8] sm:$0xff]
      %v4796 = vld [vmem:[%s5 + $0x3d0] sm:$0xff]
      %v4797 = vld [vmem:[%s5 + $0x3d8] sm:$0xff]
      %v4798 = vld [vmem:[%s5 + $0x3e0] sm:$0xff]
      %v4799 = vld [vmem:[%s5 + $0x3e8] sm:$0xff]
      %v4800 = vld [vmem:[%s5 + $0x3f0] sm:$0xff]
      %v4801 = vld [vmem:[%s5 + $0x3f8] sm:$0xff]
      %v4802 = vld [vmem:[%s5 + $0x400] sm:$0xff]
      %v4803 = vld [vmem:[%s5 + $0x408] sm:$0xff]
      %v4804 = vld [vmem:[%s5 + $0x410] sm:$0xff]
      %v4805 = vld [vmem:[%s5 + $0x418] sm:$0xff]
      %v4806 = vld [vmem:[%s5 + $0x420] sm:$0xff]
      %v4807 = vld [vmem:[%s5 + $0x428] sm:$0xff]
      %v4808 = vld [vmem:[%s5 + $0x430] sm:$0xff]
      %v4809 = vld [vmem:[%s5 + $0x438] sm:$0xff]
      %v4810 = vld [vmem:[%s5 + $0x440] sm:$0xff]
      %v4811 = vld [vmem:[%s5 + $0x448] sm:$0xff]
      %v4812 = vld [vmem:[%s5 + $0x450] sm:$0xff]
      %v4813 = vld [vmem:[%s5 + $0x458] sm:$0xff]
      %v4814 = vld [vmem:[%s5 + $0x460] sm:$0xff]
      %v4815 = vld [vmem:[%s5 + $0x468] sm:$0xff]
      %v4816 = vld [vmem:[%s5 + $0x470] sm:$0xff]
      %v4817 = vld [vmem:[%s5 + $0x478] sm:$0xff]
      %v4818 = vld [vmem:[%s5 + $0x480] sm:$0xff]
      %v4819 = vld [vmem:[%s5 + $0x488] sm:$0xff]
      %v4820 = vld [vmem:[%s5 + $0x490] sm:$0xff]
      %v4821 = vld [vmem:[%s5 + $0x498] sm:$0xff]
      %v4822 = vld [vmem:[%s5 + $0x4a0] sm:$0xff]
      %v4823 = vld [vmem:[%s5 + $0x4a8] sm:$0xff]
      %v4824 = vld [vmem:[%s5 + $0x4b0] sm:$0xff]
      %v4825 = vld [vmem:[%s5 + $0x4b8] sm:$0xff]
      %v4826 = vld [vmem:[%s5 + $0x4c0] sm:$0xff]
      %v4827 = vld [vmem:[%s5 + $0x4c8] sm:$0xff]
      %v4828 = vld [vmem:[%s5 + $0x4d0] sm:$0xff]
      %v4829 = vld [vmem:[%s5 + $0x4d8] sm:$0xff]
      %v4830 = vld [vmem:[%s5 + $0x4e0] sm:$0xff]
      %v4831 = vld [vmem:[%s5 + $0x4e8] sm:$0xff]
      %v4832 = vld [vmem:[%s5 + $0x4f0] sm:$0xff]
      %v4833 = vld [vmem:[%s5 + $0x4f8] sm:$0xff]
      %v4834 = vld [vmem:[%s5 + $0x500] sm:$0xff]
      %v4835 = vld [vmem:[%s5 + $0x508] sm:$0xff]
      %v4836 = vld [vmem:[%s5 + $0x510] sm:$0xff]
      %v4837 = vld [vmem:[%s5 + $0x518] sm:$0xff]
      %v4838 = vld [vmem:[%s5 + $0x520] sm:$0xff]
      %v4839 = vld [vmem:[%s5 + $0x528] sm:$0xff]
      %v4840 = vld [vmem:[%s5 + $0x530] sm:$0xff]
      %v4841 = vld [vmem:[%s5 + $0x538] sm:$0xff]
      %v4842 = vld [vmem:[%s5 + $0x540] sm:$0xff]
      %v4843 = vld [vmem:[%s5 + $0x548] sm:$0xff]
      %v4844 = vld [vmem:[%s5 + $0x550] sm:$0xff]
      %v4845 = vld [vmem:[%s5 + $0x558] sm:$0xff]
      %v4846 = vld [vmem:[%s5 + $0x560] sm:$0xff]
      %v4847 = vld [vmem:[%s5 + $0x568] sm:$0xff]
      %v4848 = vld [vmem:[%s5 + $0x570] sm:$0xff]
      %v4849 = vld [vmem:[%s5 + $0x578] sm:$0xff]
      %v4850 = vld [vmem:[%s5 + $0x580] sm:$0xff]
      %v4851 = vld [vmem:[%s5 + $0x588] sm:$0xff]
      %v4852 = vld [vmem:[%s5 + $0x590] sm:$0xff]
      %v4853 = vld [vmem:[%s5 + $0x598] sm:$0xff]
      %v4854 = vld [vmem:[%s5 + $0x5a0] sm:$0xff]
      %v4855 = vld [vmem:[%s5 + $0x5a8] sm:$0xff]
      %v4856 = vld [vmem:[%s5 + $0x5b0] sm:$0xff]
      %v4857 = vld [vmem:[%s5 + $0x5b8] sm:$0xff]
      %v4858 = vld [vmem:[%s5 + $0x5c0] sm:$0xff]
      %v4859 = vld [vmem:[%s5 + $0x5c8] sm:$0xff]
      %v4860 = vld [vmem:[%s5 + $0x5d0] sm:$0xff]
      %v4861 = vld [vmem:[%s5 + $0x5d8] sm:$0xff]
      %v4862 = vld [vmem:[%s5 + $0x5e0] sm:$0xff]
      %v4863 = vld [vmem:[%s5 + $0x5e8] sm:$0xff]
      %v4864 = vld [vmem:[%s5 + $0x5f0] sm:$0xff]
      %v4865 = vld [vmem:[%s5 + $0x5f8] sm:$0xff]
      %v4866 = vld [vmem:[%s5 + $0x600] sm:$0xff]
      %v4867 = vld [vmem:[%s5 + $0x608] sm:$0xff]
      %v4868 = vld [vmem:[%s5 + $0x610] sm:$0xff]
      %v4869 = vld [vmem:[%s5 + $0x618] sm:$0xff]
      %v4870 = vld [vmem:[%s5 + $0x620] sm:$0xff]
      %v4871 = vld [vmem:[%s5 + $0x628] sm:$0xff]
      %v4872 = vld [vmem:[%s5 + $0x630] sm:$0xff]
      %v4873 = vld [vmem:[%s5 + $0x638] sm:$0xff]
      %v4874 = vld [vmem:[%s5 + $0x640] sm:$0xff]
      %v4875 = vld [vmem:[%s5 + $0x648] sm:$0xff]
      %v4876 = vld [vmem:[%s5 + $0x650] sm:$0xff]
      %v4877 = vld [vmem:[%s5 + $0x658] sm:$0xff]
      %v4878 = vld [vmem:[%s5 + $0x660] sm:$0xff]
      %v4879 = vld [vmem:[%s5 + $0x668] sm:$0xff]
      %v4880 = vld [vmem:[%s5 + $0x670] sm:$0xff]
      %v4881 = vld [vmem:[%s5 + $0x678] sm:$0xff]
      %v4882 = vld [vmem:[%s5 + $0x680] sm:$0xff]
      %v4883 = vld [vmem:[%s5 + $0x688] sm:$0xff]
      %v4884 = vld [vmem:[%s5 + $0x690] sm:$0xff]
      %v4885 = vld [vmem:[%s5 + $0x698] sm:$0xff]
      %v4886 = vld [vmem:[%s5 + $0x6a0] sm:$0xff]
      %v4887 = vld [vmem:[%s5 + $0x6a8] sm:$0xff]
      %v4888 = vld [vmem:[%s5 + $0x6b0] sm:$0xff]
      %v4889 = vld [vmem:[%s5 + $0x6b8] sm:$0xff]
      %v4890 = vld [vmem:[%s5 + $0x6c0] sm:$0xff]
      %v4891 = vld [vmem:[%s5 + $0x6c8] sm:$0xff]
      %v4892 = vld [vmem:[%s5 + $0x6d0] sm:$0xff]
      %v4893 = vld [vmem:[%s5 + $0x6d8] sm:$0xff]
      %v4894 = vld [vmem:[%s5 + $0x6e0] sm:$0xff]
      %v4895 = vld [vmem:[%s5 + $0x6e8] sm:$0xff]
      %v4896 = vld [vmem:[%s5 + $0x6f0] sm:$0xff]
      %v4897 = vld [vmem:[%s5 + $0x6f8] sm:$0xff]
      %v4898 = vld [vmem:[%s5 + $0x700] sm:$0xff]
      %v4899 = vld [vmem:[%s5 + $0x708] sm:$0xff]
      %v4900 = vld [vmem:[%s5 + $0x710] sm:$0xff]
      %v4901 = vld [vmem:[%s5 + $0x718] sm:$0xff]
      %v4902 = vld [vmem:[%s5 + $0x720] sm:$0xff]
      %v4903 = vld [vmem:[%s5 + $0x728] sm:$0xff]
      %v4904 = vld [vmem:[%s5 + $0x730] sm:$0xff]
      %v4905 = vld [vmem:[%s5 + $0x738] sm:$0xff]
      %v4906 = vld [vmem:[%s5 + $0x740] sm:$0xff]
      %v4907 = vld [vmem:[%s5 + $0x748] sm:$0xff]
      %v4908 = vld [vmem:[%s5 + $0x750] sm:$0xff]
      %v4909 = vld [vmem:[%s5 + $0x758] sm:$0xff]
      %v4910 = vld [vmem:[%s5 + $0x760] sm:$0xff]
      %v4911 = vld [vmem:[%s5 + $0x768] sm:$0xff]
      %v4912 = vld [vmem:[%s5 + $0x770] sm:$0xff]
      %v4913 = vld [vmem:[%s5 + $0x778] sm:$0xff]
      %v4914 = vld [vmem:[%s5 + $0x780] sm:$0xff]
      %v4915 = vld [vmem:[%s5 + $0x788] sm:$0xff]
      %v4916 = vld [vmem:[%s5 + $0x790] sm:$0xff]
      %v4917 = vld [vmem:[%s5 + $0x798] sm:$0xff]
      %v4918 = vld [vmem:[%s5 + $0x7a0] sm:$0xff]
      %v4919 = vld [vmem:[%s5 + $0x7a8] sm:$0xff]
      %v4920 = vld [vmem:[%s5 + $0x7b0] sm:$0xff]
      %v4921 = vld [vmem:[%s5 + $0x7b8] sm:$0xff]
      %v4922 = vld [vmem:[%s5 + $0x7c0] sm:$0xff]
      %v4923 = vld [vmem:[%s5 + $0x7c8] sm:$0xff]
      %v4924 = vld [vmem:[%s5 + $0x7d0] sm:$0xff]
      %v4925 = vld [vmem:[%s5 + $0x7d8] sm:$0xff]
      %v4926 = vld [vmem:[%s5 + $0x7e0] sm:$0xff]
      %v4927 = vld [vmem:[%s5 + $0x7e8] sm:$0xff]
      %v4928 = vld [vmem:[%s5 + $0x7f0] sm:$0xff]
      %v4929 = vld [vmem:[%s5 + $0x7f8] sm:$0xff]
      %v4930 = vld [vmem:[%s5 + $0x800] sm:$0xff]
      %v4931 = vld [vmem:[%s5 + $0x808] sm:$0xff]
      %v4932 = vld [vmem:[%s5 + $0x810] sm:$0xff]
      %v4933 = vld [vmem:[%s5 + $0x818] sm:$0xff]
      %v4934 = vld [vmem:[%s5 + $0x820] sm:$0xff]
      %v4935 = vld [vmem:[%s5 + $0x828] sm:$0xff]
      %v4936 = vld [vmem:[%s5 + $0x830] sm:$0xff]
      %v4937 = vld [vmem:[%s5 + $0x838] sm:$0xff]
      %v4938 = vld [vmem:[%s5 + $0x840] sm:$0xff]
      %v4939 = vld [vmem:[%s5 + $0x848] sm:$0xff]
      %v4940 = vld [vmem:[%s5 + $0x850] sm:$0xff]
      %v4941 = vld [vmem:[%s5 + $0x858] sm:$0xff]
      %v4942 = vld [vmem:[%s5 + $0x860] sm:$0xff]
      %v4943 = vld [vmem:[%s5 + $0x868] sm:$0xff]
      %v4944 = vld [vmem:[%s5 + $0x870] sm:$0xff]
      %v4945 = vld [vmem:[%s5 + $0x878] sm:$0xff]
      %v4946 = vld [vmem:[%s5 + $0x880] sm:$0xff]
      %v4947 = vld [vmem:[%s5 + $0x888] sm:$0xff]
      %v4948 = vld [vmem:[%s5 + $0x890] sm:$0xff]
      %v4949 = vld [vmem:[%s5 + $0x898] sm:$0xff]
      %v4950 = vld [vmem:[%s5 + $0x8a0] sm:$0xff]
      %v4951 = vld [vmem:[%s5 + $0x8a8] sm:$0xff]
      %v4952 = vld [vmem:[%s5 + $0x8b0] sm:$0xff]
      %v4953 = vld [vmem:[%s5 + $0x8b8] sm:$0xff]
      %v4954 = vld [vmem:[%s5 + $0x8c0] sm:$0xff]
      %v4955 = vld [vmem:[%s5 + $0x8c8] sm:$0xff]
      %v4956 = vld [vmem:[%s5 + $0x8d0] sm:$0xff]
      %v4957 = vld [vmem:[%s5 + $0x8d8] sm:$0xff]
      %v4958 = vld [vmem:[%s5 + $0x8e0] sm:$0xff]
      %v4959 = vld [vmem:[%s5 + $0x8e8] sm:$0xff]
      %v4960 = vld [vmem:[%s5 + $0x8f0] sm:$0xff]
      %v4961 = vld [vmem:[%s5 + $0x8f8] sm:$0xff]
      %v4962 = vpack.c.bf16 %v4668, %v4668
      %v4963 = vpack.c.bf16 %v4669, %v4669
      %v4964 = vpack.c.bf16 %v4670, %v4670
      %v4965 = vpack.c.bf16 %v4671, %v4671
      %v4966 = vpack.c.bf16 %v4672, %v4672
      %v4967 = vpack.c.bf16 %v4673, %v4673
      %v4968 = vld [vmem:[%s6] sm:$0x3f]
      %v4970 = vlaneseq
      %v4971 = vshrl.u32 %v4970, 7
      %v4972 = vsub.s32 0, %v4971
      %v4973 = vrot.slane %v4968, %v4972
      %v4974 = vlaneseq
      %v4975 = vshrl.u32 %v4974, 7
      %v4976 = vsub.s32 1, %v4975
      %v4977 = vrot.slane %v4968, %v4976
      %v4978 = vlaneseq
      %v4979 = vshrl.u32 %v4978, 7
      %v4980 = vsub.s32 2, %v4979
      %v4981 = vrot.slane %v4968, %v4980
      %v4982 = vlaneseq
      %v4983 = vshrl.u32 %v4982, 7
      %v4984 = vsub.s32 3, %v4983
      %v4985 = vrot.slane %v4968, %v4984
      %v4986 = vlaneseq
      %v4987 = vshrl.u32 %v4986, 7
      %v4988 = vsub.s32 4, %v4987
      %v4989 = vrot.slane %v4968, %v4988
      %v4990 = vlaneseq
      %v4991 = vshrl.u32 %v4990, 7
      %v4992 = vsub.s32 5, %v4991
      %v4993 = vrot.slane %v4968, %v4992
      %v5288 = vunpack.c.l.b16 %v4674
      %v5289 = vunpack.c.h.b16 %v4674
      %v5290 = vunpack.c.l.b16 %v4675
      %v5291 = vunpack.c.h.b16 %v4675
      %v5292 = vunpack.c.l.b16 %v4676
      %v5293 = vunpack.c.h.b16 %v4676
      %v5294 = vunpack.c.l.b16 %v4677
      %v5295 = vunpack.c.h.b16 %v4677
      %v5296 = vunpack.c.l.b16 %v4678
      %v5297 = vunpack.c.h.b16 %v4678
      %v5298 = vunpack.c.l.b16 %v4679
      %v5299 = vunpack.c.h.b16 %v4679
      %v5300 = vunpack.c.l.b16 %v4680
      %v5301 = vunpack.c.h.b16 %v4680
      %v5302 = vunpack.c.l.b16 %v4681
      %v5303 = vunpack.c.h.b16 %v4681
      %v5304 = vunpack.c.l.b16 %v4682
      %v5305 = vunpack.c.h.b16 %v4682
      %v5306 = vunpack.c.l.b16 %v4683
      %v5307 = vunpack.c.h.b16 %v4683
      %v5308 = vunpack.c.l.b16 %v4684
      %v5309 = vunpack.c.h.b16 %v4684
      %v5310 = vunpack.c.l.b16 %v4685
      %v5311 = vunpack.c.h.b16 %v4685
      %v5312 = vunpack.c.l.b16 %v4686
      %v5313 = vunpack.c.h.b16 %v4686
      %v5314 = vunpack.c.l.b16 %v4687
      %v5315 = vunpack.c.h.b16 %v4687
      %v5316 = vunpack.c.l.b16 %v4688
      %v5317 = vunpack.c.h.b16 %v4688
      %v5318 = vunpack.c.l.b16 %v4689
      %v5319 = vunpack.c.h.b16 %v4689
      %v5320 = vunpack.c.l.b16 %v4690
      %v5321 = vunpack.c.h.b16 %v4690
      %v5322 = vunpack.c.l.b16 %v4691
      %v5323 = vunpack.c.h.b16 %v4691
      %v5324 = vunpack.c.l.b16 %v4692
      %v5325 = vunpack.c.h.b16 %v4692
      %v5326 = vunpack.c.l.b16 %v4693
      %v5327 = vunpack.c.h.b16 %v4693
      %v5328 = vunpack.c.l.b16 %v4694
      %v5329 = vunpack.c.h.b16 %v4694
      %v5330 = vunpack.c.l.b16 %v4695
      %v5331 = vunpack.c.h.b16 %v4695
      %v5332 = vunpack.c.l.b16 %v4696
      %v5333 = vunpack.c.h.b16 %v4696
      %v5334 = vunpack.c.l.b16 %v4697
      %v5335 = vunpack.c.h.b16 %v4697
      %v5336 = vunpack.c.l.b16 %v4698
      %v5337 = vunpack.c.h.b16 %v4698
      %v5338 = vunpack.c.l.b16 %v4699
      %v5339 = vunpack.c.h.b16 %v4699
      %v5340 = vunpack.c.l.b16 %v4700
      %v5341 = vunpack.c.h.b16 %v4700
      %v5342 = vunpack.c.l.b16 %v4701
      %v5343 = vunpack.c.h.b16 %v4701
      %v5344 = vunpack.c.l.b16 %v4702
      %v5345 = vunpack.c.h.b16 %v4702
      %v5346 = vunpack.c.l.b16 %v4703
      %v5347 = vunpack.c.h.b16 %v4703
      %v5348 = vunpack.c.l.b16 %v4704
      %v5349 = vunpack.c.h.b16 %v4704
      %v5350 = vunpack.c.l.b16 %v4705
      %v5351 = vunpack.c.h.b16 %v4705
      %v5352 = vunpack.c.l.b16 %v4706
      %v5353 = vunpack.c.h.b16 %v4706
      %v5354 = vunpack.c.l.b16 %v4707
      %v5355 = vunpack.c.h.b16 %v4707
      %v5356 = vunpack.c.l.b16 %v4708
      %v5357 = vunpack.c.h.b16 %v4708
      %v5358 = vunpack.c.l.b16 %v4709
      %v5359 = vunpack.c.h.b16 %v4709
      %v5360 = vunpack.c.l.b16 %v4710
      %v5361 = vunpack.c.h.b16 %v4710
      %v5362 = vunpack.c.l.b16 %v4711
      %v5363 = vunpack.c.h.b16 %v4711
      %v5364 = vunpack.c.l.b16 %v4712
      %v5365 = vunpack.c.h.b16 %v4712
      %v5366 = vunpack.c.l.b16 %v4713
      %v5367 = vunpack.c.h.b16 %v4713
      %v5368 = vunpack.c.l.b16 %v4714
      %v5369 = vunpack.c.h.b16 %v4714
      %v5370 = vunpack.c.l.b16 %v4715
      %v5371 = vunpack.c.h.b16 %v4715
      %v5372 = vunpack.c.l.b16 %v4716
      %v5373 = vunpack.c.h.b16 %v4716
      %v5374 = vunpack.c.l.b16 %v4717
      %v5375 = vunpack.c.h.b16 %v4717
      %v5376 = vunpack.c.l.b16 %v4718
      %v5377 = vunpack.c.h.b16 %v4718
      %v5378 = vunpack.c.l.b16 %v4719
      %v5379 = vunpack.c.h.b16 %v4719
      %v5380 = vunpack.c.l.b16 %v4720
      %v5381 = vunpack.c.h.b16 %v4720
      %v5382 = vunpack.c.l.b16 %v4721
      %v5383 = vunpack.c.h.b16 %v4721
      %v5384 = vunpack.c.l.b16 %v4722
      %v5385 = vunpack.c.h.b16 %v4722
      %v5386 = vunpack.c.l.b16 %v4723
      %v5387 = vunpack.c.h.b16 %v4723
      %v5388 = vunpack.c.l.b16 %v4724
      %v5389 = vunpack.c.h.b16 %v4724
      %v5390 = vunpack.c.l.b16 %v4725
      %v5391 = vunpack.c.h.b16 %v4725
      %v5392 = vunpack.c.l.b16 %v4726
      %v5393 = vunpack.c.h.b16 %v4726
      %v5394 = vunpack.c.l.b16 %v4727
      %v5395 = vunpack.c.h.b16 %v4727
      %v5396 = vunpack.c.l.b16 %v4728
      %v5397 = vunpack.c.h.b16 %v4728
      %v5398 = vunpack.c.l.b16 %v4729
      %v5399 = vunpack.c.h.b16 %v4729
      %v5400 = vunpack.c.l.b16 %v4730
      %v5401 = vunpack.c.h.b16 %v4730
      %v5402 = vunpack.c.l.b16 %v4731
      %v5403 = vunpack.c.h.b16 %v4731
      %v5404 = vunpack.c.l.b16 %v4732
      %v5405 = vunpack.c.h.b16 %v4732
      %v5406 = vunpack.c.l.b16 %v4733
      %v5407 = vunpack.c.h.b16 %v4733
      %v5408 = vunpack.c.l.b16 %v4734
      %v5409 = vunpack.c.h.b16 %v4734
      %v5410 = vunpack.c.l.b16 %v4735
      %v5411 = vunpack.c.h.b16 %v4735
      %v5412 = vunpack.c.l.b16 %v4736
      %v5413 = vunpack.c.h.b16 %v4736
      %v5414 = vunpack.c.l.b16 %v4737
      %v5415 = vunpack.c.h.b16 %v4737
      %v5416 = vunpack.c.l.b16 %v4738
      %v5417 = vunpack.c.h.b16 %v4738
      %v5418 = vunpack.c.l.b16 %v4739
      %v5419 = vunpack.c.h.b16 %v4739
      %v5420 = vunpack.c.l.b16 %v4740
      %v5421 = vunpack.c.h.b16 %v4740
      %v5422 = vunpack.c.l.b16 %v4741
      %v5423 = vunpack.c.h.b16 %v4741
      %v5424 = vunpack.c.l.b16 %v4742
      %v5425 = vunpack.c.h.b16 %v4742
      %v5426 = vunpack.c.l.b16 %v4743
      %v5427 = vunpack.c.h.b16 %v4743
      %v5428 = vunpack.c.l.b16 %v4744
      %v5429 = vunpack.c.h.b16 %v4744
      %v5430 = vunpack.c.l.b16 %v4745
      %v5431 = vunpack.c.h.b16 %v4745
      %v5432 = vunpack.c.l.b16 %v4746
      %v5433 = vunpack.c.h.b16 %v4746
      %v5434 = vunpack.c.l.b16 %v4747
      %v5435 = vunpack.c.h.b16 %v4747
      %v5436 = vunpack.c.l.b16 %v4748
      %v5437 = vunpack.c.h.b16 %v4748
      %v5438 = vunpack.c.l.b16 %v4749
      %v5439 = vunpack.c.h.b16 %v4749
      %v5440 = vunpack.c.l.b16 %v4750
      %v5441 = vunpack.c.h.b16 %v4750
      %v5442 = vunpack.c.l.b16 %v4751
      %v5443 = vunpack.c.h.b16 %v4751
      %v5444 = vunpack.c.l.b16 %v4752
      %v5445 = vunpack.c.h.b16 %v4752
      %v5446 = vunpack.c.l.b16 %v4753
      %v5447 = vunpack.c.h.b16 %v4753
      %v5448 = vunpack.c.l.b16 %v4754
      %v5449 = vunpack.c.h.b16 %v4754
      %v5450 = vunpack.c.l.b16 %v4755
      %v5451 = vunpack.c.h.b16 %v4755
      %v5452 = vunpack.c.l.b16 %v4756
      %v5453 = vunpack.c.h.b16 %v4756
      %v5454 = vunpack.c.l.b16 %v4757
      %v5455 = vunpack.c.h.b16 %v4757
      %v5456 = vunpack.c.l.b16 %v4758
      %v5457 = vunpack.c.h.b16 %v4758
      %v5458 = vunpack.c.l.b16 %v4759
      %v5459 = vunpack.c.h.b16 %v4759
      %v5460 = vunpack.c.l.b16 %v4760
      %v5461 = vunpack.c.h.b16 %v4760
      %v5462 = vunpack.c.l.b16 %v4761
      %v5463 = vunpack.c.h.b16 %v4761
      %v5464 = vunpack.c.l.b16 %v4762
      %v5465 = vunpack.c.h.b16 %v4762
      %v5466 = vunpack.c.l.b16 %v4763
      %v5467 = vunpack.c.h.b16 %v4763
      %v5468 = vunpack.c.l.b16 %v4764
      %v5469 = vunpack.c.h.b16 %v4764
      %v5470 = vunpack.c.l.b16 %v4765
      %v5471 = vunpack.c.h.b16 %v4765
      %v5472 = vunpack.c.l.b16 %v4766
      %v5473 = vunpack.c.h.b16 %v4766
      %v5474 = vunpack.c.l.b16 %v4767
      %v5475 = vunpack.c.h.b16 %v4767
      %v5476 = vunpack.c.l.b16 %v4768
      %v5477 = vunpack.c.h.b16 %v4768
      %v5478 = vunpack.c.l.b16 %v4769
      %v5479 = vunpack.c.h.b16 %v4769
      %v5480 = vunpack.c.l.b16 %v4770
      %v5481 = vunpack.c.h.b16 %v4770
      %v5482 = vunpack.c.l.b16 %v4771
      %v5483 = vunpack.c.h.b16 %v4771
      %v5484 = vunpack.c.l.b16 %v4772
      %v5485 = vunpack.c.h.b16 %v4772
      %v5486 = vunpack.c.l.b16 %v4773
      %v5487 = vunpack.c.h.b16 %v4773
      %v5488 = vunpack.c.l.b16 %v4774
      %v5489 = vunpack.c.h.b16 %v4774
      %v5490 = vunpack.c.l.b16 %v4775
      %v5491 = vunpack.c.h.b16 %v4775
      %v5492 = vunpack.c.l.b16 %v4776
      %v5493 = vunpack.c.h.b16 %v4776
      %v5494 = vunpack.c.l.b16 %v4777
      %v5495 = vunpack.c.h.b16 %v4777
      %v5496 = vunpack.c.l.b16 %v4778
      %v5497 = vunpack.c.h.b16 %v4778
      %v5498 = vunpack.c.l.b16 %v4779
      %v5499 = vunpack.c.h.b16 %v4779
      %v5500 = vunpack.c.l.b16 %v4780
      %v5501 = vunpack.c.h.b16 %v4780
      %v5502 = vunpack.c.l.b16 %v4781
      %v5503 = vunpack.c.h.b16 %v4781
      %v5504 = vunpack.c.l.b16 %v4782
      %v5505 = vunpack.c.h.b16 %v4782
      %v5506 = vunpack.c.l.b16 %v4783
      %v5507 = vunpack.c.h.b16 %v4783
      %v5508 = vunpack.c.l.b16 %v4784
      %v5509 = vunpack.c.h.b16 %v4784
      %v5510 = vunpack.c.l.b16 %v4785
      %v5511 = vunpack.c.h.b16 %v4785
      %v5512 = vunpack.c.l.b16 %v4786
      %v5513 = vunpack.c.h.b16 %v4786
      %v5514 = vunpack.c.l.b16 %v4787
      %v5515 = vunpack.c.h.b16 %v4787
      %v5516 = vunpack.c.l.b16 %v4788
      %v5517 = vunpack.c.h.b16 %v4788
      %v5518 = vunpack.c.l.b16 %v4789
      %v5519 = vunpack.c.h.b16 %v4789
      %v5520 = vunpack.c.l.b16 %v4790
      %v5521 = vunpack.c.h.b16 %v4790
      %v5522 = vunpack.c.l.b16 %v4791
      %v5523 = vunpack.c.h.b16 %v4791
      %v5524 = vunpack.c.l.b16 %v4792
      %v5525 = vunpack.c.h.b16 %v4792
      %v5526 = vunpack.c.l.b16 %v4793
      %v5527 = vunpack.c.h.b16 %v4793
      %v5528 = vunpack.c.l.b16 %v4794
      %v5529 = vunpack.c.h.b16 %v4794
      %v5530 = vunpack.c.l.b16 %v4795
      %v5531 = vunpack.c.h.b16 %v4795
      %v5532 = vunpack.c.l.b16 %v4796
      %v5533 = vunpack.c.h.b16 %v4796
      %v5534 = vunpack.c.l.b16 %v4797
      %v5535 = vunpack.c.h.b16 %v4797
      %v5536 = vunpack.c.l.b16 %v4798
      %v5537 = vunpack.c.h.b16 %v4798
      %v5538 = vunpack.c.l.b16 %v4799
      %v5539 = vunpack.c.h.b16 %v4799
      %v5540 = vunpack.c.l.b16 %v4800
      %v5541 = vunpack.c.h.b16 %v4800
      %v5542 = vunpack.c.l.b16 %v4801
      %v5543 = vunpack.c.h.b16 %v4801
      %v5544 = vunpack.c.l.b16 %v4802
      %v5545 = vunpack.c.h.b16 %v4802
      %v5546 = vunpack.c.l.b16 %v4803
      %v5547 = vunpack.c.h.b16 %v4803
      %v5548 = vunpack.c.l.b16 %v4804
      %v5549 = vunpack.c.h.b16 %v4804
      %v5550 = vunpack.c.l.b16 %v4805
      %v5551 = vunpack.c.h.b16 %v4805
      %v5552 = vunpack.c.l.b16 %v4806
      %v5553 = vunpack.c.h.b16 %v4806
      %v5554 = vunpack.c.l.b16 %v4807
      %v5555 = vunpack.c.h.b16 %v4807
      %v5556 = vunpack.c.l.b16 %v4808
      %v5557 = vunpack.c.h.b16 %v4808
      %v5558 = vunpack.c.l.b16 %v4809
      %v5559 = vunpack.c.h.b16 %v4809
      %v5560 = vunpack.c.l.b16 %v4810
      %v5561 = vunpack.c.h.b16 %v4810
      %v5562 = vunpack.c.l.b16 %v4811
      %v5563 = vunpack.c.h.b16 %v4811
      %v5564 = vunpack.c.l.b16 %v4812
      %v5565 = vunpack.c.h.b16 %v4812
      %v5566 = vunpack.c.l.b16 %v4813
      %v5567 = vunpack.c.h.b16 %v4813
      %v5568 = vunpack.c.l.b16 %v4814
      %v5569 = vunpack.c.h.b16 %v4814
      %v5570 = vunpack.c.l.b16 %v4815
      %v5571 = vunpack.c.h.b16 %v4815
      %v5572 = vunpack.c.l.b16 %v4816
      %v5573 = vunpack.c.h.b16 %v4816
      %v5574 = vunpack.c.l.b16 %v4817
      %v5575 = vunpack.c.h.b16 %v4817
      %v5576 = vunpack.c.l.b16 %v4818
      %v5577 = vunpack.c.h.b16 %v4818
      %v5578 = vunpack.c.l.b16 %v4819
      %v5579 = vunpack.c.h.b16 %v4819
      %v5580 = vunpack.c.l.b16 %v4820
      %v5581 = vunpack.c.h.b16 %v4820
      %v5582 = vunpack.c.l.b16 %v4821
      %v5583 = vunpack.c.h.b16 %v4821
      %v5584 = vunpack.c.l.b16 %v4822
      %v5585 = vunpack.c.h.b16 %v4822
      %v5586 = vunpack.c.l.b16 %v4823
      %v5587 = vunpack.c.h.b16 %v4823
      %v5588 = vunpack.c.l.b16 %v4824
      %v5589 = vunpack.c.h.b16 %v4824
      %v5590 = vunpack.c.l.b16 %v4825
      %v5591 = vunpack.c.h.b16 %v4825
      %v5592 = vunpack.c.l.b16 %v4826
      %v5593 = vunpack.c.h.b16 %v4826
      %v5594 = vunpack.c.l.b16 %v4827
      %v5595 = vunpack.c.h.b16 %v4827
      %v5596 = vunpack.c.l.b16 %v4828
      %v5597 = vunpack.c.h.b16 %v4828
      %v5598 = vunpack.c.l.b16 %v4829
      %v5599 = vunpack.c.h.b16 %v4829
      %v5600 = vunpack.c.l.b16 %v4830
      %v5601 = vunpack.c.h.b16 %v4830
      %v5602 = vunpack.c.l.b16 %v4831
      %v5603 = vunpack.c.h.b16 %v4831
      %v5604 = vunpack.c.l.b16 %v4832
      %v5605 = vunpack.c.h.b16 %v4832
      %v5606 = vunpack.c.l.b16 %v4833
      %v5607 = vunpack.c.h.b16 %v4833
      %v5608 = vunpack.c.l.b16 %v4834
      %v5609 = vunpack.c.h.b16 %v4834
      %v5610 = vunpack.c.l.b16 %v4835
      %v5611 = vunpack.c.h.b16 %v4835
      %v5612 = vunpack.c.l.b16 %v4836
      %v5613 = vunpack.c.h.b16 %v4836
      %v5614 = vunpack.c.l.b16 %v4837
      %v5615 = vunpack.c.h.b16 %v4837
      %v5616 = vunpack.c.l.b16 %v4838
      %v5617 = vunpack.c.h.b16 %v4838
      %v5618 = vunpack.c.l.b16 %v4839
      %v5619 = vunpack.c.h.b16 %v4839
      %v5620 = vunpack.c.l.b16 %v4840
      %v5621 = vunpack.c.h.b16 %v4840
      %v5622 = vunpack.c.l.b16 %v4841
      %v5623 = vunpack.c.h.b16 %v4841
      %v5624 = vunpack.c.l.b16 %v4842
      %v5625 = vunpack.c.h.b16 %v4842
      %v5626 = vunpack.c.l.b16 %v4843
      %v5627 = vunpack.c.h.b16 %v4843
      %v5628 = vunpack.c.l.b16 %v4844
      %v5629 = vunpack.c.h.b16 %v4844
      %v5630 = vunpack.c.l.b16 %v4845
      %v5631 = vunpack.c.h.b16 %v4845
      %v5632 = vunpack.c.l.b16 %v4846
      %v5633 = vunpack.c.h.b16 %v4846
      %v5634 = vunpack.c.l.b16 %v4847
      %v5635 = vunpack.c.h.b16 %v4847
      %v5636 = vunpack.c.l.b16 %v4848
      %v5637 = vunpack.c.h.b16 %v4848
      %v5638 = vunpack.c.l.b16 %v4849
      %v5639 = vunpack.c.h.b16 %v4849
      %v5640 = vunpack.c.l.b16 %v4850
      %v5641 = vunpack.c.h.b16 %v4850
      %v5642 = vunpack.c.l.b16 %v4851
      %v5643 = vunpack.c.h.b16 %v4851
      %v5644 = vunpack.c.l.b16 %v4852
      %v5645 = vunpack.c.h.b16 %v4852
      %v5646 = vunpack.c.l.b16 %v4853
      %v5647 = vunpack.c.h.b16 %v4853
      %v5648 = vunpack.c.l.b16 %v4854
      %v5649 = vunpack.c.h.b16 %v4854
      %v5650 = vunpack.c.l.b16 %v4855
      %v5651 = vunpack.c.h.b16 %v4855
      %v5652 = vunpack.c.l.b16 %v4856
      %v5653 = vunpack.c.h.b16 %v4856
      %v5654 = vunpack.c.l.b16 %v4857
      %v5655 = vunpack.c.h.b16 %v4857
      %v5656 = vunpack.c.l.b16 %v4858
      %v5657 = vunpack.c.h.b16 %v4858
      %v5658 = vunpack.c.l.b16 %v4859
      %v5659 = vunpack.c.h.b16 %v4859
      %v5660 = vunpack.c.l.b16 %v4860
      %v5661 = vunpack.c.h.b16 %v4860
      %v5662 = vunpack.c.l.b16 %v4861
      %v5663 = vunpack.c.h.b16 %v4861
      %v5664 = vunpack.c.l.b16 %v4862
      %v5665 = vunpack.c.h.b16 %v4862
      %v5666 = vunpack.c.l.b16 %v4863
      %v5667 = vunpack.c.h.b16 %v4863
      %v5668 = vunpack.c.l.b16 %v4864
      %v5669 = vunpack.c.h.b16 %v4864
      %v5670 = vunpack.c.l.b16 %v4865
      %v5671 = vunpack.c.h.b16 %v4865
      %v5672 = vunpack.c.l.b16 %v4866
      %v5673 = vunpack.c.h.b16 %v4866
      %v5674 = vunpack.c.l.b16 %v4867
      %v5675 = vunpack.c.h.b16 %v4867
      %v5676 = vunpack.c.l.b16 %v4868
      %v5677 = vunpack.c.h.b16 %v4868
      %v5678 = vunpack.c.l.b16 %v4869
      %v5679 = vunpack.c.h.b16 %v4869
      %v5680 = vunpack.c.l.b16 %v4870
      %v5681 = vunpack.c.h.b16 %v4870
      %v5682 = vunpack.c.l.b16 %v4871
      %v5683 = vunpack.c.h.b16 %v4871
      %v5684 = vunpack.c.l.b16 %v4872
      %v5685 = vunpack.c.h.b16 %v4872
      %v5686 = vunpack.c.l.b16 %v4873
      %v5687 = vunpack.c.h.b16 %v4873
      %v5688 = vunpack.c.l.b16 %v4874
      %v5689 = vunpack.c.h.b16 %v4874
      %v5690 = vunpack.c.l.b16 %v4875
      %v5691 = vunpack.c.h.b16 %v4875
      %v5692 = vunpack.c.l.b16 %v4876
      %v5693 = vunpack.c.h.b16 %v4876
      %v5694 = vunpack.c.l.b16 %v4877
      %v5695 = vunpack.c.h.b16 %v4877
      %v5696 = vunpack.c.l.b16 %v4878
      %v5697 = vunpack.c.h.b16 %v4878
      %v5698 = vunpack.c.l.b16 %v4879
      %v5699 = vunpack.c.h.b16 %v4879
      %v5700 = vunpack.c.l.b16 %v4880
      %v5701 = vunpack.c.h.b16 %v4880
      %v5702 = vunpack.c.l.b16 %v4881
      %v5703 = vunpack.c.h.b16 %v4881
      %v5704 = vunpack.c.l.b16 %v4882
      %v5705 = vunpack.c.h.b16 %v4882
      %v5706 = vunpack.c.l.b16 %v4883
      %v5707 = vunpack.c.h.b16 %v4883
      %v5708 = vunpack.c.l.b16 %v4884
      %v5709 = vunpack.c.h.b16 %v4884
      %v5710 = vunpack.c.l.b16 %v4885
      %v5711 = vunpack.c.h.b16 %v4885
      %v5712 = vunpack.c.l.b16 %v4886
      %v5713 = vunpack.c.h.b16 %v4886
      %v5714 = vunpack.c.l.b16 %v4887
      %v5715 = vunpack.c.h.b16 %v4887
      %v5716 = vunpack.c.l.b16 %v4888
      %v5717 = vunpack.c.h.b16 %v4888
      %v5718 = vunpack.c.l.b16 %v4889
      %v5719 = vunpack.c.h.b16 %v4889
      %v5720 = vunpack.c.l.b16 %v4890
      %v5721 = vunpack.c.h.b16 %v4890
      %v5722 = vunpack.c.l.b16 %v4891
      %v5723 = vunpack.c.h.b16 %v4891
      %v5724 = vunpack.c.l.b16 %v4892
      %v5725 = vunpack.c.h.b16 %v4892
      %v5726 = vunpack.c.l.b16 %v4893
      %v5727 = vunpack.c.h.b16 %v4893
      %v5728 = vunpack.c.l.b16 %v4894
      %v5729 = vunpack.c.h.b16 %v4894
      %v5730 = vunpack.c.l.b16 %v4895
      %v5731 = vunpack.c.h.b16 %v4895
      %v5732 = vunpack.c.l.b16 %v4896
      %v5733 = vunpack.c.h.b16 %v4896
      %v5734 = vunpack.c.l.b16 %v4897
      %v5735 = vunpack.c.h.b16 %v4897
      %v5736 = vunpack.c.l.b16 %v4898
      %v5737 = vunpack.c.h.b16 %v4898
      %v5738 = vunpack.c.l.b16 %v4899
      %v5739 = vunpack.c.h.b16 %v4899
      %v5740 = vunpack.c.l.b16 %v4900
      %v5741 = vunpack.c.h.b16 %v4900
      %v5742 = vunpack.c.l.b16 %v4901
      %v5743 = vunpack.c.h.b16 %v4901
      %v5744 = vunpack.c.l.b16 %v4902
      %v5745 = vunpack.c.h.b16 %v4902
      %v5746 = vunpack.c.l.b16 %v4903
      %v5747 = vunpack.c.h.b16 %v4903
      %v5748 = vunpack.c.l.b16 %v4904
      %v5749 = vunpack.c.h.b16 %v4904
      %v5750 = vunpack.c.l.b16 %v4905
      %v5751 = vunpack.c.h.b16 %v4905
      %v5752 = vunpack.c.l.b16 %v4906
      %v5753 = vunpack.c.h.b16 %v4906
      %v5754 = vunpack.c.l.b16 %v4907
      %v5755 = vunpack.c.h.b16 %v4907
      %v5756 = vunpack.c.l.b16 %v4908
      %v5757 = vunpack.c.h.b16 %v4908
      %v5758 = vunpack.c.l.b16 %v4909
      %v5759 = vunpack.c.h.b16 %v4909
      %v5760 = vunpack.c.l.b16 %v4910
      %v5761 = vunpack.c.h.b16 %v4910
      %v5762 = vunpack.c.l.b16 %v4911
      %v5763 = vunpack.c.h.b16 %v4911
      %v5764 = vunpack.c.l.b16 %v4912
      %v5765 = vunpack.c.h.b16 %v4912
      %v5766 = vunpack.c.l.b16 %v4913
      %v5767 = vunpack.c.h.b16 %v4913
      %v5768 = vunpack.c.l.b16 %v4914
      %v5769 = vunpack.c.h.b16 %v4914
      %v5770 = vunpack.c.l.b16 %v4915
      %v5771 = vunpack.c.h.b16 %v4915
      %v5772 = vunpack.c.l.b16 %v4916
      %v5773 = vunpack.c.h.b16 %v4916
      %v5774 = vunpack.c.l.b16 %v4917
      %v5775 = vunpack.c.h.b16 %v4917
      %v5776 = vunpack.c.l.b16 %v4918
      %v5777 = vunpack.c.h.b16 %v4918
      %v5778 = vunpack.c.l.b16 %v4919
      %v5779 = vunpack.c.h.b16 %v4919
      %v5780 = vunpack.c.l.b16 %v4920
      %v5781 = vunpack.c.h.b16 %v4920
      %v5782 = vunpack.c.l.b16 %v4921
      %v5783 = vunpack.c.h.b16 %v4921
      %v5784 = vunpack.c.l.b16 %v4922
      %v5785 = vunpack.c.h.b16 %v4922
      %v5786 = vunpack.c.l.b16 %v4923
      %v5787 = vunpack.c.h.b16 %v4923
      %v5788 = vunpack.c.l.b16 %v4924
      %v5789 = vunpack.c.h.b16 %v4924
      %v5790 = vunpack.c.l.b16 %v4925
      %v5791 = vunpack.c.h.b16 %v4925
      %v5792 = vunpack.c.l.b16 %v4926
      %v5793 = vunpack.c.h.b16 %v4926
      %v5794 = vunpack.c.l.b16 %v4927
      %v5795 = vunpack.c.h.b16 %v4927
      %v5796 = vunpack.c.l.b16 %v4928
      %v5797 = vunpack.c.h.b16 %v4928
      %v5798 = vunpack.c.l.b16 %v4929
      %v5799 = vunpack.c.h.b16 %v4929
      %v5800 = vunpack.c.l.b16 %v4930
      %v5801 = vunpack.c.h.b16 %v4930
      %v5802 = vunpack.c.l.b16 %v4931
      %v5803 = vunpack.c.h.b16 %v4931
      %v5804 = vunpack.c.l.b16 %v4932
      %v5805 = vunpack.c.h.b16 %v4932
      %v5806 = vunpack.c.l.b16 %v4933
      %v5807 = vunpack.c.h.b16 %v4933
      %v5808 = vunpack.c.l.b16 %v4934
      %v5809 = vunpack.c.h.b16 %v4934
      %v5810 = vunpack.c.l.b16 %v4935
      %v5811 = vunpack.c.h.b16 %v4935
      %v5812 = vunpack.c.l.b16 %v4936
      %v5813 = vunpack.c.h.b16 %v4936
      %v5814 = vunpack.c.l.b16 %v4937
      %v5815 = vunpack.c.h.b16 %v4937
      %v5816 = vunpack.c.l.b16 %v4938
      %v5817 = vunpack.c.h.b16 %v4938
      %v5818 = vunpack.c.l.b16 %v4939
      %v5819 = vunpack.c.h.b16 %v4939
      %v5820 = vunpack.c.l.b16 %v4940
      %v5821 = vunpack.c.h.b16 %v4940
      %v5822 = vunpack.c.l.b16 %v4941
      %v5823 = vunpack.c.h.b16 %v4941
      %v5824 = vunpack.c.l.b16 %v4942
      %v5825 = vunpack.c.h.b16 %v4942
      %v5826 = vunpack.c.l.b16 %v4943
      %v5827 = vunpack.c.h.b16 %v4943
      %v5828 = vunpack.c.l.b16 %v4944
      %v5829 = vunpack.c.h.b16 %v4944
      %v5830 = vunpack.c.l.b16 %v4945
      %v5831 = vunpack.c.h.b16 %v4945
      %v5832 = vunpack.c.l.b16 %v4946
      %v5833 = vunpack.c.h.b16 %v4946
      %v5834 = vunpack.c.l.b16 %v4947
      %v5835 = vunpack.c.h.b16 %v4947
      %v5836 = vunpack.c.l.b16 %v4948
      %v5837 = vunpack.c.h.b16 %v4948
      %v5838 = vunpack.c.l.b16 %v4949
      %v5839 = vunpack.c.h.b16 %v4949
      %v5840 = vunpack.c.l.b16 %v4950
      %v5841 = vunpack.c.h.b16 %v4950
      %v5842 = vunpack.c.l.b16 %v4951
      %v5843 = vunpack.c.h.b16 %v4951
      %v5844 = vunpack.c.l.b16 %v4952
      %v5845 = vunpack.c.h.b16 %v4952
      %v5846 = vunpack.c.l.b16 %v4953
      %v5847 = vunpack.c.h.b16 %v4953
      %v5848 = vunpack.c.l.b16 %v4954
      %v5849 = vunpack.c.h.b16 %v4954
      %v5850 = vunpack.c.l.b16 %v4955
      %v5851 = vunpack.c.h.b16 %v4955
      %v5852 = vunpack.c.l.b16 %v4956
      %v5853 = vunpack.c.h.b16 %v4956
      %v5854 = vunpack.c.l.b16 %v4957
      %v5855 = vunpack.c.h.b16 %v4957
      %v5856 = vunpack.c.l.b16 %v4958
      %v5857 = vunpack.c.h.b16 %v4958
      %v5858 = vunpack.c.l.b16 %v4959
      %v5859 = vunpack.c.h.b16 %v4959
      %v5860 = vunpack.c.l.b16 %v4960
      %v5861 = vunpack.c.h.b16 %v4960
      %v5862 = vunpack.c.l.b16 %v4961
      %v5863 = vunpack.c.h.b16 %v4961
      %v5864 = vpack.c.b16 %v5294, %v5288
      %v5865 = vpack.c.b16 %v5295, %v5289
      %v5866 = vpack.c.b16 %v5296, %v5290
      %v5867 = vpack.c.b16 %v5297, %v5291
      %v5868 = vpack.c.b16 %v5298, %v5292
      %v5869 = vpack.c.b16 %v5299, %v5293
      %v5870 = vpack.c.b16 %v5306, %v5300
      %v5871 = vpack.c.b16 %v5307, %v5301
      %v5872 = vpack.c.b16 %v5308, %v5302
      %v5873 = vpack.c.b16 %v5309, %v5303
      %v5874 = vpack.c.b16 %v5310, %v5304
      %v5875 = vpack.c.b16 %v5311, %v5305
      %v5876 = vpack.c.b16 %v5318, %v5312
      %v5877 = vpack.c.b16 %v5319, %v5313
      %v5878 = vpack.c.b16 %v5320, %v5314
      %v5879 = vpack.c.b16 %v5321, %v5315
      %v5880 = vpack.c.b16 %v5322, %v5316
      %v5881 = vpack.c.b16 %v5323, %v5317
      %v5882 = vpack.c.b16 %v5330, %v5324
      %v5883 = vpack.c.b16 %v5331, %v5325
      %v5884 = vpack.c.b16 %v5332, %v5326
      %v5885 = vpack.c.b16 %v5333, %v5327
      %v5886 = vpack.c.b16 %v5334, %v5328
      %v5887 = vpack.c.b16 %v5335, %v5329
      %v5888 = vpack.c.b16 %v5342, %v5336
      %v5889 = vpack.c.b16 %v5343, %v5337
      %v5890 = vpack.c.b16 %v5344, %v5338
      %v5891 = vpack.c.b16 %v5345, %v5339
      %v5892 = vpack.c.b16 %v5346, %v5340
      %v5893 = vpack.c.b16 %v5347, %v5341
      %v5894 = vpack.c.b16 %v5354, %v5348
      %v5895 = vpack.c.b16 %v5355, %v5349
      %v5896 = vpack.c.b16 %v5356, %v5350
      %v5897 = vpack.c.b16 %v5357, %v5351
      %v5898 = vpack.c.b16 %v5358, %v5352
      %v5899 = vpack.c.b16 %v5359, %v5353
      %v5900 = vpack.c.b16 %v5366, %v5360
      %v5901 = vpack.c.b16 %v5367, %v5361
      %v5902 = vpack.c.b16 %v5368, %v5362
      %v5903 = vpack.c.b16 %v5369, %v5363
      %v5904 = vpack.c.b16 %v5370, %v5364
      %v5905 = vpack.c.b16 %v5371, %v5365
      %v5906 = vpack.c.b16 %v5378, %v5372
      %v5907 = vpack.c.b16 %v5379, %v5373
      %v5908 = vpack.c.b16 %v5380, %v5374
      %v5909 = vpack.c.b16 %v5381, %v5375
      %v5910 = vpack.c.b16 %v5382, %v5376
      %v5911 = vpack.c.b16 %v5383, %v5377
      %v5912 = vpack.c.b16 %v5390, %v5384
      %v5913 = vpack.c.b16 %v5391, %v5385
      %v5914 = vpack.c.b16 %v5392, %v5386
      %v5915 = vpack.c.b16 %v5393, %v5387
      %v5916 = vpack.c.b16 %v5394, %v5388
      %v5917 = vpack.c.b16 %v5395, %v5389
      %v5918 = vpack.c.b16 %v5402, %v5396
      %v5919 = vpack.c.b16 %v5403, %v5397
      %v5920 = vpack.c.b16 %v5404, %v5398
      %v5921 = vpack.c.b16 %v5405, %v5399
      %v5922 = vpack.c.b16 %v5406, %v5400
      %v5923 = vpack.c.b16 %v5407, %v5401
      %v5924 = vpack.c.b16 %v5414, %v5408
      %v5925 = vpack.c.b16 %v5415, %v5409
      %v5926 = vpack.c.b16 %v5416, %v5410
      %v5927 = vpack.c.b16 %v5417, %v5411
      %v5928 = vpack.c.b16 %v5418, %v5412
      %v5929 = vpack.c.b16 %v5419, %v5413
      %v5930 = vpack.c.b16 %v5426, %v5420
      %v5931 = vpack.c.b16 %v5427, %v5421
      %v5932 = vpack.c.b16 %v5428, %v5422
      %v5933 = vpack.c.b16 %v5429, %v5423
      %v5934 = vpack.c.b16 %v5430, %v5424
      %v5935 = vpack.c.b16 %v5431, %v5425
      %v5936 = vpack.c.b16 %v5438, %v5432
      %v5937 = vpack.c.b16 %v5439, %v5433
      %v5938 = vpack.c.b16 %v5440, %v5434
      %v5939 = vpack.c.b16 %v5441, %v5435
      %v5940 = vpack.c.b16 %v5442, %v5436
      %v5941 = vpack.c.b16 %v5443, %v5437
      %v5942 = vpack.c.b16 %v5450, %v5444
      %v5943 = vpack.c.b16 %v5451, %v5445
      %v5944 = vpack.c.b16 %v5452, %v5446
      %v5945 = vpack.c.b16 %v5453, %v5447
      %v5946 = vpack.c.b16 %v5454, %v5448
      %v5947 = vpack.c.b16 %v5455, %v5449
      %v5948 = vpack.c.b16 %v5462, %v5456
      %v5949 = vpack.c.b16 %v5463, %v5457
      %v5950 = vpack.c.b16 %v5464, %v5458
      %v5951 = vpack.c.b16 %v5465, %v5459
      %v5952 = vpack.c.b16 %v5466, %v5460
      %v5953 = vpack.c.b16 %v5467, %v5461
      %v5954 = vpack.c.b16 %v5474, %v5468
      %v5955 = vpack.c.b16 %v5475, %v5469
      %v5956 = vpack.c.b16 %v5476, %v5470
      %v5957 = vpack.c.b16 %v5477, %v5471
      %v5958 = vpack.c.b16 %v5478, %v5472
      %v5959 = vpack.c.b16 %v5479, %v5473
      %v5960 = vpack.c.b16 %v5486, %v5480
      %v5961 = vpack.c.b16 %v5487, %v5481
      %v5962 = vpack.c.b16 %v5488, %v5482
      %v5963 = vpack.c.b16 %v5489, %v5483
      %v5964 = vpack.c.b16 %v5490, %v5484
      %v5965 = vpack.c.b16 %v5491, %v5485
      %v5966 = vpack.c.b16 %v5498, %v5492
      %v5967 = vpack.c.b16 %v5499, %v5493
      %v5968 = vpack.c.b16 %v5500, %v5494
      %v5969 = vpack.c.b16 %v5501, %v5495
      %v5970 = vpack.c.b16 %v5502, %v5496
      %v5971 = vpack.c.b16 %v5503, %v5497
      %v5972 = vpack.c.b16 %v5510, %v5504
      %v5973 = vpack.c.b16 %v5511, %v5505
      %v5974 = vpack.c.b16 %v5512, %v5506
      %v5975 = vpack.c.b16 %v5513, %v5507
      %v5976 = vpack.c.b16 %v5514, %v5508
      %v5977 = vpack.c.b16 %v5515, %v5509
      %v5978 = vpack.c.b16 %v5522, %v5516
      %v5979 = vpack.c.b16 %v5523, %v5517
      %v5980 = vpack.c.b16 %v5524, %v5518
      %v5981 = vpack.c.b16 %v5525, %v5519
      %v5982 = vpack.c.b16 %v5526, %v5520
      %v5983 = vpack.c.b16 %v5527, %v5521
      %v5984 = vpack.c.b16 %v5534, %v5528
      %v5985 = vpack.c.b16 %v5535, %v5529
      %v5986 = vpack.c.b16 %v5536, %v5530
      %v5987 = vpack.c.b16 %v5537, %v5531
      %v5988 = vpack.c.b16 %v5538, %v5532
      %v5989 = vpack.c.b16 %v5539, %v5533
      %v5990 = vpack.c.b16 %v5546, %v5540
      %v5991 = vpack.c.b16 %v5547, %v5541
      %v5992 = vpack.c.b16 %v5548, %v5542
      %v5993 = vpack.c.b16 %v5549, %v5543
      %v5994 = vpack.c.b16 %v5550, %v5544
      %v5995 = vpack.c.b16 %v5551, %v5545
      %v5996 = vpack.c.b16 %v5558, %v5552
      %v5997 = vpack.c.b16 %v5559, %v5553
      %v5998 = vpack.c.b16 %v5560, %v5554
      %v5999 = vpack.c.b16 %v5561, %v5555
      %v6000 = vpack.c.b16 %v5562, %v5556
      %v6001 = vpack.c.b16 %v5563, %v5557
      %v6002 = vpack.c.b16 %v5570, %v5564
      %v6003 = vpack.c.b16 %v5571, %v5565
      %v6004 = vpack.c.b16 %v5572, %v5566
      %v6005 = vpack.c.b16 %v5573, %v5567
      %v6006 = vpack.c.b16 %v5574, %v5568
      %v6007 = vpack.c.b16 %v5575, %v5569
      %v6008 = vpack.c.b16 %v5582, %v5576
      %v6009 = vpack.c.b16 %v5583, %v5577
      %v6010 = vpack.c.b16 %v5584, %v5578
      %v6011 = vpack.c.b16 %v5585, %v5579
      %v6012 = vpack.c.b16 %v5586, %v5580
      %v6013 = vpack.c.b16 %v5587, %v5581
      %v6014 = vpack.c.b16 %v5594, %v5588
      %v6015 = vpack.c.b16 %v5595, %v5589
      %v6016 = vpack.c.b16 %v5596, %v5590
      %v6017 = vpack.c.b16 %v5597, %v5591
      %v6018 = vpack.c.b16 %v5598, %v5592
      %v6019 = vpack.c.b16 %v5599, %v5593
      %v6020 = vpack.c.b16 %v5606, %v5600
      %v6021 = vpack.c.b16 %v5607, %v5601
      %v6022 = vpack.c.b16 %v5608, %v5602
      %v6023 = vpack.c.b16 %v5609, %v5603
      %v6024 = vpack.c.b16 %v5610, %v5604
      %v6025 = vpack.c.b16 %v5611, %v5605
      %v6026 = vpack.c.b16 %v5618, %v5612
      %v6027 = vpack.c.b16 %v5619, %v5613
      %v6028 = vpack.c.b16 %v5620, %v5614
      %v6029 = vpack.c.b16 %v5621, %v5615
      %v6030 = vpack.c.b16 %v5622, %v5616
      %v6031 = vpack.c.b16 %v5623, %v5617
      %v6032 = vpack.c.b16 %v5630, %v5624
      %v6033 = vpack.c.b16 %v5631, %v5625
      %v6034 = vpack.c.b16 %v5632, %v5626
      %v6035 = vpack.c.b16 %v5633, %v5627
      %v6036 = vpack.c.b16 %v5634, %v5628
      %v6037 = vpack.c.b16 %v5635, %v5629
      %v6038 = vpack.c.b16 %v5642, %v5636
      %v6039 = vpack.c.b16 %v5643, %v5637
      %v6040 = vpack.c.b16 %v5644, %v5638
      %v6041 = vpack.c.b16 %v5645, %v5639
      %v6042 = vpack.c.b16 %v5646, %v5640
      %v6043 = vpack.c.b16 %v5647, %v5641
      %v6044 = vpack.c.b16 %v5654, %v5648
      %v6045 = vpack.c.b16 %v5655, %v5649
      %v6046 = vpack.c.b16 %v5656, %v5650
      %v6047 = vpack.c.b16 %v5657, %v5651
      %v6048 = vpack.c.b16 %v5658, %v5652
      %v6049 = vpack.c.b16 %v5659, %v5653
      %v6050 = vpack.c.b16 %v5666, %v5660
      %v6051 = vpack.c.b16 %v5667, %v5661
      %v6052 = vpack.c.b16 %v5668, %v5662
      %v6053 = vpack.c.b16 %v5669, %v5663
      %v6054 = vpack.c.b16 %v5670, %v5664
      %v6055 = vpack.c.b16 %v5671, %v5665
      %v6056 = vpack.c.b16 %v5678, %v5672
      %v6057 = vpack.c.b16 %v5679, %v5673
      %v6058 = vpack.c.b16 %v5680, %v5674
      %v6059 = vpack.c.b16 %v5681, %v5675
      %v6060 = vpack.c.b16 %v5682, %v5676
      %v6061 = vpack.c.b16 %v5683, %v5677
      %v6062 = vpack.c.b16 %v5690, %v5684
      %v6063 = vpack.c.b16 %v5691, %v5685
      %v6064 = vpack.c.b16 %v5692, %v5686
      %v6065 = vpack.c.b16 %v5693, %v5687
      %v6066 = vpack.c.b16 %v5694, %v5688
      %v6067 = vpack.c.b16 %v5695, %v5689
      %v6068 = vpack.c.b16 %v5702, %v5696
      %v6069 = vpack.c.b16 %v5703, %v5697
      %v6070 = vpack.c.b16 %v5704, %v5698
      %v6071 = vpack.c.b16 %v5705, %v5699
      %v6072 = vpack.c.b16 %v5706, %v5700
      %v6073 = vpack.c.b16 %v5707, %v5701
      %v6074 = vpack.c.b16 %v5714, %v5708
      %v6075 = vpack.c.b16 %v5715, %v5709
      %v6076 = vpack.c.b16 %v5716, %v5710
      %v6077 = vpack.c.b16 %v5717, %v5711
      %v6078 = vpack.c.b16 %v5718, %v5712
      %v6079 = vpack.c.b16 %v5719, %v5713
      %v6080 = vpack.c.b16 %v5726, %v5720
      %v6081 = vpack.c.b16 %v5727, %v5721
      %v6082 = vpack.c.b16 %v5728, %v5722
      %v6083 = vpack.c.b16 %v5729, %v5723
      %v6084 = vpack.c.b16 %v5730, %v5724
      %v6085 = vpack.c.b16 %v5731, %v5725
      %v6086 = vpack.c.b16 %v5738, %v5732
      %v6087 = vpack.c.b16 %v5739, %v5733
      %v6088 = vpack.c.b16 %v5740, %v5734
      %v6089 = vpack.c.b16 %v5741, %v5735
      %v6090 = vpack.c.b16 %v5742, %v5736
      %v6091 = vpack.c.b16 %v5743, %v5737
      %v6092 = vpack.c.b16 %v5750, %v5744
      %v6093 = vpack.c.b16 %v5751, %v5745
      %v6094 = vpack.c.b16 %v5752, %v5746
      %v6095 = vpack.c.b16 %v5753, %v5747
      %v6096 = vpack.c.b16 %v5754, %v5748
      %v6097 = vpack.c.b16 %v5755, %v5749
      %v6098 = vpack.c.b16 %v5762, %v5756
      %v6099 = vpack.c.b16 %v5763, %v5757
      %v6100 = vpack.c.b16 %v5764, %v5758
      %v6101 = vpack.c.b16 %v5765, %v5759
      %v6102 = vpack.c.b16 %v5766, %v5760
      %v6103 = vpack.c.b16 %v5767, %v5761
      %v6104 = vpack.c.b16 %v5774, %v5768
      %v6105 = vpack.c.b16 %v5775, %v5769
      %v6106 = vpack.c.b16 %v5776, %v5770
      %v6107 = vpack.c.b16 %v5777, %v5771
      %v6108 = vpack.c.b16 %v5778, %v5772
      %v6109 = vpack.c.b16 %v5779, %v5773
      %v6110 = vpack.c.b16 %v5786, %v5780
      %v6111 = vpack.c.b16 %v5787, %v5781
      %v6112 = vpack.c.b16 %v5788, %v5782
      %v6113 = vpack.c.b16 %v5789, %v5783
      %v6114 = vpack.c.b16 %v5790, %v5784
      %v6115 = vpack.c.b16 %v5791, %v5785
      %v6116 = vpack.c.b16 %v5798, %v5792
      %v6117 = vpack.c.b16 %v5799, %v5793
      %v6118 = vpack.c.b16 %v5800, %v5794
      %v6119 = vpack.c.b16 %v5801, %v5795
      %v6120 = vpack.c.b16 %v5802, %v5796
      %v6121 = vpack.c.b16 %v5803, %v5797
      %v6122 = vpack.c.b16 %v5810, %v5804
      %v6123 = vpack.c.b16 %v5811, %v5805
      %v6124 = vpack.c.b16 %v5812, %v5806
      %v6125 = vpack.c.b16 %v5813, %v5807
      %v6126 = vpack.c.b16 %v5814, %v5808
      %v6127 = vpack.c.b16 %v5815, %v5809
      %v6128 = vpack.c.b16 %v5822, %v5816
      %v6129 = vpack.c.b16 %v5823, %v5817
      %v6130 = vpack.c.b16 %v5824, %v5818
      %v6131 = vpack.c.b16 %v5825, %v5819
      %v6132 = vpack.c.b16 %v5826, %v5820
      %v6133 = vpack.c.b16 %v5827, %v5821
      %v6134 = vpack.c.b16 %v5834, %v5828
      %v6135 = vpack.c.b16 %v5835, %v5829
      %v6136 = vpack.c.b16 %v5836, %v5830
      %v6137 = vpack.c.b16 %v5837, %v5831
      %v6138 = vpack.c.b16 %v5838, %v5832
      %v6139 = vpack.c.b16 %v5839, %v5833
      %v6140 = vpack.c.b16 %v5846, %v5840
      %v6141 = vpack.c.b16 %v5847, %v5841
      %v6142 = vpack.c.b16 %v5848, %v5842
      %v6143 = vpack.c.b16 %v5849, %v5843
      %v6144 = vpack.c.b16 %v5850, %v5844
      %v6145 = vpack.c.b16 %v5851, %v5845
      %v6146 = vpack.c.b16 %v5858, %v5852
      %v6147 = vpack.c.b16 %v5859, %v5853
      %v6148 = vpack.c.b16 %v5860, %v5854
      %v6149 = vpack.c.b16 %v5861, %v5855
      %v6150 = vpack.c.b16 %v5862, %v5856
      %v6151 = vpack.c.b16 %v5863, %v5857
      %6440 = vmatprep.subr.bf16.mxu0 %v5865
      %6441 = vmatpush1.bf16.msra.mxu0 %v5864
      %6442 = vmatprep.subr.bf16.mxu0 %v5871
      %6443 = vmatpush1.bf16.msra.mxu0 %v5870
      %6444 = vmatprep.subr.bf16.mxu0 %v5877
      %6445 = vmatpush1.bf16.msra.mxu0 %v5876
      %6446 = vmatprep.subr.bf16.mxu0 %v5883
      %6447 = vmatpush1.bf16.msra.mxu0 %v5882
      %6448 = vmatprep.subr.bf16.mxu0 %v5889
      %6449 = vmatpush1.bf16.msra.mxu0 %v5888
      %6450 = vmatprep.subr.bf16.mxu0 %v5895
      %6451 = vmatpush1.bf16.msra.mxu0 %v5894
      %6452 = vmatprep.subr.bf16.mxu0 %v5901
      %6453 = vmatpush1.bf16.msra.mxu0 %v5900
      %6454 = vmatprep.subr.bf16.mxu0 %v5907
      %6455 = vmatpush1.bf16.msra.mxu0 %v5906
      %6456 = vmatprep.subr.bf16.mxu0 %v5913
      %6457 = vmatpush1.bf16.msra.mxu0 %v5912
      %6458 = vmatprep.subr.bf16.mxu0 %v5919
      %6459 = vmatpush1.bf16.msra.mxu0 %v5918
      %6460 = vmatprep.subr.bf16.mxu0 %v5925
      %6461 = vmatpush1.bf16.msra.mxu0 %v5924
      %6462 = vmatprep.subr.bf16.mxu0 %v5931
      %6463 = vmatpush1.bf16.msra.mxu0 %v5930
      %6464 = vmatprep.subr.bf16.mxu0 %v5937
      %6465 = vmatpush1.bf16.msra.mxu0 %v5936
      %6466 = vmatprep.subr.bf16.mxu0 %v5943
      %6467 = vmatpush1.bf16.msra.mxu0 %v5942
      %6468 = vmatprep.subr.bf16.mxu0 %v5949
      %6469 = vmatpush1.bf16.msra.mxu0 %v5948
      %6470 = vmatprep.subr.bf16.mxu0 %v5955
      %6471 = vmatpush1.bf16.msra.mxu0 %v5954
      %6472 = vmatprep.mubr.bf16.mxu0 %v4963
      %6473 = vmatmul.mubr.bf16.gmra.mrb[0].mxu0 %v4962
      %v6474 = vpop.f32.mrb[0].mxu0
      %v6475 = vadd.f32 %v4973, %v6474
      %v6476 = vpop.f32.mrb[0].mxu0
      %v6477 = vadd.f32 %v4977, %v6476
      %v6478 = vpop.f32.mrb[0].mxu0
      %v6479 = vpop.f32.mrb[0].mxu0
      %6480 = vdwg.mxu0
      %6481 = vmatprep.subr.bf16.mxu0 %v5961
      %6482 = vmatpush1.bf16.msra.mxu0 %v5960
      %6483 = vmatprep.subr.bf16.mxu0 %v5967
      %6484 = vmatpush1.bf16.msra.mxu0 %v5966
      %6485 = vmatprep.subr.bf16.mxu0 %v5973
      %6486 = vmatpush1.bf16.msra.mxu0 %v5972
      %6487 = vmatprep.subr.bf16.mxu0 %v5979
      %6488 = vmatpush1.bf16.msra.mxu0 %v5978
      %6489 = vmatprep.subr.bf16.mxu0 %v5985
      %6490 = vmatpush1.bf16.msra.mxu0 %v5984
      %6491 = vmatprep.subr.bf16.mxu0 %v5991
      %6492 = vmatpush1.bf16.msra.mxu0 %v5990
      %6493 = vmatprep.subr.bf16.mxu0 %v5997
      %6494 = vmatpush1.bf16.msra.mxu0 %v5996
      %6495 = vmatprep.subr.bf16.mxu0 %v6003
      %6496 = vmatpush1.bf16.msra.mxu0 %v6002
      %6497 = vmatprep.subr.bf16.mxu0 %v6009
      %6498 = vmatpush1.bf16.msra.mxu0 %v6008
      %6499 = vmatprep.subr.bf16.mxu0 %v6015
      %6500 = vmatpush1.bf16.msra.mxu0 %v6014
      %6501 = vmatprep.subr.bf16.mxu0 %v6021
      %6502 = vmatpush1.bf16.msra.mxu0 %v6020
      %6503 = vmatprep.subr.bf16.mxu0 %v6027
      %6504 = vmatpush1.bf16.msra.mxu0 %v6026
      %6505 = vmatprep.subr.bf16.mxu0 %v6033
      %6506 = vmatpush1.bf16.msra.mxu0 %v6032
      %6507 = vmatprep.subr.bf16.mxu0 %v6039
      %6508 = vmatpush1.bf16.msra.mxu0 %v6038
      %6509 = vmatprep.subr.bf16.mxu0 %v6045
      %6510 = vmatpush1.bf16.msra.mxu0 %v6044
      %6511 = vmatprep.subr.bf16.mxu0 %v6051
      %6512 = vmatpush1.bf16.msra.mxu0 %v6050
      %6513 = vmatprep.mubr.bf16.mxu0 %v4965
      %6514 = vmatmul.mubr.bf16.gmra.mrb[0].mxu0 %v4964
      %v6515 = vpop.f32.mrb[0].mxu0
      %v6516 = vadd.f32 %v6475, %v6515
      %v6517 = vpop.f32.mrb[0].mxu0
      %v6518 = vadd.f32 %v6477, %v6517
      %v6519 = vpop.f32.mrb[0].mxu0
      %v6520 = vpop.f32.mrb[0].mxu0
      %6521 = vdwg.mxu0
      %6522 = vmatprep.subr.bf16.mxu0 %v6057
      %6523 = vmatpush1.bf16.msra.mxu0 %v6056
      %6524 = vmatprep.subr.bf16.mxu0 %v6063
      %6525 = vmatpush1.bf16.msra.mxu0 %v6062
      %6526 = vmatprep.subr.bf16.mxu0 %v6069
      %6527 = vmatpush1.bf16.msra.mxu0 %v6068
      %6528 = vmatprep.subr.bf16.mxu0 %v6075
      %6529 = vmatpush1.bf16.msra.mxu0 %v6074
      %6530 = vmatprep.subr.bf16.mxu0 %v6081
      %6531 = vmatpush1.bf16.msra.mxu0 %v6080
      %6532 = vmatprep.subr.bf16.mxu0 %v6087
      %6533 = vmatpush1.bf16.msra.mxu0 %v6086
      %6534 = vmatprep.subr.bf16.mxu0 %v6093
      %6535 = vmatpush1.bf16.msra.mxu0 %v6092
      %6536 = vmatprep.subr.bf16.mxu0 %v6099
      %6537 = vmatpush1.bf16.msra.mxu0 %v6098
      %6538 = vmatprep.subr.bf16.mxu0 %v6105
      %6539 = vmatpush1.bf16.msra.mxu0 %v6104
      %6540 = vmatprep.subr.bf16.mxu0 %v6111
      %6541 = vmatpush1.bf16.msra.mxu0 %v6110
      %6542 = vmatprep.subr.bf16.mxu0 %v6117
      %6543 = vmatpush1.bf16.msra.mxu0 %v6116
      %6544 = vmatprep.subr.bf16.mxu0 %v6123
      %6545 = vmatpush1.bf16.msra.mxu0 %v6122
      %6546 = vmatprep.subr.bf16.mxu0 %v6129
      %6547 = vmatpush1.bf16.msra.mxu0 %v6128
      %6548 = vmatprep.subr.bf16.mxu0 %v6135
      %6549 = vmatpush1.bf16.msra.mxu0 %v6134
      %6550 = vmatprep.subr.bf16.mxu0 %v6141
      %6551 = vmatpush1.bf16.msra.mxu0 %v6140
      %6552 = vmatprep.subr.bf16.mxu0 %v6147
      %6553 = vmatpush1.bf16.msra.mxu0 %v6146
      %6554 = vmatprep.mubr.bf16.mxu0 %v4967
      %6555 = vmatmul.mubr.bf16.gmra.mrb[0].mxu0 %v4966
      %v6556 = vpop.f32.mrb[0].mxu0
      %v6557 = vadd.f32 %v6516, %v6556
      %v6558 = vpop.f32.mrb[0].mxu0
      %v6559 = vadd.f32 %v6518, %v6558
      %v6560 = vpop.f32.mrb[0].mxu0
      %v6561 = vpop.f32.mrb[0].mxu0
      %6562 = vdwg.mxu0
      %6563 = vmatprep.subr.bf16.mxu0 %v5867
      %6564 = vmatpush1.bf16.msra.mxu0 %v5866
      %6565 = vmatprep.subr.bf16.mxu0 %v5873
      %6566 = vmatpush1.bf16.msra.mxu0 %v5872
      %6567 = vmatprep.subr.bf16.mxu0 %v5879
      %6568 = vmatpush1.bf16.msra.mxu0 %v5878
      %6569 = vmatprep.subr.bf16.mxu0 %v5885
      %6570 = vmatpush1.bf16.msra.mxu0 %v5884
      %6571 = vmatprep.subr.bf16.mxu0 %v5891
      %6572 = vmatpush1.bf16.msra.mxu0 %v5890
      %6573 = vmatprep.subr.bf16.mxu0 %v5897
      %6574 = vmatpush1.bf16.msra.mxu0 %v5896
      %6575 = vmatprep.subr.bf16.mxu0 %v5903
      %6576 = vmatpush1.bf16.msra.mxu0 %v5902
      %6577 = vmatprep.subr.bf16.mxu0 %v5909
      %6578 = vmatpush1.bf16.msra.mxu0 %v5908
      %6579 = vmatprep.subr.bf16.mxu0 %v5915
      %6580 = vmatpush1.bf16.msra.mxu0 %v5914
      %6581 = vmatprep.subr.bf16.mxu0 %v5921
      %6582 = vmatpush1.bf16.msra.mxu0 %v5920
      %6583 = vmatprep.subr.bf16.mxu0 %v5927
      %6584 = vmatpush1.bf16.msra.mxu0 %v5926
      %6585 = vmatprep.subr.bf16.mxu0 %v5933
      %6586 = vmatpush1.bf16.msra.mxu0 %v5932
      %6587 = vmatprep.subr.bf16.mxu0 %v5939
      %6588 = vmatpush1.bf16.msra.mxu0 %v5938
      %6589 = vmatprep.subr.bf16.mxu0 %v5945
      %6590 = vmatpush1.bf16.msra.mxu0 %v5944
      %6591 = vmatprep.subr.bf16.mxu0 %v5951
      %6592 = vmatpush1.bf16.msra.mxu0 %v5950
      %6593 = vmatprep.subr.bf16.mxu0 %v5957
      %6594 = vmatpush1.bf16.msra.mxu0 %v5956
      %6595 = vmatprep.mubr.bf16.mxu0 %v4963
      %6596 = vmatmul.mubr.bf16.gmra.mrb[0].mxu0 %v4962
      %v6597 = vpop.f32.mrb[0].mxu0
      %v6598 = vadd.f32 %v4981, %v6597
      %v6599 = vpop.f32.mrb[0].mxu0
      %v6600 = vadd.f32 %v4985, %v6599
      %v6601 = vpop.f32.mrb[0].mxu0
      %v6602 = vpop.f32.mrb[0].mxu0
      %6603 = vdwg.mxu0
      %6604 = vmatprep.subr.bf16.mxu0 %v5963
      %6605 = vmatpush1.bf16.msra.mxu0 %v5962
      %6606 = vmatprep.subr.bf16.mxu0 %v5969
      %6607 = vmatpush1.bf16.msra.mxu0 %v5968
      %6608 = vmatprep.subr.bf16.mxu0 %v5975
      %6609 = vmatpush1.bf16.msra.mxu0 %v5974
      %6610 = vmatprep.subr.bf16.mxu0 %v5981
      %6611 = vmatpush1.bf16.msra.mxu0 %v5980
      %6612 = vmatprep.subr.bf16.mxu0 %v5987
      %6613 = vmatpush1.bf16.msra.mxu0 %v5986
      %6614 = vmatprep.subr.bf16.mxu0 %v5993
      %6615 = vmatpush1.bf16.msra.mxu0 %v5992
      %6616 = vmatprep.subr.bf16.mxu0 %v5999
      %6617 = vmatpush1.bf16.msra.mxu0 %v5998
      %6618 = vmatprep.subr.bf16.mxu0 %v6005
      %6619 = vmatpush1.bf16.msra.mxu0 %v6004
      %6620 = vmatprep.subr.bf16.mxu0 %v6011
      %6621 = vmatpush1.bf16.msra.mxu0 %v6010
      %6622 = vmatprep.subr.bf16.mxu0 %v6017
      %6623 = vmatpush1.bf16.msra.mxu0 %v6016
      %6624 = vmatprep.subr.bf16.mxu0 %v6023
      %6625 = vmatpush1.bf16.msra.mxu0 %v6022
      %6626 = vmatprep.subr.bf16.mxu0 %v6029
      %6627 = vmatpush1.bf16.msra.mxu0 %v6028
      %6628 = vmatprep.subr.bf16.mxu0 %v6035
      %6629 = vmatpush1.bf16.msra.mxu0 %v6034
      %6630 = vmatprep.subr.bf16.mxu0 %v6041
      %6631 = vmatpush1.bf16.msra.mxu0 %v6040
      %6632 = vmatprep.subr.bf16.mxu0 %v6047
      %6633 = vmatpush1.bf16.msra.mxu0 %v6046
      %6634 = vmatprep.subr.bf16.mxu0 %v6053
      %6635 = vmatpush1.bf16.msra.mxu0 %v6052
      %6636 = vmatprep.mubr.bf16.mxu0 %v4965
      %6637 = vmatmul.mubr.bf16.gmra.mrb[0].mxu0 %v4964
      %v6638 = vpop.f32.mrb[0].mxu0
      %v6639 = vadd.f32 %v6598, %v6638
      %v6640 = vpop.f32.mrb[0].mxu0
      %v6641 = vadd.f32 %v6600, %v6640
      %v6642 = vpop.f32.mrb[0].mxu0
      %v6643 = vpop.f32.mrb[0].mxu0
      %6644 = vdwg.mxu0
      %6645 = vmatprep.subr.bf16.mxu0 %v6059
      %6646 = vmatpush1.bf16.msra.mxu0 %v6058
      %6647 = vmatprep.subr.bf16.mxu0 %v6065
      %6648 = vmatpush1.bf16.msra.mxu0 %v6064
      %6649 = vmatprep.subr.bf16.mxu0 %v6071
      %6650 = vmatpush1.bf16.msra.mxu0 %v6070
      %6651 = vmatprep.subr.bf16.mxu0 %v6077
      %6652 = vmatpush1.bf16.msra.mxu0 %v6076
      %6653 = vmatprep.subr.bf16.mxu0 %v6083
      %6654 = vmatpush1.bf16.msra.mxu0 %v6082
      %6655 = vmatprep.subr.bf16.mxu0 %v6089
      %6656 = vmatpush1.bf16.msra.mxu0 %v6088
      %6657 = vmatprep.subr.bf16.mxu0 %v6095
      %6658 = vmatpush1.bf16.msra.mxu0 %v6094
      %6659 = vmatprep.subr.bf16.mxu0 %v6101
      %6660 = vmatpush1.bf16.msra.mxu0 %v6100
      %6661 = vmatprep.subr.bf16.mxu0 %v6107
      %6662 = vmatpush1.bf16.msra.mxu0 %v6106
      %6663 = vmatprep.subr.bf16.mxu0 %v6113
      %6664 = vmatpush1.bf16.msra.mxu0 %v6112
      %6665 = vmatprep.subr.bf16.mxu0 %v6119
      %6666 = vmatpush1.bf16.msra.mxu0 %v6118
      %6667 = vmatprep.subr.bf16.mxu0 %v6125
      %6668 = vmatpush1.bf16.msra.mxu0 %v6124
      %6669 = vmatprep.subr.bf16.mxu0 %v6131
      %6670 = vmatpush1.bf16.msra.mxu0 %v6130
      %6671 = vmatprep.subr.bf16.mxu0 %v6137
      %6672 = vmatpush1.bf16.msra.mxu0 %v6136
      %6673 = vmatprep.subr.bf16.mxu0 %v6143
      %6674 = vmatpush1.bf16.msra.mxu0 %v6142
      %6675 = vmatprep.subr.bf16.mxu0 %v6149
      %6676 = vmatpush1.bf16.msra.mxu0 %v6148
      %6677 = vmatprep.mubr.bf16.mxu0 %v4967
      %6678 = vmatmul.mubr.bf16.gmra.mrb[0].mxu0 %v4966
      %v6679 = vpop.f32.mrb[0].mxu0
      %v6680 = vadd.f32 %v6639, %v6679
      %v6681 = vpop.f32.mrb[0].mxu0
      %v6682 = vadd.f32 %v6641, %v6681
      %v6683 = vpop.f32.mrb[0].mxu0
      %v6684 = vpop.f32.mrb[0].mxu0
      %6685 = vdwg.mxu0
      %6686 = vmatprep.subr.bf16.mxu0 %v5869
      %6687 = vmatpush1.bf16.msra.mxu0 %v5868
      %6688 = vmatprep.subr.bf16.mxu0 %v5875
      %6689 = vmatpush1.bf16.msra.mxu0 %v5874
      %6690 = vmatprep.subr.bf16.mxu0 %v5881
      %6691 = vmatpush1.bf16.msra.mxu0 %v5880
      %6692 = vmatprep.subr.bf16.mxu0 %v5887
      %6693 = vmatpush1.bf16.msra.mxu0 %v5886
      %6694 = vmatprep.subr.bf16.mxu0 %v5893
      %6695 = vmatpush1.bf16.msra.mxu0 %v5892
      %6696 = vmatprep.subr.bf16.mxu0 %v5899
      %6697 = vmatpush1.bf16.msra.mxu0 %v5898
      %6698 = vmatprep.subr.bf16.mxu0 %v5905
      %6699 = vmatpush1.bf16.msra.mxu0 %v5904
      %6700 = vmatprep.subr.bf16.mxu0 %v5911
      %6701 = vmatpush1.bf16.msra.mxu0 %v5910
      %6702 = vmatprep.subr.bf16.mxu0 %v5917
      %6703 = vmatpush1.bf16.msra.mxu0 %v5916
      %6704 = vmatprep.subr.bf16.mxu0 %v5923
      %6705 = vmatpush1.bf16.msra.mxu0 %v5922
      %6706 = vmatprep.subr.bf16.mxu0 %v5929
      %6707 = vmatpush1.bf16.msra.mxu0 %v5928
      %6708 = vmatprep.subr.bf16.mxu0 %v5935
      %6709 = vmatpush1.bf16.msra.mxu0 %v5934
      %6710 = vmatprep.subr.bf16.mxu0 %v5941
      %6711 = vmatpush1.bf16.msra.mxu0 %v5940
      %6712 = vmatprep.subr.bf16.mxu0 %v5947
      %6713 = vmatpush1.bf16.msra.mxu0 %v5946
      %6714 = vmatprep.subr.bf16.mxu0 %v5953
      %6715 = vmatpush1.bf16.msra.mxu0 %v5952
      %6716 = vmatprep.subr.bf16.mxu0 %v5959
      %6717 = vmatpush1.bf16.msra.mxu0 %v5958
      %6718 = vmatprep.mubr.bf16.mxu0 %v4963
      %6719 = vmatmul.mubr.bf16.gmra.mrb[0].mxu0 %v4962
      %v6720 = vpop.f32.mrb[0].mxu0
      %v6721 = vadd.f32 %v4989, %v6720
      %v6722 = vpop.f32.mrb[0].mxu0
      %v6723 = vadd.f32 %v4993, %v6722
      %v6724 = vpop.f32.mrb[0].mxu0
      %v6725 = vpop.f32.mrb[0].mxu0
      %6726 = vdwg.mxu0
      %6727 = vmatprep.subr.bf16.mxu0 %v5965
      %6728 = vmatpush1.bf16.msra.mxu0 %v5964
      %6729 = vmatprep.subr.bf16.mxu0 %v5971
      %6730 = vmatpush1.bf16.msra.mxu0 %v5970
      %6731 = vmatprep.subr.bf16.mxu0 %v5977
      %6732 = vmatpush1.bf16.msra.mxu0 %v5976
      %6733 = vmatprep.subr.bf16.mxu0 %v5983
      %6734 = vmatpush1.bf16.msra.mxu0 %v5982
      %6735 = vmatprep.subr.bf16.mxu0 %v5989
      %6736 = vmatpush1.bf16.msra.mxu0 %v5988
      %6737 = vmatprep.subr.bf16.mxu0 %v5995
      %6738 = vmatpush1.bf16.msra.mxu0 %v5994
      %6739 = vmatprep.subr.bf16.mxu0 %v6001
      %6740 = vmatpush1.bf16.msra.mxu0 %v6000
      %6741 = vmatprep.subr.bf16.mxu0 %v6007
      %6742 = vmatpush1.bf16.msra.mxu0 %v6006
      %6743 = vmatprep.subr.bf16.mxu0 %v6013
      %6744 = vmatpush1.bf16.msra.mxu0 %v6012
      %6745 = vmatprep.subr.bf16.mxu0 %v6019
      %6746 = vmatpush1.bf16.msra.mxu0 %v6018
      %6747 = vmatprep.subr.bf16.mxu0 %v6025
      %6748 = vmatpush1.bf16.msra.mxu0 %v6024
      %6749 = vmatprep.subr.bf16.mxu0 %v6031
      %6750 = vmatpush1.bf16.msra.mxu0 %v6030
      %6751 = vmatprep.subr.bf16.mxu0 %v6037
      %6752 = vmatpush1.bf16.msra.mxu0 %v6036
      %6753 = vmatprep.subr.bf16.mxu0 %v6043
      %6754 = vmatpush1.bf16.msra.mxu0 %v6042
      %6755 = vmatprep.subr.bf16.mxu0 %v6049
      %6756 = vmatpush1.bf16.msra.mxu0 %v6048
      %6757 = vmatprep.subr.bf16.mxu0 %v6055
      %6758 = vmatpush1.bf16.msra.mxu0 %v6054
      %6759 = vmatprep.mubr.bf16.mxu0 %v4965
      %6760 = vmatmul.mubr.bf16.gmra.mrb[0].mxu0 %v4964
      %v6761 = vpop.f32.mrb[0].mxu0
      %v6762 = vadd.f32 %v6721, %v6761
      %v6763 = vpop.f32.mrb[0].mxu0
      %v6764 = vadd.f32 %v6723, %v6763
      %v6765 = vpop.f32.mrb[0].mxu0
      %v6766 = vpop.f32.mrb[0].mxu0
      %6767 = vdwg.mxu0
      %6768 = vmatprep.subr.bf16.mxu0 %v6061
      %6769 = vmatpush1.bf16.msra.mxu0 %v6060
      %6770 = vmatprep.subr.bf16.mxu0 %v6067
      %6771 = vmatpush1.bf16.msra.mxu0 %v6066
      %6772 = vmatprep.subr.bf16.mxu0 %v6073
      %6773 = vmatpush1.bf16.msra.mxu0 %v6072
      %6774 = vmatprep.subr.bf16.mxu0 %v6079
      %6775 = vmatpush1.bf16.msra.mxu0 %v6078
      %6776 = vmatprep.subr.bf16.mxu0 %v6085
      %6777 = vmatpush1.bf16.msra.mxu0 %v6084
      %6778 = vmatprep.subr.bf16.mxu0 %v6091
      %6779 = vmatpush1.bf16.msra.mxu0 %v6090
      %6780 = vmatprep.subr.bf16.mxu0 %v6097
      %6781 = vmatpush1.bf16.msra.mxu0 %v6096
      %6782 = vmatprep.subr.bf16.mxu0 %v6103
      %6783 = vmatpush1.bf16.msra.mxu0 %v6102
      %6784 = vmatprep.subr.bf16.mxu0 %v6109
      %6785 = vmatpush1.bf16.msra.mxu0 %v6108
      %6786 = vmatprep.subr.bf16.mxu0 %v6115
      %6787 = vmatpush1.bf16.msra.mxu0 %v6114
      %6788 = vmatprep.subr.bf16.mxu0 %v6121
      %6789 = vmatpush1.bf16.msra.mxu0 %v6120
      %6790 = vmatprep.subr.bf16.mxu0 %v6127
      %6791 = vmatpush1.bf16.msra.mxu0 %v6126
      %6792 = vmatprep.subr.bf16.mxu0 %v6133
      %6793 = vmatpush1.bf16.msra.mxu0 %v6132
      %6794 = vmatprep.subr.bf16.mxu0 %v6139
      %6795 = vmatpush1.bf16.msra.mxu0 %v6138
      %6796 = vmatprep.subr.bf16.mxu0 %v6145
      %6797 = vmatpush1.bf16.msra.mxu0 %v6144
      %6798 = vmatprep.subr.bf16.mxu0 %v6151
      %6799 = vmatpush1.bf16.msra.mxu0 %v6150
      %6800 = vmatprep.mubr.bf16.mxu0 %v4967
      %6801 = vmatmul.mubr.bf16.gmra.mrb[0].mxu0 %v4966
      %v6802 = vpop.f32.mrb[0].mxu0
      %v6803 = vadd.f32 %v6762, %v6802
      %v6804 = vpop.f32.mrb[0].mxu0
      %v6805 = vadd.f32 %v6764, %v6804
      %v6806 = vpop.f32.mrb[0].mxu0
      %v6807 = vpop.f32.mrb[0].mxu0
      %6808 = vdwg.mxu0
      %v6809 = vmax.f32 %v6557, 0.0
      %v6810 = vmax.f32 %v6559, 0.0
      %v6811 = vmax.f32 %v6680, 0.0
      %v6812 = vmax.f32 %v6682, 0.0
      %v6813 = vmax.f32 %v6803, 0.0
      %v6814 = vmax.f32 %v6805, 0.0
      %v6815 = vld [vmem:[%s7] sm:$0xff]
      %v6816 = vld [vmem:[%s7 + $0x8] sm:$0xff]
      %v6817 = vld [vmem:[%s7 + $0x10] sm:$0xff]
      %v6818 = vld [vmem:[%s7 + $0x18] sm:$0xff]
      %v6819 = vld [vmem:[%s7 + $0x20] sm:$0xff]
      %v6820 = vld [vmem:[%s7 + $0x28] sm:$0xff]
      %v6821 = vld [vmem:[%s7 + $0x30] sm:$0xff]
      %v6822 = vld [vmem:[%s7 + $0x38] sm:$0xff]
      %v6823 = vld [vmem:[%s7 + $0x40] sm:$0xff]
      %v6824 = vld [vmem:[%s7 + $0x48] sm:$0xff]
      %v6825 = vld [vmem:[%s7 + $0x50] sm:$0xff]
      %v6826 = vld [vmem:[%s7 + $0x58] sm:$0xff]
      %v6827 = vld [vmem:[%s7 + $0x60] sm:$0xff]
      %v6828 = vld [vmem:[%s7 + $0x68] sm:$0xff]
      %v6829 = vld [vmem:[%s7 + $0x70] sm:$0xff]
      %v6830 = vld [vmem:[%s7 + $0x78] sm:$0xff]
      %v6831 = vld [vmem:[%s7 + $0x80] sm:$0xff]
      %v6832 = vld [vmem:[%s7 + $0x88] sm:$0xff]
      %v6833 = vld [vmem:[%s7 + $0x90] sm:$0xff]
      %v6834 = vld [vmem:[%s7 + $0x98] sm:$0xff]
      %v6835 = vld [vmem:[%s7 + $0xa0] sm:$0xff]
      %v6836 = vld [vmem:[%s7 + $0xa8] sm:$0xff]
      %v6837 = vld [vmem:[%s7 + $0xb0] sm:$0xff]
      %v6838 = vld [vmem:[%s7 + $0xb8] sm:$0xff]
      %v6839 = vld [vmem:[%s7 + $0xc0] sm:$0xff]
      %v6840 = vld [vmem:[%s7 + $0xc8] sm:$0xff]
      %v6841 = vld [vmem:[%s7 + $0xd0] sm:$0xff]
      %v6842 = vld [vmem:[%s7 + $0xd8] sm:$0xff]
      %v6843 = vld [vmem:[%s7 + $0xe0] sm:$0xff]
      %v6844 = vld [vmem:[%s7 + $0xe8] sm:$0xff]
      %v6845 = vld [vmem:[%s7 + $0xf0] sm:$0xff]
      %v6846 = vld [vmem:[%s7 + $0xf8] sm:$0xff]
      %v6847 = vld [vmem:[%s7 + $0x100] sm:$0xff]
      %v6848 = vld [vmem:[%s7 + $0x108] sm:$0xff]
      %v6849 = vld [vmem:[%s7 + $0x110] sm:$0xff]
      %v6850 = vld [vmem:[%s7 + $0x118] sm:$0xff]
      %v6851 = vld [vmem:[%s7 + $0x120] sm:$0xff]
      %v6852 = vld [vmem:[%s7 + $0x128] sm:$0xff]
      %v6853 = vld [vmem:[%s7 + $0x130] sm:$0xff]
      %v6854 = vld [vmem:[%s7 + $0x138] sm:$0xff]
      %v6855 = vld [vmem:[%s7 + $0x140] sm:$0xff]
      %v6856 = vld [vmem:[%s7 + $0x148] sm:$0xff]
      %v6857 = vld [vmem:[%s7 + $0x150] sm:$0xff]
      %v6858 = vld [vmem:[%s7 + $0x158] sm:$0xff]
      %v6859 = vld [vmem:[%s7 + $0x160] sm:$0xff]
      %v6860 = vld [vmem:[%s7 + $0x168] sm:$0xff]
      %v6861 = vld [vmem:[%s7 + $0x170] sm:$0xff]
      %v6862 = vld [vmem:[%s7 + $0x178] sm:$0xff]
      %v6863 = vld [vmem:[%s7 + $0x180] sm:$0xff]
      %v6864 = vld [vmem:[%s7 + $0x188] sm:$0xff]
      %v6865 = vld [vmem:[%s7 + $0x190] sm:$0xff]
      %v6866 = vld [vmem:[%s7 + $0x198] sm:$0xff]
      %v6867 = vld [vmem:[%s7 + $0x1a0] sm:$0xff]
      %v6868 = vld [vmem:[%s7 + $0x1a8] sm:$0xff]
      %v6869 = vld [vmem:[%s7 + $0x1b0] sm:$0xff]
      %v6870 = vld [vmem:[%s7 + $0x1b8] sm:$0xff]
      %v6871 = vld [vmem:[%s7 + $0x1c0] sm:$0xff]
      %v6872 = vld [vmem:[%s7 + $0x1c8] sm:$0xff]
      %v6873 = vld [vmem:[%s7 + $0x1d0] sm:$0xff]
      %v6874 = vld [vmem:[%s7 + $0x1d8] sm:$0xff]
      %v6875 = vld [vmem:[%s7 + $0x1e0] sm:$0xff]
      %v6876 = vld [vmem:[%s7 + $0x1e8] sm:$0xff]
      %v6877 = vld [vmem:[%s7 + $0x1f0] sm:$0xff]
      %v6878 = vld [vmem:[%s7 + $0x1f8] sm:$0xff]
      %v6879 = vld [vmem:[%s7 + $0x200] sm:$0xff]
      %v6880 = vld [vmem:[%s7 + $0x208] sm:$0xff]
      %v6881 = vld [vmem:[%s7 + $0x210] sm:$0xff]
      %v6882 = vld [vmem:[%s7 + $0x218] sm:$0xff]
      %v6883 = vld [vmem:[%s7 + $0x220] sm:$0xff]
      %v6884 = vld [vmem:[%s7 + $0x228] sm:$0xff]
      %v6885 = vld [vmem:[%s7 + $0x230] sm:$0xff]
      %v6886 = vld [vmem:[%s7 + $0x238] sm:$0xff]
      %v6887 = vld [vmem:[%s7 + $0x240] sm:$0xff]
      %v6888 = vld [vmem:[%s7 + $0x248] sm:$0xff]
      %v6889 = vld [vmem:[%s7 + $0x250] sm:$0xff]
      %v6890 = vld [vmem:[%s7 + $0x258] sm:$0xff]
      %v6891 = vld [vmem:[%s7 + $0x260] sm:$0xff]
      %v6892 = vld [vmem:[%s7 + $0x268] sm:$0xff]
      %v6893 = vld [vmem:[%s7 + $0x270] sm:$0xff]
      %v6894 = vld [vmem:[%s7 + $0x278] sm:$0xff]
      %v6895 = vld [vmem:[%s7 + $0x280] sm:$0xff]
      %v6896 = vld [vmem:[%s7 + $0x288] sm:$0xff]
      %v6897 = vld [vmem:[%s7 + $0x290] sm:$0xff]
      %v6898 = vld [vmem:[%s7 + $0x298] sm:$0xff]
      %v6899 = vld [vmem:[%s7 + $0x2a0] sm:$0xff]
      %v6900 = vld [vmem:[%s7 + $0x2a8] sm:$0xff]
      %v6901 = vld [vmem:[%s7 + $0x2b0] sm:$0xff]
      %v6902 = vld [vmem:[%s7 + $0x2b8] sm:$0xff]
      %v6903 = vld [vmem:[%s7 + $0x2c0] sm:$0xff]
      %v6904 = vld [vmem:[%s7 + $0x2c8] sm:$0xff]
      %v6905 = vld [vmem:[%s7 + $0x2d0] sm:$0xff]
      %v6906 = vld [vmem:[%s7 + $0x2d8] sm:$0xff]
      %v6907 = vld [vmem:[%s7 + $0x2e0] sm:$0xff]
      %v6908 = vld [vmem:[%s7 + $0x2e8] sm:$0xff]
      %v6909 = vld [vmem:[%s7 + $0x2f0] sm:$0xff]
      %v6910 = vld [vmem:[%s7 + $0x2f8] sm:$0xff]
      %v6911 = vld [vmem:[%s7 + $0x300] sm:$0xff]
      %v6912 = vld [vmem:[%s7 + $0x308] sm:$0xff]
      %v6913 = vld [vmem:[%s7 + $0x310] sm:$0xff]
      %v6914 = vld [vmem:[%s7 + $0x318] sm:$0xff]
      %v6915 = vld [vmem:[%s7 + $0x320] sm:$0xff]
      %v6916 = vld [vmem:[%s7 + $0x328] sm:$0xff]
      %v6917 = vld [vmem:[%s7 + $0x330] sm:$0xff]
      %v6918 = vld [vmem:[%s7 + $0x338] sm:$0xff]
      %v6919 = vld [vmem:[%s7 + $0x340] sm:$0xff]
      %v6920 = vld [vmem:[%s7 + $0x348] sm:$0xff]
      %v6921 = vld [vmem:[%s7 + $0x350] sm:$0xff]
      %v6922 = vld [vmem:[%s7 + $0x358] sm:$0xff]
      %v6923 = vld [vmem:[%s7 + $0x360] sm:$0xff]
      %v6924 = vld [vmem:[%s7 + $0x368] sm:$0xff]
      %v6925 = vld [vmem:[%s7 + $0x370] sm:$0xff]
      %v6926 = vld [vmem:[%s7 + $0x378] sm:$0xff]
      %v6927 = vld [vmem:[%s7 + $0x380] sm:$0xff]
      %v6928 = vld [vmem:[%s7 + $0x388] sm:$0xff]
      %v6929 = vld [vmem:[%s7 + $0x390] sm:$0xff]
      %v6930 = vld [vmem:[%s7 + $0x398] sm:$0xff]
      %v6931 = vld [vmem:[%s7 + $0x3a0] sm:$0xff]
      %v6932 = vld [vmem:[%s7 + $0x3a8] sm:$0xff]
      %v6933 = vld [vmem:[%s7 + $0x3b0] sm:$0xff]
      %v6934 = vld [vmem:[%s7 + $0x3b8] sm:$0xff]
      %v6935 = vld [vmem:[%s7 + $0x3c0] sm:$0xff]
      %v6936 = vld [vmem:[%s7 + $0x3c8] sm:$0xff]
      %v6937 = vld [vmem:[%s7 + $0x3d0] sm:$0xff]
      %v6938 = vld [vmem:[%s7 + $0x3d8] sm:$0xff]
      %v6939 = vld [vmem:[%s7 + $0x3e0] sm:$0xff]
      %v6940 = vld [vmem:[%s7 + $0x3e8] sm:$0xff]
      %v6941 = vld [vmem:[%s7 + $0x3f0] sm:$0xff]
      %v6942 = vld [vmem:[%s7 + $0x3f8] sm:$0xff]
      %v6943 = vld [vmem:[%s7 + $0x400] sm:$0xff]
      %v6944 = vld [vmem:[%s7 + $0x408] sm:$0xff]
      %v6945 = vld [vmem:[%s7 + $0x410] sm:$0xff]
      %v6946 = vld [vmem:[%s7 + $0x418] sm:$0xff]
      %v6947 = vld [vmem:[%s7 + $0x420] sm:$0xff]
      %v6948 = vld [vmem:[%s7 + $0x428] sm:$0xff]
      %v6949 = vld [vmem:[%s7 + $0x430] sm:$0xff]
      %v6950 = vld [vmem:[%s7 + $0x438] sm:$0xff]
      %v6951 = vld [vmem:[%s7 + $0x440] sm:$0xff]
      %v6952 = vld [vmem:[%s7 + $0x448] sm:$0xff]
      %v6953 = vld [vmem:[%s7 + $0x450] sm:$0xff]
      %v6954 = vld [vmem:[%s7 + $0x458] sm:$0xff]
      %v6955 = vld [vmem:[%s7 + $0x460] sm:$0xff]
      %v6956 = vld [vmem:[%s7 + $0x468] sm:$0xff]
      %v6957 = vld [vmem:[%s7 + $0x470] sm:$0xff]
      %v6958 = vld [vmem:[%s7 + $0x478] sm:$0xff]
      %v6959 = vld [vmem:[%s7 + $0x480] sm:$0xff]
      %v6960 = vld [vmem:[%s7 + $0x488] sm:$0xff]
      %v6961 = vld [vmem:[%s7 + $0x490] sm:$0xff]
      %v6962 = vld [vmem:[%s7 + $0x498] sm:$0xff]
      %v6963 = vld [vmem:[%s7 + $0x4a0] sm:$0xff]
      %v6964 = vld [vmem:[%s7 + $0x4a8] sm:$0xff]
      %v6965 = vld [vmem:[%s7 + $0x4b0] sm:$0xff]
      %v6966 = vld [vmem:[%s7 + $0x4b8] sm:$0xff]
      %v6967 = vld [vmem:[%s7 + $0x4c0] sm:$0xff]
      %v6968 = vld [vmem:[%s7 + $0x4c8] sm:$0xff]
      %v6969 = vld [vmem:[%s7 + $0x4d0] sm:$0xff]
      %v6970 = vld [vmem:[%s7 + $0x4d8] sm:$0xff]
      %v6971 = vld [vmem:[%s7 + $0x4e0] sm:$0xff]
      %v6972 = vld [vmem:[%s7 + $0x4e8] sm:$0xff]
      %v6973 = vld [vmem:[%s7 + $0x4f0] sm:$0xff]
      %v6974 = vld [vmem:[%s7 + $0x4f8] sm:$0xff]
      %v6975 = vld [vmem:[%s7 + $0x500] sm:$0xff]
      %v6976 = vld [vmem:[%s7 + $0x508] sm:$0xff]
      %v6977 = vld [vmem:[%s7 + $0x510] sm:$0xff]
      %v6978 = vld [vmem:[%s7 + $0x518] sm:$0xff]
      %v6979 = vld [vmem:[%s7 + $0x520] sm:$0xff]
      %v6980 = vld [vmem:[%s7 + $0x528] sm:$0xff]
      %v6981 = vld [vmem:[%s7 + $0x530] sm:$0xff]
      %v6982 = vld [vmem:[%s7 + $0x538] sm:$0xff]
      %v6983 = vld [vmem:[%s7 + $0x540] sm:$0xff]
      %v6984 = vld [vmem:[%s7 + $0x548] sm:$0xff]
      %v6985 = vld [vmem:[%s7 + $0x550] sm:$0xff]
      %v6986 = vld [vmem:[%s7 + $0x558] sm:$0xff]
      %v6987 = vld [vmem:[%s7 + $0x560] sm:$0xff]
      %v6988 = vld [vmem:[%s7 + $0x568] sm:$0xff]
      %v6989 = vld [vmem:[%s7 + $0x570] sm:$0xff]
      %v6990 = vld [vmem:[%s7 + $0x578] sm:$0xff]
      %v6991 = vld [vmem:[%s7 + $0x580] sm:$0xff]
      %v6992 = vld [vmem:[%s7 + $0x588] sm:$0xff]
      %v6993 = vld [vmem:[%s7 + $0x590] sm:$0xff]
      %v6994 = vld [vmem:[%s7 + $0x598] sm:$0xff]
      %v6995 = vld [vmem:[%s7 + $0x5a0] sm:$0xff]
      %v6996 = vld [vmem:[%s7 + $0x5a8] sm:$0xff]
      %v6997 = vld [vmem:[%s7 + $0x5b0] sm:$0xff]
      %v6998 = vld [vmem:[%s7 + $0x5b8] sm:$0xff]
      %v6999 = vld [vmem:[%s7 + $0x5c0] sm:$0xff]
      %v7000 = vld [vmem:[%s7 + $0x5c8] sm:$0xff]
      %v7001 = vld [vmem:[%s7 + $0x5d0] sm:$0xff]
      %v7002 = vld [vmem:[%s7 + $0x5d8] sm:$0xff]
      %v7003 = vld [vmem:[%s7 + $0x5e0] sm:$0xff]
      %v7004 = vld [vmem:[%s7 + $0x5e8] sm:$0xff]
      %v7005 = vld [vmem:[%s7 + $0x5f0] sm:$0xff]
      %v7006 = vld [vmem:[%s7 + $0x5f8] sm:$0xff]
      %v7007 = vld [vmem:[%s7 + $0x600] sm:$0xff]
      %v7008 = vld [vmem:[%s7 + $0x608] sm:$0xff]
      %v7009 = vld [vmem:[%s7 + $0x610] sm:$0xff]
      %v7010 = vld [vmem:[%s7 + $0x618] sm:$0xff]
      %v7011 = vld [vmem:[%s7 + $0x620] sm:$0xff]
      %v7012 = vld [vmem:[%s7 + $0x628] sm:$0xff]
      %v7013 = vld [vmem:[%s7 + $0x630] sm:$0xff]
      %v7014 = vld [vmem:[%s7 + $0x638] sm:$0xff]
      %v7015 = vld [vmem:[%s7 + $0x640] sm:$0xff]
      %v7016 = vld [vmem:[%s7 + $0x648] sm:$0xff]
      %v7017 = vld [vmem:[%s7 + $0x650] sm:$0xff]
      %v7018 = vld [vmem:[%s7 + $0x658] sm:$0xff]
      %v7019 = vld [vmem:[%s7 + $0x660] sm:$0xff]
      %v7020 = vld [vmem:[%s7 + $0x668] sm:$0xff]
      %v7021 = vld [vmem:[%s7 + $0x670] sm:$0xff]
      %v7022 = vld [vmem:[%s7 + $0x678] sm:$0xff]
      %v7023 = vld [vmem:[%s7 + $0x680] sm:$0xff]
      %v7024 = vld [vmem:[%s7 + $0x688] sm:$0xff]
      %v7025 = vld [vmem:[%s7 + $0x690] sm:$0xff]
      %v7026 = vld [vmem:[%s7 + $0x698] sm:$0xff]
      %v7027 = vld [vmem:[%s7 + $0x6a0] sm:$0xff]
      %v7028 = vld [vmem:[%s7 + $0x6a8] sm:$0xff]
      %v7029 = vld [vmem:[%s7 + $0x6b0] sm:$0xff]
      %v7030 = vld [vmem:[%s7 + $0x6b8] sm:$0xff]
      %v7031 = vld [vmem:[%s7 + $0x6c0] sm:$0xff]
      %v7032 = vld [vmem:[%s7 + $0x6c8] sm:$0xff]
      %v7033 = vld [vmem:[%s7 + $0x6d0] sm:$0xff]
      %v7034 = vld [vmem:[%s7 + $0x6d8] sm:$0xff]
      %v7035 = vld [vmem:[%s7 + $0x6e0] sm:$0xff]
      %v7036 = vld [vmem:[%s7 + $0x6e8] sm:$0xff]
      %v7037 = vld [vmem:[%s7 + $0x6f0] sm:$0xff]
      %v7038 = vld [vmem:[%s7 + $0x6f8] sm:$0xff]
      %v7039 = vld [vmem:[%s7 + $0x700] sm:$0xff]
      %v7040 = vld [vmem:[%s7 + $0x708] sm:$0xff]
      %v7041 = vld [vmem:[%s7 + $0x710] sm:$0xff]
      %v7042 = vld [vmem:[%s7 + $0x718] sm:$0xff]
      %v7043 = vld [vmem:[%s7 + $0x720] sm:$0xff]
      %v7044 = vld [vmem:[%s7 + $0x728] sm:$0xff]
      %v7045 = vld [vmem:[%s7 + $0x730] sm:$0xff]
      %v7046 = vld [vmem:[%s7 + $0x738] sm:$0xff]
      %v7047 = vld [vmem:[%s7 + $0x740] sm:$0xff]
      %v7048 = vld [vmem:[%s7 + $0x748] sm:$0xff]
      %v7049 = vld [vmem:[%s7 + $0x750] sm:$0xff]
      %v7050 = vld [vmem:[%s7 + $0x758] sm:$0xff]
      %v7051 = vld [vmem:[%s7 + $0x760] sm:$0xff]
      %v7052 = vld [vmem:[%s7 + $0x768] sm:$0xff]
      %v7053 = vld [vmem:[%s7 + $0x770] sm:$0xff]
      %v7054 = vld [vmem:[%s7 + $0x778] sm:$0xff]
      %v7055 = vld [vmem:[%s7 + $0x780] sm:$0xff]
      %v7056 = vld [vmem:[%s7 + $0x788] sm:$0xff]
      %v7057 = vld [vmem:[%s7 + $0x790] sm:$0xff]
      %v7058 = vld [vmem:[%s7 + $0x798] sm:$0xff]
      %v7059 = vld [vmem:[%s7 + $0x7a0] sm:$0xff]
      %v7060 = vld [vmem:[%s7 + $0x7a8] sm:$0xff]
      %v7061 = vld [vmem:[%s7 + $0x7b0] sm:$0xff]
      %v7062 = vld [vmem:[%s7 + $0x7b8] sm:$0xff]
      %v7063 = vld [vmem:[%s7 + $0x7c0] sm:$0xff]
      %v7064 = vld [vmem:[%s7 + $0x7c8] sm:$0xff]
      %v7065 = vld [vmem:[%s7 + $0x7d0] sm:$0xff]
      %v7066 = vld [vmem:[%s7 + $0x7d8] sm:$0xff]
      %v7067 = vld [vmem:[%s7 + $0x7e0] sm:$0xff]
      %v7068 = vld [vmem:[%s7 + $0x7e8] sm:$0xff]
      %v7069 = vld [vmem:[%s7 + $0x7f0] sm:$0xff]
      %v7070 = vld [vmem:[%s7 + $0x7f8] sm:$0xff]
      %v7071 = vld [vmem:[%s7 + $0x800] sm:$0xff]
      %v7072 = vld [vmem:[%s7 + $0x808] sm:$0xff]
      %v7073 = vld [vmem:[%s7 + $0x810] sm:$0xff]
      %v7074 = vld [vmem:[%s7 + $0x818] sm:$0xff]
      %v7075 = vld [vmem:[%s7 + $0x820] sm:$0xff]
      %v7076 = vld [vmem:[%s7 + $0x828] sm:$0xff]
      %v7077 = vld [vmem:[%s7 + $0x830] sm:$0xff]
      %v7078 = vld [vmem:[%s7 + $0x838] sm:$0xff]
      %v7079 = vld [vmem:[%s7 + $0x840] sm:$0xff]
      %v7080 = vld [vmem:[%s7 + $0x848] sm:$0xff]
      %v7081 = vld [vmem:[%s7 + $0x850] sm:$0xff]
      %v7082 = vld [vmem:[%s7 + $0x858] sm:$0xff]
      %v7083 = vld [vmem:[%s7 + $0x860] sm:$0xff]
      %v7084 = vld [vmem:[%s7 + $0x868] sm:$0xff]
      %v7085 = vld [vmem:[%s7 + $0x870] sm:$0xff]
      %v7086 = vld [vmem:[%s7 + $0x878] sm:$0xff]
      %v7087 = vld [vmem:[%s7 + $0x880] sm:$0xff]
      %v7088 = vld [vmem:[%s7 + $0x888] sm:$0xff]
      %v7089 = vld [vmem:[%s7 + $0x890] sm:$0xff]
      %v7090 = vld [vmem:[%s7 + $0x898] sm:$0xff]
      %v7091 = vld [vmem:[%s7 + $0x8a0] sm:$0xff]
      %v7092 = vld [vmem:[%s7 + $0x8a8] sm:$0xff]
      %v7093 = vld [vmem:[%s7 + $0x8b0] sm:$0xff]
      %v7094 = vld [vmem:[%s7 + $0x8b8] sm:$0xff]
      %v7095 = vld [vmem:[%s7 + $0x8c0] sm:$0xff]
      %v7096 = vld [vmem:[%s7 + $0x8c8] sm:$0xff]
      %v7097 = vld [vmem:[%s7 + $0x8d0] sm:$0xff]
      %v7098 = vld [vmem:[%s7 + $0x8d8] sm:$0xff]
      %v7099 = vld [vmem:[%s7 + $0x8e0] sm:$0xff]
      %v7100 = vld [vmem:[%s7 + $0x8e8] sm:$0xff]
      %v7101 = vld [vmem:[%s7 + $0x8f0] sm:$0xff]
      %v7102 = vld [vmem:[%s7 + $0x8f8] sm:$0xff]
      %v7103 = vpack.c.bf16 %v6809, %v6809
      %v7104 = vpack.c.bf16 %v6810, %v6810
      %v7105 = vpack.c.bf16 %v6811, %v6811
      %v7106 = vpack.c.bf16 %v6812, %v6812
      %v7107 = vpack.c.bf16 %v6813, %v6813
      %v7108 = vpack.c.bf16 %v6814, %v6814
      %v7109 = vld [vmem:[%s8] sm:$0x3f]
      %v7111 = vlaneseq
      %v7112 = vshrl.u32 %v7111, 7
      %v7113 = vsub.s32 0, %v7112
      %v7114 = vrot.slane %v7109, %v7113
      %v7115 = vlaneseq
      %v7116 = vshrl.u32 %v7115, 7
      %v7117 = vsub.s32 1, %v7116
      %v7118 = vrot.slane %v7109, %v7117
      %v7119 = vlaneseq
      %v7120 = vshrl.u32 %v7119, 7
      %v7121 = vsub.s32 2, %v7120
      %v7122 = vrot.slane %v7109, %v7121
      %v7123 = vlaneseq
      %v7124 = vshrl.u32 %v7123, 7
      %v7125 = vsub.s32 3, %v7124
      %v7126 = vrot.slane %v7109, %v7125
      %v7127 = vlaneseq
      %v7128 = vshrl.u32 %v7127, 7
      %v7129 = vsub.s32 4, %v7128
      %v7130 = vrot.slane %v7109, %v7129
      %v7131 = vlaneseq
      %v7132 = vshrl.u32 %v7131, 7
      %v7133 = vsub.s32 5, %v7132
      %v7134 = vrot.slane %v7109, %v7133
      %v7429 = vunpack.c.l.b16 %v6815
      %v7430 = vunpack.c.h.b16 %v6815
      %v7431 = vunpack.c.l.b16 %v6816
      %v7432 = vunpack.c.h.b16 %v6816
      %v7433 = vunpack.c.l.b16 %v6817
      %v7434 = vunpack.c.h.b16 %v6817
      %v7435 = vunpack.c.l.b16 %v6818
      %v7436 = vunpack.c.h.b16 %v6818
      %v7437 = vunpack.c.l.b16 %v6819
      %v7438 = vunpack.c.h.b16 %v6819
      %v7439 = vunpack.c.l.b16 %v6820
      %v7440 = vunpack.c.h.b16 %v6820
      %v7441 = vunpack.c.l.b16 %v6821
      %v7442 = vunpack.c.h.b16 %v6821
      %v7443 = vunpack.c.l.b16 %v6822
      %v7444 = vunpack.c.h.b16 %v6822
      %v7445 = vunpack.c.l.b16 %v6823
      %v7446 = vunpack.c.h.b16 %v6823
      %v7447 = vunpack.c.l.b16 %v6824
      %v7448 = vunpack.c.h.b16 %v6824
      %v7449 = vunpack.c.l.b16 %v6825
      %v7450 = vunpack.c.h.b16 %v6825
      %v7451 = vunpack.c.l.b16 %v6826
      %v7452 = vunpack.c.h.b16 %v6826
      %v7453 = vunpack.c.l.b16 %v6827
      %v7454 = vunpack.c.h.b16 %v6827
      %v7455 = vunpack.c.l.b16 %v6828
      %v7456 = vunpack.c.h.b16 %v6828
      %v7457 = vunpack.c.l.b16 %v6829
      %v7458 = vunpack.c.h.b16 %v6829
      %v7459 = vunpack.c.l.b16 %v6830
      %v7460 = vunpack.c.h.b16 %v6830
      %v7461 = vunpack.c.l.b16 %v6831
      %v7462 = vunpack.c.h.b16 %v6831
      %v7463 = vunpack.c.l.b16 %v6832
      %v7464 = vunpack.c.h.b16 %v6832
      %v7465 = vunpack.c.l.b16 %v6833
      %v7466 = vunpack.c.h.b16 %v6833
      %v7467 = vunpack.c.l.b16 %v6834
      %v7468 = vunpack.c.h.b16 %v6834
      %v7469 = vunpack.c.l.b16 %v6835
      %v7470 = vunpack.c.h.b16 %v6835
      %v7471 = vunpack.c.l.b16 %v6836
      %v7472 = vunpack.c.h.b16 %v6836
      %v7473 = vunpack.c.l.b16 %v6837
      %v7474 = vunpack.c.h.b16 %v6837
      %v7475 = vunpack.c.l.b16 %v6838
      %v7476 = vunpack.c.h.b16 %v6838
      %v7477 = vunpack.c.l.b16 %v6839
      %v7478 = vunpack.c.h.b16 %v6839
      %v7479 = vunpack.c.l.b16 %v6840
      %v7480 = vunpack.c.h.b16 %v6840
      %v7481 = vunpack.c.l.b16 %v6841
      %v7482 = vunpack.c.h.b16 %v6841
      %v7483 = vunpack.c.l.b16 %v6842
      %v7484 = vunpack.c.h.b16 %v6842
      %v7485 = vunpack.c.l.b16 %v6843
      %v7486 = vunpack.c.h.b16 %v6843
      %v7487 = vunpack.c.l.b16 %v6844
      %v7488 = vunpack.c.h.b16 %v6844
      %v7489 = vunpack.c.l.b16 %v6845
      %v7490 = vunpack.c.h.b16 %v6845
      %v7491 = vunpack.c.l.b16 %v6846
      %v7492 = vunpack.c.h.b16 %v6846
      %v7493 = vunpack.c.l.b16 %v6847
      %v7494 = vunpack.c.h.b16 %v6847
      %v7495 = vunpack.c.l.b16 %v6848
      %v7496 = vunpack.c.h.b16 %v6848
      %v7497 = vunpack.c.l.b16 %v6849
      %v7498 = vunpack.c.h.b16 %v6849
      %v7499 = vunpack.c.l.b16 %v6850
      %v7500 = vunpack.c.h.b16 %v6850
      %v7501 = vunpack.c.l.b16 %v6851
      %v7502 = vunpack.c.h.b16 %v6851
      %v7503 = vunpack.c.l.b16 %v6852
      %v7504 = vunpack.c.h.b16 %v6852
      %v7505 = vunpack.c.l.b16 %v6853
      %v7506 = vunpack.c.h.b16 %v6853
      %v7507 = vunpack.c.l.b16 %v6854
      %v7508 = vunpack.c.h.b16 %v6854
      %v7509 = vunpack.c.l.b16 %v6855
      %v7510 = vunpack.c.h.b16 %v6855
      %v7511 = vunpack.c.l.b16 %v6856
      %v7512 = vunpack.c.h.b16 %v6856
      %v7513 = vunpack.c.l.b16 %v6857
      %v7514 = vunpack.c.h.b16 %v6857
      %v7515 = vunpack.c.l.b16 %v6858
      %v7516 = vunpack.c.h.b16 %v6858
      %v7517 = vunpack.c.l.b16 %v6859
      %v7518 = vunpack.c.h.b16 %v6859
      %v7519 = vunpack.c.l.b16 %v6860
      %v7520 = vunpack.c.h.b16 %v6860
      %v7521 = vunpack.c.l.b16 %v6861
      %v7522 = vunpack.c.h.b16 %v6861
      %v7523 = vunpack.c.l.b16 %v6862
      %v7524 = vunpack.c.h.b16 %v6862
      %v7525 = vunpack.c.l.b16 %v6863
      %v7526 = vunpack.c.h.b16 %v6863
      %v7527 = vunpack.c.l.b16 %v6864
      %v7528 = vunpack.c.h.b16 %v6864
      %v7529 = vunpack.c.l.b16 %v6865
      %v7530 = vunpack.c.h.b16 %v6865
      %v7531 = vunpack.c.l.b16 %v6866
      %v7532 = vunpack.c.h.b16 %v6866
      %v7533 = vunpack.c.l.b16 %v6867
      %v7534 = vunpack.c.h.b16 %v6867
      %v7535 = vunpack.c.l.b16 %v6868
      %v7536 = vunpack.c.h.b16 %v6868
      %v7537 = vunpack.c.l.b16 %v6869
      %v7538 = vunpack.c.h.b16 %v6869
      %v7539 = vunpack.c.l.b16 %v6870
      %v7540 = vunpack.c.h.b16 %v6870
      %v7541 = vunpack.c.l.b16 %v6871
      %v7542 = vunpack.c.h.b16 %v6871
      %v7543 = vunpack.c.l.b16 %v6872
      %v7544 = vunpack.c.h.b16 %v6872
      %v7545 = vunpack.c.l.b16 %v6873
      %v7546 = vunpack.c.h.b16 %v6873
      %v7547 = vunpack.c.l.b16 %v6874
      %v7548 = vunpack.c.h.b16 %v6874
      %v7549 = vunpack.c.l.b16 %v6875
      %v7550 = vunpack.c.h.b16 %v6875
      %v7551 = vunpack.c.l.b16 %v6876
      %v7552 = vunpack.c.h.b16 %v6876
      %v7553 = vunpack.c.l.b16 %v6877
      %v7554 = vunpack.c.h.b16 %v6877
      %v7555 = vunpack.c.l.b16 %v6878
      %v7556 = vunpack.c.h.b16 %v6878
      %v7557 = vunpack.c.l.b16 %v6879
      %v7558 = vunpack.c.h.b16 %v6879
      %v7559 = vunpack.c.l.b16 %v6880
      %v7560 = vunpack.c.h.b16 %v6880
      %v7561 = vunpack.c.l.b16 %v6881
      %v7562 = vunpack.c.h.b16 %v6881
      %v7563 = vunpack.c.l.b16 %v6882
      %v7564 = vunpack.c.h.b16 %v6882
      %v7565 = vunpack.c.l.b16 %v6883
      %v7566 = vunpack.c.h.b16 %v6883
      %v7567 = vunpack.c.l.b16 %v6884
      %v7568 = vunpack.c.h.b16 %v6884
      %v7569 = vunpack.c.l.b16 %v6885
      %v7570 = vunpack.c.h.b16 %v6885
      %v7571 = vunpack.c.l.b16 %v6886
      %v7572 = vunpack.c.h.b16 %v6886
      %v7573 = vunpack.c.l.b16 %v6887
      %v7574 = vunpack.c.h.b16 %v6887
      %v7575 = vunpack.c.l.b16 %v6888
      %v7576 = vunpack.c.h.b16 %v6888
      %v7577 = vunpack.c.l.b16 %v6889
      %v7578 = vunpack.c.h.b16 %v6889
      %v7579 = vunpack.c.l.b16 %v6890
      %v7580 = vunpack.c.h.b16 %v6890
      %v7581 = vunpack.c.l.b16 %v6891
      %v7582 = vunpack.c.h.b16 %v6891
      %v7583 = vunpack.c.l.b16 %v6892
      %v7584 = vunpack.c.h.b16 %v6892
      %v7585 = vunpack.c.l.b16 %v6893
      %v7586 = vunpack.c.h.b16 %v6893
      %v7587 = vunpack.c.l.b16 %v6894
      %v7588 = vunpack.c.h.b16 %v6894
      %v7589 = vunpack.c.l.b16 %v6895
      %v7590 = vunpack.c.h.b16 %v6895
      %v7591 = vunpack.c.l.b16 %v6896
      %v7592 = vunpack.c.h.b16 %v6896
      %v7593 = vunpack.c.l.b16 %v6897
      %v7594 = vunpack.c.h.b16 %v6897
      %v7595 = vunpack.c.l.b16 %v6898
      %v7596 = vunpack.c.h.b16 %v6898
      %v7597 = vunpack.c.l.b16 %v6899
      %v7598 = vunpack.c.h.b16 %v6899
      %v7599 = vunpack.c.l.b16 %v6900
      %v7600 = vunpack.c.h.b16 %v6900
      %v7601 = vunpack.c.l.b16 %v6901
      %v7602 = vunpack.c.h.b16 %v6901
      %v7603 = vunpack.c.l.b16 %v6902
      %v7604 = vunpack.c.h.b16 %v6902
      %v7605 = vunpack.c.l.b16 %v6903
      %v7606 = vunpack.c.h.b16 %v6903
      %v7607 = vunpack.c.l.b16 %v6904
      %v7608 = vunpack.c.h.b16 %v6904
      %v7609 = vunpack.c.l.b16 %v6905
      %v7610 = vunpack.c.h.b16 %v6905
      %v7611 = vunpack.c.l.b16 %v6906
      %v7612 = vunpack.c.h.b16 %v6906
      %v7613 = vunpack.c.l.b16 %v6907
      %v7614 = vunpack.c.h.b16 %v6907
      %v7615 = vunpack.c.l.b16 %v6908
      %v7616 = vunpack.c.h.b16 %v6908
      %v7617 = vunpack.c.l.b16 %v6909
      %v7618 = vunpack.c.h.b16 %v6909
      %v7619 = vunpack.c.l.b16 %v6910
      %v7620 = vunpack.c.h.b16 %v6910
      %v7621 = vunpack.c.l.b16 %v6911
      %v7622 = vunpack.c.h.b16 %v6911
      %v7623 = vunpack.c.l.b16 %v6912
      %v7624 = vunpack.c.h.b16 %v6912
      %v7625 = vunpack.c.l.b16 %v6913
      %v7626 = vunpack.c.h.b16 %v6913
      %v7627 = vunpack.c.l.b16 %v6914
      %v7628 = vunpack.c.h.b16 %v6914
      %v7629 = vunpack.c.l.b16 %v6915
      %v7630 = vunpack.c.h.b16 %v6915
      %v7631 = vunpack.c.l.b16 %v6916
      %v7632 = vunpack.c.h.b16 %v6916
      %v7633 = vunpack.c.l.b16 %v6917
      %v7634 = vunpack.c.h.b16 %v6917
      %v7635 = vunpack.c.l.b16 %v6918
      %v7636 = vunpack.c.h.b16 %v6918
      %v7637 = vunpack.c.l.b16 %v6919
      %v7638 = vunpack.c.h.b16 %v6919
      %v7639 = vunpack.c.l.b16 %v6920
      %v7640 = vunpack.c.h.b16 %v6920
      %v7641 = vunpack.c.l.b16 %v6921
      %v7642 = vunpack.c.h.b16 %v6921
      %v7643 = vunpack.c.l.b16 %v6922
      %v7644 = vunpack.c.h.b16 %v6922
      %v7645 = vunpack.c.l.b16 %v6923
      %v7646 = vunpack.c.h.b16 %v6923
      %v7647 = vunpack.c.l.b16 %v6924
      %v7648 = vunpack.c.h.b16 %v6924
      %v7649 = vunpack.c.l.b16 %v6925
      %v7650 = vunpack.c.h.b16 %v6925
      %v7651 = vunpack.c.l.b16 %v6926
      %v7652 = vunpack.c.h.b16 %v6926
      %v7653 = vunpack.c.l.b16 %v6927
      %v7654 = vunpack.c.h.b16 %v6927
      %v7655 = vunpack.c.l.b16 %v6928
      %v7656 = vunpack.c.h.b16 %v6928
      %v7657 = vunpack.c.l.b16 %v6929
      %v7658 = vunpack.c.h.b16 %v6929
      %v7659 = vunpack.c.l.b16 %v6930
      %v7660 = vunpack.c.h.b16 %v6930
      %v7661 = vunpack.c.l.b16 %v6931
      %v7662 = vunpack.c.h.b16 %v6931
      %v7663 = vunpack.c.l.b16 %v6932
      %v7664 = vunpack.c.h.b16 %v6932
      %v7665 = vunpack.c.l.b16 %v6933
      %v7666 = vunpack.c.h.b16 %v6933
      %v7667 = vunpack.c.l.b16 %v6934
      %v7668 = vunpack.c.h.b16 %v6934
      %v7669 = vunpack.c.l.b16 %v6935
      %v7670 = vunpack.c.h.b16 %v6935
      %v7671 = vunpack.c.l.b16 %v6936
      %v7672 = vunpack.c.h.b16 %v6936
      %v7673 = vunpack.c.l.b16 %v6937
      %v7674 = vunpack.c.h.b16 %v6937
      %v7675 = vunpack.c.l.b16 %v6938
      %v7676 = vunpack.c.h.b16 %v6938
      %v7677 = vunpack.c.l.b16 %v6939
      %v7678 = vunpack.c.h.b16 %v6939
      %v7679 = vunpack.c.l.b16 %v6940
      %v7680 = vunpack.c.h.b16 %v6940
      %v7681 = vunpack.c.l.b16 %v6941
      %v7682 = vunpack.c.h.b16 %v6941
      %v7683 = vunpack.c.l.b16 %v6942
      %v7684 = vunpack.c.h.b16 %v6942
      %v7685 = vunpack.c.l.b16 %v6943
      %v7686 = vunpack.c.h.b16 %v6943
      %v7687 = vunpack.c.l.b16 %v6944
      %v7688 = vunpack.c.h.b16 %v6944
      %v7689 = vunpack.c.l.b16 %v6945
      %v7690 = vunpack.c.h.b16 %v6945
      %v7691 = vunpack.c.l.b16 %v6946
      %v7692 = vunpack.c.h.b16 %v6946
      %v7693 = vunpack.c.l.b16 %v6947
      %v7694 = vunpack.c.h.b16 %v6947
      %v7695 = vunpack.c.l.b16 %v6948
      %v7696 = vunpack.c.h.b16 %v6948
      %v7697 = vunpack.c.l.b16 %v6949
      %v7698 = vunpack.c.h.b16 %v6949
      %v7699 = vunpack.c.l.b16 %v6950
      %v7700 = vunpack.c.h.b16 %v6950
      %v7701 = vunpack.c.l.b16 %v6951
      %v7702 = vunpack.c.h.b16 %v6951
      %v7703 = vunpack.c.l.b16 %v6952
      %v7704 = vunpack.c.h.b16 %v6952
      %v7705 = vunpack.c.l.b16 %v6953
      %v7706 = vunpack.c.h.b16 %v6953
      %v7707 = vunpack.c.l.b16 %v6954
      %v7708 = vunpack.c.h.b16 %v6954
      %v7709 = vunpack.c.l.b16 %v6955
      %v7710 = vunpack.c.h.b16 %v6955
      %v7711 = vunpack.c.l.b16 %v6956
      %v7712 = vunpack.c.h.b16 %v6956
      %v7713 = vunpack.c.l.b16 %v6957
      %v7714 = vunpack.c.h.b16 %v6957
      %v7715 = vunpack.c.l.b16 %v6958
      %v7716 = vunpack.c.h.b16 %v6958
      %v7717 = vunpack.c.l.b16 %v6959
      %v7718 = vunpack.c.h.b16 %v6959
      %v7719 = vunpack.c.l.b16 %v6960
      %v7720 = vunpack.c.h.b16 %v6960
      %v7721 = vunpack.c.l.b16 %v6961
      %v7722 = vunpack.c.h.b16 %v6961
      %v7723 = vunpack.c.l.b16 %v6962
      %v7724 = vunpack.c.h.b16 %v6962
      %v7725 = vunpack.c.l.b16 %v6963
      %v7726 = vunpack.c.h.b16 %v6963
      %v7727 = vunpack.c.l.b16 %v6964
      %v7728 = vunpack.c.h.b16 %v6964
      %v7729 = vunpack.c.l.b16 %v6965
      %v7730 = vunpack.c.h.b16 %v6965
      %v7731 = vunpack.c.l.b16 %v6966
      %v7732 = vunpack.c.h.b16 %v6966
      %v7733 = vunpack.c.l.b16 %v6967
      %v7734 = vunpack.c.h.b16 %v6967
      %v7735 = vunpack.c.l.b16 %v6968
      %v7736 = vunpack.c.h.b16 %v6968
      %v7737 = vunpack.c.l.b16 %v6969
      %v7738 = vunpack.c.h.b16 %v6969
      %v7739 = vunpack.c.l.b16 %v6970
      %v7740 = vunpack.c.h.b16 %v6970
      %v7741 = vunpack.c.l.b16 %v6971
      %v7742 = vunpack.c.h.b16 %v6971
      %v7743 = vunpack.c.l.b16 %v6972
      %v7744 = vunpack.c.h.b16 %v6972
      %v7745 = vunpack.c.l.b16 %v6973
      %v7746 = vunpack.c.h.b16 %v6973
      %v7747 = vunpack.c.l.b16 %v6974
      %v7748 = vunpack.c.h.b16 %v6974
      %v7749 = vunpack.c.l.b16 %v6975
      %v7750 = vunpack.c.h.b16 %v6975
      %v7751 = vunpack.c.l.b16 %v6976
      %v7752 = vunpack.c.h.b16 %v6976
      %v7753 = vunpack.c.l.b16 %v6977
      %v7754 = vunpack.c.h.b16 %v6977
      %v7755 = vunpack.c.l.b16 %v6978
      %v7756 = vunpack.c.h.b16 %v6978
      %v7757 = vunpack.c.l.b16 %v6979
      %v7758 = vunpack.c.h.b16 %v6979
      %v7759 = vunpack.c.l.b16 %v6980
      %v7760 = vunpack.c.h.b16 %v6980
      %v7761 = vunpack.c.l.b16 %v6981
      %v7762 = vunpack.c.h.b16 %v6981
      %v7763 = vunpack.c.l.b16 %v6982
      %v7764 = vunpack.c.h.b16 %v6982
      %v7765 = vunpack.c.l.b16 %v6983
      %v7766 = vunpack.c.h.b16 %v6983
      %v7767 = vunpack.c.l.b16 %v6984
      %v7768 = vunpack.c.h.b16 %v6984
      %v7769 = vunpack.c.l.b16 %v6985
      %v7770 = vunpack.c.h.b16 %v6985
      %v7771 = vunpack.c.l.b16 %v6986
      %v7772 = vunpack.c.h.b16 %v6986
      %v7773 = vunpack.c.l.b16 %v6987
      %v7774 = vunpack.c.h.b16 %v6987
      %v7775 = vunpack.c.l.b16 %v6988
      %v7776 = vunpack.c.h.b16 %v6988
      %v7777 = vunpack.c.l.b16 %v6989
      %v7778 = vunpack.c.h.b16 %v6989
      %v7779 = vunpack.c.l.b16 %v6990
      %v7780 = vunpack.c.h.b16 %v6990
      %v7781 = vunpack.c.l.b16 %v6991
      %v7782 = vunpack.c.h.b16 %v6991
      %v7783 = vunpack.c.l.b16 %v6992
      %v7784 = vunpack.c.h.b16 %v6992
      %v7785 = vunpack.c.l.b16 %v6993
      %v7786 = vunpack.c.h.b16 %v6993
      %v7787 = vunpack.c.l.b16 %v6994
      %v7788 = vunpack.c.h.b16 %v6994
      %v7789 = vunpack.c.l.b16 %v6995
      %v7790 = vunpack.c.h.b16 %v6995
      %v7791 = vunpack.c.l.b16 %v6996
      %v7792 = vunpack.c.h.b16 %v6996
      %v7793 = vunpack.c.l.b16 %v6997
      %v7794 = vunpack.c.h.b16 %v6997
      %v7795 = vunpack.c.l.b16 %v6998
      %v7796 = vunpack.c.h.b16 %v6998
      %v7797 = vunpack.c.l.b16 %v6999
      %v7798 = vunpack.c.h.b16 %v6999
      %v7799 = vunpack.c.l.b16 %v7000
      %v7800 = vunpack.c.h.b16 %v7000
      %v7801 = vunpack.c.l.b16 %v7001
      %v7802 = vunpack.c.h.b16 %v7001
      %v7803 = vunpack.c.l.b16 %v7002
      %v7804 = vunpack.c.h.b16 %v7002
      %v7805 = vunpack.c.l.b16 %v7003
      %v7806 = vunpack.c.h.b16 %v7003
      %v7807 = vunpack.c.l.b16 %v7004
      %v7808 = vunpack.c.h.b16 %v7004
      %v7809 = vunpack.c.l.b16 %v7005
      %v7810 = vunpack.c.h.b16 %v7005
      %v7811 = vunpack.c.l.b16 %v7006
      %v7812 = vunpack.c.h.b16 %v7006
      %v7813 = vunpack.c.l.b16 %v7007
      %v7814 = vunpack.c.h.b16 %v7007
      %v7815 = vunpack.c.l.b16 %v7008
      %v7816 = vunpack.c.h.b16 %v7008
      %v7817 = vunpack.c.l.b16 %v7009
      %v7818 = vunpack.c.h.b16 %v7009
      %v7819 = vunpack.c.l.b16 %v7010
      %v7820 = vunpack.c.h.b16 %v7010
      %v7821 = vunpack.c.l.b16 %v7011
      %v7822 = vunpack.c.h.b16 %v7011
      %v7823 = vunpack.c.l.b16 %v7012
      %v7824 = vunpack.c.h.b16 %v7012
      %v7825 = vunpack.c.l.b16 %v7013
      %v7826 = vunpack.c.h.b16 %v7013
      %v7827 = vunpack.c.l.b16 %v7014
      %v7828 = vunpack.c.h.b16 %v7014
      %v7829 = vunpack.c.l.b16 %v7015
      %v7830 = vunpack.c.h.b16 %v7015
      %v7831 = vunpack.c.l.b16 %v7016
      %v7832 = vunpack.c.h.b16 %v7016
      %v7833 = vunpack.c.l.b16 %v7017
      %v7834 = vunpack.c.h.b16 %v7017
      %v7835 = vunpack.c.l.b16 %v7018
      %v7836 = vunpack.c.h.b16 %v7018
      %v7837 = vunpack.c.l.b16 %v7019
      %v7838 = vunpack.c.h.b16 %v7019
      %v7839 = vunpack.c.l.b16 %v7020
      %v7840 = vunpack.c.h.b16 %v7020
      %v7841 = vunpack.c.l.b16 %v7021
      %v7842 = vunpack.c.h.b16 %v7021
      %v7843 = vunpack.c.l.b16 %v7022
      %v7844 = vunpack.c.h.b16 %v7022
      %v7845 = vunpack.c.l.b16 %v7023
      %v7846 = vunpack.c.h.b16 %v7023
      %v7847 = vunpack.c.l.b16 %v7024
      %v7848 = vunpack.c.h.b16 %v7024
      %v7849 = vunpack.c.l.b16 %v7025
      %v7850 = vunpack.c.h.b16 %v7025
      %v7851 = vunpack.c.l.b16 %v7026
      %v7852 = vunpack.c.h.b16 %v7026
      %v7853 = vunpack.c.l.b16 %v7027
      %v7854 = vunpack.c.h.b16 %v7027
      %v7855 = vunpack.c.l.b16 %v7028
      %v7856 = vunpack.c.h.b16 %v7028
      %v7857 = vunpack.c.l.b16 %v7029
      %v7858 = vunpack.c.h.b16 %v7029
      %v7859 = vunpack.c.l.b16 %v7030
      %v7860 = vunpack.c.h.b16 %v7030
      %v7861 = vunpack.c.l.b16 %v7031
      %v7862 = vunpack.c.h.b16 %v7031
      %v7863 = vunpack.c.l.b16 %v7032
      %v7864 = vunpack.c.h.b16 %v7032
      %v7865 = vunpack.c.l.b16 %v7033
      %v7866 = vunpack.c.h.b16 %v7033
      %v7867 = vunpack.c.l.b16 %v7034
      %v7868 = vunpack.c.h.b16 %v7034
      %v7869 = vunpack.c.l.b16 %v7035
      %v7870 = vunpack.c.h.b16 %v7035
      %v7871 = vunpack.c.l.b16 %v7036
      %v7872 = vunpack.c.h.b16 %v7036
      %v7873 = vunpack.c.l.b16 %v7037
      %v7874 = vunpack.c.h.b16 %v7037
      %v7875 = vunpack.c.l.b16 %v7038
      %v7876 = vunpack.c.h.b16 %v7038
      %v7877 = vunpack.c.l.b16 %v7039
      %v7878 = vunpack.c.h.b16 %v7039
      %v7879 = vunpack.c.l.b16 %v7040
      %v7880 = vunpack.c.h.b16 %v7040
      %v7881 = vunpack.c.l.b16 %v7041
      %v7882 = vunpack.c.h.b16 %v7041
      %v7883 = vunpack.c.l.b16 %v7042
      %v7884 = vunpack.c.h.b16 %v7042
      %v7885 = vunpack.c.l.b16 %v7043
      %v7886 = vunpack.c.h.b16 %v7043
      %v7887 = vunpack.c.l.b16 %v7044
      %v7888 = vunpack.c.h.b16 %v7044
      %v7889 = vunpack.c.l.b16 %v7045
      %v7890 = vunpack.c.h.b16 %v7045
      %v7891 = vunpack.c.l.b16 %v7046
      %v7892 = vunpack.c.h.b16 %v7046
      %v7893 = vunpack.c.l.b16 %v7047
      %v7894 = vunpack.c.h.b16 %v7047
      %v7895 = vunpack.c.l.b16 %v7048
      %v7896 = vunpack.c.h.b16 %v7048
      %v7897 = vunpack.c.l.b16 %v7049
      %v7898 = vunpack.c.h.b16 %v7049
      %v7899 = vunpack.c.l.b16 %v7050
      %v7900 = vunpack.c.h.b16 %v7050
      %v7901 = vunpack.c.l.b16 %v7051
      %v7902 = vunpack.c.h.b16 %v7051
      %v7903 = vunpack.c.l.b16 %v7052
      %v7904 = vunpack.c.h.b16 %v7052
      %v7905 = vunpack.c.l.b16 %v7053
      %v7906 = vunpack.c.h.b16 %v7053
      %v7907 = vunpack.c.l.b16 %v7054
      %v7908 = vunpack.c.h.b16 %v7054
      %v7909 = vunpack.c.l.b16 %v7055
      %v7910 = vunpack.c.h.b16 %v7055
      %v7911 = vunpack.c.l.b16 %v7056
      %v7912 = vunpack.c.h.b16 %v7056
      %v7913 = vunpack.c.l.b16 %v7057
      %v7914 = vunpack.c.h.b16 %v7057
      %v7915 = vunpack.c.l.b16 %v7058
      %v7916 = vunpack.c.h.b16 %v7058
      %v7917 = vunpack.c.l.b16 %v7059
      %v7918 = vunpack.c.h.b16 %v7059
      %v7919 = vunpack.c.l.b16 %v7060
      %v7920 = vunpack.c.h.b16 %v7060
      %v7921 = vunpack.c.l.b16 %v7061
      %v7922 = vunpack.c.h.b16 %v7061
      %v7923 = vunpack.c.l.b16 %v7062
      %v7924 = vunpack.c.h.b16 %v7062
      %v7925 = vunpack.c.l.b16 %v7063
      %v7926 = vunpack.c.h.b16 %v7063
      %v7927 = vunpack.c.l.b16 %v7064
      %v7928 = vunpack.c.h.b16 %v7064
      %v7929 = vunpack.c.l.b16 %v7065
      %v7930 = vunpack.c.h.b16 %v7065
      %v7931 = vunpack.c.l.b16 %v7066
      %v7932 = vunpack.c.h.b16 %v7066
      %v7933 = vunpack.c.l.b16 %v7067
      %v7934 = vunpack.c.h.b16 %v7067
      %v7935 = vunpack.c.l.b16 %v7068
      %v7936 = vunpack.c.h.b16 %v7068
      %v7937 = vunpack.c.l.b16 %v7069
      %v7938 = vunpack.c.h.b16 %v7069
      %v7939 = vunpack.c.l.b16 %v7070
      %v7940 = vunpack.c.h.b16 %v7070
      %v7941 = vunpack.c.l.b16 %v7071
      %v7942 = vunpack.c.h.b16 %v7071
      %v7943 = vunpack.c.l.b16 %v7072
      %v7944 = vunpack.c.h.b16 %v7072
      %v7945 = vunpack.c.l.b16 %v7073
      %v7946 = vunpack.c.h.b16 %v7073
      %v7947 = vunpack.c.l.b16 %v7074
      %v7948 = vunpack.c.h.b16 %v7074
      %v7949 = vunpack.c.l.b16 %v7075
      %v7950 = vunpack.c.h.b16 %v7075
      %v7951 = vunpack.c.l.b16 %v7076
      %v7952 = vunpack.c.h.b16 %v7076
      %v7953 = vunpack.c.l.b16 %v7077
      %v7954 = vunpack.c.h.b16 %v7077
      %v7955 = vunpack.c.l.b16 %v7078
      %v7956 = vunpack.c.h.b16 %v7078
      %v7957 = vunpack.c.l.b16 %v7079
      %v7958 = vunpack.c.h.b16 %v7079
      %v7959 = vunpack.c.l.b16 %v7080
      %v7960 = vunpack.c.h.b16 %v7080
      %v7961 = vunpack.c.l.b16 %v7081
      %v7962 = vunpack.c.h.b16 %v7081
      %v7963 = vunpack.c.l.b16 %v7082
      %v7964 = vunpack.c.h.b16 %v7082
      %v7965 = vunpack.c.l.b16 %v7083
      %v7966 = vunpack.c.h.b16 %v7083
      %v7967 = vunpack.c.l.b16 %v7084
      %v7968 = vunpack.c.h.b16 %v7084
      %v7969 = vunpack.c.l.b16 %v7085
      %v7970 = vunpack.c.h.b16 %v7085
      %v7971 = vunpack.c.l.b16 %v7086
      %v7972 = vunpack.c.h.b16 %v7086
      %v7973 = vunpack.c.l.b16 %v7087
      %v7974 = vunpack.c.h.b16 %v7087
      %v7975 = vunpack.c.l.b16 %v7088
      %v7976 = vunpack.c.h.b16 %v7088
      %v7977 = vunpack.c.l.b16 %v7089
      %v7978 = vunpack.c.h.b16 %v7089
      %v7979 = vunpack.c.l.b16 %v7090
      %v7980 = vunpack.c.h.b16 %v7090
      %v7981 = vunpack.c.l.b16 %v7091
      %v7982 = vunpack.c.h.b16 %v7091
      %v7983 = vunpack.c.l.b16 %v7092
      %v7984 = vunpack.c.h.b16 %v7092
      %v7985 = vunpack.c.l.b16 %v7093
      %v7986 = vunpack.c.h.b16 %v7093
      %v7987 = vunpack.c.l.b16 %v7094
      %v7988 = vunpack.c.h.b16 %v7094
      %v7989 = vunpack.c.l.b16 %v7095
      %v7990 = vunpack.c.h.b16 %v7095
      %v7991 = vunpack.c.l.b16 %v7096
      %v7992 = vunpack.c.h.b16 %v7096
      %v7993 = vunpack.c.l.b16 %v7097
      %v7994 = vunpack.c.h.b16 %v7097
      %v7995 = vunpack.c.l.b16 %v7098
      %v7996 = vunpack.c.h.b16 %v7098
      %v7997 = vunpack.c.l.b16 %v7099
      %v7998 = vunpack.c.h.b16 %v7099
      %v7999 = vunpack.c.l.b16 %v7100
      %v8000 = vunpack.c.h.b16 %v7100
      %v8001 = vunpack.c.l.b16 %v7101
      %v8002 = vunpack.c.h.b16 %v7101
      %v8003 = vunpack.c.l.b16 %v7102
      %v8004 = vunpack.c.h.b16 %v7102
      %v8005 = vpack.c.b16 %v7435, %v7429
      %v8006 = vpack.c.b16 %v7436, %v7430
      %v8007 = vpack.c.b16 %v7437, %v7431
      %v8008 = vpack.c.b16 %v7438, %v7432
      %v8009 = vpack.c.b16 %v7439, %v7433
      %v8010 = vpack.c.b16 %v7440, %v7434
      %v8011 = vpack.c.b16 %v7447, %v7441
      %v8012 = vpack.c.b16 %v7448, %v7442
      %v8013 = vpack.c.b16 %v7449, %v7443
      %v8014 = vpack.c.b16 %v7450, %v7444
      %v8015 = vpack.c.b16 %v7451, %v7445
      %v8016 = vpack.c.b16 %v7452, %v7446
      %v8017 = vpack.c.b16 %v7459, %v7453
      %v8018 = vpack.c.b16 %v7460, %v7454
      %v8019 = vpack.c.b16 %v7461, %v7455
      %v8020 = vpack.c.b16 %v7462, %v7456
      %v8021 = vpack.c.b16 %v7463, %v7457
      %v8022 = vpack.c.b16 %v7464, %v7458
      %v8023 = vpack.c.b16 %v7471, %v7465
      %v8024 = vpack.c.b16 %v7472, %v7466
      %v8025 = vpack.c.b16 %v7473, %v7467
      %v8026 = vpack.c.b16 %v7474, %v7468
      %v8027 = vpack.c.b16 %v7475, %v7469
      %v8028 = vpack.c.b16 %v7476, %v7470
      %v8029 = vpack.c.b16 %v7483, %v7477
      %v8030 = vpack.c.b16 %v7484, %v7478
      %v8031 = vpack.c.b16 %v7485, %v7479
      %v8032 = vpack.c.b16 %v7486, %v7480
      %v8033 = vpack.c.b16 %v7487, %v7481
      %v8034 = vpack.c.b16 %v7488, %v7482
      %v8035 = vpack.c.b16 %v7495, %v7489
      %v8036 = vpack.c.b16 %v7496, %v7490
      %v8037 = vpack.c.b16 %v7497, %v7491
      %v8038 = vpack.c.b16 %v7498, %v7492
      %v8039 = vpack.c.b16 %v7499, %v7493
      %v8040 = vpack.c.b16 %v7500, %v7494
      %v8041 = vpack.c.b16 %v7507, %v7501
      %v8042 = vpack.c.b16 %v7508, %v7502
      %v8043 = vpack.c.b16 %v7509, %v7503
      %v8044 = vpack.c.b16 %v7510, %v7504
      %v8045 = vpack.c.b16 %v7511, %v7505
      %v8046 = vpack.c.b16 %v7512, %v7506
      %v8047 = vpack.c.b16 %v7519, %v7513
      %v8048 = vpack.c.b16 %v7520, %v7514
      %v8049 = vpack.c.b16 %v7521, %v7515
      %v8050 = vpack.c.b16 %v7522, %v7516
      %v8051 = vpack.c.b16 %v7523, %v7517
      %v8052 = vpack.c.b16 %v7524, %v7518
      %v8053 = vpack.c.b16 %v7531, %v7525
      %v8054 = vpack.c.b16 %v7532, %v7526
      %v8055 = vpack.c.b16 %v7533, %v7527
      %v8056 = vpack.c.b16 %v7534, %v7528
      %v8057 = vpack.c.b16 %v7535, %v7529
      %v8058 = vpack.c.b16 %v7536, %v7530
      %v8059 = vpack.c.b16 %v7543, %v7537
      %v8060 = vpack.c.b16 %v7544, %v7538
      %v8061 = vpack.c.b16 %v7545, %v7539
      %v8062 = vpack.c.b16 %v7546, %v7540
      %v8063 = vpack.c.b16 %v7547, %v7541
      %v8064 = vpack.c.b16 %v7548, %v7542
      %v8065 = vpack.c.b16 %v7555, %v7549
      %v8066 = vpack.c.b16 %v7556, %v7550
      %v8067 = vpack.c.b16 %v7557, %v7551
      %v8068 = vpack.c.b16 %v7558, %v7552
      %v8069 = vpack.c.b16 %v7559, %v7553
      %v8070 = vpack.c.b16 %v7560, %v7554
      %v8071 = vpack.c.b16 %v7567, %v7561
      %v8072 = vpack.c.b16 %v7568, %v7562
      %v8073 = vpack.c.b16 %v7569, %v7563
      %v8074 = vpack.c.b16 %v7570, %v7564
      %v8075 = vpack.c.b16 %v7571, %v7565
      %v8076 = vpack.c.b16 %v7572, %v7566
      %v8077 = vpack.c.b16 %v7579, %v7573
      %v8078 = vpack.c.b16 %v7580, %v7574
      %v8079 = vpack.c.b16 %v7581, %v7575
      %v8080 = vpack.c.b16 %v7582, %v7576
      %v8081 = vpack.c.b16 %v7583, %v7577
      %v8082 = vpack.c.b16 %v7584, %v7578
      %v8083 = vpack.c.b16 %v7591, %v7585
      %v8084 = vpack.c.b16 %v7592, %v7586
      %v8085 = vpack.c.b16 %v7593, %v7587
      %v8086 = vpack.c.b16 %v7594, %v7588
      %v8087 = vpack.c.b16 %v7595, %v7589
      %v8088 = vpack.c.b16 %v7596, %v7590
      %v8089 = vpack.c.b16 %v7603, %v7597
      %v8090 = vpack.c.b16 %v7604, %v7598
      %v8091 = vpack.c.b16 %v7605, %v7599
      %v8092 = vpack.c.b16 %v7606, %v7600
      %v8093 = vpack.c.b16 %v7607, %v7601
      %v8094 = vpack.c.b16 %v7608, %v7602
      %v8095 = vpack.c.b16 %v7615, %v7609
      %v8096 = vpack.c.b16 %v7616, %v7610
      %v8097 = vpack.c.b16 %v7617, %v7611
      %v8098 = vpack.c.b16 %v7618, %v7612
      %v8099 = vpack.c.b16 %v7619, %v7613
      %v8100 = vpack.c.b16 %v7620, %v7614
      %v8101 = vpack.c.b16 %v7627, %v7621
      %v8102 = vpack.c.b16 %v7628, %v7622
      %v8103 = vpack.c.b16 %v7629, %v7623
      %v8104 = vpack.c.b16 %v7630, %v7624
      %v8105 = vpack.c.b16 %v7631, %v7625
      %v8106 = vpack.c.b16 %v7632, %v7626
      %v8107 = vpack.c.b16 %v7639, %v7633
      %v8108 = vpack.c.b16 %v7640, %v7634
      %v8109 = vpack.c.b16 %v7641, %v7635
      %v8110 = vpack.c.b16 %v7642, %v7636
      %v8111 = vpack.c.b16 %v7643, %v7637
      %v8112 = vpack.c.b16 %v7644, %v7638
      %v8113 = vpack.c.b16 %v7651, %v7645
      %v8114 = vpack.c.b16 %v7652, %v7646
      %v8115 = vpack.c.b16 %v7653, %v7647
      %v8116 = vpack.c.b16 %v7654, %v7648
      %v8117 = vpack.c.b16 %v7655, %v7649
      %v8118 = vpack.c.b16 %v7656, %v7650
      %v8119 = vpack.c.b16 %v7663, %v7657
      %v8120 = vpack.c.b16 %v7664, %v7658
      %v8121 = vpack.c.b16 %v7665, %v7659
      %v8122 = vpack.c.b16 %v7666, %v7660
      %v8123 = vpack.c.b16 %v7667, %v7661
      %v8124 = vpack.c.b16 %v7668, %v7662
      %v8125 = vpack.c.b16 %v7675, %v7669
      %v8126 = vpack.c.b16 %v7676, %v7670
      %v8127 = vpack.c.b16 %v7677, %v7671
      %v8128 = vpack.c.b16 %v7678, %v7672
      %v8129 = vpack.c.b16 %v7679, %v7673
      %v8130 = vpack.c.b16 %v7680, %v7674
      %v8131 = vpack.c.b16 %v7687, %v7681
      %v8132 = vpack.c.b16 %v7688, %v7682
      %v8133 = vpack.c.b16 %v7689, %v7683
      %v8134 = vpack.c.b16 %v7690, %v7684
      %v8135 = vpack.c.b16 %v7691, %v7685
      %v8136 = vpack.c.b16 %v7692, %v7686
      %v8137 = vpack.c.b16 %v7699, %v7693
      %v8138 = vpack.c.b16 %v7700, %v7694
      %v8139 = vpack.c.b16 %v7701, %v7695
      %v8140 = vpack.c.b16 %v7702, %v7696
      %v8141 = vpack.c.b16 %v7703, %v7697
      %v8142 = vpack.c.b16 %v7704, %v7698
      %v8143 = vpack.c.b16 %v7711, %v7705
      %v8144 = vpack.c.b16 %v7712, %v7706
      %v8145 = vpack.c.b16 %v7713, %v7707
      %v8146 = vpack.c.b16 %v7714, %v7708
      %v8147 = vpack.c.b16 %v7715, %v7709
      %v8148 = vpack.c.b16 %v7716, %v7710
      %v8149 = vpack.c.b16 %v7723, %v7717
      %v8150 = vpack.c.b16 %v7724, %v7718
      %v8151 = vpack.c.b16 %v7725, %v7719
      %v8152 = vpack.c.b16 %v7726, %v7720
      %v8153 = vpack.c.b16 %v7727, %v7721
      %v8154 = vpack.c.b16 %v7728, %v7722
      %v8155 = vpack.c.b16 %v7735, %v7729
      %v8156 = vpack.c.b16 %v7736, %v7730
      %v8157 = vpack.c.b16 %v7737, %v7731
      %v8158 = vpack.c.b16 %v7738, %v7732
      %v8159 = vpack.c.b16 %v7739, %v7733
      %v8160 = vpack.c.b16 %v7740, %v7734
      %v8161 = vpack.c.b16 %v7747, %v7741
      %v8162 = vpack.c.b16 %v7748, %v7742
      %v8163 = vpack.c.b16 %v7749, %v7743
      %v8164 = vpack.c.b16 %v7750, %v7744
      %v8165 = vpack.c.b16 %v7751, %v7745
      %v8166 = vpack.c.b16 %v7752, %v7746
      %v8167 = vpack.c.b16 %v7759, %v7753
      %v8168 = vpack.c.b16 %v7760, %v7754
      %v8169 = vpack.c.b16 %v7761, %v7755
      %v8170 = vpack.c.b16 %v7762, %v7756
      %v8171 = vpack.c.b16 %v7763, %v7757
      %v8172 = vpack.c.b16 %v7764, %v7758
      %v8173 = vpack.c.b16 %v7771, %v7765
      %v8174 = vpack.c.b16 %v7772, %v7766
      %v8175 = vpack.c.b16 %v7773, %v7767
      %v8176 = vpack.c.b16 %v7774, %v7768
      %v8177 = vpack.c.b16 %v7775, %v7769
      %v8178 = vpack.c.b16 %v7776, %v7770
      %v8179 = vpack.c.b16 %v7783, %v7777
      %v8180 = vpack.c.b16 %v7784, %v7778
      %v8181 = vpack.c.b16 %v7785, %v7779
      %v8182 = vpack.c.b16 %v7786, %v7780
      %v8183 = vpack.c.b16 %v7787, %v7781
      %v8184 = vpack.c.b16 %v7788, %v7782
      %v8185 = vpack.c.b16 %v7795, %v7789
      %v8186 = vpack.c.b16 %v7796, %v7790
      %v8187 = vpack.c.b16 %v7797, %v7791
      %v8188 = vpack.c.b16 %v7798, %v7792
      %v8189 = vpack.c.b16 %v7799, %v7793
      %v8190 = vpack.c.b16 %v7800, %v7794
      %v8191 = vpack.c.b16 %v7807, %v7801
      %v8192 = vpack.c.b16 %v7808, %v7802
      %v8193 = vpack.c.b16 %v7809, %v7803
      %v8194 = vpack.c.b16 %v7810, %v7804
      %v8195 = vpack.c.b16 %v7811, %v7805
      %v8196 = vpack.c.b16 %v7812, %v7806
      %v8197 = vpack.c.b16 %v7819, %v7813
      %v8198 = vpack.c.b16 %v7820, %v7814
      %v8199 = vpack.c.b16 %v7821, %v7815
      %v8200 = vpack.c.b16 %v7822, %v7816
      %v8201 = vpack.c.b16 %v7823, %v7817
      %v8202 = vpack.c.b16 %v7824, %v7818
      %v8203 = vpack.c.b16 %v7831, %v7825
      %v8204 = vpack.c.b16 %v7832, %v7826
      %v8205 = vpack.c.b16 %v7833, %v7827
      %v8206 = vpack.c.b16 %v7834, %v7828
      %v8207 = vpack.c.b16 %v7835, %v7829
      %v8208 = vpack.c.b16 %v7836, %v7830
      %v8209 = vpack.c.b16 %v7843, %v7837
      %v8210 = vpack.c.b16 %v7844, %v7838
      %v8211 = vpack.c.b16 %v7845, %v7839
      %v8212 = vpack.c.b16 %v7846, %v7840
      %v8213 = vpack.c.b16 %v7847, %v7841
      %v8214 = vpack.c.b16 %v7848, %v7842
      %v8215 = vpack.c.b16 %v7855, %v7849
      %v8216 = vpack.c.b16 %v7856, %v7850
      %v8217 = vpack.c.b16 %v7857, %v7851
      %v8218 = vpack.c.b16 %v7858, %v7852
      %v8219 = vpack.c.b16 %v7859, %v7853
      %v8220 = vpack.c.b16 %v7860, %v7854
      %v8221 = vpack.c.b16 %v7867, %v7861
      %v8222 = vpack.c.b16 %v7868, %v7862
      %v8223 = vpack.c.b16 %v7869, %v7863
      %v8224 = vpack.c.b16 %v7870, %v7864
      %v8225 = vpack.c.b16 %v7871, %v7865
      %v8226 = vpack.c.b16 %v7872, %v7866
      %v8227 = vpack.c.b16 %v7879, %v7873
      %v8228 = vpack.c.b16 %v7880, %v7874
      %v8229 = vpack.c.b16 %v7881, %v7875
      %v8230 = vpack.c.b16 %v7882, %v7876
      %v8231 = vpack.c.b16 %v7883, %v7877
      %v8232 = vpack.c.b16 %v7884, %v7878
      %v8233 = vpack.c.b16 %v7891, %v7885
      %v8234 = vpack.c.b16 %v7892, %v7886
      %v8235 = vpack.c.b16 %v7893, %v7887
      %v8236 = vpack.c.b16 %v7894, %v7888
      %v8237 = vpack.c.b16 %v7895, %v7889
      %v8238 = vpack.c.b16 %v7896, %v7890
      %v8239 = vpack.c.b16 %v7903, %v7897
      %v8240 = vpack.c.b16 %v7904, %v7898
      %v8241 = vpack.c.b16 %v7905, %v7899
      %v8242 = vpack.c.b16 %v7906, %v7900
      %v8243 = vpack.c.b16 %v7907, %v7901
      %v8244 = vpack.c.b16 %v7908, %v7902
      %v8245 = vpack.c.b16 %v7915, %v7909
      %v8246 = vpack.c.b16 %v7916, %v7910
      %v8247 = vpack.c.b16 %v7917, %v7911
      %v8248 = vpack.c.b16 %v7918, %v7912
      %v8249 = vpack.c.b16 %v7919, %v7913
      %v8250 = vpack.c.b16 %v7920, %v7914
      %v8251 = vpack.c.b16 %v7927, %v7921
      %v8252 = vpack.c.b16 %v7928, %v7922
      %v8253 = vpack.c.b16 %v7929, %v7923
      %v8254 = vpack.c.b16 %v7930, %v7924
      %v8255 = vpack.c.b16 %v7931, %v7925
      %v8256 = vpack.c.b16 %v7932, %v7926
      %v8257 = vpack.c.b16 %v7939, %v7933
      %v8258 = vpack.c.b16 %v7940, %v7934
      %v8259 = vpack.c.b16 %v7941, %v7935
      %v8260 = vpack.c.b16 %v7942, %v7936
      %v8261 = vpack.c.b16 %v7943, %v7937
      %v8262 = vpack.c.b16 %v7944, %v7938
      %v8263 = vpack.c.b16 %v7951, %v7945
      %v8264 = vpack.c.b16 %v7952, %v7946
      %v8265 = vpack.c.b16 %v7953, %v7947
      %v8266 = vpack.c.b16 %v7954, %v7948
      %v8267 = vpack.c.b16 %v7955, %v7949
      %v8268 = vpack.c.b16 %v7956, %v7950
      %v8269 = vpack.c.b16 %v7963, %v7957
      %v8270 = vpack.c.b16 %v7964, %v7958
      %v8271 = vpack.c.b16 %v7965, %v7959
      %v8272 = vpack.c.b16 %v7966, %v7960
      %v8273 = vpack.c.b16 %v7967, %v7961
      %v8274 = vpack.c.b16 %v7968, %v7962
      %v8275 = vpack.c.b16 %v7975, %v7969
      %v8276 = vpack.c.b16 %v7976, %v7970
      %v8277 = vpack.c.b16 %v7977, %v7971
      %v8278 = vpack.c.b16 %v7978, %v7972
      %v8279 = vpack.c.b16 %v7979, %v7973
      %v8280 = vpack.c.b16 %v7980, %v7974
      %v8281 = vpack.c.b16 %v7987, %v7981
      %v8282 = vpack.c.b16 %v7988, %v7982
      %v8283 = vpack.c.b16 %v7989, %v7983
      %v8284 = vpack.c.b16 %v7990, %v7984
      %v8285 = vpack.c.b16 %v7991, %v7985
      %v8286 = vpack.c.b16 %v7992, %v7986
      %v8287 = vpack.c.b16 %v7999, %v7993
      %v8288 = vpack.c.b16 %v8000, %v7994
      %v8289 = vpack.c.b16 %v8001, %v7995
      %v8290 = vpack.c.b16 %v8002, %v7996
      %v8291 = vpack.c.b16 %v8003, %v7997
      %v8292 = vpack.c.b16 %v8004, %v7998
      %8581 = vmatprep.subr.bf16.mxu0 %v8006
      %8582 = vmatpush1.bf16.msra.mxu0 %v8005
      %8583 = vmatprep.subr.bf16.mxu0 %v8012
      %8584 = vmatpush1.bf16.msra.mxu0 %v8011
      %8585 = vmatprep.subr.bf16.mxu0 %v8018
      %8586 = vmatpush1.bf16.msra.mxu0 %v8017
      %8587 = vmatprep.subr.bf16.mxu0 %v8024
      %8588 = vmatpush1.bf16.msra.mxu0 %v8023
      %8589 = vmatprep.subr.bf16.mxu0 %v8030
      %8590 = vmatpush1.bf16.msra.mxu0 %v8029
      %8591 = vmatprep.subr.bf16.mxu0 %v8036
      %8592 = vmatpush1.bf16.msra.mxu0 %v8035
      %8593 = vmatprep.subr.bf16.mxu0 %v8042
      %8594 = vmatpush1.bf16.msra.mxu0 %v8041
      %8595 = vmatprep.subr.bf16.mxu0 %v8048
      %8596 = vmatpush1.bf16.msra.mxu0 %v8047
      %8597 = vmatprep.subr.bf16.mxu0 %v8054
      %8598 = vmatpush1.bf16.msra.mxu0 %v8053
      %8599 = vmatprep.subr.bf16.mxu0 %v8060
      %8600 = vmatpush1.bf16.msra.mxu0 %v8059
      %8601 = vmatprep.subr.bf16.mxu0 %v8066
      %8602 = vmatpush1.bf16.msra.mxu0 %v8065
      %8603 = vmatprep.subr.bf16.mxu0 %v8072
      %8604 = vmatpush1.bf16.msra.mxu0 %v8071
      %8605 = vmatprep.subr.bf16.mxu0 %v8078
      %8606 = vmatpush1.bf16.msra.mxu0 %v8077
      %8607 = vmatprep.subr.bf16.mxu0 %v8084
      %8608 = vmatpush1.bf16.msra.mxu0 %v8083
      %8609 = vmatprep.subr.bf16.mxu0 %v8090
      %8610 = vmatpush1.bf16.msra.mxu0 %v8089
      %8611 = vmatprep.subr.bf16.mxu0 %v8096
      %8612 = vmatpush1.bf16.msra.mxu0 %v8095
      %8613 = vmatprep.mubr.bf16.mxu0 %v7104
      %8614 = vmatmul.mubr.bf16.gmra.mrb[0].mxu0 %v7103
      %v8615 = vpop.f32.mrb[0].mxu0
      %v8616 = vadd.f32 %v7114, %v8615
      %v8617 = vpop.f32.mrb[0].mxu0
      %v8618 = vadd.f32 %v7118, %v8617
      %v8619 = vpop.f32.mrb[0].mxu0
      %v8620 = vpop.f32.mrb[0].mxu0
      %8621 = vdwg.mxu0
      %8622 = vmatprep.subr.bf16.mxu0 %v8102
      %8623 = vmatpush1.bf16.msra.mxu0 %v8101
      %8624 = vmatprep.subr.bf16.mxu0 %v8108
      %8625 = vmatpush1.bf16.msra.mxu0 %v8107
      %8626 = vmatprep.subr.bf16.mxu0 %v8114
      %8627 = vmatpush1.bf16.msra.mxu0 %v8113
      %8628 = vmatprep.subr.bf16.mxu0 %v8120
      %8629 = vmatpush1.bf16.msra.mxu0 %v8119
      %8630 = vmatprep.subr.bf16.mxu0 %v8126
      %8631 = vmatpush1.bf16.msra.mxu0 %v8125
      %8632 = vmatprep.subr.bf16.mxu0 %v8132
      %8633 = vmatpush1.bf16.msra.mxu0 %v8131
      %8634 = vmatprep.subr.bf16.mxu0 %v8138
      %8635 = vmatpush1.bf16.msra.mxu0 %v8137
      %8636 = vmatprep.subr.bf16.mxu0 %v8144
      %8637 = vmatpush1.bf16.msra.mxu0 %v8143
      %8638 = vmatprep.subr.bf16.mxu0 %v8150
      %8639 = vmatpush1.bf16.msra.mxu0 %v8149
      %8640 = vmatprep.subr.bf16.mxu0 %v8156
      %8641 = vmatpush1.bf16.msra.mxu0 %v8155
      %8642 = vmatprep.subr.bf16.mxu0 %v8162
      %8643 = vmatpush1.bf16.msra.mxu0 %v8161
      %8644 = vmatprep.subr.bf16.mxu0 %v8168
      %8645 = vmatpush1.bf16.msra.mxu0 %v8167
      %8646 = vmatprep.subr.bf16.mxu0 %v8174
      %8647 = vmatpush1.bf16.msra.mxu0 %v8173
      %8648 = vmatprep.subr.bf16.mxu0 %v8180
      %8649 = vmatpush1.bf16.msra.mxu0 %v8179
      %8650 = vmatprep.subr.bf16.mxu0 %v8186
      %8651 = vmatpush1.bf16.msra.mxu0 %v8185
      %8652 = vmatprep.subr.bf16.mxu0 %v8192
      %8653 = vmatpush1.bf16.msra.mxu0 %v8191
      %8654 = vmatprep.mubr.bf16.mxu0 %v7106
      %8655 = vmatmul.mubr.bf16.gmra.mrb[0].mxu0 %v7105
      %v8656 = vpop.f32.mrb[0].mxu0
      %v8657 = vadd.f32 %v8616, %v8656
      %v8658 = vpop.f32.mrb[0].mxu0
      %v8659 = vadd.f32 %v8618, %v8658
      %v8660 = vpop.f32.mrb[0].mxu0
      %v8661 = vpop.f32.mrb[0].mxu0
      %8662 = vdwg.mxu0
      %8663 = vmatprep.subr.bf16.mxu0 %v8198
      %8664 = vmatpush1.bf16.msra.mxu0 %v8197
      %8665 = vmatprep.subr.bf16.mxu0 %v8204
      %8666 = vmatpush1.bf16.msra.mxu0 %v8203
      %8667 = vmatprep.subr.bf16.mxu0 %v8210
      %8668 = vmatpush1.bf16.msra.mxu0 %v8209
      %8669 = vmatprep.subr.bf16.mxu0 %v8216
      %8670 = vmatpush1.bf16.msra.mxu0 %v8215
      %8671 = vmatprep.subr.bf16.mxu0 %v8222
      %8672 = vmatpush1.bf16.msra.mxu0 %v8221
      %8673 = vmatprep.subr.bf16.mxu0 %v8228
      %8674 = vmatpush1.bf16.msra.mxu0 %v8227
      %8675 = vmatprep.subr.bf16.mxu0 %v8234
      %8676 = vmatpush1.bf16.msra.mxu0 %v8233
      %8677 = vmatprep.subr.bf16.mxu0 %v8240
      %8678 = vmatpush1.bf16.msra.mxu0 %v8239
      %8679 = vmatprep.subr.bf16.mxu0 %v8246
      %8680 = vmatpush1.bf16.msra.mxu0 %v8245
      %8681 = vmatprep.subr.bf16.mxu0 %v8252
      %8682 = vmatpush1.bf16.msra.mxu0 %v8251
      %8683 = vmatprep.subr.bf16.mxu0 %v8258
      %8684 = vmatpush1.bf16.msra.mxu0 %v8257
      %8685 = vmatprep.subr.bf16.mxu0 %v8264
      %8686 = vmatpush1.bf16.msra.mxu0 %v8263
      %8687 = vmatprep.subr.bf16.mxu0 %v8270
      %8688 = vmatpush1.bf16.msra.mxu0 %v8269
      %8689 = vmatprep.subr.bf16.mxu0 %v8276
      %8690 = vmatpush1.bf16.msra.mxu0 %v8275
      %8691 = vmatprep.subr.bf16.mxu0 %v8282
      %8692 = vmatpush1.bf16.msra.mxu0 %v8281
      %8693 = vmatprep.subr.bf16.mxu0 %v8288
      %8694 = vmatpush1.bf16.msra.mxu0 %v8287
      %8695 = vmatprep.mubr.bf16.mxu0 %v7108
      %8696 = vmatmul.mubr.bf16.gmra.mrb[0].mxu0 %v7107
      %v8697 = vpop.f32.mrb[0].mxu0
      %v8698 = vadd.f32 %v8657, %v8697
      %v8699 = vpop.f32.mrb[0].mxu0
      %v8700 = vadd.f32 %v8659, %v8699
      %v8701 = vpop.f32.mrb[0].mxu0
      %v8702 = vpop.f32.mrb[0].mxu0
      %8703 = vdwg.mxu0
      %8704 = vmatprep.subr.bf16.mxu0 %v8008
      %8705 = vmatpush1.bf16.msra.mxu0 %v8007
      %8706 = vmatprep.subr.bf16.mxu0 %v8014
      %8707 = vmatpush1.bf16.msra.mxu0 %v8013
      %8708 = vmatprep.subr.bf16.mxu0 %v8020
      %8709 = vmatpush1.bf16.msra.mxu0 %v8019
      %8710 = vmatprep.subr.bf16.mxu0 %v8026
      %8711 = vmatpush1.bf16.msra.mxu0 %v8025
      %8712 = vmatprep.subr.bf16.mxu0 %v8032
      %8713 = vmatpush1.bf16.msra.mxu0 %v8031
      %8714 = vmatprep.subr.bf16.mxu0 %v8038
      %8715 = vmatpush1.bf16.msra.mxu0 %v8037
      %8716 = vmatprep.subr.bf16.mxu0 %v8044
      %8717 = vmatpush1.bf16.msra.mxu0 %v8043
      %8718 = vmatprep.subr.bf16.mxu0 %v8050
      %8719 = vmatpush1.bf16.msra.mxu0 %v8049
      %8720 = vmatprep.subr.bf16.mxu0 %v8056
      %8721 = vmatpush1.bf16.msra.mxu0 %v8055
      %8722 = vmatprep.subr.bf16.mxu0 %v8062
      %8723 = vmatpush1.bf16.msra.mxu0 %v8061
      %8724 = vmatprep.subr.bf16.mxu0 %v8068
      %8725 = vmatpush1.bf16.msra.mxu0 %v8067
      %8726 = vmatprep.subr.bf16.mxu0 %v8074
      %8727 = vmatpush1.bf16.msra.mxu0 %v8073
      %8728 = vmatprep.subr.bf16.mxu0 %v8080
      %8729 = vmatpush1.bf16.msra.mxu0 %v8079
      %8730 = vmatprep.subr.bf16.mxu0 %v8086
      %8731 = vmatpush1.bf16.msra.mxu0 %v8085
      %8732 = vmatprep.subr.bf16.mxu0 %v8092
      %8733 = vmatpush1.bf16.msra.mxu0 %v8091
      %8734 = vmatprep.subr.bf16.mxu0 %v8098
      %8735 = vmatpush1.bf16.msra.mxu0 %v8097
      %8736 = vmatprep.mubr.bf16.mxu0 %v7104
      %8737 = vmatmul.mubr.bf16.gmra.mrb[0].mxu0 %v7103
      %v8738 = vpop.f32.mrb[0].mxu0
      %v8739 = vadd.f32 %v7122, %v8738
      %v8740 = vpop.f32.mrb[0].mxu0
      %v8741 = vadd.f32 %v7126, %v8740
      %v8742 = vpop.f32.mrb[0].mxu0
      %v8743 = vpop.f32.mrb[0].mxu0
      %8744 = vdwg.mxu0
      %8745 = vmatprep.subr.bf16.mxu0 %v8104
      %8746 = vmatpush1.bf16.msra.mxu0 %v8103
      %8747 = vmatprep.subr.bf16.mxu0 %v8110
      %8748 = vmatpush1.bf16.msra.mxu0 %v8109
      %8749 = vmatprep.subr.bf16.mxu0 %v8116
      %8750 = vmatpush1.bf16.msra.mxu0 %v8115
      %8751 = vmatprep.subr.bf16.mxu0 %v8122
      %8752 = vmatpush1.bf16.msra.mxu0 %v8121
      %8753 = vmatprep.subr.bf16.mxu0 %v8128
      %8754 = vmatpush1.bf16.msra.mxu0 %v8127
      %8755 = vmatprep.subr.bf16.mxu0 %v8134
      %8756 = vmatpush1.bf16.msra.mxu0 %v8133
      %8757 = vmatprep.subr.bf16.mxu0 %v8140
      %8758 = vmatpush1.bf16.msra.mxu0 %v8139
      %8759 = vmatprep.subr.bf16.mxu0 %v8146
      %8760 = vmatpush1.bf16.msra.mxu0 %v8145
      %8761 = vmatprep.subr.bf16.mxu0 %v8152
      %8762 = vmatpush1.bf16.msra.mxu0 %v8151
      %8763 = vmatprep.subr.bf16.mxu0 %v8158
      %8764 = vmatpush1.bf16.msra.mxu0 %v8157
      %8765 = vmatprep.subr.bf16.mxu0 %v8164
      %8766 = vmatpush1.bf16.msra.mxu0 %v8163
      %8767 = vmatprep.subr.bf16.mxu0 %v8170
      %8768 = vmatpush1.bf16.msra.mxu0 %v8169
      %8769 = vmatprep.subr.bf16.mxu0 %v8176
      %8770 = vmatpush1.bf16.msra.mxu0 %v8175
      %8771 = vmatprep.subr.bf16.mxu0 %v8182
      %8772 = vmatpush1.bf16.msra.mxu0 %v8181
      %8773 = vmatprep.subr.bf16.mxu0 %v8188
      %8774 = vmatpush1.bf16.msra.mxu0 %v8187
      %8775 = vmatprep.subr.bf16.mxu0 %v8194
      %8776 = vmatpush1.bf16.msra.mxu0 %v8193
      %8777 = vmatprep.mubr.bf16.mxu0 %v7106
      %8778 = vmatmul.mubr.bf16.gmra.mrb[0].mxu0 %v7105
      %v8779 = vpop.f32.mrb[0].mxu0
      %v8780 = vadd.f32 %v8739, %v8779
      %v8781 = vpop.f32.mrb[0].mxu0
      %v8782 = vadd.f32 %v8741, %v8781
      %v8783 = vpop.f32.mrb[0].mxu0
      %v8784 = vpop.f32.mrb[0].mxu0
      %8785 = vdwg.mxu0
      %8786 = vmatprep.subr.bf16.mxu0 %v8200
      %8787 = vmatpush1.bf16.msra.mxu0 %v8199
      %8788 = vmatprep.subr.bf16.mxu0 %v8206
      %8789 = vmatpush1.bf16.msra.mxu0 %v8205
      %8790 = vmatprep.subr.bf16.mxu0 %v8212
      %8791 = vmatpush1.bf16.msra.mxu0 %v8211
      %8792 = vmatprep.subr.bf16.mxu0 %v8218
      %8793 = vmatpush1.bf16.msra.mxu0 %v8217
      %8794 = vmatprep.subr.bf16.mxu0 %v8224
      %8795 = vmatpush1.bf16.msra.mxu0 %v8223
      %8796 = vmatprep.subr.bf16.mxu0 %v8230
      %8797 = vmatpush1.bf16.msra.mxu0 %v8229
      %8798 = vmatprep.subr.bf16.mxu0 %v8236
      %8799 = vmatpush1.bf16.msra.mxu0 %v8235
      %8800 = vmatprep.subr.bf16.mxu0 %v8242
      %8801 = vmatpush1.bf16.msra.mxu0 %v8241
      %8802 = vmatprep.subr.bf16.mxu0 %v8248
      %8803 = vmatpush1.bf16.msra.mxu0 %v8247
      %8804 = vmatprep.subr.bf16.mxu0 %v8254
      %8805 = vmatpush1.bf16.msra.mxu0 %v8253
      %8806 = vmatprep.subr.bf16.mxu0 %v8260
      %8807 = vmatpush1.bf16.msra.mxu0 %v8259
      %8808 = vmatprep.subr.bf16.mxu0 %v8266
      %8809 = vmatpush1.bf16.msra.mxu0 %v8265
      %8810 = vmatprep.subr.bf16.mxu0 %v8272
      %8811 = vmatpush1.bf16.msra.mxu0 %v8271
      %8812 = vmatprep.subr.bf16.mxu0 %v8278
      %8813 = vmatpush1.bf16.msra.mxu0 %v8277
      %8814 = vmatprep.subr.bf16.mxu0 %v8284
      %8815 = vmatpush1.bf16.msra.mxu0 %v8283
      %8816 = vmatprep.subr.bf16.mxu0 %v8290
      %8817 = vmatpush1.bf16.msra.mxu0 %v8289
      %8818 = vmatprep.mubr.bf16.mxu0 %v7108
      %8819 = vmatmul.mubr.bf16.gmra.mrb[0].mxu0 %v7107
      %v8820 = vpop.f32.mrb[0].mxu0
      %v8821 = vadd.f32 %v8780, %v8820
      %v8822 = vpop.f32.mrb[0].mxu0
      %v8823 = vadd.f32 %v8782, %v8822
      %v8824 = vpop.f32.mrb[0].mxu0
      %v8825 = vpop.f32.mrb[0].mxu0
      %8826 = vdwg.mxu0
      %8827 = vmatprep.subr.bf16.mxu0 %v8010
      %8828 = vmatpush1.bf16.msra.mxu0 %v8009
      %8829 = vmatprep.subr.bf16.mxu0 %v8016
      %8830 = vmatpush1.bf16.msra.mxu0 %v8015
      %8831 = vmatprep.subr.bf16.mxu0 %v8022
      %8832 = vmatpush1.bf16.msra.mxu0 %v8021
      %8833 = vmatprep.subr.bf16.mxu0 %v8028
      %8834 = vmatpush1.bf16.msra.mxu0 %v8027
      %8835 = vmatprep.subr.bf16.mxu0 %v8034
      %8836 = vmatpush1.bf16.msra.mxu0 %v8033
      %8837 = vmatprep.subr.bf16.mxu0 %v8040
      %8838 = vmatpush1.bf16.msra.mxu0 %v8039
      %8839 = vmatprep.subr.bf16.mxu0 %v8046
      %8840 = vmatpush1.bf16.msra.mxu0 %v8045
      %8841 = vmatprep.subr.bf16.mxu0 %v8052
      %8842 = vmatpush1.bf16.msra.mxu0 %v8051
      %8843 = vmatprep.subr.bf16.mxu0 %v8058
      %8844 = vmatpush1.bf16.msra.mxu0 %v8057
      %8845 = vmatprep.subr.bf16.mxu0 %v8064
      %8846 = vmatpush1.bf16.msra.mxu0 %v8063
      %8847 = vmatprep.subr.bf16.mxu0 %v8070
      %8848 = vmatpush1.bf16.msra.mxu0 %v8069
      %8849 = vmatprep.subr.bf16.mxu0 %v8076
      %8850 = vmatpush1.bf16.msra.mxu0 %v8075
      %8851 = vmatprep.subr.bf16.mxu0 %v8082
      %8852 = vmatpush1.bf16.msra.mxu0 %v8081
      %8853 = vmatprep.subr.bf16.mxu0 %v8088
      %8854 = vmatpush1.bf16.msra.mxu0 %v8087
      %8855 = vmatprep.subr.bf16.mxu0 %v8094
      %8856 = vmatpush1.bf16.msra.mxu0 %v8093
      %8857 = vmatprep.subr.bf16.mxu0 %v8100
      %8858 = vmatpush1.bf16.msra.mxu0 %v8099
      %8859 = vmatprep.mubr.bf16.mxu0 %v7104
      %8860 = vmatmul.mubr.bf16.gmra.mrb[0].mxu0 %v7103
      %v8861 = vpop.f32.mrb[0].mxu0
      %v8862 = vadd.f32 %v7130, %v8861
      %v8863 = vpop.f32.mrb[0].mxu0
      %v8864 = vadd.f32 %v7134, %v8863
      %v8865 = vpop.f32.mrb[0].mxu0
      %v8866 = vpop.f32.mrb[0].mxu0
      %8867 = vdwg.mxu0
      %8868 = vmatprep.subr.bf16.mxu0 %v8106
      %8869 = vmatpush1.bf16.msra.mxu0 %v8105
      %8870 = vmatprep.subr.bf16.mxu0 %v8112
      %8871 = vmatpush1.bf16.msra.mxu0 %v8111
      %8872 = vmatprep.subr.bf16.mxu0 %v8118
      %8873 = vmatpush1.bf16.msra.mxu0 %v8117
      %8874 = vmatprep.subr.bf16.mxu0 %v8124
      %8875 = vmatpush1.bf16.msra.mxu0 %v8123
      %8876 = vmatprep.subr.bf16.mxu0 %v8130
      %8877 = vmatpush1.bf16.msra.mxu0 %v8129
      %8878 = vmatprep.subr.bf16.mxu0 %v8136
      %8879 = vmatpush1.bf16.msra.mxu0 %v8135
      %8880 = vmatprep.subr.bf16.mxu0 %v8142
      %8881 = vmatpush1.bf16.msra.mxu0 %v8141
      %8882 = vmatprep.subr.bf16.mxu0 %v8148
      %8883 = vmatpush1.bf16.msra.mxu0 %v8147
      %8884 = vmatprep.subr.bf16.mxu0 %v8154
      %8885 = vmatpush1.bf16.msra.mxu0 %v8153
      %8886 = vmatprep.subr.bf16.mxu0 %v8160
      %8887 = vmatpush1.bf16.msra.mxu0 %v8159
      %8888 = vmatprep.subr.bf16.mxu0 %v8166
      %8889 = vmatpush1.bf16.msra.mxu0 %v8165
      %8890 = vmatprep.subr.bf16.mxu0 %v8172
      %8891 = vmatpush1.bf16.msra.mxu0 %v8171
      %8892 = vmatprep.subr.bf16.mxu0 %v8178
      %8893 = vmatpush1.bf16.msra.mxu0 %v8177
      %8894 = vmatprep.subr.bf16.mxu0 %v8184
      %8895 = vmatpush1.bf16.msra.mxu0 %v8183
      %8896 = vmatprep.subr.bf16.mxu0 %v8190
      %8897 = vmatpush1.bf16.msra.mxu0 %v8189
      %8898 = vmatprep.subr.bf16.mxu0 %v8196
      %8899 = vmatpush1.bf16.msra.mxu0 %v8195
      %8900 = vmatprep.mubr.bf16.mxu0 %v7106
      %8901 = vmatmul.mubr.bf16.gmra.mrb[0].mxu0 %v7105
      %v8902 = vpop.f32.mrb[0].mxu0
      %v8903 = vadd.f32 %v8862, %v8902
      %v8904 = vpop.f32.mrb[0].mxu0
      %v8905 = vadd.f32 %v8864, %v8904
      %v8906 = vpop.f32.mrb[0].mxu0
      %v8907 = vpop.f32.mrb[0].mxu0
      %8908 = vdwg.mxu0
      %8909 = vmatprep.subr.bf16.mxu0 %v8202
      %8910 = vmatpush1.bf16.msra.mxu0 %v8201
      %8911 = vmatprep.subr.bf16.mxu0 %v8208
      %8912 = vmatpush1.bf16.msra.mxu0 %v8207
      %8913 = vmatprep.subr.bf16.mxu0 %v8214
      %8914 = vmatpush1.bf16.msra.mxu0 %v8213
      %8915 = vmatprep.subr.bf16.mxu0 %v8220
      %8916 = vmatpush1.bf16.msra.mxu0 %v8219
      %8917 = vmatprep.subr.bf16.mxu0 %v8226
      %8918 = vmatpush1.bf16.msra.mxu0 %v8225
      %8919 = vmatprep.subr.bf16.mxu0 %v8232
      %8920 = vmatpush1.bf16.msra.mxu0 %v8231
      %8921 = vmatprep.subr.bf16.mxu0 %v8238
      %8922 = vmatpush1.bf16.msra.mxu0 %v8237
      %8923 = vmatprep.subr.bf16.mxu0 %v8244
      %8924 = vmatpush1.bf16.msra.mxu0 %v8243
      %8925 = vmatprep.subr.bf16.mxu0 %v8250
      %8926 = vmatpush1.bf16.msra.mxu0 %v8249
      %8927 = vmatprep.subr.bf16.mxu0 %v8256
      %8928 = vmatpush1.bf16.msra.mxu0 %v8255
      %8929 = vmatprep.subr.bf16.mxu0 %v8262
      %8930 = vmatpush1.bf16.msra.mxu0 %v8261
      %8931 = vmatprep.subr.bf16.mxu0 %v8268
      %8932 = vmatpush1.bf16.msra.mxu0 %v8267
      %8933 = vmatprep.subr.bf16.mxu0 %v8274
      %8934 = vmatpush1.bf16.msra.mxu0 %v8273
      %8935 = vmatprep.subr.bf16.mxu0 %v8280
      %8936 = vmatpush1.bf16.msra.mxu0 %v8279
      %8937 = vmatprep.subr.bf16.mxu0 %v8286
      %8938 = vmatpush1.bf16.msra.mxu0 %v8285
      %8939 = vmatprep.subr.bf16.mxu0 %v8292
      %8940 = vmatpush1.bf16.msra.mxu0 %v8291
      %8941 = vmatprep.mubr.bf16.mxu0 %v7108
      %8942 = vmatmul.mubr.bf16.gmra.mrb[0].mxu0 %v7107
      %v8943 = vpop.f32.mrb[0].mxu0
      %v8944 = vadd.f32 %v8903, %v8943
      %v8945 = vpop.f32.mrb[0].mxu0
      %v8946 = vadd.f32 %v8905, %v8945
      %v8947 = vpop.f32.mrb[0].mxu0
      %v8948 = vpop.f32.mrb[0].mxu0
      %8949 = vdwg.mxu0
      %v8950 = vmax.f32 %v8698, 0.0
      %v8951 = vmax.f32 %v8700, 0.0
      %v8952 = vmax.f32 %v8821, 0.0
      %v8953 = vmax.f32 %v8823, 0.0
      %v8954 = vmax.f32 %v8944, 0.0
      %v8955 = vmax.f32 %v8946, 0.0
      %v8956 = vld [vmem:[%s9] sm:$0xf]
      %v8957 = vld [vmem:[%s9 + $0x4] sm:$0xf]
      %v8958 = vld [vmem:[%s9 + $0x8] sm:$0xf]
      %v8959 = vld [vmem:[%s9 + $0xc] sm:$0xf]
      %v8960 = vld [vmem:[%s9 + $0x10] sm:$0xf]
      %v8961 = vld [vmem:[%s9 + $0x14] sm:$0xf]
      %v8962 = vld [vmem:[%s9 + $0x18] sm:$0xf]
      %v8963 = vld [vmem:[%s9 + $0x1c] sm:$0xf]
      %v8964 = vld [vmem:[%s9 + $0x20] sm:$0xf]
      %v8965 = vld [vmem:[%s9 + $0x24] sm:$0xf]
      %v8966 = vld [vmem:[%s9 + $0x28] sm:$0xf]
      %v8967 = vld [vmem:[%s9 + $0x2c] sm:$0xf]
      %v8968 = vld [vmem:[%s9 + $0x30] sm:$0xf]
      %v8969 = vld [vmem:[%s9 + $0x34] sm:$0xf]
      %v8970 = vld [vmem:[%s9 + $0x38] sm:$0xf]
      %v8971 = vld [vmem:[%s9 + $0x3c] sm:$0xf]
      %v8972 = vld [vmem:[%s9 + $0x40] sm:$0xf]
      %v8973 = vld [vmem:[%s9 + $0x44] sm:$0xf]
      %v8974 = vld [vmem:[%s9 + $0x48] sm:$0xf]
      %v8975 = vld [vmem:[%s9 + $0x4c] sm:$0xf]
      %v8976 = vld [vmem:[%s9 + $0x50] sm:$0xf]
      %v8977 = vld [vmem:[%s9 + $0x54] sm:$0xf]
      %v8978 = vld [vmem:[%s9 + $0x58] sm:$0xf]
      %v8979 = vld [vmem:[%s9 + $0x5c] sm:$0xf]
      %v8980 = vld [vmem:[%s9 + $0x60] sm:$0xf]
      %v8981 = vld [vmem:[%s9 + $0x64] sm:$0xf]
      %v8982 = vld [vmem:[%s9 + $0x68] sm:$0xf]
      %v8983 = vld [vmem:[%s9 + $0x6c] sm:$0xf]
      %v8984 = vld [vmem:[%s9 + $0x70] sm:$0xf]
      %v8985 = vld [vmem:[%s9 + $0x74] sm:$0xf]
      %v8986 = vld [vmem:[%s9 + $0x78] sm:$0xf]
      %v8987 = vld [vmem:[%s9 + $0x7c] sm:$0xf]
      %v8988 = vld [vmem:[%s9 + $0x80] sm:$0xf]
      %v8989 = vld [vmem:[%s9 + $0x84] sm:$0xf]
      %v8990 = vld [vmem:[%s9 + $0x88] sm:$0xf]
      %v8991 = vld [vmem:[%s9 + $0x8c] sm:$0xf]
      %v8992 = vld [vmem:[%s9 + $0x90] sm:$0xf]
      %v8993 = vld [vmem:[%s9 + $0x94] sm:$0xf]
      %v8994 = vld [vmem:[%s9 + $0x98] sm:$0xf]
      %v8995 = vld [vmem:[%s9 + $0x9c] sm:$0xf]
      %v8996 = vld [vmem:[%s9 + $0xa0] sm:$0xf]
      %v8997 = vld [vmem:[%s9 + $0xa4] sm:$0xf]
      %v8998 = vld [vmem:[%s9 + $0xa8] sm:$0xf]
      %v8999 = vld [vmem:[%s9 + $0xac] sm:$0xf]
      %v9000 = vld [vmem:[%s9 + $0xb0] sm:$0xf]
      %v9001 = vld [vmem:[%s9 + $0xb4] sm:$0xf]
      %v9002 = vld [vmem:[%s9 + $0xb8] sm:$0xf]
      %v9003 = vld [vmem:[%s9 + $0xbc] sm:$0xf]
      %v9004 = vld [vmem:[%s9 + $0xc0] sm:$0xf]
      %v9005 = vld [vmem:[%s9 + $0xc4] sm:$0xf]
      %v9006 = vld [vmem:[%s9 + $0xc8] sm:$0xf]
      %v9007 = vld [vmem:[%s9 + $0xcc] sm:$0xf]
      %v9008 = vld [vmem:[%s9 + $0xd0] sm:$0xf]
      %v9009 = vld [vmem:[%s9 + $0xd4] sm:$0xf]
      %v9010 = vld [vmem:[%s9 + $0xd8] sm:$0xf]
      %v9011 = vld [vmem:[%s9 + $0xdc] sm:$0xf]
      %v9012 = vld [vmem:[%s9 + $0xe0] sm:$0xf]
      %v9013 = vld [vmem:[%s9 + $0xe4] sm:$0xf]
      %v9014 = vld [vmem:[%s9 + $0xe8] sm:$0xf]
      %v9015 = vld [vmem:[%s9 + $0xec] sm:$0xf]
      %v9016 = vld [vmem:[%s9 + $0xf0] sm:$0xf]
      %v9017 = vld [vmem:[%s9 + $0xf4] sm:$0xf]
      %v9018 = vld [vmem:[%s9 + $0xf8] sm:$0xf]
      %v9019 = vld [vmem:[%s9 + $0xfc] sm:$0xf]
      %v9020 = vld [vmem:[%s9 + $0x100] sm:$0xf]
      %v9021 = vld [vmem:[%s9 + $0x104] sm:$0xf]
      %v9022 = vld [vmem:[%s9 + $0x108] sm:$0xf]
      %v9023 = vld [vmem:[%s9 + $0x10c] sm:$0xf]
      %v9024 = vld [vmem:[%s9 + $0x110] sm:$0xf]
      %v9025 = vld [vmem:[%s9 + $0x114] sm:$0xf]
      %v9026 = vld [vmem:[%s9 + $0x118] sm:$0xf]
      %v9027 = vld [vmem:[%s9 + $0x11c] sm:$0xf]
      %v9028 = vld [vmem:[%s9 + $0x120] sm:$0xf]
      %v9029 = vld [vmem:[%s9 + $0x124] sm:$0xf]
      %v9030 = vld [vmem:[%s9 + $0x128] sm:$0xf]
      %v9031 = vld [vmem:[%s9 + $0x12c] sm:$0xf]
      %v9032 = vld [vmem:[%s9 + $0x130] sm:$0xf]
      %v9033 = vld [vmem:[%s9 + $0x134] sm:$0xf]
      %v9034 = vld [vmem:[%s9 + $0x138] sm:$0xf]
      %v9035 = vld [vmem:[%s9 + $0x13c] sm:$0xf]
      %v9036 = vld [vmem:[%s9 + $0x140] sm:$0xf]
      %v9037 = vld [vmem:[%s9 + $0x144] sm:$0xf]
      %v9038 = vld [vmem:[%s9 + $0x148] sm:$0xf]
      %v9039 = vld [vmem:[%s9 + $0x14c] sm:$0xf]
      %v9040 = vld [vmem:[%s9 + $0x150] sm:$0xf]
      %v9041 = vld [vmem:[%s9 + $0x154] sm:$0xf]
      %v9042 = vld [vmem:[%s9 + $0x158] sm:$0xf]
      %v9043 = vld [vmem:[%s9 + $0x15c] sm:$0xf]
      %v9044 = vld [vmem:[%s9 + $0x160] sm:$0xf]
      %v9045 = vld [vmem:[%s9 + $0x164] sm:$0xf]
      %v9046 = vld [vmem:[%s9 + $0x168] sm:$0xf]
      %v9047 = vld [vmem:[%s9 + $0x16c] sm:$0xf]
      %v9048 = vld [vmem:[%s9 + $0x170] sm:$0xf]
      %v9049 = vld [vmem:[%s9 + $0x174] sm:$0xf]
      %v9050 = vld [vmem:[%s9 + $0x178] sm:$0xf]
      %v9051 = vld [vmem:[%s9 + $0x17c] sm:$0xf]
      %v9052 = vpack.c.bf16 %v8950, %v8950
      %v9053 = vpack.c.bf16 %v8951, %v8951
      %v9054 = vpack.c.bf16 %v8952, %v8952
      %v9055 = vpack.c.bf16 %v8953, %v8953
      %v9056 = vpack.c.bf16 %v8954, %v8954
      %v9057 = vpack.c.bf16 %v8955, %v8955
      %v9058 = vld [vmem:[%s10] sm:$0x1]
      %v9060 = vlaneseq
      %v9061 = vshrl.u32 %v9060, 7
      %v9062 = vsub.s32 0, %v9061
      %v9063 = vrot.slane %v9058, %v9062
      %v9161 = vunpack.c.l.b16 %v8956
      %v9162 = vunpack.c.l.b16 %v8957
      %v9163 = vunpack.c.l.b16 %v8958
      %v9164 = vunpack.c.l.b16 %v8959
      %v9165 = vunpack.c.l.b16 %v8960
      %v9166 = vunpack.c.l.b16 %v8961
      %v9167 = vunpack.c.l.b16 %v8962
      %v9168 = vunpack.c.l.b16 %v8963
      %v9169 = vunpack.c.l.b16 %v8964
      %v9170 = vunpack.c.l.b16 %v8965
      %v9171 = vunpack.c.l.b16 %v8966
      %v9172 = vunpack.c.l.b16 %v8967
      %v9173 = vunpack.c.l.b16 %v8968
      %v9174 = vunpack.c.l.b16 %v8969
      %v9175 = vunpack.c.l.b16 %v8970
      %v9176 = vunpack.c.l.b16 %v8971
      %v9177 = vunpack.c.l.b16 %v8972
      %v9178 = vunpack.c.l.b16 %v8973
      %v9179 = vunpack.c.l.b16 %v8974
      %v9180 = vunpack.c.l.b16 %v8975
      %v9181 = vunpack.c.l.b16 %v8976
      %v9182 = vunpack.c.l.b16 %v8977
      %v9183 = vunpack.c.l.b16 %v8978
      %v9184 = vunpack.c.l.b16 %v8979
      %v9185 = vunpack.c.l.b16 %v8980
      %v9186 = vunpack.c.l.b16 %v8981
      %v9187 = vunpack.c.l.b16 %v8982
      %v9188 = vunpack.c.l.b16 %v8983
      %v9189 = vunpack.c.l.b16 %v8984
      %v9190 = vunpack.c.l.b16 %v8985
      %v9191 = vunpack.c.l.b16 %v8986
      %v9192 = vunpack.c.l.b16 %v8987
      %v9193 = vunpack.c.l.b16 %v8988
      %v9194 = vunpack.c.l.b16 %v8989
      %v9195 = vunpack.c.l.b16 %v8990
      %v9196 = vunpack.c.l.b16 %v8991
      %v9197 = vunpack.c.l.b16 %v8992
      %v9198 = vunpack.c.l.b16 %v8993
      %v9199 = vunpack.c.l.b16 %v8994
      %v9200 = vunpack.c.l.b16 %v8995
      %v9201 = vunpack.c.l.b16 %v8996
      %v9202 = vunpack.c.l.b16 %v8997
      %v9203 = vunpack.c.l.b16 %v8998
      %v9204 = vunpack.c.l.b16 %v8999
      %v9205 = vunpack.c.l.b16 %v9000
      %v9206 = vunpack.c.l.b16 %v9001
      %v9207 = vunpack.c.l.b16 %v9002
      %v9208 = vunpack.c.l.b16 %v9003
      %v9209 = vunpack.c.l.b16 %v9004
      %v9210 = vunpack.c.l.b16 %v9005
      %v9211 = vunpack.c.l.b16 %v9006
      %v9212 = vunpack.c.l.b16 %v9007
      %v9213 = vunpack.c.l.b16 %v9008
      %v9214 = vunpack.c.l.b16 %v9009
      %v9215 = vunpack.c.l.b16 %v9010
      %v9216 = vunpack.c.l.b16 %v9011
      %v9217 = vunpack.c.l.b16 %v9012
      %v9218 = vunpack.c.l.b16 %v9013
      %v9219 = vunpack.c.l.b16 %v9014
      %v9220 = vunpack.c.l.b16 %v9015
      %v9221 = vunpack.c.l.b16 %v9016
      %v9222 = vunpack.c.l.b16 %v9017
      %v9223 = vunpack.c.l.b16 %v9018
      %v9224 = vunpack.c.l.b16 %v9019
      %v9225 = vunpack.c.l.b16 %v9020
      %v9226 = vunpack.c.l.b16 %v9021
      %v9227 = vunpack.c.l.b16 %v9022
      %v9228 = vunpack.c.l.b16 %v9023
      %v9229 = vunpack.c.l.b16 %v9024
      %v9230 = vunpack.c.l.b16 %v9025
      %v9231 = vunpack.c.l.b16 %v9026
      %v9232 = vunpack.c.l.b16 %v9027
      %v9233 = vunpack.c.l.b16 %v9028
      %v9234 = vunpack.c.l.b16 %v9029
      %v9235 = vunpack.c.l.b16 %v9030
      %v9236 = vunpack.c.l.b16 %v9031
      %v9237 = vunpack.c.l.b16 %v9032
      %v9238 = vunpack.c.l.b16 %v9033
      %v9239 = vunpack.c.l.b16 %v9034
      %v9240 = vunpack.c.l.b16 %v9035
      %v9241 = vunpack.c.l.b16 %v9036
      %v9242 = vunpack.c.l.b16 %v9037
      %v9243 = vunpack.c.l.b16 %v9038
      %v9244 = vunpack.c.l.b16 %v9039
      %v9245 = vunpack.c.l.b16 %v9040
      %v9246 = vunpack.c.l.b16 %v9041
      %v9247 = vunpack.c.l.b16 %v9042
      %v9248 = vunpack.c.l.b16 %v9043
      %v9249 = vunpack.c.l.b16 %v9044
      %v9250 = vunpack.c.l.b16 %v9045
      %v9251 = vunpack.c.l.b16 %v9046
      %v9252 = vunpack.c.l.b16 %v9047
      %v9253 = vunpack.c.l.b16 %v9048
      %v9254 = vunpack.c.l.b16 %v9049
      %v9255 = vunpack.c.l.b16 %v9050
      %v9256 = vunpack.c.l.b16 %v9051
      %v9257 = vpack.c.b16 %v9162, %v9161
      %v9258 = vpack.c.b16 %v9164, %v9163
      %v9259 = vpack.c.b16 %v9166, %v9165
      %v9260 = vpack.c.b16 %v9168, %v9167
      %v9261 = vpack.c.b16 %v9170, %v9169
      %v9262 = vpack.c.b16 %v9172, %v9171
      %v9263 = vpack.c.b16 %v9174, %v9173
      %v9264 = vpack.c.b16 %v9176, %v9175
      %v9265 = vpack.c.b16 %v9178, %v9177
      %v9266 = vpack.c.b16 %v9180, %v9179
      %v9267 = vpack.c.b16 %v9182, %v9181
      %v9268 = vpack.c.b16 %v9184, %v9183
      %v9269 = vpack.c.b16 %v9186, %v9185
      %v9270 = vpack.c.b16 %v9188, %v9187
      %v9271 = vpack.c.b16 %v9190, %v9189
      %v9272 = vpack.c.b16 %v9192, %v9191
      %v9273 = vpack.c.b16 %v9194, %v9193
      %v9274 = vpack.c.b16 %v9196, %v9195
      %v9275 = vpack.c.b16 %v9198, %v9197
      %v9276 = vpack.c.b16 %v9200, %v9199
      %v9277 = vpack.c.b16 %v9202, %v9201
      %v9278 = vpack.c.b16 %v9204, %v9203
      %v9279 = vpack.c.b16 %v9206, %v9205
      %v9280 = vpack.c.b16 %v9208, %v9207
      %v9281 = vpack.c.b16 %v9210, %v9209
      %v9282 = vpack.c.b16 %v9212, %v9211
      %v9283 = vpack.c.b16 %v9214, %v9213
      %v9284 = vpack.c.b16 %v9216, %v9215
      %v9285 = vpack.c.b16 %v9218, %v9217
      %v9286 = vpack.c.b16 %v9220, %v9219
      %v9287 = vpack.c.b16 %v9222, %v9221
      %v9288 = vpack.c.b16 %v9224, %v9223
      %v9289 = vpack.c.b16 %v9226, %v9225
      %v9290 = vpack.c.b16 %v9228, %v9227
      %v9291 = vpack.c.b16 %v9230, %v9229
      %v9292 = vpack.c.b16 %v9232, %v9231
      %v9293 = vpack.c.b16 %v9234, %v9233
      %v9294 = vpack.c.b16 %v9236, %v9235
      %v9295 = vpack.c.b16 %v9238, %v9237
      %v9296 = vpack.c.b16 %v9240, %v9239
      %v9297 = vpack.c.b16 %v9242, %v9241
      %v9298 = vpack.c.b16 %v9244, %v9243
      %v9299 = vpack.c.b16 %v9246, %v9245
      %v9300 = vpack.c.b16 %v9248, %v9247
      %v9301 = vpack.c.b16 %v9250, %v9249
      %v9302 = vpack.c.b16 %v9252, %v9251
      %v9303 = vpack.c.b16 %v9254, %v9253
      %v9304 = vpack.c.b16 %v9256, %v9255
      %9353 = vmatprep.subr.bf16.mxu0 0
      %9354 = vmatpush1.bf16.msra.mxu0 %v9257
      %9355 = vmatprep.subr.bf16.mxu0 0
      %9356 = vmatpush1.bf16.msra.mxu0 %v9258
      %9357 = vmatprep.subr.bf16.mxu0 0
      %9358 = vmatpush1.bf16.msra.mxu0 %v9259
      %9359 = vmatprep.subr.bf16.mxu0 0
      %9360 = vmatpush1.bf16.msra.mxu0 %v9260
      %9361 = vmatprep.subr.bf16.mxu0 0
      %9362 = vmatpush1.bf16.msra.mxu0 %v9261
      %9363 = vmatprep.subr.bf16.mxu0 0
      %9364 = vmatpush1.bf16.msra.mxu0 %v9262
      %9365 = vmatprep.subr.bf16.mxu0 0
      %9366 = vmatpush1.bf16.msra.mxu0 %v9263
      %9367 = vmatprep.subr.bf16.mxu0 0
      %9368 = vmatpush1.bf16.msra.mxu0 %v9264
      %9369 = vmatprep.subr.bf16.mxu0 0
      %9370 = vmatpush1.bf16.msra.mxu0 %v9265
      %9371 = vmatprep.subr.bf16.mxu0 0
      %9372 = vmatpush1.bf16.msra.mxu0 %v9266
      %9373 = vmatprep.subr.bf16.mxu0 0
      %9374 = vmatpush1.bf16.msra.mxu0 %v9267
      %9375 = vmatprep.subr.bf16.mxu0 0
      %9376 = vmatpush1.bf16.msra.mxu0 %v9268
      %9377 = vmatprep.subr.bf16.mxu0 0
      %9378 = vmatpush1.bf16.msra.mxu0 %v9269
      %9379 = vmatprep.subr.bf16.mxu0 0
      %9380 = vmatpush1.bf16.msra.mxu0 %v9270
      %9381 = vmatprep.subr.bf16.mxu0 0
      %9382 = vmatpush1.bf16.msra.mxu0 %v9271
      %9383 = vmatprep.subr.bf16.mxu0 0
      %9384 = vmatpush1.bf16.msra.mxu0 %v9272
      %9385 = vmatprep.mubr.bf16.mxu0 %v9053
      %9386 = vmatmul.mubr.bf16.gmra.mrb[0].mxu0 %v9052
      %v9387 = vpop.f32.mrb[0].mxu0
      %v9388 = vadd.f32 %v9063, %v9387
      %v9389 = vpop.f32.mrb[0].mxu0
      %v9390 = vpop.f32.mrb[0].mxu0
      %v9391 = vpop.f32.mrb[0].mxu0
      %9392 = vdwg.mxu0
      %9393 = vmatprep.subr.bf16.mxu0 0
      %9394 = vmatpush1.bf16.msra.mxu0 %v9273
      %9395 = vmatprep.subr.bf16.mxu0 0
      %9396 = vmatpush1.bf16.msra.mxu0 %v9274
      %9397 = vmatprep.subr.bf16.mxu0 0
      %9398 = vmatpush1.bf16.msra.mxu0 %v9275
      %9399 = vmatprep.subr.bf16.mxu0 0
      %9400 = vmatpush1.bf16.msra.mxu0 %v9276
      %9401 = vmatprep.subr.bf16.mxu0 0
      %9402 = vmatpush1.bf16.msra.mxu0 %v9277
      %9403 = vmatprep.subr.bf16.mxu0 0
      %9404 = vmatpush1.bf16.msra.mxu0 %v9278
      %9405 = vmatprep.subr.bf16.mxu0 0
      %9406 = vmatpush1.bf16.msra.mxu0 %v9279
      %9407 = vmatprep.subr.bf16.mxu0 0
      %9408 = vmatpush1.bf16.msra.mxu0 %v9280
      %9409 = vmatprep.subr.bf16.mxu0 0
      %9410 = vmatpush1.bf16.msra.mxu0 %v9281
      %9411 = vmatprep.subr.bf16.mxu0 0
      %9412 = vmatpush1.bf16.msra.mxu0 %v9282
      %9413 = vmatprep.subr.bf16.mxu0 0
      %9414 = vmatpush1.bf16.msra.mxu0 %v9283
      %9415 = vmatprep.subr.bf16.mxu0 0
      %9416 = vmatpush1.bf16.msra.mxu0 %v9284
      %9417 = vmatprep.subr.bf16.mxu0 0
      %9418 = vmatpush1.bf16.msra.mxu0 %v9285
      %9419 = vmatprep.subr.bf16.mxu0 0
      %9420 = vmatpush1.bf16.msra.mxu0 %v9286
      %9421 = vmatprep.subr.bf16.mxu0 0
      %9422 = vmatpush1.bf16.msra.mxu0 %v9287
      %9423 = vmatprep.subr.bf16.mxu0 0
      %9424 = vmatpush1.bf16.msra.mxu0 %v9288
      %9425 = vmatprep.mubr.bf16.mxu0 %v9055
      %9426 = vmatmul.mubr.bf16.gmra.mrb[0].mxu0 %v9054
      %v9427 = vpop.f32.mrb[0].mxu0
      %v9428 = vadd.f32 %v9388, %v9427
      %v9429 = vpop.f32.mrb[0].mxu0
      %v9430 = vpop.f32.mrb[0].mxu0
      %v9431 = vpop.f32.mrb[0].mxu0
      %9432 = vdwg.mxu0
      %9433 = vmatprep.subr.bf16.mxu0 0
      %9434 = vmatpush1.bf16.msra.mxu0 %v9289
      %9435 = vmatprep.subr.bf16.mxu0 0
      %9436 = vmatpush1.bf16.msra.mxu0 %v9290
      %9437 = vmatprep.subr.bf16.mxu0 0
      %9438 = vmatpush1.bf16.msra.mxu0 %v9291
      %9439 = vmatprep.subr.bf16.mxu0 0
      %9440 = vmatpush1.bf16.msra.mxu0 %v9292
      %9441 = vmatprep.subr.bf16.mxu0 0
      %9442 = vmatpush1.bf16.msra.mxu0 %v9293
      %9443 = vmatprep.subr.bf16.mxu0 0
      %9444 = vmatpush1.bf16.msra.mxu0 %v9294
      %9445 = vmatprep.subr.bf16.mxu0 0
      %9446 = vmatpush1.bf16.msra.mxu0 %v9295
      %9447 = vmatprep.subr.bf16.mxu0 0
      %9448 = vmatpush1.bf16.msra.mxu0 %v9296
      %9449 = vmatprep.subr.bf16.mxu0 0
      %9450 = vmatpush1.bf16.msra.mxu0 %v9297
      %9451 = vmatprep.subr.bf16.mxu0 0
      %9452 = vmatpush1.bf16.msra.mxu0 %v9298
      %9453 = vmatprep.subr.bf16.mxu0 0
      %9454 = vmatpush1.bf16.msra.mxu0 %v9299
      %9455 = vmatprep.subr.bf16.mxu0 0
      %9456 = vmatpush1.bf16.msra.mxu0 %v9300
      %9457 = vmatprep.subr.bf16.mxu0 0
      %9458 = vmatpush1.bf16.msra.mxu0 %v9301
      %9459 = vmatprep.subr.bf16.mxu0 0
      %9460 = vmatpush1.bf16.msra.mxu0 %v9302
      %9461 = vmatprep.subr.bf16.mxu0 0
      %9462 = vmatpush1.bf16.msra.mxu0 %v9303
      %9463 = vmatprep.subr.bf16.mxu0 0
      %9464 = vmatpush1.bf16.msra.mxu0 %v9304
      %9465 = vmatprep.mubr.bf16.mxu0 %v9057
      %9466 = vmatmul.mubr.bf16.gmra.mrb[0].mxu0 %v9056
      %v9467 = vpop.f32.mrb[0].mxu0
      %v9468 = vadd.f32 %v9428, %v9467
      %v9469 = vpop.f32.mrb[0].mxu0
      %v9470 = vpop.f32.mrb[0].mxu0
      %v9471 = vpop.f32.mrb[0].mxu0
      %9472 = vdwg.mxu0
      %9473 = vst [vmem:[%s384] sm:$0xff] %v9468
      %p9474 = scmp.lt.s32.totalorder %s22, 1
      %s9475 = scalar_select %p9474, %s22, 1
      %s9476 = smul.addr %s9475, 8
      %s9477 = scalar_lea.vmem %s11, %s9476
      // Predicated region
      $region65: #{_forward.1} parent=63 // pred_check
        %p9478 = pneg %p276
      $region66: #{_forward.1} parent=63 // pred_check_branch
        %9480 = sbr.rel (%p9478) target = $region68
      $region67: #{_forward.1} parent=63 // pred_region
        _
      $region68: #{_forward.1} parent=63 // pred_fallthru
        _
    $region64: #{_forward.1} parent=5 // pred_fallthru
      _
    %p9481 = scmp.le.s32.totalorder 2, %s17
    // Predicated region
    $region69: #{_forward.1} parent=5 // pred_check
      %p9482 = pneg %p9481
    $region70: #{_forward.1} parent=5 // pred_check_branch
      %9484 = sbr.rel (%p9482) target = $region72
    $region71: #{_forward.1} parent=5 // pred_region
      %s9485 = ssub.s32 %s17, 2
      // Predicated region
      $region73: #{_forward.1} parent=71 // pred_check
        %p9486 = pneg %p282
      $region74: #{_forward.1} parent=71 // pred_check_branch
        %9488 = sbr.rel (%p9486) target = $region76
      $region75: #{_forward.1} parent=71 // pred_region
        %p9489 = scmp.lt.s32.totalorder %s23, 1
        %s9490 = scalar_select %p9489, %s23, 1
        %s9491 = smul.addr %s9490, 8
        %s9492 = scalar_lea.vmem %s11, %s9491
      $region76: #{_forward.1} parent=71 // pred_fallthru
        _
    $region72: #{_forward.1} parent=5 // pred_fallthru
      _
  $region6: #{_forward.1} parent=0 // loop_footer
    %s21 = sadd.s32 1, %s17
  $region7: #{_forward.1} parent=0 // loop_footer_branch
    %16 = sbr.rel target = $region3
  $region8: #{_forward.1} parent=0 // loop_exit
    _

</llo_original>
